<compile_context>
chip_gen: v6e
topology: v6e:2x2x1
jax: 0.10.0
libtpu: 0.0.40
codegen_flags: <defaults>
</compile_context>

<pallas_src>
import functools

import jax
import jax.numpy as jnp
from jax.experimental import pallas as pl
from jax.experimental.pallas import tpu as pltpu


def _round_up(x, m):
    return (x + m - 1) // m * m


def _pad2d(a, rows, cols):
    return jnp.pad(a, ((0, rows - a.shape[0]), (0, cols - a.shape[1])))


def _pick_tile_m(m, cap=256, unit=16):
    """Largest multiple-of-`unit` tile <= cap that divides round_up(m, unit)."""
    mp = _round_up(m, unit)
    best = unit
    t = unit
    while t <= min(cap, mp):
        if mp % t == 0:
            best = t
        t += unit
    return best


# ----------------------------------------------------------------------------
# Pallas kernel 1: tiled  out = act(x @ w + c)   (bf16 in, f32 acc, bf16 out)
# ----------------------------------------------------------------------------
def _mm_bias_act_k1_kernel(x_ref, w_ref, c_ref, o_ref, *, relu):
    # Single K step: no scratch accumulator, fused epilogue, direct store.
    acc = jnp.dot(x_ref[...], w_ref[...], preferred_element_type=jnp.float32)
    acc = acc + c_ref[...]
    if relu:
        acc = jnp.maximum(acc, 0.0)
    o_ref[...] = acc.astype(o_ref.dtype)


def _mm_bias_act_acc_kernel(x_ref, w_ref, c_ref, o_ref, acc_ref, *, relu):
    # General path (K grid > 1): f32 VMEM accumulator + init/finalize.
    @pl.when(pl.program_id(2) == 0)
    def _init():
        acc_ref[...] = jnp.zeros_like(acc_ref)

    acc_ref[...] += jnp.dot(x_ref[...], w_ref[...],
                            preferred_element_type=jnp.float32)

    @pl.when(pl.program_id(2) == pl.num_programs(2) - 1)
    def _finalize():
        y = acc_ref[...] + c_ref[...]
        if relu:
            y = jnp.maximum(y, 0.0)
        o_ref[...] = y.astype(o_ref.dtype)


def _matmul_bias_act(x, w, c, *, relu, out_dtype=jnp.bfloat16):
    """act(x @ w + c).

    x: (M, K) activations (unpadded).  w: (Kp, Np) and c: (1, Np) are already
    padded/folded/bf16 (done once in __init__).  Returns (M, Np) in out_dtype;
    padded output channels are kept (they are exactly zero after the epilogue).
    """
    M, K = x.shape
    Kp, Np = w.shape

    tm = _pick_tile_m(M, cap=256)
    tk = min(1024, Kp)
    tn = min(256, Np)
    assert Kp % tk == 0 and Np % tn == 0
    Mp = _round_up(M, tm)

    xp = x.astype(jnp.bfloat16)
    if (Mp, Kp) != (M, K):
        xp = _pad2d(xp, Mp, Kp)

    mt, nt, kt = Mp // tm, Np // tn, Kp // tk
    flops = 2 * Mp * Np * Kp
    bytes_accessed = 2 * (nt * Mp * Kp + mt * Kp * Np + Mp * Np)

    if kt == 1:
        out = pl.pallas_call(
            functools.partial(_mm_bias_act_k1_kernel, relu=relu),
            out_shape=jax.ShapeDtypeStruct((Mp, Np), out_dtype),
            grid_spec=pltpu.PrefetchScalarGridSpec(
                num_scalar_prefetch=0,
                grid=(mt, nt),
                in_specs=[
                    pl.BlockSpec((tm, tk), lambda i, j: (i, 0)),
                    pl.BlockSpec((tk, tn), lambda i, j: (0, j)),
                    pl.BlockSpec((1, tn), lambda i, j: (0, j)),
                ],
                out_specs=pl.BlockSpec((tm, tn), lambda i, j: (i, j)),
            ),
            compiler_params=pltpu.CompilerParams(
                dimension_semantics=("parallel", "parallel"),
                vmem_limit_bytes=32 * 1024 * 1024,
            ),
            cost_estimate=pl.CostEstimate(
                flops=flops, transcendentals=0, bytes_accessed=bytes_accessed),
        )(xp, w, c)
    else:
        out = pl.pallas_call(
            functools.partial(_mm_bias_act_acc_kernel, relu=relu),
            out_shape=jax.ShapeDtypeStruct((Mp, Np), out_dtype),
            grid_spec=pltpu.PrefetchScalarGridSpec(
                num_scalar_prefetch=0,
                grid=(mt, nt, kt),
                in_specs=[
                    pl.BlockSpec((tm, tk), lambda i, j, k: (i, k)),
                    pl.BlockSpec((tk, tn), lambda i, j, k: (k, j)),
                    pl.BlockSpec((1, tn), lambda i, j, k: (0, j)),
                ],
                out_specs=pl.BlockSpec((tm, tn), lambda i, j, k: (i, j)),
                scratch_shapes=[pltpu.VMEM((tm, tn), jnp.float32)],
            ),
            compiler_params=pltpu.CompilerParams(
                dimension_semantics=("parallel", "parallel", "arbitrary"),
                vmem_limit_bytes=32 * 1024 * 1024,
            ),
            cost_estimate=pl.CostEstimate(
                flops=flops, transcendentals=0, bytes_accessed=bytes_accessed),
        )(xp, w, c)

    return out if Mp == M else out[:M]


# ----------------------------------------------------------------------------
# Pallas kernel 2: conv2(+bn2,relu) + fc1 + relu + fc2 + relu + fc3, one call.
#
# patches:  (n_pos, Bp, K2p)  - conv2 im2col, ordered (output position, batch)
# w2 / c2:  (K2p, C2p), (1, C2p)  - BN-folded conv2 weights
# w1:       (n_pos, C2p, FH1)     - fc1 split into one block per position so
#                                   the NCDHW flatten reduces to a sum of
#                                   per-position matmuls (no in-kernel reshape)
# ----------------------------------------------------------------------------
def _conv2_fc_tail_kernel(p_ref, w2_ref, c2_ref, w1_ref, b1_ref,
                          wf2_ref, bf2_ref, wf3_ref, bf3_ref, o_ref, *, n_pos):
    w2 = w2_ref[...]
    c2 = c2_ref[...]
    acc = jnp.zeros((p_ref.shape[1], w1_ref.shape[2]), jnp.float32)
    for p in range(n_pos):                      # static, fully unrolled (8)
        y = jnp.dot(p_ref[p], w2, preferred_element_type=jnp.float32)
        y = jnp.maximum(y + c2, 0.0).astype(jnp.bfloat16)      # conv2 output @ pos p
        acc = acc + jnp.dot(y, w1_ref[p], preferred_element_type=jnp.float32)
    h = jnp.maximum(acc + b1_ref[...], 0.0).astype(jnp.bfloat16)   # fc1 + relu
    h = jnp.dot(h, wf2_ref[...], preferred_element_type=jnp.float32)
    h = jnp.maximum(h + bf2_ref[...], 0.0).astype(jnp.bfloat16)    # fc2 + relu
    y = jnp.dot(h, wf3_ref[...], preferred_element_type=jnp.float32)
    o_ref[...] = (y + bf3_ref[...]).astype(o_ref.dtype)            # fc3


def _conv2_fc_tail(patches, w2, c2, w1, b1, wf2, bf2, wf3, bf3):
    n_pos, bp, _ = patches.shape
    n_out = wf3.shape[1]
    vmem = pl.BlockSpec(memory_space=pltpu.MemorySpace.VMEM)
    return pl.pallas_call(
        functools.partial(_conv2_fc_tail_kernel, n_pos=n_pos),
        out_shape=jax.ShapeDtypeStruct((bp, n_out), jnp.float32),
        in_specs=[vmem] * 9,
        out_specs=vmem,
        compiler_params=pltpu.CompilerParams(
            vmem_limit_bytes=32 * 1024 * 1024),
    )(patches, w2, c2, w1, b1, wf2, bf2, wf3, bf3)


# ----------------------------------------------------------------------------
# im2col glue (NDHWC activations, stride, no padding) - XLA slice/concat
# ----------------------------------------------------------------------------
def _im2col_ndhwc(x, ksize, stride):
    B, D, H, W, C = x.shape
    kd, kh, kw = ksize
    sd, sh, sw = stride
    Do = (D - kd) // sd + 1
    Ho = (H - kh) // sh + 1
    Wo = (W - kw) // sw + 1
    cols = []
    for dz in range(kd):
        for dy in range(kh):
            for dx in range(kw):
                cols.append(x[:, dz:dz + sd * Do:sd,
                              dy:dy + sh * Ho:sh,
                              dx:dx + sw * Wo:sw, :])
    return jnp.concatenate(cols, axis=-1)        # (B, Do, Ho, Wo, k^3*C)


# ----------------------------------------------------------------------------
# Model
# ----------------------------------------------------------------------------
class CNN3DPallas:
    def __init__(self, t_dim, img_h, img_w, num_classes, key):
        self.k1, self.k2 = (5, 5, 5), (3, 3, 3)
        self.s1, self.s2 = (2, 2, 2), (2, 2, 2)
        self.ch1, self.ch2 = 32, 48
        fc_h1, fc_h2 = 256, 128
        self.num_classes = num_classes

        def out_sz(sz, k, s):
            return tuple((sz[i] - (k[i] - 1) - 1) // s[i] + 1 for i in range(3))

        self.o1 = out_sz((t_dim, img_h, img_w), self.k1, self.s1)
        self.o2 = out_sz(self.o1, self.k2, self.s2)
        self.n_pos = self.o2[0] * self.o2[1] * self.o2[2]
        flat = self.ch2 * self.n_pos

        keys = jax.random.split(key, 16)

        def init_w(k, shape, fan_in):
            return jax.random.normal(k, shape, jnp.float32) / jnp.sqrt(fan_in)

        ch1, ch2 = self.ch1, self.ch2
        self.params = dict(
            conv1_w=init_w(keys[0], (ch1, 3, *self.k1), 3 * 5 * 5 * 5),
            conv1_b=init_w(keys[1], (ch1,), 3 * 5 * 5 * 5),
            bn1_g=1.0 + 0.1 * jax.random.normal(keys[2], (ch1,), jnp.float32),
            bn1_b=0.1 * jax.random.normal(keys[3], (ch1,), jnp.float32),
            bn1_m=0.1 * jax.random.normal(keys[4], (ch1,), jnp.float32),
            bn1_v=1.0 + 0.1 * jnp.abs(jax.random.normal(keys[5], (ch1,), jnp.float32)),
            conv2_w=init_w(keys[6], (ch2, ch1, *self.k2), ch1 * 3 * 3 * 3),
            conv2_b=init_w(keys[7], (ch2,), ch1 * 3 * 3 * 3),
            bn2_g=1.0 + 0.1 * jax.random.normal(keys[8], (ch2,), jnp.float32),
            bn2_b=0.1 * jax.random.normal(keys[9], (ch2,), jnp.float32),
            bn2_m=0.1 * jax.random.normal(keys[10], (ch2,), jnp.float32),
            bn2_v=1.0 + 0.1 * jnp.abs(jax.random.normal(keys[11], (ch2,), jnp.float32)),
            fc1_w=init_w(keys[12], (fc_h1, flat), flat),
            fc1_b=jnp.zeros((fc_h1,), jnp.float32),
            fc2_w=init_w(keys[13], (fc_h2, fc_h1), fc_h1),
            fc2_b=jnp.zeros((fc_h2,), jnp.float32),
            fc3_w=init_w(keys[14], (num_classes, fc_h2), fc_h2),
            fc3_b=jnp.zeros((num_classes,), jnp.float32),
        )
        self._build_derived()

    def _build_derived(self, eps=1e-5):
        """Fold BN, permute/pad/cast all weights ONCE (not per forward step)."""
        p = self.params
        kd1, kh1, kw1 = self.k1
        kd2, kh2, kw2 = self.k2
        ch1, ch2 = self.ch1, self.ch2
        c1p = _round_up(ch1, 128)          # conv1 channels kept padded downstream
        c2p = _round_up(ch2, 128)

        # conv1 + bn1 folded: columns ordered (offset-major, channel-minor).
        s1 = p["bn1_g"] / jnp.sqrt(p["bn1_v"] + eps)
        w1 = p["conv1_w"].transpose(2, 3, 4, 1, 0).reshape(kd1 * kh1 * kw1 * 3, ch1)
        w1 = w1 * s1[None, :]
        c1 = (p["conv1_b"] * s1 + p["bn1_b"] - p["bn1_m"] * s1).reshape(1, ch1)
        self.d_w1 = _pad2d(w1, _round_up(w1.shape[0], 128), c1p).astype(jnp.bfloat16)
        self.d_c1 = _pad2d(c1, 1, c1p).astype(jnp.float32)

        # conv2 + bn2 folded, with the INPUT channel axis pre-padded to c1p so
        # conv1's output can stay channel-padded (no slice / re-pad pass).
        s2 = p["bn2_g"] / jnp.sqrt(p["bn2_v"] + eps)
        w2 = p["conv2_w"].transpose(2, 3, 4, 1, 0)               # (kd,kh,kw,Cin,Cout)
        w2 = jnp.pad(w2, ((0, 0), (0, 0), (0, 0), (0, c1p - ch1), (0, 0)))
        w2 = w2.reshape(kd2 * kh2 * kw2 * c1p, ch2) * s2[None, :]
        c2 = (p["conv2_b"] * s2 + p["bn2_b"] - p["bn2_m"] * s2).reshape(1, ch2)
        self.d_w2 = _pad2d(w2, w2.shape[0], c2p).astype(jnp.bfloat16)
        self.d_c2 = _pad2d(c2, 1, c2p).astype(jnp.float32)

        # fc1: permute from torch NCDHW flatten (channel-major) into one
        # (channels -> c2p padded) block per conv2 output spatial position.
        do, ho, wo = self.o2
        fh1 = p["fc1_w"].shape[0]
        w1fc = p["fc1_w"].reshape(fh1, ch2, do, ho, wo).transpose(2, 3, 4, 1, 0)
        w1fc = w1fc.reshape(self.n_pos, ch2, fh1)
        self.d_fc1_w = jnp.pad(
            w1fc, ((0, 0), (0, c2p - ch2), (0, 0))).astype(jnp.bfloat16)
        self.d_fc1_b = p["fc1_b"].reshape(1, fh1).astype(jnp.float32)

        fh2 = p["fc2_w"].shape[0]
        self.d_fc2_w = p["fc2_w"].T.astype(jnp.bfloat16)         # (fh1, fh2)
        self.d_fc2_b = p["fc2_b"].reshape(1, fh2).astype(jnp.float32)

        ncp = _round_up(self.num_classes, 128)
        self.d_fc3_w = _pad2d(p["fc3_w"].T, fh2, ncp).astype(jnp.bfloat16)
        self.d_fc3_b = _pad2d(p["fc3_b"].reshape(1, -1), 1, ncp).astype(jnp.float32)

    def __call__(self, x):
        B = x.shape[0]
        # NCDHW -> NDHWC once; bf16 activations end-to-end from here on.
        x = jnp.transpose(x, (0, 2, 3, 4, 1)).astype(jnp.bfloat16)

        # --- conv1 + bn1 + relu: tiled im2col GEMM (3 parallel M tiles) ---
        # TODO(synk): at non-toy shapes, fuse this im2col gather into the conv
        # kernel with manual strided DMA instead of the XLA slice/concat.
        p1 = _im2col_ndhwc(x, self.k1, self.s1)          # (B, D1,H1,W1, 375)
        d1, h1, w1 = self.o1
        p1 = p1.reshape(B * d1 * h1 * w1, p1.shape[-1])
        y1 = _matmul_bias_act(p1, self.d_w1, self.d_c1, relu=True)   # (M1,128) bf16
        y1 = y1.reshape(B, d1, h1, w1, self.d_w1.shape[1])           # channels stay padded

        # --- conv2+bn2+relu + fc1 + fc2 + fc3, one fused pallas_call ---
        p2 = _im2col_ndhwc(y1, self.k2, self.s2)         # (B, D2,H2,W2, 27*128)
        p2 = p2.reshape(B, self.n_pos, p2.shape[-1]).transpose(1, 0, 2)
        bp = _round_up(B, 16)
        if bp != B:
            p2 = jnp.pad(p2, ((0, 0), (0, bp - B), (0, 0)))
        out = _conv2_fc_tail(p2, self.d_w2, self.d_c2,
                             self.d_fc1_w, self.d_fc1_b,
                             self.d_fc2_w, self.d_fc2_b,
                             self.d_fc3_w, self.d_fc3_b)
        return out[:B, :self.num_classes]


# ----------------------------------------------------------------------------
# Pure-JAX f32 reference (original NCDHW / torch layout) for validation
# ----------------------------------------------------------------------------
def _reference_forward(model, x):
    p = model.params
    eps = 1e-5

    def conv_bn_relu(x, w, b, g, bt, m, v, stride):
        dn = jax.lax.conv_dimension_numbers(x.shape, w.shape,
                                            ("NCDHW", "OIDHW", "NCDHW"))
        y = jax.lax.conv_general_dilated(x, w, window_strides=stride,
                                         padding="VALID",
                                         dimension_numbers=dn)
        y = y + b.reshape(1, -1, 1, 1, 1)
        scale = (g / jnp.sqrt(v + eps)).reshape(1, -1, 1, 1, 1)
        shift = (bt - m * g / jnp.sqrt(v + eps)).reshape(1, -1, 1, 1, 1)
        return jnp.maximum(y * scale + shift, 0.0)

    x = conv_bn_relu(x, p["conv1_w"], p["conv1_b"], p["bn1_g"], p["bn1_b"],
                     p["bn1_m"], p["bn1_v"], model.s1)
    x = conv_bn_relu(x, p["conv2_w"], p["conv2_b"], p["bn2_g"], p["bn2_b"],
                     p["bn2_m"], p["bn2_v"], model.s2)
    x = x.reshape(x.shape[0], -1)                        # torch NCDHW flatten
    x = jnp.maximum(x @ p["fc1_w"].T + p["fc1_b"], 0.0)
    x = jnp.maximum(x @ p["fc2_w"].T + p["fc2_b"], 0.0)
    return x @ p["fc3_w"].T + p["fc3_b"]


if __name__ == "__main__":
    # Small shapes: batch=2, in_channels=3, t_dim=img_h=img_w=16, classes=10.
    key = jax.random.PRNGKey(0)
    k_x, k_p = jax.random.split(key)
    model = CNN3DPallas(t_dim=16, img_h=16, img_w=16, num_classes=10, key=k_p)

    x = jax.random.normal(k_x, (2, 3, 16, 16, 16), jnp.float32)   # NCDHW

    fwd = jax.jit(model.__call__)
    out = fwd(x)
    jax.block_until_ready(out)
    assert out.shape == (2, 10), out.shape

    ref = _reference_forward(model, x)
    max_err = float(jnp.max(jnp.abs(out - ref)))
    assert max_err < 1e-1, f"mismatch vs reference: max abs err = {max_err}"

    print("KERNEL_OK")
</pallas_src>

<mosaic_0001>
module attributes {stable_mosaic.version = 11 : i64} {
  func.func @_mm_bias_act_k1_kernel(%arg0: i32, %arg1: i32, %arg2: memref<144x384xbf16, #tpu.memory_space<vmem>>, %arg3: memref<384x128xbf16, #tpu.memory_space<vmem>>, %arg4: memref<1x128xf32, #tpu.memory_space<vmem>>, %arg5: memref<144x128xbf16, #tpu.memory_space<vmem>>) attributes {dimension_semantics = [#tpu.dimension_semantics<parallel>, #tpu.dimension_semantics<parallel>], iteration_bounds = array<i64: 3, 1>, scalar_prefetch = 0 : i64, scratch_operands = 0 : i64, tpu.core_type = #tpu.core_type<tc>, window_params = [{transform_indices = @transform_0, window_bounds = array<i64: 144, 384>}, {transform_indices = @transform_1, window_bounds = array<i64: 384, 128>}, {transform_indices = @transform_2, window_bounds = array<i64: 1, 128>}, {transform_indices = @transform_3, window_bounds = array<i64: 144, 128>}]} {
    %c0 = arith.constant 0 : index
    %c0_0 = arith.constant 0 : index
    %0 = vector.load %arg2[%c0, %c0_0] : memref<144x384xbf16, #tpu.memory_space<vmem>>, vector<144x384xbf16>
    %c0_1 = arith.constant 0 : index
    %c0_2 = arith.constant 0 : index
    %1 = vector.load %arg3[%c0_1, %c0_2] : memref<384x128xbf16, #tpu.memory_space<vmem>>, vector<384x128xbf16>
    %cst = arith.constant dense<0.000000e+00> : vector<144x128xf32>
    %2 = tpu.matmul %0, %1, %cst {dimension_numbers = #tpu.dot_dimension_numbers<[1], [0], [0], [1], [0, 0, 1, 1], [], []>} : vector<144x384xbf16>, vector<384x128xbf16>, vector<144x128xf32> -> vector<144x128xf32>
    %c0_3 = arith.constant 0 : index
    %c0_4 = arith.constant 0 : index
    %3 = vector.load %arg4[%c0_3, %c0_4] : memref<1x128xf32, #tpu.memory_space<vmem>>, vector<1x128xf32>
    %4 = vector.broadcast %3 : vector<1x128xf32> to vector<144x128xf32>
    %5 = arith.addf %2, %4 : vector<144x128xf32>
    %cst_5 = arith.constant 0.000000e+00 : f32
    %6 = vector.broadcast %cst_5 : f32 to vector<144x128xf32>
    %7 = arith.maximumf %5, %6 : vector<144x128xf32>
    %8 = arith.truncf %7 : vector<144x128xf32> to vector<144x128xbf16>
    %c0_6 = arith.constant 0 : index
    %c0_7 = arith.constant 0 : index
    %9 = vector.load %arg5[%c0_6, %c0_7] : memref<144x128xbf16, #tpu.memory_space<vmem>>, vector<144x128xbf16>
    tpu.vector_store %arg5[%c0_6, %c0_7], %8 {strides = array<i32>} : memref<144x128xbf16, #tpu.memory_space<vmem>>, vector<144x128xbf16>,
    return
  }
  func.func @transform_0(%arg0: i32, %arg1: i32) -> (i32, i32) {
    %c0_i32 = arith.constant 0 : i32
    %c0_i32_0 = arith.constant 0 : i32
    return %arg0, %c0_i32 : i32, i32
  }
  func.func @transform_1(%arg0: i32, %arg1: i32) -> (i32, i32) {
    %c0_i32 = arith.constant 0 : i32
    %c0_i32_0 = arith.constant 0 : i32
    return %c0_i32, %arg1 : i32, i32
  }
  func.func @transform_2(%arg0: i32, %arg1: i32) -> (i32, i32) {
    %c0_i32 = arith.constant 0 : i32
    %c0_i32_0 = arith.constant 0 : i32
    return %c0_i32, %arg1 : i32, i32
  }
  func.func @transform_3(%arg0: i32, %arg1: i32) -> (i32, i32) {
    %c0_i32 = arith.constant 0 : i32
    return %arg0, %arg1 : i32, i32
  }
}

module attributes {stable_mosaic.version = 11 : i64} {
  func.func @_conv2_fc_tail_kernel(%arg0: memref<8x16x3456xbf16, #tpu.memory_space<vmem>>, %arg1: memref<3456x128xbf16, #tpu.memory_space<vmem>>, %arg2: memref<1x128xf32, #tpu.memory_space<vmem>>, %arg3: memref<8x128x256xbf16, #tpu.memory_space<vmem>>, %arg4: memref<1x256xf32, #tpu.memory_space<vmem>>, %arg5: memref<256x128xbf16, #tpu.memory_space<vmem>>, %arg6: memref<1x128xf32, #tpu.memory_space<vmem>>, %arg7: memref<128x128xbf16, #tpu.memory_space<vmem>>, %arg8: memref<1x128xf32, #tpu.memory_space<vmem>>, %arg9: memref<16x128xf32, #tpu.memory_space<vmem>>) attributes {dimension_semantics = [], scalar_prefetch = 0 : i64, scratch_operands = 0 : i64, tpu.core_type = #tpu.core_type<tc>} {
    %c0 = arith.constant 0 : index
    %c0_0 = arith.constant 0 : index
    %0 = vector.load %arg1[%c0, %c0_0] : memref<3456x128xbf16, #tpu.memory_space<vmem>>, vector<3456x128xbf16>
    %c0_1 = arith.constant 0 : index
    %c0_2 = arith.constant 0 : index
    %1 = vector.load %arg2[%c0_1, %c0_2] : memref<1x128xf32, #tpu.memory_space<vmem>>, vector<1x128xf32>
    %cst = arith.constant 0.000000e+00 : f32
    %2 = vector.broadcast %cst : f32 to vector<16x256xf32>
    %c0_3 = arith.constant 0 : index
    %c0_4 = arith.constant 0 : index
    %c0_5 = arith.constant 0 : index
    %3 = vector.load %arg0[%c0_3, %c0_4, %c0_5] : memref<8x16x3456xbf16, #tpu.memory_space<vmem>>, vector<1x16x3456xbf16>
    %4 = vector.shape_cast %3 : vector<1x16x3456xbf16> to vector<16x3456xbf16>
    %cst_6 = arith.constant dense<0.000000e+00> : vector<16x128xf32>
    %5 = tpu.matmul %4, %0, %cst_6 {dimension_numbers = #tpu.dot_dimension_numbers<[1], [0], [0], [1], [0, 0, 1, 1], [], []>} : vector<16x3456xbf16>, vector<3456x128xbf16>, vector<16x128xf32> -> vector<16x128xf32>
    %6 = vector.broadcast %1 : vector<1x128xf32> to vector<16x128xf32>
    %7 = arith.addf %5, %6 : vector<16x128xf32>
    %cst_7 = arith.constant 0.000000e+00 : f32
    %8 = vector.broadcast %cst_7 : f32 to vector<16x128xf32>
    %9 = arith.maximumf %7, %8 : vector<16x128xf32>
    %10 = arith.truncf %9 : vector<16x128xf32> to vector<16x128xbf16>
    %c0_8 = arith.constant 0 : index
    %c0_9 = arith.constant 0 : index
    %c0_10 = arith.constant 0 : index
    %11 = vector.load %arg3[%c0_8, %c0_9, %c0_10] : memref<8x128x256xbf16, #tpu.memory_space<vmem>>, vector<1x128x256xbf16>
    %12 = vector.shape_cast %11 : vector<1x128x256xbf16> to vector<128x256xbf16>
    %cst_11 = arith.constant dense<0.000000e+00> : vector<16x256xf32>
    %13 = tpu.matmul %10, %12, %cst_11 {dimension_numbers = #tpu.dot_dimension_numbers<[1], [0], [0], [1], [0, 0, 1, 1], [], []>} : vector<16x128xbf16>, vector<128x256xbf16>, vector<16x256xf32> -> vector<16x256xf32>
    %14 = arith.addf %2, %13 : vector<16x256xf32>
    %c1 = arith.constant 1 : index
    %c0_12 = arith.constant 0 : index
    %c0_13 = arith.constant 0 : index
    %15 = vector.load %arg0[%c1, %c0_12, %c0_13] : memref<8x16x3456xbf16, #tpu.memory_space<vmem>>, vector<1x16x3456xbf16>
    %16 = vector.shape_cast %15 : vector<1x16x3456xbf16> to vector<16x3456xbf16>
    %cst_14 = arith.constant dense<0.000000e+00> : vector<16x128xf32>
    %17 = tpu.matmul %16, %0, %cst_14 {dimension_numbers = #tpu.dot_dimension_numbers<[1], [0], [0], [1], [0, 0, 1, 1], [], []>} : vector<16x3456xbf16>, vector<3456x128xbf16>, vector<16x128xf32> -> vector<16x128xf32>
    %18 = vector.broadcast %1 : vector<1x128xf32> to vector<16x128xf32>
    %19 = arith.addf %17, %18 : vector<16x128xf32>
    %cst_15 = arith.constant 0.000000e+00 : f32
    %20 = vector.broadcast %cst_15 : f32 to vector<16x128xf32>
    %21 = arith.maximumf %19, %20 : vector<16x128xf32>
    %22 = arith.truncf %21 : vector<16x128xf32> to vector<16x128xbf16>
    %c1_16 = arith.constant 1 : index
    %c0_17 = arith.constant 0 : index
    %c0_18 = arith.constant 0 : index
    %23 = vector.load %arg3[%c1_16, %c0_17, %c0_18] : memref<8x128x256xbf16, #tpu.memory_space<vmem>>, vector<1x128x256xbf16>
    %24 = vector.shape_cast %23 : vector<1x128x256xbf16> to vector<128x256xbf16>
    %cst_19 = arith.constant dense<0.000000e+00> : vector<16x256xf32>
    %25 = tpu.matmul %22, %24, %cst_19 {dimension_numbers = #tpu.dot_dimension_numbers<[1], [0], [0], [1], [0, 0, 1, 1], [], []>} : vector<16x128xbf16>, vector<128x256xbf16>, vector<16x256xf32> -> vector<16x256xf32>
    %26 = arith.addf %14, %25 : vector<16x256xf32>
    %c2 = arith.constant 2 : index
    %c0_20 = arith.constant 0 : index
    %c0_21 = arith.constant 0 : index
    %27 = vector.load %arg0[%c2, %c0_20, %c0_21] : memref<8x16x3456xbf16, #tpu.memory_space<vmem>>, vector<1x16x3456xbf16>
    %28 = vector.shape_cast %27 : vector<1x16x3456xbf16> to vector<16x3456xbf16>
    %cst_22 = arith.constant dense<0.000000e+00> : vector<16x128xf32>
    %29 = tpu.matmul %28, %0, %cst_22 {dimension_numbers = #tpu.dot_dimension_numbers<[1], [0], [0], [1], [0, 0, 1, 1], [], []>} : vector<16x3456xbf16>, vector<3456x128xbf16>, vector<16x128xf32> -> vector<16x128xf32>
    %30 = vector.broadcast %1 : vector<1x128xf32> to vector<16x128xf32>
    %31 = arith.addf %29, %30 : vector<16x128xf32>
    %cst_23 = arith.constant 0.000000e+00 : f32
    %32 = vector.broadcast %cst_23 : f32 to vector<16x128xf32>
    %33 = arith.maximumf %31, %32 : vector<16x128xf32>
    %34 = arith.truncf %33 : vector<16x128xf32> to vector<16x128xbf16>
    %c2_24 = arith.constant 2 : index
    %c0_25 = arith.constant 0 : index
    %c0_26 = arith.constant 0 : index
    %35 = vector.load %arg3[%c2_24, %c0_25, %c0_26] : memref<8x128x256xbf16, #tpu.memory_space<vmem>>, vector<1x128x256xbf16>
    %36 = vector.shape_cast %35 : vector<1x128x256xbf16> to vector<128x256xbf16>
    %cst_27 = arith.constant dense<0.000000e+00> : vector<16x256xf32>
    %37 = tpu.matmul %34, %36, %cst_27 {dimension_numbers = #tpu.dot_dimension_numbers<[1], [0], [0], [1], [0, 0, 1, 1], [], []>} : vector<16x128xbf16>, vector<128x256xbf16>, vector<16x256xf32> -> vector<16x256xf32>
    %38 = arith.addf %26, %37 : vector<16x256xf32>
    %c3 = arith.constant 3 : index
    %c0_28 = arith.constant 0 : index
    %c0_29 = arith.constant 0 : index
    %39 = vector.load %arg0[%c3, %c0_28, %c0_29] : memref<8x16x3456xbf16, #tpu.memory_space<vmem>>, vector<1x16x3456xbf16>
    %40 = vector.shape_cast %39 : vector<1x16x3456xbf16> to vector<16x3456xbf16>
    %cst_30 = arith.constant dense<0.000000e+00> : vector<16x128xf32>
    %41 = tpu.matmul %40, %0, %cst_30 {dimension_numbers = #tpu.dot_dimension_numbers<[1], [0], [0], [1], [0, 0, 1, 1], [], []>} : vector<16x3456xbf16>, vector<3456x128xbf16>, vector<16x128xf32> -> vector<16x128xf32>
    %42 = vector.broadcast %1 : vector<1x128xf32> to vector<16x128xf32>
    %43 = arith.addf %41, %42 : vector<16x128xf32>
    %cst_31 = arith.constant 0.000000e+00 : f32
    %44 = vector.broadcast %cst_31 : f32 to vector<16x128xf32>
    %45 = arith.maximumf %43, %44 : vector<16x128xf32>
    %46 = arith.truncf %45 : vector<16x128xf32> to vector<16x128xbf16>
    %c3_32 = arith.constant 3 : index
    %c0_33 = arith.constant 0 : index
    %c0_34 = arith.constant 0 : index
    %47 = vector.load %arg3[%c3_32, %c0_33, %c0_34] : memref<8x128x256xbf16, #tpu.memory_space<vmem>>, vector<1x128x256xbf16>
    %48 = vector.shape_cast %47 : vector<1x128x256xbf16> to vector<128x256xbf16>
    %cst_35 = arith.constant dense<0.000000e+00> : vector<16x256xf32>
    %49 = tpu.matmul %46, %48, %cst_35 {dimension_numbers = #tpu.dot_dimension_numbers<[1], [0], [0], [1], [0, 0, 1, 1], [], []>} : vector<16x128xbf16>, vector<128x256xbf16>, vector<16x256xf32> -> vector<16x256xf32>
    %50 = arith.addf %38, %49 : vector<16x256xf32>
    %c4 = arith.constant 4 : index
    %c0_36 = arith.constant 0 : index
    %c0_37 = arith.constant 0 : index
    %51 = vector.load %arg0[%c4, %c0_36, %c0_37] : memref<8x16x3456xbf16, #tpu.memory_space<vmem>>, vector<1x16x3456xbf16>
    %52 = vector.shape_cast %51 : vector<1x16x3456xbf16> to vector<16x3456xbf16>
    %cst_38 = arith.constant dense<0.000000e+00> : vector<16x128xf32>
    %53 = tpu.matmul %52, %0, %cst_38 {dimension_numbers = #tpu.dot_dimension_numbers<[1], [0], [0], [1], [0, 0, 1, 1], [], []>} : vector<16x3456xbf16>, vector<3456x128xbf16>, vector<16x128xf32> -> vector<16x128xf32>
    %54 = vector.broadcast %1 : vector<1x128xf32> to vector<16x128xf32>
    %55 = arith.addf %53, %54 : vector<16x128xf32>
    %cst_39 = arith.constant 0.000000e+00 : f32
    %56 = vector.broadcast %cst_39 : f32 to vector<16x128xf32>
    %57 = arith.maximumf %55, %56 : vector<16x128xf32>
    %58 = arith.truncf %57 : vector<16x128xf32> to vector<16x128xbf16>
    %c4_40 = arith.constant 4 : index
    %c0_41 = arith.constant 0 : index
    %c0_42 = arith.constant 0 : index
    %59 = vector.load %arg3[%c4_40, %c0_41, %c0_42] : memref<8x128x256xbf16, #tpu.memory_space<vmem>>, vector<1x128x256xbf16>
    %60 = vector.shape_cast %59 : vector<1x128x256xbf16> to vector<128x256xbf16>
    %cst_43 = arith.constant dense<0.000000e+00> : vector<16x256xf32>
    %61 = tpu.matmul %58, %60, %cst_43 {dimension_numbers = #tpu.dot_dimension_numbers<[1], [0], [0], [1], [0, 0, 1, 1], [], []>} : vector<16x128xbf16>, vector<128x256xbf16>, vector<16x256xf32> -> vector<16x256xf32>
    %62 = arith.addf %50, %61 : vector<16x256xf32>
    %c5 = arith.constant 5 : index
    %c0_44 = arith.constant 0 : index
    %c0_45 = arith.constant 0 : index
    %63 = vector.load %arg0[%c5, %c0_44, %c0_45] : memref<8x16x3456xbf16, #tpu.memory_space<vmem>>, vector<1x16x3456xbf16>
    %64 = vector.shape_cast %63 : vector<1x16x3456xbf16> to vector<16x3456xbf16>
    %cst_46 = arith.constant dense<0.000000e+00> : vector<16x128xf32>
    %65 = tpu.matmul %64, %0, %cst_46 {dimension_numbers = #tpu.dot_dimension_numbers<[1], [0], [0], [1], [0, 0, 1, 1], [], []>} : vector<16x3456xbf16>, vector<3456x128xbf16>, vector<16x128xf32> -> vector<16x128xf32>
    %66 = vector.broadcast %1 : vector<1x128xf32> to vector<16x128xf32>
    %67 = arith.addf %65, %66 : vector<16x128xf32>
    %cst_47 = arith.constant 0.000000e+00 : f32
    %68 = vector.broadcast %cst_47 : f32 to vector<16x128xf32>
    %69 = arith.maximumf %67, %68 : vector<16x128xf32>
    %70 = arith.truncf %69 : vector<16x128xf32> to vector<16x128xbf16>
    %c5_48 = arith.constant 5 : index
    %c0_49 = arith.constant 0 : index
    %c0_50 = arith.constant 0 : index
    %71 = vector.load %arg3[%c5_48, %c0_49, %c0_50] : memref<8x128x256xbf16, #tpu.memory_space<vmem>>, vector<1x128x256xbf16>
    %72 = vector.shape_cast %71 : vector<1x128x256xbf16> to vector<128x256xbf16>
    %cst_51 = arith.constant dense<0.000000e+00> : vector<16x256xf32>
    %73 = tpu.matmul %70, %72, %cst_51 {dimension_numbers = #tpu.dot_dimension_numbers<[1], [0], [0], [1], [0, 0, 1, 1], [], []>} : vector<16x128xbf16>, vector<128x256xbf16>, vector<16x256xf32> -> vector<16x256xf32>
    %74 = arith.addf %62, %73 : vector<16x256xf32>
    %c6 = arith.constant 6 : index
    %c0_52 = arith.constant 0 : index
    %c0_53 = arith.constant 0 : index
    %75 = vector.load %arg0[%c6, %c0_52, %c0_53] : memref<8x16x3456xbf16, #tpu.memory_space<vmem>>, vector<1x16x3456xbf16>
    %76 = vector.shape_cast %75 : vector<1x16x3456xbf16> to vector<16x3456xbf16>
    %cst_54 = arith.constant dense<0.000000e+00> : vector<16x128xf32>
    %77 = tpu.matmul %76, %0, %cst_54 {dimension_numbers = #tpu.dot_dimension_numbers<[1], [0], [0], [1], [0, 0, 1, 1], [], []>} : vector<16x3456xbf16>, vector<3456x128xbf16>, vector<16x128xf32> -> vector<16x128xf32>
    %78 = vector.broadcast %1 : vector<1x128xf32> to vector<16x128xf32>
    %79 = arith.addf %77, %78 : vector<16x128xf32>
    %cst_55 = arith.constant 0.000000e+00 : f32
    %80 = vector.broadcast %cst_55 : f32 to vector<16x128xf32>
    %81 = arith.maximumf %79, %80 : vector<16x128xf32>
    %82 = arith.truncf %81 : vector<16x128xf32> to vector<16x128xbf16>
    %c6_56 = arith.constant 6 : index
    %c0_57 = arith.constant 0 : index
    %c0_58 = arith.constant 0 : index
    %83 = vector.load %arg3[%c6_56, %c0_57, %c0_58] : memref<8x128x256xbf16, #tpu.memory_space<vmem>>, vector<1x128x256xbf16>
    %84 = vector.shape_cast %83 : vector<1x128x256xbf16> to vector<128x256xbf16>
    %cst_59 = arith.constant dense<0.000000e+00> : vector<16x256xf32>
    %85 = tpu.matmul %82, %84, %cst_59 {dimension_numbers = #tpu.dot_dimension_numbers<[1], [0], [0], [1], [0, 0, 1, 1], [], []>} : vector<16x128xbf16>, vector<128x256xbf16>, vector<16x256xf32> -> vector<16x256xf32>
    %86 = arith.addf %74, %85 : vector<16x256xf32>
    %c7 = arith.constant 7 : index
    %c0_60 = arith.constant 0 : index
    %c0_61 = arith.constant 0 : index
    %87 = vector.load %arg0[%c7, %c0_60, %c0_61] : memref<8x16x3456xbf16, #tpu.memory_space<vmem>>, vector<1x16x3456xbf16>
    %88 = vector.shape_cast %87 : vector<1x16x3456xbf16> to vector<16x3456xbf16>
    %cst_62 = arith.constant dense<0.000000e+00> : vector<16x128xf32>
    %89 = tpu.matmul %88, %0, %cst_62 {dimension_numbers = #tpu.dot_dimension_numbers<[1], [0], [0], [1], [0, 0, 1, 1], [], []>} : vector<16x3456xbf16>, vector<3456x128xbf16>, vector<16x128xf32> -> vector<16x128xf32>
    %90 = vector.broadcast %1 : vector<1x128xf32> to vector<16x128xf32>
    %91 = arith.addf %89, %90 : vector<16x128xf32>
    %cst_63 = arith.constant 0.000000e+00 : f32
    %92 = vector.broadcast %cst_63 : f32 to vector<16x128xf32>
    %93 = arith.maximumf %91, %92 : vector<16x128xf32>
    %94 = arith.truncf %93 : vector<16x128xf32> to vector<16x128xbf16>
    %c7_64 = arith.constant 7 : index
    %c0_65 = arith.constant 0 : index
    %c0_66 = arith.constant 0 : index
    %95 = vector.load %arg3[%c7_64, %c0_65, %c0_66] : memref<8x128x256xbf16, #tpu.memory_space<vmem>>, vector<1x128x256xbf16>
    %96 = vector.shape_cast %95 : vector<1x128x256xbf16> to vector<128x256xbf16>
    %cst_67 = arith.constant dense<0.000000e+00> : vector<16x256xf32>
    %97 = tpu.matmul %94, %96, %cst_67 {dimension_numbers = #tpu.dot_dimension_numbers<[1], [0], [0], [1], [0, 0, 1, 1], [], []>} : vector<16x128xbf16>, vector<128x256xbf16>, vector<16x256xf32> -> vector<16x256xf32>
    %98 = arith.addf %86, %97 : vector<16x256xf32>
    %c0_68 = arith.constant 0 : index
    %c0_69 = arith.constant 0 : index
    %99 = vector.load %arg4[%c0_68, %c0_69] : memref<1x256xf32, #tpu.memory_space<vmem>>, vector<1x256xf32>
    %100 = vector.broadcast %99 : vector<1x256xf32> to vector<16x256xf32>
    %101 = arith.addf %98, %100 : vector<16x256xf32>
    %cst_70 = arith.constant 0.000000e+00 : f32
    %102 = vector.broadcast %cst_70 : f32 to vector<16x256xf32>
    %103 = arith.maximumf %101, %102 : vector<16x256xf32>
    %104 = arith.truncf %103 : vector<16x256xf32> to vector<16x256xbf16>
    %c0_71 = arith.constant 0 : index
    %c0_72 = arith.constant 0 : index
    %105 = vector.load %arg5[%c0_71, %c0_72] : memref<256x128xbf16, #tpu.memory_space<vmem>>, vector<256x128xbf16>
    %cst_73 = arith.constant dense<0.000000e+00> : vector<16x128xf32>
    %106 = tpu.matmul %104, %105, %cst_73 {dimension_numbers = #tpu.dot_dimension_numbers<[1], [0], [0], [1], [0, 0, 1, 1], [], []>} : vector<16x256xbf16>, vector<256x128xbf16>, vector<16x128xf32> -> vector<16x128xf32>
    %c0_74 = arith.constant 0 : index
    %c0_75 = arith.constant 0 : index
    %107 = vector.load %arg6[%c0_74, %c0_75] : memref<1x128xf32, #tpu.memory_space<vmem>>, vector<1x128xf32>
    %108 = vector.broadcast %107 : vector<1x128xf32> to vector<16x128xf32>
    %109 = arith.addf %106, %108 : vector<16x128xf32>
    %cst_76 = arith.constant 0.000000e+00 : f32
    %110 = vector.broadcast %cst_76 : f32 to vector<16x128xf32>
    %111 = arith.maximumf %109, %110 : vector<16x128xf32>
    %112 = arith.truncf %111 : vector<16x128xf32> to vector<16x128xbf16>
    %c0_77 = arith.constant 0 : index
    %c0_78 = arith.constant 0 : index
    %113 = vector.load %arg7[%c0_77, %c0_78] : memref<128x128xbf16, #tpu.memory_space<vmem>>, vector<128x128xbf16>
    %cst_79 = arith.constant dense<0.000000e+00> : vector<16x128xf32>
    %114 = tpu.matmul %112, %113, %cst_79 {dimension_numbers = #tpu.dot_dimension_numbers<[1], [0], [0], [1], [0, 0, 1, 1], [], []>} : vector<16x128xbf16>, vector<128x128xbf16>, vector<16x128xf32> -> vector<16x128xf32>
    %c0_80 = arith.constant 0 : index
    %c0_81 = arith.constant 0 : index
    %115 = vector.load %arg8[%c0_80, %c0_81] : memref<1x128xf32, #tpu.memory_space<vmem>>, vector<1x128xf32>
    %116 = vector.broadcast %115 : vector<1x128xf32> to vector<16x128xf32>
    %117 = arith.addf %114, %116 : vector<16x128xf32>
    %c0_82 = arith.constant 0 : index
    %c0_83 = arith.constant 0 : index
    %118 = vector.load %arg9[%c0_82, %c0_83] : memref<16x128xf32, #tpu.memory_space<vmem>>, vector<16x128xf32>
    tpu.vector_store %arg9[%c0_82, %c0_83], %117 {strides = array<i32>} : memref<16x128xf32, #tpu.memory_space<vmem>>, vector<16x128xf32>,
    return
  }
}

</mosaic_0001>

<llo_original>
// kernel: a_call__.2
$region0: #{a_call__.2}
  #allocation0 [shape = 'u32[]', space=smem, size = 0x4, offset = 0x4, fixed_abs, tag = 'smem constant byte address 0x4 - core index']
  #allocation1 [shape = 'u32[144,128]{1,0:T(1,128)}', space=vmem, size = 0x12000, scoped, tag = 'internal scratch']
  %s0 = inlined_call_operand.vmem [shape: bf16[432,384], index: 0, kind: input, shape index: {}]
  %s1 = inlined_call_operand.vmem [shape: bf16[384,128], index: 1, kind: input, shape index: {}]
  %s2 = inlined_call_operand.vmem [shape: f32[1,128], index: 2, kind: input, shape index: {}]
  %s3 = inlined_call_operand.vmem [shape: bf16[432,128], index: 3, kind: output, shape index: {}]
  %s4 = sld [smem:[#allocation0]]
  $region45: #{a_call__.2} parent=0
    _
  %s6 = ssub.s32 1, %s4
  %s7 = scalar_select 0, %s6, %s4
  loop: start=0, step=1, limit=5
  $region2: #{a_call__.2} parent=0 // loop_pre_header
    _
  $region3: #{a_call__.2} parent=0 // loop_header
    %s9 = sphi 0, %s13
    %p10 = scmp.ge.s32.totalorder %s9, 5
    %s16 = sphi 0, %s28
    %s17 = sphi 0, %s24
    %s18 = sphi 0, %s16
    %s19 = sphi 0, %s17
    %s20 = sphi 0, %s18
    %s21 = sphi 0, %s19
    %s31 = sphi 0, %s33
    %s34 = sphi 0, %s31
    %s35 = sphi 0, %s34
    %s51 = sphi 0, %s35
    %s57 = sphi 0, %s59
    %s60 = sphi 0, %s57
    %s61 = sphi 0, %s60
    %s77 = sphi 0, %s61
    %s83 = sphi 0, %s85
    %s86 = sphi 0, %s83
    %s87 = sphi 0, %s86
    %s103 = sphi 0, %s87
    %s111 = sphi 0, %s113
    %s114 = sphi 0, %s111
    %s115 = sphi 0, %s114
    %s131 = sphi 0, %s115
  $region4: #{a_call__.2} parent=0 // loop_header_branch
    %12 = sbr.rel (%p10) target = $region8
  $region5: #{a_call__.2} parent=0 // loop_body
    %s14 = ssub.s32 %s9, 1
    %s15 = ssub.s32 %s9, 2
    %s22 = sadd.s32 1, %s17
    %p23 = scmp.ge.s32.totalorder %s22, 1
    %s24 = scalar_select %p23, 0, %s22
    %s25 = sadd.s32 1, %s16
    %s26 = scalar_select %p23, %s25, %s16
    %p27 = scmp.ge.s32.totalorder %s26, 3
    %s28 = scalar_select %p27, 0, %s26
    %s29 = ssub.s32 %s16, %s28
    %p30 = scmp.eq.s32.totalorder %s29, 0
    %s32 = sadd.s32 %s31, 1
    %s33 = scalar_select %p30, %s31, %s32
    %p36 = pneg %p30
    %p37 = scmp.eq.s32.totalorder %s9, 2
    %p38 = por %p36, %p37
    %p39 = scmp.ne.s32.totalorder %s31, %s34
    %p40 = scmp.eq.s32.totalorder %s9, 0
    %p41 = por %p39, %p40
    %p42 = scmp.ne.s32.totalorder %s31, %s34
    %p43 = scmp.eq.s32.totalorder %s14, 2
    %p44 = por %p42, %p43
    %p45 = scmp.ne.s32.totalorder %s34, %s35
    %p46 = scmp.eq.s32.totalorder %s14, 0
    %p47 = por %p45, %p46
    %p48 = scmp.ne.s32.totalorder %s34, %s35
    %p49 = scmp.eq.s32.totalorder %s15, 2
    %p50 = por %p48, %p49
    %p52 = scmp.ne.s32.totalorder %s35, %s51
    %p53 = scmp.eq.s32.totalorder %s15, 0
    %p54 = por %p52, %p53
    %s55 = ssub.s32 %s17, %s24
    %p56 = scmp.eq.s32.totalorder %s55, 0
    %s58 = sadd.s32 %s57, 1
    %s59 = scalar_select %p56, %s57, %s58
    %p62 = pneg %p56
    %p63 = scmp.eq.s32.totalorder %s9, 2
    %p64 = por %p62, %p63
    %p65 = scmp.ne.s32.totalorder %s57, %s60
    %p66 = scmp.eq.s32.totalorder %s9, 0
    %p67 = por %p65, %p66
    %p68 = scmp.ne.s32.totalorder %s57, %s60
    %p69 = scmp.eq.s32.totalorder %s14, 2
    %p70 = por %p68, %p69
    %p71 = scmp.ne.s32.totalorder %s60, %s61
    %p72 = scmp.eq.s32.totalorder %s14, 0
    %p73 = por %p71, %p72
    %p74 = scmp.ne.s32.totalorder %s60, %s61
    %p75 = scmp.eq.s32.totalorder %s15, 2
    %p76 = por %p74, %p75
    %p78 = scmp.ne.s32.totalorder %s61, %s77
    %p79 = scmp.eq.s32.totalorder %s15, 0
    %p80 = por %p78, %p79
    %s81 = ssub.s32 %s17, %s24
    %p82 = scmp.eq.s32.totalorder %s81, 0
    %s84 = sadd.s32 %s83, 1
    %s85 = scalar_select %p82, %s83, %s84
    %p88 = pneg %p82
    %p89 = scmp.eq.s32.totalorder %s9, 2
    %p90 = por %p88, %p89
    %p91 = scmp.ne.s32.totalorder %s83, %s86
    %p92 = scmp.eq.s32.totalorder %s9, 0
    %p93 = por %p91, %p92
    %p94 = scmp.ne.s32.totalorder %s83, %s86
    %p95 = scmp.eq.s32.totalorder %s14, 2
    %p96 = por %p94, %p95
    %p97 = scmp.ne.s32.totalorder %s86, %s87
    %p98 = scmp.eq.s32.totalorder %s14, 0
    %p99 = por %p97, %p98
    %p100 = scmp.ne.s32.totalorder %s86, %s87
    %p101 = scmp.eq.s32.totalorder %s15, 2
    %p102 = por %p100, %p101
    %p104 = scmp.ne.s32.totalorder %s87, %s103
    %p105 = scmp.eq.s32.totalorder %s15, 0
    %p106 = por %p104, %p105
    %s107 = ssub.s32 %s16, %s28
    %s108 = ssub.s32 %s17, %s24
    %s109 = sor.u32 %s107, %s108
    %p110 = scmp.eq.s32.totalorder %s109, 0
    %s112 = sadd.s32 %s111, 1
    %s113 = scalar_select %p110, %s111, %s112
    %p116 = pneg %p110
    %p117 = scmp.eq.s32.totalorder %s9, 2
    %p118 = por %p116, %p117
    %p119 = scmp.ne.s32.totalorder %s111, %s114
    %p120 = scmp.eq.s32.totalorder %s9, 0
    %p121 = por %p119, %p120
    %p122 = scmp.ne.s32.totalorder %s111, %s114
    %p123 = scmp.eq.s32.totalorder %s14, 2
    %p124 = por %p122, %p123
    %p125 = scmp.ne.s32.totalorder %s114, %s115
    %p126 = scmp.eq.s32.totalorder %s14, 0
    %p127 = por %p125, %p126
    %p128 = scmp.ne.s32.totalorder %s114, %s115
    %p129 = scmp.eq.s32.totalorder %s15, 2
    %p130 = por %p128, %p129
    %p132 = scmp.ne.s32.totalorder %s115, %s131
    %p133 = scmp.eq.s32.totalorder %s15, 0
    %p134 = por %p132, %p133
    %p135 = scmp.le.s32.totalorder 1, %s9
    %p136 = scmp.lt.s32.totalorder %s9, 4
    %p137 = pnand %p135, %p136
    %p138 = pneg %p137
    // Predicated region
    $region9: #{a_call__.2} parent=5 // pred_check
      _
    $region10: #{a_call__.2} parent=5 // pred_check_branch
      %140 = sbr.rel (%p137) target = $region12
    $region11: #{a_call__.2} parent=5 // pred_region
      %s141 = ssub.s32 %s9, 1
      // Predicated region
      $region13: #{a_call__.2} parent=11 // pred_check
        %p142 = pneg %p73
      $region14: #{a_call__.2} parent=11 // pred_check_branch
        %144 = sbr.rel (%p142) target = $region16
      $region15: #{a_call__.2} parent=11 // pred_region
        %p145 = scmp.lt.s32.totalorder %s19, 0
        %s146 = scalar_select %p145, %s19, 0
        %s147 = smul.addr %s146, 4
        %s148 = scalar_lea.vmem %s1, %s147
      $region16: #{a_call__.2} parent=11 // pred_fallthru
        _
      // Predicated region
      $region17: #{a_call__.2} parent=11 // pred_check
        %p149 = pneg %p99
      $region18: #{a_call__.2} parent=11 // pred_check_branch
        %151 = sbr.rel (%p149) target = $region20
      $region19: #{a_call__.2} parent=11 // pred_region
        %p152 = scmp.lt.s32.totalorder %s19, 0
        %s153 = scalar_select %p152, %s19, 0
        %s154 = scalar_lea.vmem %s2, %s153
      $region20: #{a_call__.2} parent=11 // pred_fallthru
        _
    $region12: #{a_call__.2} parent=5 // pred_fallthru
      _
    %p155 = scmp.lt.s32.totalorder %s9, 3
    // Predicated region
    $region21: #{a_call__.2} parent=5 // pred_check
      %p156 = pneg %p155
    $region22: #{a_call__.2} parent=5 // pred_check_branch
      %158 = sbr.rel (%p156) target = $region24
    $region23: #{a_call__.2} parent=5 // pred_region
      // Predicated region
      $region25: #{a_call__.2} parent=23 // pred_check
        %p159 = pneg %p41
      $region26: #{a_call__.2} parent=23 // pred_check_branch
        %161 = sbr.rel (%p159) target = $region28
      $region27: #{a_call__.2} parent=23 // pred_region
        %s162 = smul.u32 18, %s16
        %p163 = scmp.lt.s32.totalorder %s162, 53
        %s164 = scalar_select %p163, %s162, 53
        %s165 = smul.addr %s164, 3
        %s166 = smul.addr %s165, 4
        %s167 = scalar_lea.vmem %s0, %s166
        %s168 = smul.u32 18, %s16
      $region28: #{a_call__.2} parent=23 // pred_fallthru
        _
    $region24: #{a_call__.2} parent=5 // pred_fallthru
      _
    %p169 = scmp.le.s32.totalorder 1, %s9
    %p170 = scmp.lt.s32.totalorder %s9, 4
    %p171 = pnand %p169, %p170
    %p172 = pneg %p171
    // Predicated region
    $region29: #{a_call__.2} parent=5 // pred_check
      _
    $region30: #{a_call__.2} parent=5 // pred_check_branch
      %174 = sbr.rel (%p171) target = $region32
    $region31: #{a_call__.2} parent=5 // pred_region
      %s175 = ssub.s32 %s9, 1
      %s176 = smul.u32 18, %s18
      %p177 = scmp.lt.s32.totalorder %s176, 53
      %s178 = scalar_select %p177, %s176, 53
      %s179 = smul.addr %s178, 3
      %s180 = smul.addr %s179, 4
      %s181 = scalar_lea.vmem %s0, %s180
      %p182 = pneg %p47
      %p183 = pneg %p44
      %p184 = scmp.lt.s32.totalorder %s19, 0
      %s185 = scalar_select %p184, %s19, 0
      %s186 = smul.addr %s185, 4
      %s187 = scalar_lea.vmem %s1, %s186
      %p188 = pneg %p73
      %p189 = pneg %p70
      %p190 = scmp.lt.s32.totalorder %s19, 0
      %s191 = scalar_select %p190, %s19, 0
      %s192 = scalar_lea.vmem %s2, %s191
      %p193 = pneg %p99
      %p194 = pneg %p96
      %p195 = pneg %p127
      %p196 = pneg %p124
      %s197 = smul.u32 18, %s18
      %p198 = scmp.lt.s32.totalorder %s197, 53
      %s199 = scalar_select %p198, %s197, 53
      %p200 = scmp.lt.s32.totalorder %s19, 0
      %s201 = scalar_select %p200, %s19, 0
      %s202 = sadd.s32 %s201, %s199
      %s203 = smul.addr %s202, 4
      %s204 = scalar_lea.vmem %s3, %s203
      %s205 = smul.u32 18, %s18
      %p206 = scmp.lt.s32.totalorder %s205, 53
      %s207 = scalar_select %p206, %s205, 53
      %s208 = smul.addr %s207, 3
      %s209 = smul.addr %s208, 4
      %s210 = scalar_lea.vmem %s0, %s209
      %s211 = smul.u32 18, %s18
      %p212 = scmp.lt.s32.totalorder %s19, 0
      %s213 = scalar_select %p212, %s19, 0
      %s214 = smul.addr %s213, 4
      %s215 = scalar_lea.vmem %s1, %s214
      %p216 = scmp.lt.s32.totalorder %s19, 0
      %s217 = scalar_select %p216, %s19, 0
      %s218 = scalar_lea.vmem %s2, %s217
      %s219 = smul.u32 18, %s18
      %p220 = scmp.lt.s32.totalorder %s219, 53
      %s221 = scalar_select %p220, %s219, 53
      %p222 = scmp.lt.s32.totalorder %s19, 0
      %s223 = scalar_select %p222, %s19, 0
      %s224 = sadd.s32 %s223, %s221
      %s225 = smul.addr %s224, 4
      %s226 = scalar_lea.vmem %s3, %s225
      %s227 = smul.u32 18, %s18
      %v229 = vld [vmem:[%s210] sm:$0xff]
      %v230 = vld [vmem:[%s210 + $0x8] sm:$0xf]
      %v231 = vld [vmem:[%s210 + $0xc] sm:$0xff]
      %v232 = vld [vmem:[%s210 + $0x14] sm:$0xf]
      %v233 = vld [vmem:[%s210 + $0x18] sm:$0xff]
      %v234 = vld [vmem:[%s210 + $0x20] sm:$0xf]
      %v235 = vld [vmem:[%s210 + $0x24] sm:$0xff]
      %v236 = vld [vmem:[%s210 + $0x2c] sm:$0xf]
      %v237 = vld [vmem:[%s210 + $0x30] sm:$0xff]
      %v238 = vld [vmem:[%s210 + $0x38] sm:$0xf]
      %v239 = vld [vmem:[%s210 + $0x3c] sm:$0xff]
      %v240 = vld [vmem:[%s210 + $0x44] sm:$0xf]
      %v241 = vld [vmem:[%s210 + $0x48] sm:$0xff]
      %v242 = vld [vmem:[%s210 + $0x50] sm:$0xf]
      %v243 = vld [vmem:[%s210 + $0x54] sm:$0xff]
      %v244 = vld [vmem:[%s210 + $0x5c] sm:$0xf]
      %v245 = vld [vmem:[%s210 + $0x60] sm:$0xff]
      %v246 = vld [vmem:[%s210 + $0x68] sm:$0xf]
      %v247 = vld [vmem:[%s210 + $0x6c] sm:$0xff]
      %v248 = vld [vmem:[%s210 + $0x74] sm:$0xf]
      %v249 = vld [vmem:[%s210 + $0x78] sm:$0xff]
      %v250 = vld [vmem:[%s210 + $0x80] sm:$0xf]
      %v251 = vld [vmem:[%s210 + $0x84] sm:$0xff]
      %v252 = vld [vmem:[%s210 + $0x8c] sm:$0xf]
      %v253 = vld [vmem:[%s210 + $0x90] sm:$0xff]
      %v254 = vld [vmem:[%s210 + $0x98] sm:$0xf]
      %v255 = vld [vmem:[%s210 + $0x9c] sm:$0xff]
      %v256 = vld [vmem:[%s210 + $0xa4] sm:$0xf]
      %v257 = vld [vmem:[%s210 + $0xa8] sm:$0xff]
      %v258 = vld [vmem:[%s210 + $0xb0] sm:$0xf]
      %v259 = vld [vmem:[%s210 + $0xb4] sm:$0xff]
      %v260 = vld [vmem:[%s210 + $0xbc] sm:$0xf]
      %v261 = vld [vmem:[%s210 + $0xc0] sm:$0xff]
      %v262 = vld [vmem:[%s210 + $0xc8] sm:$0xf]
      %v263 = vld [vmem:[%s210 + $0xcc] sm:$0xff]
      %v264 = vld [vmem:[%s210 + $0xd4] sm:$0xf]
      %v265 = vld [vmem:[%s215] sm:$0xf]
      %v266 = vld [vmem:[%s215 + $0x4] sm:$0xf]
      %v267 = vld [vmem:[%s215 + $0x8] sm:$0xf]
      %v268 = vld [vmem:[%s215 + $0xc] sm:$0xf]
      %v269 = vld [vmem:[%s215 + $0x10] sm:$0xf]
      %v270 = vld [vmem:[%s215 + $0x14] sm:$0xf]
      %v271 = vld [vmem:[%s215 + $0x18] sm:$0xf]
      %v272 = vld [vmem:[%s215 + $0x1c] sm:$0xf]
      %v273 = vld [vmem:[%s215 + $0x20] sm:$0xf]
      %v274 = vld [vmem:[%s215 + $0x24] sm:$0xf]
      %v275 = vld [vmem:[%s215 + $0x28] sm:$0xf]
      %v276 = vld [vmem:[%s215 + $0x2c] sm:$0xf]
      %v277 = vld [vmem:[%s215 + $0x30] sm:$0xf]
      %v278 = vld [vmem:[%s215 + $0x34] sm:$0xf]
      %v279 = vld [vmem:[%s215 + $0x38] sm:$0xf]
      %v280 = vld [vmem:[%s215 + $0x3c] sm:$0xf]
      %v281 = vld [vmem:[%s215 + $0x40] sm:$0xf]
      %v282 = vld [vmem:[%s215 + $0x44] sm:$0xf]
      %v283 = vld [vmem:[%s215 + $0x48] sm:$0xf]
      %v284 = vld [vmem:[%s215 + $0x4c] sm:$0xf]
      %v285 = vld [vmem:[%s215 + $0x50] sm:$0xf]
      %v286 = vld [vmem:[%s215 + $0x54] sm:$0xf]
      %v287 = vld [vmem:[%s215 + $0x58] sm:$0xf]
      %v288 = vld [vmem:[%s215 + $0x5c] sm:$0xf]
      %v289 = vld [vmem:[%s215 + $0x60] sm:$0xf]
      %v290 = vld [vmem:[%s215 + $0x64] sm:$0xf]
      %v291 = vld [vmem:[%s215 + $0x68] sm:$0xf]
      %v292 = vld [vmem:[%s215 + $0x6c] sm:$0xf]
      %v293 = vld [vmem:[%s215 + $0x70] sm:$0xf]
      %v294 = vld [vmem:[%s215 + $0x74] sm:$0xf]
      %v295 = vld [vmem:[%s215 + $0x78] sm:$0xf]
      %v296 = vld [vmem:[%s215 + $0x7c] sm:$0xf]
      %v297 = vld [vmem:[%s215 + $0x80] sm:$0xf]
      %v298 = vld [vmem:[%s215 + $0x84] sm:$0xf]
      %v299 = vld [vmem:[%s215 + $0x88] sm:$0xf]
      %v300 = vld [vmem:[%s215 + $0x8c] sm:$0xf]
      %v301 = vld [vmem:[%s215 + $0x90] sm:$0xf]
      %v302 = vld [vmem:[%s215 + $0x94] sm:$0xf]
      %v303 = vld [vmem:[%s215 + $0x98] sm:$0xf]
      %v304 = vld [vmem:[%s215 + $0x9c] sm:$0xf]
      %v305 = vld [vmem:[%s215 + $0xa0] sm:$0xf]
      %v306 = vld [vmem:[%s215 + $0xa4] sm:$0xf]
      %v307 = vld [vmem:[%s215 + $0xa8] sm:$0xf]
      %v308 = vld [vmem:[%s215 + $0xac] sm:$0xf]
      %v309 = vld [vmem:[%s215 + $0xb0] sm:$0xf]
      %v310 = vld [vmem:[%s215 + $0xb4] sm:$0xf]
      %v311 = vld [vmem:[%s215 + $0xb8] sm:$0xf]
      %v312 = vld [vmem:[%s215 + $0xbc] sm:$0xf]
      %v313 = vld [vmem:[%s218] sm:$0x1]
      %v315 = vlaneseq
      %v316 = vshrl.u32 %v315, 7
      %v317 = vsub.s32 0, %v316
      %v318 = vrot.slane %v313, %v317
      %v356 = vunpack.c.l.b16 %v229
      %v357 = vunpack.c.h.b16 %v229
      %v358 = vunpack.c.l.b16 %v230
      %v359 = vunpack.c.l.b16 %v231
      %v360 = vunpack.c.h.b16 %v231
      %v361 = vunpack.c.l.b16 %v232
      %v362 = vunpack.c.l.b16 %v233
      %v363 = vunpack.c.h.b16 %v233
      %v364 = vunpack.c.l.b16 %v234
      %v365 = vunpack.c.l.b16 %v235
      %v366 = vunpack.c.h.b16 %v235
      %v367 = vunpack.c.l.b16 %v236
      %v368 = vunpack.c.l.b16 %v237
      %v369 = vunpack.c.h.b16 %v237
      %v370 = vunpack.c.l.b16 %v238
      %v371 = vunpack.c.l.b16 %v239
      %v372 = vunpack.c.h.b16 %v239
      %v373 = vunpack.c.l.b16 %v240
      %v374 = vunpack.c.l.b16 %v241
      %v375 = vunpack.c.h.b16 %v241
      %v376 = vunpack.c.l.b16 %v242
      %v377 = vunpack.c.l.b16 %v243
      %v378 = vunpack.c.h.b16 %v243
      %v379 = vunpack.c.l.b16 %v244
      %v380 = vunpack.c.l.b16 %v245
      %v381 = vunpack.c.h.b16 %v245
      %v382 = vunpack.c.l.b16 %v246
      %v383 = vunpack.c.l.b16 %v247
      %v384 = vunpack.c.h.b16 %v247
      %v385 = vunpack.c.l.b16 %v248
      %v386 = vunpack.c.l.b16 %v249
      %v387 = vunpack.c.h.b16 %v249
      %v388 = vunpack.c.l.b16 %v250
      %v389 = vunpack.c.l.b16 %v251
      %v390 = vunpack.c.h.b16 %v251
      %v391 = vunpack.c.l.b16 %v252
      %v392 = vunpack.c.l.b16 %v253
      %v393 = vunpack.c.h.b16 %v253
      %v394 = vunpack.c.l.b16 %v254
      %v395 = vunpack.c.l.b16 %v255
      %v396 = vunpack.c.h.b16 %v255
      %v397 = vunpack.c.l.b16 %v256
      %v398 = vunpack.c.l.b16 %v257
      %v399 = vunpack.c.h.b16 %v257
      %v400 = vunpack.c.l.b16 %v258
      %v401 = vunpack.c.l.b16 %v259
      %v402 = vunpack.c.h.b16 %v259
      %v403 = vunpack.c.l.b16 %v260
      %v404 = vunpack.c.l.b16 %v261
      %v405 = vunpack.c.h.b16 %v261
      %v406 = vunpack.c.l.b16 %v262
      %v407 = vunpack.c.l.b16 %v263
      %v408 = vunpack.c.h.b16 %v263
      %v409 = vunpack.c.l.b16 %v264
      %v410 = vpack.c.b16 %v359, %v356
      %v411 = vpack.c.b16 %v360, %v357
      %v412 = vpack.c.b16 %v361, %v358
      %v413 = vpack.c.b16 %v365, %v362
      %v414 = vpack.c.b16 %v366, %v363
      %v415 = vpack.c.b16 %v367, %v364
      %v416 = vpack.c.b16 %v371, %v368
      %v417 = vpack.c.b16 %v372, %v369
      %v418 = vpack.c.b16 %v373, %v370
      %v419 = vpack.c.b16 %v377, %v374
      %v420 = vpack.c.b16 %v378, %v375
      %v421 = vpack.c.b16 %v379, %v376
      %v422 = vpack.c.b16 %v383, %v380
      %v423 = vpack.c.b16 %v384, %v381
      %v424 = vpack.c.b16 %v385, %v382
      %v425 = vpack.c.b16 %v389, %v386
      %v426 = vpack.c.b16 %v390, %v387
      %v427 = vpack.c.b16 %v391, %v388
      %v428 = vpack.c.b16 %v395, %v392
      %v429 = vpack.c.b16 %v396, %v393
      %v430 = vpack.c.b16 %v397, %v394
      %v431 = vpack.c.b16 %v401, %v398
      %v432 = vpack.c.b16 %v402, %v399
      %v433 = vpack.c.b16 %v403, %v400
      %v434 = vpack.c.b16 %v407, %v404
      %v435 = vpack.c.b16 %v408, %v405
      %v436 = vpack.c.b16 %v409, %v406
      %v512 = vunpack.c.l.b16 %v265
      %v513 = vunpack.c.l.b16 %v266
      %v514 = vunpack.c.l.b16 %v267
      %v515 = vunpack.c.l.b16 %v268
      %v516 = vunpack.c.l.b16 %v269
      %v517 = vunpack.c.l.b16 %v270
      %v518 = vunpack.c.l.b16 %v271
      %v519 = vunpack.c.l.b16 %v272
      %v520 = vunpack.c.l.b16 %v273
      %v521 = vunpack.c.l.b16 %v274
      %v522 = vunpack.c.l.b16 %v275
      %v523 = vunpack.c.l.b16 %v276
      %v524 = vunpack.c.l.b16 %v277
      %v525 = vunpack.c.l.b16 %v278
      %v526 = vunpack.c.l.b16 %v279
      %v527 = vunpack.c.l.b16 %v280
      %v528 = vunpack.c.l.b16 %v281
      %v529 = vunpack.c.l.b16 %v282
      %v530 = vunpack.c.l.b16 %v283
      %v531 = vunpack.c.l.b16 %v284
      %v532 = vunpack.c.l.b16 %v285
      %v533 = vunpack.c.l.b16 %v286
      %v534 = vunpack.c.l.b16 %v287
      %v535 = vunpack.c.l.b16 %v288
      %v536 = vunpack.c.l.b16 %v289
      %v537 = vunpack.c.l.b16 %v290
      %v538 = vunpack.c.l.b16 %v291
      %v539 = vunpack.c.l.b16 %v292
      %v540 = vunpack.c.l.b16 %v293
      %v541 = vunpack.c.l.b16 %v294
      %v542 = vunpack.c.l.b16 %v295
      %v543 = vunpack.c.l.b16 %v296
      %v544 = vunpack.c.l.b16 %v297
      %v545 = vunpack.c.l.b16 %v298
      %v546 = vunpack.c.l.b16 %v299
      %v547 = vunpack.c.l.b16 %v300
      %v548 = vunpack.c.l.b16 %v301
      %v549 = vunpack.c.l.b16 %v302
      %v550 = vunpack.c.l.b16 %v303
      %v551 = vunpack.c.l.b16 %v304
      %v552 = vunpack.c.l.b16 %v305
      %v553 = vunpack.c.l.b16 %v306
      %v554 = vunpack.c.l.b16 %v307
      %v555 = vunpack.c.l.b16 %v308
      %v556 = vunpack.c.l.b16 %v309
      %v557 = vunpack.c.l.b16 %v310
      %v558 = vunpack.c.l.b16 %v311
      %v559 = vunpack.c.l.b16 %v312
      %v560 = vpack.c.b16 %v513, %v512
      %v561 = vpack.c.b16 %v515, %v514
      %v562 = vpack.c.b16 %v517, %v516
      %v563 = vpack.c.b16 %v519, %v518
      %v564 = vpack.c.b16 %v521, %v520
      %v565 = vpack.c.b16 %v523, %v522
      %v566 = vpack.c.b16 %v525, %v524
      %v567 = vpack.c.b16 %v527, %v526
      %v568 = vpack.c.b16 %v529, %v528
      %v569 = vpack.c.b16 %v531, %v530
      %v570 = vpack.c.b16 %v533, %v532
      %v571 = vpack.c.b16 %v535, %v534
      %v572 = vpack.c.b16 %v537, %v536
      %v573 = vpack.c.b16 %v539, %v538
      %v574 = vpack.c.b16 %v541, %v540
      %v575 = vpack.c.b16 %v543, %v542
      %v576 = vpack.c.b16 %v545, %v544
      %v577 = vpack.c.b16 %v547, %v546
      %v578 = vpack.c.b16 %v549, %v548
      %v579 = vpack.c.b16 %v551, %v550
      %v580 = vpack.c.b16 %v553, %v552
      %v581 = vpack.c.b16 %v555, %v554
      %v582 = vpack.c.b16 %v557, %v556
      %v583 = vpack.c.b16 %v559, %v558
      %608 = vmatprep.subr.bf16.mxu0 0
      %609 = vmatpush1.bf16.msra.mxu0 %v567
      %610 = vmatprep.subr.bf16.mxu0 0
      %611 = vmatpush1.bf16.msra.mxu0 %v566
      %612 = vmatprep.subr.bf16.mxu0 0
      %613 = vmatpush1.bf16.msra.mxu0 %v565
      %614 = vmatprep.subr.bf16.mxu0 0
      %615 = vmatpush1.bf16.msra.mxu0 %v564
      %616 = vmatprep.subr.bf16.mxu0 0
      %617 = vmatpush1.bf16.msra.mxu0 %v563
      %618 = vmatprep.subr.bf16.mxu0 0
      %619 = vmatpush1.bf16.msra.mxu0 %v562
      %620 = vmatprep.subr.bf16.mxu0 0
      %621 = vmatpush1.bf16.msra.mxu0 %v561
      %622 = vmatprep.subr.bf16.mxu0 0
      %623 = vmatpush1.bf16.msra.mxu0 %v560
      %624 = vmatprep.subr.bf16.mxu0 0
      %625 = vmatpush2.bf16.msra.mxu0 %v575
      %626 = vmatprep.subr.bf16.mxu0 0
      %627 = vmatpush2.bf16.msra.mxu0 %v574
      %628 = vmatprep.subr.bf16.mxu0 0
      %629 = vmatpush2.bf16.msra.mxu0 %v573
      %630 = vmatprep.subr.bf16.mxu0 0
      %631 = vmatpush2.bf16.msra.mxu0 %v572
      %632 = vmatprep.subr.bf16.mxu0 0
      %633 = vmatpush2.bf16.msra.mxu0 %v571
      %634 = vmatprep.subr.bf16.mxu0 0
      %635 = vmatpush2.bf16.msra.mxu0 %v570
      %636 = vmatprep.subr.bf16.mxu0 0
      %637 = vmatpush2.bf16.msra.mxu0 %v569
      %638 = vmatprep.subr.bf16.mxu0 0
      %639 = vmatpush2.bf16.msra.mxu0 %v568
      %640 = vmatprep.mubr.bf16.mxu0 %v411
      %641 = vmatmul.mubr.bf16.gmra.mxu0 %v410
      %v642 = vpop.f32.mrf.mxu0
      %v643 = vadd.f32 %v318, %v642
      %v644 = vpop.f32.mrf.mxu0
      %v645 = vpop.f32.mrf.mxu0
      %v646 = vadd.f32 %v318, %v645
      %v647 = vpop.f32.mrf.mxu0
      %648 = vmatprep.mubr.bf16.mxu0 %v414
      %649 = vmatmul.mubr.bf16.gmra.mxu0 %v413
      %v650 = vpop.f32.mrf.mxu0
      %v651 = vadd.f32 %v318, %v650
      %v652 = vpop.f32.mrf.mxu0
      %v653 = vpop.f32.mrf.mxu0
      %v654 = vadd.f32 %v318, %v653
      %v655 = vpop.f32.mrf.mxu0
      %656 = vmatprep.mubr.bf16.mxu0 %v417
      %657 = vmatmul.mubr.bf16.gmra.mxu0 %v416
      %v658 = vpop.f32.mrf.mxu0
      %v659 = vadd.f32 %v318, %v658
      %v660 = vpop.f32.mrf.mxu0
      %v661 = vpop.f32.mrf.mxu0
      %v662 = vadd.f32 %v318, %v661
      %v663 = vpop.f32.mrf.mxu0
      %664 = vmatprep.mubr.bf16.mxu0 %v420
      %665 = vmatmul.mubr.bf16.gmra.mxu0 %v419
      %v666 = vpop.f32.mrf.mxu0
      %v667 = vadd.f32 %v318, %v666
      %v668 = vpop.f32.mrf.mxu0
      %v669 = vpop.f32.mrf.mxu0
      %v670 = vadd.f32 %v318, %v669
      %v671 = vpop.f32.mrf.mxu0
      %672 = vmatprep.mubr.bf16.mxu0 %v423
      %673 = vmatmul.mubr.bf16.gmra.mxu0 %v422
      %v674 = vpop.f32.mrf.mxu0
      %v675 = vadd.f32 %v318, %v674
      %v676 = vpop.f32.mrf.mxu0
      %v677 = vpop.f32.mrf.mxu0
      %v678 = vadd.f32 %v318, %v677
      %v679 = vpop.f32.mrf.mxu0
      %680 = vmatprep.mubr.bf16.mxu0 %v426
      %681 = vmatmul.mubr.bf16.gmra.mxu0 %v425
      %v682 = vpop.f32.mrf.mxu0
      %v683 = vadd.f32 %v318, %v682
      %v684 = vpop.f32.mrf.mxu0
      %v685 = vpop.f32.mrf.mxu0
      %v686 = vadd.f32 %v318, %v685
      %v687 = vpop.f32.mrf.mxu0
      %688 = vmatprep.mubr.bf16.mxu0 %v429
      %689 = vmatmul.mubr.bf16.gmra.mxu0 %v428
      %v690 = vpop.f32.mrf.mxu0
      %v691 = vadd.f32 %v318, %v690
      %v692 = vpop.f32.mrf.mxu0
      %v693 = vpop.f32.mrf.mxu0
      %v694 = vadd.f32 %v318, %v693
      %v695 = vpop.f32.mrf.mxu0
      %696 = vmatprep.mubr.bf16.mxu0 %v432
      %697 = vmatmul.mubr.bf16.gmra.mxu0 %v431
      %v698 = vpop.f32.mrf.mxu0
      %v699 = vadd.f32 %v318, %v698
      %v700 = vpop.f32.mrf.mxu0
      %v701 = vpop.f32.mrf.mxu0
      %v702 = vadd.f32 %v318, %v701
      %v703 = vpop.f32.mrf.mxu0
      %704 = vmatprep.mubr.bf16.mxu0 %v435
      %705 = vmatmul.mubr.bf16.gmra.mxu0 %v434
      %v706 = vpop.f32.mrf.mxu0
      %v707 = vadd.f32 %v318, %v706
      %v708 = vpop.f32.mrf.mxu0
      %v709 = vpop.f32.mrf.mxu0
      %v710 = vadd.f32 %v318, %v709
      %v711 = vpop.f32.mrf.mxu0
      %712 = vdwg.mxu0
      %713 = vmatprep.subr.bf16.mxu0 0
      %714 = vmatpush1.bf16.msra.mxu0 %v583
      %715 = vmatprep.subr.bf16.mxu0 0
      %716 = vmatpush1.bf16.msra.mxu0 %v582
      %717 = vmatprep.subr.bf16.mxu0 0
      %718 = vmatpush1.bf16.msra.mxu0 %v581
      %719 = vmatprep.subr.bf16.mxu0 0
      %720 = vmatpush1.bf16.msra.mxu0 %v580
      %721 = vmatprep.subr.bf16.mxu0 0
      %722 = vmatpush1.bf16.msra.mxu0 %v579
      %723 = vmatprep.subr.bf16.mxu0 0
      %724 = vmatpush1.bf16.msra.mxu0 %v578
      %725 = vmatprep.subr.bf16.mxu0 0
      %726 = vmatpush1.bf16.msra.mxu0 %v577
      %727 = vmatprep.subr.bf16.mxu0 0
      %728 = vmatpush1.bf16.msra.mxu0 %v576
      %729 = vmatprep.subr.bf16.mxu0 0
      %730 = vmatpush2.bf16.msra.mxu0 0
      %731 = vmatprep.subr.bf16.mxu0 0
      %732 = vmatpush2.bf16.msra.mxu0 0
      %733 = vmatprep.subr.bf16.mxu0 0
      %734 = vmatpush2.bf16.msra.mxu0 0
      %735 = vmatprep.subr.bf16.mxu0 0
      %736 = vmatpush2.bf16.msra.mxu0 0
      %737 = vmatprep.subr.bf16.mxu0 0
      %738 = vmatpush2.bf16.msra.mxu0 0
      %739 = vmatprep.subr.bf16.mxu0 0
      %740 = vmatpush2.bf16.msra.mxu0 0
      %741 = vmatprep.subr.bf16.mxu0 0
      %742 = vmatpush2.bf16.msra.mxu0 0
      %743 = vmatprep.subr.bf16.mxu0 0
      %744 = vmatpush2.bf16.msra.mxu0 0
      %745 = vmatprep.mubr.bf16.mxu0 0
      %746 = vmatmul.mubr.bf16.gmra.mxu0 %v412
      %v747 = vpop.f32.mrf.mxu0
      %v748 = vadd.f32 %v643, %v747
      %v749 = vpop.f32.mrf.mxu0
      %v750 = vpop.f32.mrf.mxu0
      %v751 = vadd.f32 %v646, %v750
      %v752 = vpop.f32.mrf.mxu0
      %753 = vmatprep.mubr.bf16.mxu0 0
      %754 = vmatmul.mubr.bf16.gmra.mxu0 %v415
      %v755 = vpop.f32.mrf.mxu0
      %v756 = vadd.f32 %v651, %v755
      %v757 = vpop.f32.mrf.mxu0
      %v758 = vpop.f32.mrf.mxu0
      %v759 = vadd.f32 %v654, %v758
      %v760 = vpop.f32.mrf.mxu0
      %761 = vmatprep.mubr.bf16.mxu0 0
      %762 = vmatmul.mubr.bf16.gmra.mxu0 %v418
      %v763 = vpop.f32.mrf.mxu0
      %v764 = vadd.f32 %v659, %v763
      %v765 = vpop.f32.mrf.mxu0
      %v766 = vpop.f32.mrf.mxu0
      %v767 = vadd.f32 %v662, %v766
      %v768 = vpop.f32.mrf.mxu0
      %769 = vmatprep.mubr.bf16.mxu0 0
      %770 = vmatmul.mubr.bf16.gmra.mxu0 %v421
      %v771 = vpop.f32.mrf.mxu0
      %v772 = vadd.f32 %v667, %v771
      %v773 = vpop.f32.mrf.mxu0
      %v774 = vpop.f32.mrf.mxu0
      %v775 = vadd.f32 %v670, %v774
      %v776 = vpop.f32.mrf.mxu0
      %777 = vmatprep.mubr.bf16.mxu0 0
      %778 = vmatmul.mubr.bf16.gmra.mxu0 %v424
      %v779 = vpop.f32.mrf.mxu0
      %v780 = vadd.f32 %v675, %v779
      %v781 = vpop.f32.mrf.mxu0
      %v782 = vpop.f32.mrf.mxu0
      %v783 = vadd.f32 %v678, %v782
      %v784 = vpop.f32.mrf.mxu0
      %785 = vmatprep.mubr.bf16.mxu0 0
      %786 = vmatmul.mubr.bf16.gmra.mxu0 %v427
      %v787 = vpop.f32.mrf.mxu0
      %v788 = vadd.f32 %v683, %v787
      %v789 = vpop.f32.mrf.mxu0
      %v790 = vpop.f32.mrf.mxu0
      %v791 = vadd.f32 %v686, %v790
      %v792 = vpop.f32.mrf.mxu0
      %793 = vmatprep.mubr.bf16.mxu0 0
      %794 = vmatmul.mubr.bf16.gmra.mxu0 %v430
      %v795 = vpop.f32.mrf.mxu0
      %v796 = vadd.f32 %v691, %v795
      %v797 = vpop.f32.mrf.mxu0
      %v798 = vpop.f32.mrf.mxu0
      %v799 = vadd.f32 %v694, %v798
      %v800 = vpop.f32.mrf.mxu0
      %801 = vmatprep.mubr.bf16.mxu0 0
      %802 = vmatmul.mubr.bf16.gmra.mxu0 %v433
      %v803 = vpop.f32.mrf.mxu0
      %v804 = vadd.f32 %v699, %v803
      %v805 = vpop.f32.mrf.mxu0
      %v806 = vpop.f32.mrf.mxu0
      %v807 = vadd.f32 %v702, %v806
      %v808 = vpop.f32.mrf.mxu0
      %809 = vmatprep.mubr.bf16.mxu0 0
      %810 = vmatmul.mubr.bf16.gmra.mxu0 %v436
      %v811 = vpop.f32.mrf.mxu0
      %v812 = vadd.f32 %v707, %v811
      %v813 = vpop.f32.mrf.mxu0
      %v814 = vpop.f32.mrf.mxu0
      %v815 = vadd.f32 %v710, %v814
      %v816 = vpop.f32.mrf.mxu0
      %817 = vdwg.mxu0
      %v818 = vmax.f32 %v748, 0.0
      %v819 = vmax.f32 %v751, 0.0
      %v820 = vmax.f32 %v756, 0.0
      %v821 = vmax.f32 %v759, 0.0
      %v822 = vmax.f32 %v764, 0.0
      %v823 = vmax.f32 %v767, 0.0
      %v824 = vmax.f32 %v772, 0.0
      %v825 = vmax.f32 %v775, 0.0
      %v826 = vmax.f32 %v780, 0.0
      %v827 = vmax.f32 %v783, 0.0
      %v828 = vmax.f32 %v788, 0.0
      %v829 = vmax.f32 %v791, 0.0
      %v830 = vmax.f32 %v796, 0.0
      %v831 = vmax.f32 %v799, 0.0
      %v832 = vmax.f32 %v804, 0.0
      %v833 = vmax.f32 %v807, 0.0
      %v834 = vmax.f32 %v812, 0.0
      %v835 = vmax.f32 %v815, 0.0
      %v836 = vpack.c.bf16 %v819, %v818
      %v837 = vpack.c.bf16 %v821, %v820
      %v838 = vpack.c.bf16 %v823, %v822
      %v839 = vpack.c.bf16 %v825, %v824
      %v840 = vpack.c.bf16 %v827, %v826
      %v841 = vpack.c.bf16 %v829, %v828
      %v842 = vpack.c.bf16 %v831, %v830
      %v843 = vpack.c.bf16 %v833, %v832
      %v844 = vpack.c.bf16 %v835, %v834
      %v854 = vunpack.c.l.b16 %v836
      %v855 = vunpack.c.h.b16 %v836
      %v856 = vunpack.c.l.b16 %v837
      %v857 = vunpack.c.h.b16 %v837
      %v858 = vunpack.c.l.b16 %v838
      %v859 = vunpack.c.h.b16 %v838
      %v860 = vunpack.c.l.b16 %v839
      %v861 = vunpack.c.h.b16 %v839
      %v862 = vunpack.c.l.b16 %v840
      %v863 = vunpack.c.h.b16 %v840
      %v864 = vunpack.c.l.b16 %v841
      %v865 = vunpack.c.h.b16 %v841
      %v866 = vunpack.c.l.b16 %v842
      %v867 = vunpack.c.h.b16 %v842
      %v868 = vunpack.c.l.b16 %v843
      %v869 = vunpack.c.h.b16 %v843
      %v870 = vunpack.c.l.b16 %v844
      %v871 = vunpack.c.h.b16 %v844
      %v872 = vpack.c.b16 %v854, %v854
      %v873 = vpack.c.b16 %v855, %v855
      %v874 = vpack.c.b16 %v856, %v856
      %v875 = vpack.c.b16 %v857, %v857
      %v876 = vpack.c.b16 %v858, %v858
      %v877 = vpack.c.b16 %v859, %v859
      %v878 = vpack.c.b16 %v860, %v860
      %v879 = vpack.c.b16 %v861, %v861
      %v880 = vpack.c.b16 %v862, %v862
      %v881 = vpack.c.b16 %v863, %v863
      %v882 = vpack.c.b16 %v864, %v864
      %v883 = vpack.c.b16 %v865, %v865
      %v884 = vpack.c.b16 %v866, %v866
      %v885 = vpack.c.b16 %v867, %v867
      %v886 = vpack.c.b16 %v868, %v868
      %v887 = vpack.c.b16 %v869, %v869
      %v888 = vpack.c.b16 %v870, %v870
      %v889 = vpack.c.b16 %v871, %v871
      %908 = vst [vmem:[%s226] sm:$0xf] %v872
      %909 = vst [vmem:[%s226 + $0x4] sm:$0xf] %v873
      %910 = vst [vmem:[%s226 + $0x8] sm:$0xf] %v874
      %911 = vst [vmem:[%s226 + $0xc] sm:$0xf] %v875
      %912 = vst [vmem:[%s226 + $0x10] sm:$0xf] %v876
      %913 = vst [vmem:[%s226 + $0x14] sm:$0xf] %v877
      %914 = vst [vmem:[%s226 + $0x18] sm:$0xf] %v878
      %915 = vst [vmem:[%s226 + $0x1c] sm:$0xf] %v879
      %916 = vst [vmem:[%s226 + $0x20] sm:$0xf] %v880
      %917 = vst [vmem:[%s226 + $0x24] sm:$0xf] %v881
      %918 = vst [vmem:[%s226 + $0x28] sm:$0xf] %v882
      %919 = vst [vmem:[%s226 + $0x2c] sm:$0xf] %v883
      %920 = vst [vmem:[%s226 + $0x30] sm:$0xf] %v884
      %921 = vst [vmem:[%s226 + $0x34] sm:$0xf] %v885
      %922 = vst [vmem:[%s226 + $0x38] sm:$0xf] %v886
      %923 = vst [vmem:[%s226 + $0x3c] sm:$0xf] %v887
      %924 = vst [vmem:[%s226 + $0x40] sm:$0xf] %v888
      %925 = vst [vmem:[%s226 + $0x44] sm:$0xf] %v889
      %s926 = smul.u32 18, %s18
      %p927 = scmp.lt.s32.totalorder %s926, 53
      %s928 = scalar_select %p927, %s926, 53
      %p929 = scmp.lt.s32.totalorder %s19, 0
      %s930 = scalar_select %p929, %s19, 0
      %s931 = sadd.s32 %s930, %s928
      %s932 = smul.addr %s931, 4
      %s933 = scalar_lea.vmem %s3, %s932
      // Predicated region
      $region33: #{a_call__.2} parent=31 // pred_check
        %p934 = pneg %p124
      $region34: #{a_call__.2} parent=31 // pred_check_branch
        %936 = sbr.rel (%p934) target = $region36
      $region35: #{a_call__.2} parent=31 // pred_region
        %s937 = smul.u32 18, %s18
      $region36: #{a_call__.2} parent=31 // pred_fallthru
        _
    $region32: #{a_call__.2} parent=5 // pred_fallthru
      _
    %p938 = scmp.le.s32.totalorder 2, %s9
    // Predicated region
    $region37: #{a_call__.2} parent=5 // pred_check
      %p939 = pneg %p938
    $region38: #{a_call__.2} parent=5 // pred_check_branch
      %941 = sbr.rel (%p939) target = $region40
    $region39: #{a_call__.2} parent=5 // pred_region
      %s942 = ssub.s32 %s9, 2
      // Predicated region
      $region41: #{a_call__.2} parent=39 // pred_check
        %p943 = pneg %p130
      $region42: #{a_call__.2} parent=39 // pred_check_branch
        %945 = sbr.rel (%p943) target = $region44
      $region43: #{a_call__.2} parent=39 // pred_region
        %s946 = smul.u32 18, %s20
        %p947 = scmp.lt.s32.totalorder %s946, 53
        %s948 = scalar_select %p947, %s946, 53
        %p949 = scmp.lt.s32.totalorder %s21, 0
        %s950 = scalar_select %p949, %s21, 0
        %s951 = sadd.s32 %s950, %s948
        %s952 = smul.addr %s951, 4
        %s953 = scalar_lea.vmem %s3, %s952
      $region44: #{a_call__.2} parent=39 // pred_fallthru
        _
    $region40: #{a_call__.2} parent=5 // pred_fallthru
      _
  $region6: #{a_call__.2} parent=0 // loop_footer
    %s13 = sadd.s32 1, %s9
  $region7: #{a_call__.2} parent=0 // loop_footer_branch
    %8 = sbr.rel target = $region3
  $region8: #{a_call__.2} parent=0 // loop_exit
    _

// kernel: a_call__.3
$region0: #{a_call__.3}
  #allocation0 [shape = 'u32[]', space=smem, size = 0x4, offset = 0x4, fixed_abs, tag = 'smem constant byte address 0x4 - core index']
  #allocation1 [shape = 'u32[144,128]{1,0:T(1,128)}', space=vmem, size = 0x12000, scoped, tag = 'internal scratch']
  %s0 = inlined_call_operand.vmem [shape: bf16[8,16,3456], index: 0, kind: input, shape index: {}]
  %s1 = inlined_call_operand.vmem [shape: bf16[3456,128], index: 1, kind: input, shape index: {}]
  %s2 = inlined_call_operand.vmem [shape: f32[1,128], index: 2, kind: input, shape index: {}]
  %s3 = inlined_call_operand.vmem [shape: bf16[8,128,256], index: 3, kind: input, shape index: {}]
  %s4 = inlined_call_operand.vmem [shape: f32[1,256], index: 4, kind: input, shape index: {}]
  %s5 = inlined_call_operand.vmem [shape: bf16[256,128], index: 5, kind: input, shape index: {}]
  %s6 = inlined_call_operand.vmem [shape: f32[1,128], index: 6, kind: input, shape index: {}, may-alias: {6,8}]
  %s7 = inlined_call_operand.vmem [shape: bf16[128,128], index: 7, kind: input, shape index: {}]
  %s8 = inlined_call_operand.vmem [shape: f32[1,128], index: 8, kind: input, shape index: {}, may-alias: {6,8}]
  %s9 = inlined_call_operand.vmem [shape: f32[16,128], index: 9, kind: output, shape index: {}]
  %s10 = sld [smem:[#allocation0]]
  $region46: #{a_call__.3} parent=0
    _
  %s12 = ssub.s32 1, %s10
  %s13 = scalar_select 0, %s12, %s10
  // Predicated region
  $region2: #{a_call__.3} parent=0 // pred_check
    _
  $region3: #{a_call__.3} parent=0 // pred_check_branch
    %15 = sbr.rel (0) target = $region5
  $region4: #{a_call__.3} parent=0 // pred_region
    _
  $region5: #{a_call__.3} parent=0 // pred_fallthru
    _
  // Predicated region
  $region6: #{a_call__.3} parent=0 // pred_check
    _
  $region7: #{a_call__.3} parent=0 // pred_check_branch
    %17 = sbr.rel (0) target = $region9
  $region8: #{a_call__.3} parent=0 // pred_region
    _
  $region9: #{a_call__.3} parent=0 // pred_fallthru
    _
  // Predicated region
  $region10: #{a_call__.3} parent=0 // pred_check
    _
  $region11: #{a_call__.3} parent=0 // pred_check_branch
    %19 = sbr.rel (0) target = $region13
  $region12: #{a_call__.3} parent=0 // pred_region
    _
  $region13: #{a_call__.3} parent=0 // pred_fallthru
    _
  // Predicated region
  $region14: #{a_call__.3} parent=0 // pred_check
    _
  $region15: #{a_call__.3} parent=0 // pred_check_branch
    %21 = sbr.rel (0) target = $region17
  $region16: #{a_call__.3} parent=0 // pred_region
    _
  $region17: #{a_call__.3} parent=0 // pred_fallthru
    _
  // Predicated region
  $region18: #{a_call__.3} parent=0 // pred_check
    _
  $region19: #{a_call__.3} parent=0 // pred_check_branch
    %23 = sbr.rel (0) target = $region21
  $region20: #{a_call__.3} parent=0 // pred_region
    _
  $region21: #{a_call__.3} parent=0 // pred_fallthru
    _
  // Predicated region
  $region22: #{a_call__.3} parent=0 // pred_check
    _
  $region23: #{a_call__.3} parent=0 // pred_check_branch
    %25 = sbr.rel (0) target = $region25
  $region24: #{a_call__.3} parent=0 // pred_region
    _
  $region25: #{a_call__.3} parent=0 // pred_fallthru
    _
  // Predicated region
  $region26: #{a_call__.3} parent=0 // pred_check
    _
  $region27: #{a_call__.3} parent=0 // pred_check_branch
    %27 = sbr.rel (0) target = $region29
  $region28: #{a_call__.3} parent=0 // pred_region
    _
  $region29: #{a_call__.3} parent=0 // pred_fallthru
    _
  // Predicated region
  $region30: #{a_call__.3} parent=0 // pred_check
    _
  $region31: #{a_call__.3} parent=0 // pred_check_branch
    %29 = sbr.rel (0) target = $region33
  $region32: #{a_call__.3} parent=0 // pred_region
    _
  $region33: #{a_call__.3} parent=0 // pred_fallthru
    _
  // Predicated region
  $region34: #{a_call__.3} parent=0 // pred_check
    _
  $region35: #{a_call__.3} parent=0 // pred_check_branch
    %31 = sbr.rel (0) target = $region37
  $region36: #{a_call__.3} parent=0 // pred_region
    _
  $region37: #{a_call__.3} parent=0 // pred_fallthru
    _
  %v33 = vld [vmem:[%s1] sm:$0xf]
  %v34 = vld [vmem:[%s1 + $0x4] sm:$0xf]
  %v35 = vld [vmem:[%s1 + $0x8] sm:$0xf]
  %v36 = vld [vmem:[%s1 + $0xc] sm:$0xf]
  %v37 = vld [vmem:[%s1 + $0x10] sm:$0xf]
  %v38 = vld [vmem:[%s1 + $0x14] sm:$0xf]
  %v39 = vld [vmem:[%s1 + $0x18] sm:$0xf]
  %v40 = vld [vmem:[%s1 + $0x1c] sm:$0xf]
  %v41 = vld [vmem:[%s1 + $0x20] sm:$0xf]
  %v42 = vld [vmem:[%s1 + $0x24] sm:$0xf]
  %v43 = vld [vmem:[%s1 + $0x28] sm:$0xf]
  %v44 = vld [vmem:[%s1 + $0x2c] sm:$0xf]
  %v45 = vld [vmem:[%s1 + $0x30] sm:$0xf]
  %v46 = vld [vmem:[%s1 + $0x34] sm:$0xf]
  %v47 = vld [vmem:[%s1 + $0x38] sm:$0xf]
  %v48 = vld [vmem:[%s1 + $0x3c] sm:$0xf]
  %v49 = vld [vmem:[%s1 + $0x40] sm:$0xf]
  %v50 = vld [vmem:[%s1 + $0x44] sm:$0xf]
  %v51 = vld [vmem:[%s1 + $0x48] sm:$0xf]
  %v52 = vld [vmem:[%s1 + $0x4c] sm:$0xf]
  %v53 = vld [vmem:[%s1 + $0x50] sm:$0xf]
  %v54 = vld [vmem:[%s1 + $0x54] sm:$0xf]
  %v55 = vld [vmem:[%s1 + $0x58] sm:$0xf]
  %v56 = vld [vmem:[%s1 + $0x5c] sm:$0xf]
  %v57 = vld [vmem:[%s1 + $0x60] sm:$0xf]
  %v58 = vld [vmem:[%s1 + $0x64] sm:$0xf]
  %v59 = vld [vmem:[%s1 + $0x68] sm:$0xf]
  %v60 = vld [vmem:[%s1 + $0x6c] sm:$0xf]
  %v61 = vld [vmem:[%s1 + $0x70] sm:$0xf]
  %v62 = vld [vmem:[%s1 + $0x74] sm:$0xf]
  %v63 = vld [vmem:[%s1 + $0x78] sm:$0xf]
  %v64 = vld [vmem:[%s1 + $0x7c] sm:$0xf]
  %v65 = vld [vmem:[%s1 + $0x80] sm:$0xf]
  %v66 = vld [vmem:[%s1 + $0x84] sm:$0xf]
  %v67 = vld [vmem:[%s1 + $0x88] sm:$0xf]
  %v68 = vld [vmem:[%s1 + $0x8c] sm:$0xf]
  %v69 = vld [vmem:[%s1 + $0x90] sm:$0xf]
  %v70 = vld [vmem:[%s1 + $0x94] sm:$0xf]
  %v71 = vld [vmem:[%s1 + $0x98] sm:$0xf]
  %v72 = vld [vmem:[%s1 + $0x9c] sm:$0xf]
  %v73 = vld [vmem:[%s1 + $0xa0] sm:$0xf]
  %v74 = vld [vmem:[%s1 + $0xa4] sm:$0xf]
  %v75 = vld [vmem:[%s1 + $0xa8] sm:$0xf]
  %v76 = vld [vmem:[%s1 + $0xac] sm:$0xf]
  %v77 = vld [vmem:[%s1 + $0xb0] sm:$0xf]
  %v78 = vld [vmem:[%s1 + $0xb4] sm:$0xf]
  %v79 = vld [vmem:[%s1 + $0xb8] sm:$0xf]
  %v80 = vld [vmem:[%s1 + $0xbc] sm:$0xf]
  %v81 = vld [vmem:[%s1 + $0xc0] sm:$0xf]
  %v82 = vld [vmem:[%s1 + $0xc4] sm:$0xf]
  %v83 = vld [vmem:[%s1 + $0xc8] sm:$0xf]
  %v84 = vld [vmem:[%s1 + $0xcc] sm:$0xf]
  %v85 = vld [vmem:[%s1 + $0xd0] sm:$0xf]
  %v86 = vld [vmem:[%s1 + $0xd4] sm:$0xf]
  %v87 = vld [vmem:[%s1 + $0xd8] sm:$0xf]
  %v88 = vld [vmem:[%s1 + $0xdc] sm:$0xf]
  %v89 = vld [vmem:[%s1 + $0xe0] sm:$0xf]
  %v90 = vld [vmem:[%s1 + $0xe4] sm:$0xf]
  %v91 = vld [vmem:[%s1 + $0xe8] sm:$0xf]
  %v92 = vld [vmem:[%s1 + $0xec] sm:$0xf]
  %v93 = vld [vmem:[%s1 + $0xf0] sm:$0xf]
  %v94 = vld [vmem:[%s1 + $0xf4] sm:$0xf]
  %v95 = vld [vmem:[%s1 + $0xf8] sm:$0xf]
  %v96 = vld [vmem:[%s1 + $0xfc] sm:$0xf]
  %v97 = vld [vmem:[%s1 + $0x100] sm:$0xf]
  %v98 = vld [vmem:[%s1 + $0x104] sm:$0xf]
  %v99 = vld [vmem:[%s1 + $0x108] sm:$0xf]
  %v100 = vld [vmem:[%s1 + $0x10c] sm:$0xf]
  %v101 = vld [vmem:[%s1 + $0x110] sm:$0xf]
  %v102 = vld [vmem:[%s1 + $0x114] sm:$0xf]
  %v103 = vld [vmem:[%s1 + $0x118] sm:$0xf]
  %v104 = vld [vmem:[%s1 + $0x11c] sm:$0xf]
  %v105 = vld [vmem:[%s1 + $0x120] sm:$0xf]
  %v106 = vld [vmem:[%s1 + $0x124] sm:$0xf]
  %v107 = vld [vmem:[%s1 + $0x128] sm:$0xf]
  %v108 = vld [vmem:[%s1 + $0x12c] sm:$0xf]
  %v109 = vld [vmem:[%s1 + $0x130] sm:$0xf]
  %v110 = vld [vmem:[%s1 + $0x134] sm:$0xf]
  %v111 = vld [vmem:[%s1 + $0x138] sm:$0xf]
  %v112 = vld [vmem:[%s1 + $0x13c] sm:$0xf]
  %v113 = vld [vmem:[%s1 + $0x140] sm:$0xf]
  %v114 = vld [vmem:[%s1 + $0x144] sm:$0xf]
  %v115 = vld [vmem:[%s1 + $0x148] sm:$0xf]
  %v116 = vld [vmem:[%s1 + $0x14c] sm:$0xf]
  %v117 = vld [vmem:[%s1 + $0x150] sm:$0xf]
  %v118 = vld [vmem:[%s1 + $0x154] sm:$0xf]
  %v119 = vld [vmem:[%s1 + $0x158] sm:$0xf]
  %v120 = vld [vmem:[%s1 + $0x15c] sm:$0xf]
  %v121 = vld [vmem:[%s1 + $0x160] sm:$0xf]
  %v122 = vld [vmem:[%s1 + $0x164] sm:$0xf]
  %v123 = vld [vmem:[%s1 + $0x168] sm:$0xf]
  %v124 = vld [vmem:[%s1 + $0x16c] sm:$0xf]
  %v125 = vld [vmem:[%s1 + $0x170] sm:$0xf]
  %v126 = vld [vmem:[%s1 + $0x174] sm:$0xf]
  %v127 = vld [vmem:[%s1 + $0x178] sm:$0xf]
  %v128 = vld [vmem:[%s1 + $0x17c] sm:$0xf]
  %v129 = vld [vmem:[%s1 + $0x180] sm:$0xf]
  %v130 = vld [vmem:[%s1 + $0x184] sm:$0xf]
  %v131 = vld [vmem:[%s1 + $0x188] sm:$0xf]
  %v132 = vld [vmem:[%s1 + $0x18c] sm:$0xf]
  %v133 = vld [vmem:[%s1 + $0x190] sm:$0xf]
  %v134 = vld [vmem:[%s1 + $0x194] sm:$0xf]
  %v135 = vld [vmem:[%s1 + $0x198] sm:$0xf]
  %v136 = vld [vmem:[%s1 + $0x19c] sm:$0xf]
  %v137 = vld [vmem:[%s1 + $0x1a0] sm:$0xf]
  %v138 = vld [vmem:[%s1 + $0x1a4] sm:$0xf]
  %v139 = vld [vmem:[%s1 + $0x1a8] sm:$0xf]
  %v140 = vld [vmem:[%s1 + $0x1ac] sm:$0xf]
  %v141 = vld [vmem:[%s1 + $0x1b0] sm:$0xf]
  %v142 = vld [vmem:[%s1 + $0x1b4] sm:$0xf]
  %v143 = vld [vmem:[%s1 + $0x1b8] sm:$0xf]
  %v144 = vld [vmem:[%s1 + $0x1bc] sm:$0xf]
  %v145 = vld [vmem:[%s1 + $0x1c0] sm:$0xf]
  %v146 = vld [vmem:[%s1 + $0x1c4] sm:$0xf]
  %v147 = vld [vmem:[%s1 + $0x1c8] sm:$0xf]
  %v148 = vld [vmem:[%s1 + $0x1cc] sm:$0xf]
  %v149 = vld [vmem:[%s1 + $0x1d0] sm:$0xf]
  %v150 = vld [vmem:[%s1 + $0x1d4] sm:$0xf]
  %v151 = vld [vmem:[%s1 + $0x1d8] sm:$0xf]
  %v152 = vld [vmem:[%s1 + $0x1dc] sm:$0xf]
  %v153 = vld [vmem:[%s1 + $0x1e0] sm:$0xf]
  %v154 = vld [vmem:[%s1 + $0x1e4] sm:$0xf]
  %v155 = vld [vmem:[%s1 + $0x1e8] sm:$0xf]
  %v156 = vld [vmem:[%s1 + $0x1ec] sm:$0xf]
  %v157 = vld [vmem:[%s1 + $0x1f0] sm:$0xf]
  %v158 = vld [vmem:[%s1 + $0x1f4] sm:$0xf]
  %v159 = vld [vmem:[%s1 + $0x1f8] sm:$0xf]
  %v160 = vld [vmem:[%s1 + $0x1fc] sm:$0xf]
  %v161 = vld [vmem:[%s1 + $0x200] sm:$0xf]
  %v162 = vld [vmem:[%s1 + $0x204] sm:$0xf]
  %v163 = vld [vmem:[%s1 + $0x208] sm:$0xf]
  %v164 = vld [vmem:[%s1 + $0x20c] sm:$0xf]
  %v165 = vld [vmem:[%s1 + $0x210] sm:$0xf]
  %v166 = vld [vmem:[%s1 + $0x214] sm:$0xf]
  %v167 = vld [vmem:[%s1 + $0x218] sm:$0xf]
  %v168 = vld [vmem:[%s1 + $0x21c] sm:$0xf]
  %v169 = vld [vmem:[%s1 + $0x220] sm:$0xf]
  %v170 = vld [vmem:[%s1 + $0x224] sm:$0xf]
  %v171 = vld [vmem:[%s1 + $0x228] sm:$0xf]
  %v172 = vld [vmem:[%s1 + $0x22c] sm:$0xf]
  %v173 = vld [vmem:[%s1 + $0x230] sm:$0xf]
  %v174 = vld [vmem:[%s1 + $0x234] sm:$0xf]
  %v175 = vld [vmem:[%s1 + $0x238] sm:$0xf]
  %v176 = vld [vmem:[%s1 + $0x23c] sm:$0xf]
  %v177 = vld [vmem:[%s1 + $0x240] sm:$0xf]
  %v178 = vld [vmem:[%s1 + $0x244] sm:$0xf]
  %v179 = vld [vmem:[%s1 + $0x248] sm:$0xf]
  %v180 = vld [vmem:[%s1 + $0x24c] sm:$0xf]
  %v181 = vld [vmem:[%s1 + $0x250] sm:$0xf]
  %v182 = vld [vmem:[%s1 + $0x254] sm:$0xf]
  %v183 = vld [vmem:[%s1 + $0x258] sm:$0xf]
  %v184 = vld [vmem:[%s1 + $0x25c] sm:$0xf]
  %v185 = vld [vmem:[%s1 + $0x260] sm:$0xf]
  %v186 = vld [vmem:[%s1 + $0x264] sm:$0xf]
  %v187 = vld [vmem:[%s1 + $0x268] sm:$0xf]
  %v188 = vld [vmem:[%s1 + $0x26c] sm:$0xf]
  %v189 = vld [vmem:[%s1 + $0x270] sm:$0xf]
  %v190 = vld [vmem:[%s1 + $0x274] sm:$0xf]
  %v191 = vld [vmem:[%s1 + $0x278] sm:$0xf]
  %v192 = vld [vmem:[%s1 + $0x27c] sm:$0xf]
  %v193 = vld [vmem:[%s1 + $0x280] sm:$0xf]
  %v194 = vld [vmem:[%s1 + $0x284] sm:$0xf]
  %v195 = vld [vmem:[%s1 + $0x288] sm:$0xf]
  %v196 = vld [vmem:[%s1 + $0x28c] sm:$0xf]
  %v197 = vld [vmem:[%s1 + $0x290] sm:$0xf]
  %v198 = vld [vmem:[%s1 + $0x294] sm:$0xf]
  %v199 = vld [vmem:[%s1 + $0x298] sm:$0xf]
  %v200 = vld [vmem:[%s1 + $0x29c] sm:$0xf]
  %v201 = vld [vmem:[%s1 + $0x2a0] sm:$0xf]
  %v202 = vld [vmem:[%s1 + $0x2a4] sm:$0xf]
  %v203 = vld [vmem:[%s1 + $0x2a8] sm:$0xf]
  %v204 = vld [vmem:[%s1 + $0x2ac] sm:$0xf]
  %v205 = vld [vmem:[%s1 + $0x2b0] sm:$0xf]
  %v206 = vld [vmem:[%s1 + $0x2b4] sm:$0xf]
  %v207 = vld [vmem:[%s1 + $0x2b8] sm:$0xf]
  %v208 = vld [vmem:[%s1 + $0x2bc] sm:$0xf]
  %v209 = vld [vmem:[%s1 + $0x2c0] sm:$0xf]
  %v210 = vld [vmem:[%s1 + $0x2c4] sm:$0xf]
  %v211 = vld [vmem:[%s1 + $0x2c8] sm:$0xf]
  %v212 = vld [vmem:[%s1 + $0x2cc] sm:$0xf]
  %v213 = vld [vmem:[%s1 + $0x2d0] sm:$0xf]
  %v214 = vld [vmem:[%s1 + $0x2d4] sm:$0xf]
  %v215 = vld [vmem:[%s1 + $0x2d8] sm:$0xf]
  %v216 = vld [vmem:[%s1 + $0x2dc] sm:$0xf]
  %v217 = vld [vmem:[%s1 + $0x2e0] sm:$0xf]
  %v218 = vld [vmem:[%s1 + $0x2e4] sm:$0xf]
  %v219 = vld [vmem:[%s1 + $0x2e8] sm:$0xf]
  %v220 = vld [vmem:[%s1 + $0x2ec] sm:$0xf]
  %v221 = vld [vmem:[%s1 + $0x2f0] sm:$0xf]
  %v222 = vld [vmem:[%s1 + $0x2f4] sm:$0xf]
  %v223 = vld [vmem:[%s1 + $0x2f8] sm:$0xf]
  %v224 = vld [vmem:[%s1 + $0x2fc] sm:$0xf]
  %v225 = vld [vmem:[%s1 + $0x300] sm:$0xf]
  %v226 = vld [vmem:[%s1 + $0x304] sm:$0xf]
  %v227 = vld [vmem:[%s1 + $0x308] sm:$0xf]
  %v228 = vld [vmem:[%s1 + $0x30c] sm:$0xf]
  %v229 = vld [vmem:[%s1 + $0x310] sm:$0xf]
  %v230 = vld [vmem:[%s1 + $0x314] sm:$0xf]
  %v231 = vld [vmem:[%s1 + $0x318] sm:$0xf]
  %v232 = vld [vmem:[%s1 + $0x31c] sm:$0xf]
  %v233 = vld [vmem:[%s1 + $0x320] sm:$0xf]
  %v234 = vld [vmem:[%s1 + $0x324] sm:$0xf]
  %v235 = vld [vmem:[%s1 + $0x328] sm:$0xf]
  %v236 = vld [vmem:[%s1 + $0x32c] sm:$0xf]
  %v237 = vld [vmem:[%s1 + $0x330] sm:$0xf]
  %v238 = vld [vmem:[%s1 + $0x334] sm:$0xf]
  %v239 = vld [vmem:[%s1 + $0x338] sm:$0xf]
  %v240 = vld [vmem:[%s1 + $0x33c] sm:$0xf]
  %v241 = vld [vmem:[%s1 + $0x340] sm:$0xf]
  %v242 = vld [vmem:[%s1 + $0x344] sm:$0xf]
  %v243 = vld [vmem:[%s1 + $0x348] sm:$0xf]
  %v244 = vld [vmem:[%s1 + $0x34c] sm:$0xf]
  %v245 = vld [vmem:[%s1 + $0x350] sm:$0xf]
  %v246 = vld [vmem:[%s1 + $0x354] sm:$0xf]
  %v247 = vld [vmem:[%s1 + $0x358] sm:$0xf]
  %v248 = vld [vmem:[%s1 + $0x35c] sm:$0xf]
  %v249 = vld [vmem:[%s1 + $0x360] sm:$0xf]
  %v250 = vld [vmem:[%s1 + $0x364] sm:$0xf]
  %v251 = vld [vmem:[%s1 + $0x368] sm:$0xf]
  %v252 = vld [vmem:[%s1 + $0x36c] sm:$0xf]
  %v253 = vld [vmem:[%s1 + $0x370] sm:$0xf]
  %v254 = vld [vmem:[%s1 + $0x374] sm:$0xf]
  %v255 = vld [vmem:[%s1 + $0x378] sm:$0xf]
  %v256 = vld [vmem:[%s1 + $0x37c] sm:$0xf]
  %v257 = vld [vmem:[%s1 + $0x380] sm:$0xf]
  %v258 = vld [vmem:[%s1 + $0x384] sm:$0xf]
  %v259 = vld [vmem:[%s1 + $0x388] sm:$0xf]
  %v260 = vld [vmem:[%s1 + $0x38c] sm:$0xf]
  %v261 = vld [vmem:[%s1 + $0x390] sm:$0xf]
  %v262 = vld [vmem:[%s1 + $0x394] sm:$0xf]
  %v263 = vld [vmem:[%s1 + $0x398] sm:$0xf]
  %v264 = vld [vmem:[%s1 + $0x39c] sm:$0xf]
  %v265 = vld [vmem:[%s1 + $0x3a0] sm:$0xf]
  %v266 = vld [vmem:[%s1 + $0x3a4] sm:$0xf]
  %v267 = vld [vmem:[%s1 + $0x3a8] sm:$0xf]
  %v268 = vld [vmem:[%s1 + $0x3ac] sm:$0xf]
  %v269 = vld [vmem:[%s1 + $0x3b0] sm:$0xf]
  %v270 = vld [vmem:[%s1 + $0x3b4] sm:$0xf]
  %v271 = vld [vmem:[%s1 + $0x3b8] sm:$0xf]
  %v272 = vld [vmem:[%s1 + $0x3bc] sm:$0xf]
  %v273 = vld [vmem:[%s1 + $0x3c0] sm:$0xf]
  %v274 = vld [vmem:[%s1 + $0x3c4] sm:$0xf]
  %v275 = vld [vmem:[%s1 + $0x3c8] sm:$0xf]
  %v276 = vld [vmem:[%s1 + $0x3cc] sm:$0xf]
  %v277 = vld [vmem:[%s1 + $0x3d0] sm:$0xf]
  %v278 = vld [vmem:[%s1 + $0x3d4] sm:$0xf]
  %v279 = vld [vmem:[%s1 + $0x3d8] sm:$0xf]
  %v280 = vld [vmem:[%s1 + $0x3dc] sm:$0xf]
  %v281 = vld [vmem:[%s1 + $0x3e0] sm:$0xf]
  %v282 = vld [vmem:[%s1 + $0x3e4] sm:$0xf]
  %v283 = vld [vmem:[%s1 + $0x3e8] sm:$0xf]
  %v284 = vld [vmem:[%s1 + $0x3ec] sm:$0xf]
  %v285 = vld [vmem:[%s1 + $0x3f0] sm:$0xf]
  %v286 = vld [vmem:[%s1 + $0x3f4] sm:$0xf]
  %v287 = vld [vmem:[%s1 + $0x3f8] sm:$0xf]
  %v288 = vld [vmem:[%s1 + $0x3fc] sm:$0xf]
  %v289 = vld [vmem:[%s1 + $0x400] sm:$0xf]
  %v290 = vld [vmem:[%s1 + $0x404] sm:$0xf]
  %v291 = vld [vmem:[%s1 + $0x408] sm:$0xf]
  %v292 = vld [vmem:[%s1 + $0x40c] sm:$0xf]
  %v293 = vld [vmem:[%s1 + $0x410] sm:$0xf]
  %v294 = vld [vmem:[%s1 + $0x414] sm:$0xf]
  %v295 = vld [vmem:[%s1 + $0x418] sm:$0xf]
  %v296 = vld [vmem:[%s1 + $0x41c] sm:$0xf]
  %v297 = vld [vmem:[%s1 + $0x420] sm:$0xf]
  %v298 = vld [vmem:[%s1 + $0x424] sm:$0xf]
  %v299 = vld [vmem:[%s1 + $0x428] sm:$0xf]
  %v300 = vld [vmem:[%s1 + $0x42c] sm:$0xf]
  %v301 = vld [vmem:[%s1 + $0x430] sm:$0xf]
  %v302 = vld [vmem:[%s1 + $0x434] sm:$0xf]
  %v303 = vld [vmem:[%s1 + $0x438] sm:$0xf]
  %v304 = vld [vmem:[%s1 + $0x43c] sm:$0xf]
  %v305 = vld [vmem:[%s1 + $0x440] sm:$0xf]
  %v306 = vld [vmem:[%s1 + $0x444] sm:$0xf]
  %v307 = vld [vmem:[%s1 + $0x448] sm:$0xf]
  %v308 = vld [vmem:[%s1 + $0x44c] sm:$0xf]
  %v309 = vld [vmem:[%s1 + $0x450] sm:$0xf]
  %v310 = vld [vmem:[%s1 + $0x454] sm:$0xf]
  %v311 = vld [vmem:[%s1 + $0x458] sm:$0xf]
  %v312 = vld [vmem:[%s1 + $0x45c] sm:$0xf]
  %v313 = vld [vmem:[%s1 + $0x460] sm:$0xf]
  %v314 = vld [vmem:[%s1 + $0x464] sm:$0xf]
  %v315 = vld [vmem:[%s1 + $0x468] sm:$0xf]
  %v316 = vld [vmem:[%s1 + $0x46c] sm:$0xf]
  %v317 = vld [vmem:[%s1 + $0x470] sm:$0xf]
  %v318 = vld [vmem:[%s1 + $0x474] sm:$0xf]
  %v319 = vld [vmem:[%s1 + $0x478] sm:$0xf]
  %v320 = vld [vmem:[%s1 + $0x47c] sm:$0xf]
  %v321 = vld [vmem:[%s1 + $0x480] sm:$0xf]
  %v322 = vld [vmem:[%s1 + $0x484] sm:$0xf]
  %v323 = vld [vmem:[%s1 + $0x488] sm:$0xf]
  %v324 = vld [vmem:[%s1 + $0x48c] sm:$0xf]
  %v325 = vld [vmem:[%s1 + $0x490] sm:$0xf]
  %v326 = vld [vmem:[%s1 + $0x494] sm:$0xf]
  %v327 = vld [vmem:[%s1 + $0x498] sm:$0xf]
  %v328 = vld [vmem:[%s1 + $0x49c] sm:$0xf]
  %v329 = vld [vmem:[%s1 + $0x4a0] sm:$0xf]
  %v330 = vld [vmem:[%s1 + $0x4a4] sm:$0xf]
  %v331 = vld [vmem:[%s1 + $0x4a8] sm:$0xf]
  %v332 = vld [vmem:[%s1 + $0x4ac] sm:$0xf]
  %v333 = vld [vmem:[%s1 + $0x4b0] sm:$0xf]
  %v334 = vld [vmem:[%s1 + $0x4b4] sm:$0xf]
  %v335 = vld [vmem:[%s1 + $0x4b8] sm:$0xf]
  %v336 = vld [vmem:[%s1 + $0x4bc] sm:$0xf]
  %v337 = vld [vmem:[%s1 + $0x4c0] sm:$0xf]
  %v338 = vld [vmem:[%s1 + $0x4c4] sm:$0xf]
  %v339 = vld [vmem:[%s1 + $0x4c8] sm:$0xf]
  %v340 = vld [vmem:[%s1 + $0x4cc] sm:$0xf]
  %v341 = vld [vmem:[%s1 + $0x4d0] sm:$0xf]
  %v342 = vld [vmem:[%s1 + $0x4d4] sm:$0xf]
  %v343 = vld [vmem:[%s1 + $0x4d8] sm:$0xf]
  %v344 = vld [vmem:[%s1 + $0x4dc] sm:$0xf]
  %v345 = vld [vmem:[%s1 + $0x4e0] sm:$0xf]
  %v346 = vld [vmem:[%s1 + $0x4e4] sm:$0xf]
  %v347 = vld [vmem:[%s1 + $0x4e8] sm:$0xf]
  %v348 = vld [vmem:[%s1 + $0x4ec] sm:$0xf]
  %v349 = vld [vmem:[%s1 + $0x4f0] sm:$0xf]
  %v350 = vld [vmem:[%s1 + $0x4f4] sm:$0xf]
  %v351 = vld [vmem:[%s1 + $0x4f8] sm:$0xf]
  %v352 = vld [vmem:[%s1 + $0x4fc] sm:$0xf]
  %v353 = vld [vmem:[%s1 + $0x500] sm:$0xf]
  %v354 = vld [vmem:[%s1 + $0x504] sm:$0xf]
  %v355 = vld [vmem:[%s1 + $0x508] sm:$0xf]
  %v356 = vld [vmem:[%s1 + $0x50c] sm:$0xf]
  %v357 = vld [vmem:[%s1 + $0x510] sm:$0xf]
  %v358 = vld [vmem:[%s1 + $0x514] sm:$0xf]
  %v359 = vld [vmem:[%s1 + $0x518] sm:$0xf]
  %v360 = vld [vmem:[%s1 + $0x51c] sm:$0xf]
  %v361 = vld [vmem:[%s1 + $0x520] sm:$0xf]
  %v362 = vld [vmem:[%s1 + $0x524] sm:$0xf]
  %v363 = vld [vmem:[%s1 + $0x528] sm:$0xf]
  %v364 = vld [vmem:[%s1 + $0x52c] sm:$0xf]
  %v365 = vld [vmem:[%s1 + $0x530] sm:$0xf]
  %v366 = vld [vmem:[%s1 + $0x534] sm:$0xf]
  %v367 = vld [vmem:[%s1 + $0x538] sm:$0xf]
  %v368 = vld [vmem:[%s1 + $0x53c] sm:$0xf]
  %v369 = vld [vmem:[%s1 + $0x540] sm:$0xf]
  %v370 = vld [vmem:[%s1 + $0x544] sm:$0xf]
  %v371 = vld [vmem:[%s1 + $0x548] sm:$0xf]
  %v372 = vld [vmem:[%s1 + $0x54c] sm:$0xf]
  %v373 = vld [vmem:[%s1 + $0x550] sm:$0xf]
  %v374 = vld [vmem:[%s1 + $0x554] sm:$0xf]
  %v375 = vld [vmem:[%s1 + $0x558] sm:$0xf]
  %v376 = vld [vmem:[%s1 + $0x55c] sm:$0xf]
  %v377 = vld [vmem:[%s1 + $0x560] sm:$0xf]
  %v378 = vld [vmem:[%s1 + $0x564] sm:$0xf]
  %v379 = vld [vmem:[%s1 + $0x568] sm:$0xf]
  %v380 = vld [vmem:[%s1 + $0x56c] sm:$0xf]
  %v381 = vld [vmem:[%s1 + $0x570] sm:$0xf]
  %v382 = vld [vmem:[%s1 + $0x574] sm:$0xf]
  %v383 = vld [vmem:[%s1 + $0x578] sm:$0xf]
  %v384 = vld [vmem:[%s1 + $0x57c] sm:$0xf]
  %v385 = vld [vmem:[%s1 + $0x580] sm:$0xf]
  %v386 = vld [vmem:[%s1 + $0x584] sm:$0xf]
  %v387 = vld [vmem:[%s1 + $0x588] sm:$0xf]
  %v388 = vld [vmem:[%s1 + $0x58c] sm:$0xf]
  %v389 = vld [vmem:[%s1 + $0x590] sm:$0xf]
  %v390 = vld [vmem:[%s1 + $0x594] sm:$0xf]
  %v391 = vld [vmem:[%s1 + $0x598] sm:$0xf]
  %v392 = vld [vmem:[%s1 + $0x59c] sm:$0xf]
  %v393 = vld [vmem:[%s1 + $0x5a0] sm:$0xf]
  %v394 = vld [vmem:[%s1 + $0x5a4] sm:$0xf]
  %v395 = vld [vmem:[%s1 + $0x5a8] sm:$0xf]
  %v396 = vld [vmem:[%s1 + $0x5ac] sm:$0xf]
  %v397 = vld [vmem:[%s1 + $0x5b0] sm:$0xf]
  %v398 = vld [vmem:[%s1 + $0x5b4] sm:$0xf]
  %v399 = vld [vmem:[%s1 + $0x5b8] sm:$0xf]
  %v400 = vld [vmem:[%s1 + $0x5bc] sm:$0xf]
  %v401 = vld [vmem:[%s1 + $0x5c0] sm:$0xf]
  %v402 = vld [vmem:[%s1 + $0x5c4] sm:$0xf]
  %v403 = vld [vmem:[%s1 + $0x5c8] sm:$0xf]
  %v404 = vld [vmem:[%s1 + $0x5cc] sm:$0xf]
  %v405 = vld [vmem:[%s1 + $0x5d0] sm:$0xf]
  %v406 = vld [vmem:[%s1 + $0x5d4] sm:$0xf]
  %v407 = vld [vmem:[%s1 + $0x5d8] sm:$0xf]
  %v408 = vld [vmem:[%s1 + $0x5dc] sm:$0xf]
  %v409 = vld [vmem:[%s1 + $0x5e0] sm:$0xf]
  %v410 = vld [vmem:[%s1 + $0x5e4] sm:$0xf]
  %v411 = vld [vmem:[%s1 + $0x5e8] sm:$0xf]
  %v412 = vld [vmem:[%s1 + $0x5ec] sm:$0xf]
  %v413 = vld [vmem:[%s1 + $0x5f0] sm:$0xf]
  %v414 = vld [vmem:[%s1 + $0x5f4] sm:$0xf]
  %v415 = vld [vmem:[%s1 + $0x5f8] sm:$0xf]
  %v416 = vld [vmem:[%s1 + $0x5fc] sm:$0xf]
  %v417 = vld [vmem:[%s1 + $0x600] sm:$0xf]
  %v418 = vld [vmem:[%s1 + $0x604] sm:$0xf]
  %v419 = vld [vmem:[%s1 + $0x608] sm:$0xf]
  %v420 = vld [vmem:[%s1 + $0x60c] sm:$0xf]
  %v421 = vld [vmem:[%s1 + $0x610] sm:$0xf]
  %v422 = vld [vmem:[%s1 + $0x614] sm:$0xf]
  %v423 = vld [vmem:[%s1 + $0x618] sm:$0xf]
  %v424 = vld [vmem:[%s1 + $0x61c] sm:$0xf]
  %v425 = vld [vmem:[%s1 + $0x620] sm:$0xf]
  %v426 = vld [vmem:[%s1 + $0x624] sm:$0xf]
  %v427 = vld [vmem:[%s1 + $0x628] sm:$0xf]
  %v428 = vld [vmem:[%s1 + $0x62c] sm:$0xf]
  %v429 = vld [vmem:[%s1 + $0x630] sm:$0xf]
  %v430 = vld [vmem:[%s1 + $0x634] sm:$0xf]
  %v431 = vld [vmem:[%s1 + $0x638] sm:$0xf]
  %v432 = vld [vmem:[%s1 + $0x63c] sm:$0xf]
  %v433 = vld [vmem:[%s1 + $0x640] sm:$0xf]
  %v434 = vld [vmem:[%s1 + $0x644] sm:$0xf]
  %v435 = vld [vmem:[%s1 + $0x648] sm:$0xf]
  %v436 = vld [vmem:[%s1 + $0x64c] sm:$0xf]
  %v437 = vld [vmem:[%s1 + $0x650] sm:$0xf]
  %v438 = vld [vmem:[%s1 + $0x654] sm:$0xf]
  %v439 = vld [vmem:[%s1 + $0x658] sm:$0xf]
  %v440 = vld [vmem:[%s1 + $0x65c] sm:$0xf]
  %v441 = vld [vmem:[%s1 + $0x660] sm:$0xf]
  %v442 = vld [vmem:[%s1 + $0x664] sm:$0xf]
  %v443 = vld [vmem:[%s1 + $0x668] sm:$0xf]
  %v444 = vld [vmem:[%s1 + $0x66c] sm:$0xf]
  %v445 = vld [vmem:[%s1 + $0x670] sm:$0xf]
  %v446 = vld [vmem:[%s1 + $0x674] sm:$0xf]
  %v447 = vld [vmem:[%s1 + $0x678] sm:$0xf]
  %v448 = vld [vmem:[%s1 + $0x67c] sm:$0xf]
  %v449 = vld [vmem:[%s1 + $0x680] sm:$0xf]
  %v450 = vld [vmem:[%s1 + $0x684] sm:$0xf]
  %v451 = vld [vmem:[%s1 + $0x688] sm:$0xf]
  %v452 = vld [vmem:[%s1 + $0x68c] sm:$0xf]
  %v453 = vld [vmem:[%s1 + $0x690] sm:$0xf]
  %v454 = vld [vmem:[%s1 + $0x694] sm:$0xf]
  %v455 = vld [vmem:[%s1 + $0x698] sm:$0xf]
  %v456 = vld [vmem:[%s1 + $0x69c] sm:$0xf]
  %v457 = vld [vmem:[%s1 + $0x6a0] sm:$0xf]
  %v458 = vld [vmem:[%s1 + $0x6a4] sm:$0xf]
  %v459 = vld [vmem:[%s1 + $0x6a8] sm:$0xf]
  %v460 = vld [vmem:[%s1 + $0x6ac] sm:$0xf]
  %v461 = vld [vmem:[%s1 + $0x6b0] sm:$0xf]
  %v462 = vld [vmem:[%s1 + $0x6b4] sm:$0xf]
  %v463 = vld [vmem:[%s1 + $0x6b8] sm:$0xf]
  %v464 = vld [vmem:[%s1 + $0x6bc] sm:$0xf]
  %v465 = vld [vmem:[%s2] sm:$0x1]
  %v466 = vld [vmem:[%s0] sm:$0xff]
  %v467 = vld [vmem:[%s0 + $0x8] sm:$0xff]
  %v468 = vld [vmem:[%s0 + $0x10] sm:$0xff]
  %v469 = vld [vmem:[%s0 + $0x18] sm:$0xff]
  %v470 = vld [vmem:[%s0 + $0x20] sm:$0xff]
  %v471 = vld [vmem:[%s0 + $0x28] sm:$0xff]
  %v472 = vld [vmem:[%s0 + $0x30] sm:$0xff]
  %v473 = vld [vmem:[%s0 + $0x38] sm:$0xff]
  %v474 = vld [vmem:[%s0 + $0x40] sm:$0xff]
  %v475 = vld [vmem:[%s0 + $0x48] sm:$0xff]
  %v476 = vld [vmem:[%s0 + $0x50] sm:$0xff]
  %v477 = vld [vmem:[%s0 + $0x58] sm:$0xff]
  %v478 = vld [vmem:[%s0 + $0x60] sm:$0xff]
  %v479 = vld [vmem:[%s0 + $0x68] sm:$0xf]
  %v480 = vld [vmem:[%s0 + $0x6c] sm:$0xff]
  %v481 = vld [vmem:[%s0 + $0x74] sm:$0xff]
  %v482 = vld [vmem:[%s0 + $0x7c] sm:$0xff]
  %v483 = vld [vmem:[%s0 + $0x84] sm:$0xff]
  %v484 = vld [vmem:[%s0 + $0x8c] sm:$0xff]
  %v485 = vld [vmem:[%s0 + $0x94] sm:$0xff]
  %v486 = vld [vmem:[%s0 + $0x9c] sm:$0xff]
  %v487 = vld [vmem:[%s0 + $0xa4] sm:$0xff]
  %v488 = vld [vmem:[%s0 + $0xac] sm:$0xff]
  %v489 = vld [vmem:[%s0 + $0xb4] sm:$0xff]
  %v490 = vld [vmem:[%s0 + $0xbc] sm:$0xff]
  %v491 = vld [vmem:[%s0 + $0xc4] sm:$0xff]
  %v492 = vld [vmem:[%s0 + $0xcc] sm:$0xff]
  %v493 = vld [vmem:[%s0 + $0xd4] sm:$0xf]
  %v495 = vlaneseq
  %v496 = vshrl.u32 %v495, 7
  %v497 = vsub.s32 0, %v496
  %v498 = vrot.slane %v465, %v497
  %v528 = vunpack.c.l.b16 %v466
  %v529 = vunpack.c.h.b16 %v466
  %v530 = vunpack.c.l.b16 %v467
  %v531 = vunpack.c.h.b16 %v467
  %v532 = vunpack.c.l.b16 %v468
  %v533 = vunpack.c.h.b16 %v468
  %v534 = vunpack.c.l.b16 %v469
  %v535 = vunpack.c.h.b16 %v469
  %v536 = vunpack.c.l.b16 %v470
  %v537 = vunpack.c.h.b16 %v470
  %v538 = vunpack.c.l.b16 %v471
  %v539 = vunpack.c.h.b16 %v471
  %v540 = vunpack.c.l.b16 %v472
  %v541 = vunpack.c.h.b16 %v472
  %v542 = vunpack.c.l.b16 %v473
  %v543 = vunpack.c.h.b16 %v473
  %v544 = vunpack.c.l.b16 %v474
  %v545 = vunpack.c.h.b16 %v474
  %v546 = vunpack.c.l.b16 %v475
  %v547 = vunpack.c.h.b16 %v475
  %v548 = vunpack.c.l.b16 %v476
  %v549 = vunpack.c.h.b16 %v476
  %v550 = vunpack.c.l.b16 %v477
  %v551 = vunpack.c.h.b16 %v477
  %v552 = vunpack.c.l.b16 %v478
  %v553 = vunpack.c.h.b16 %v478
  %v554 = vunpack.c.l.b16 %v479
  %v555 = vunpack.c.l.b16 %v480
  %v556 = vunpack.c.h.b16 %v480
  %v557 = vunpack.c.l.b16 %v481
  %v558 = vunpack.c.h.b16 %v481
  %v559 = vunpack.c.l.b16 %v482
  %v560 = vunpack.c.h.b16 %v482
  %v561 = vunpack.c.l.b16 %v483
  %v562 = vunpack.c.h.b16 %v483
  %v563 = vunpack.c.l.b16 %v484
  %v564 = vunpack.c.h.b16 %v484
  %v565 = vunpack.c.l.b16 %v485
  %v566 = vunpack.c.h.b16 %v485
  %v567 = vunpack.c.l.b16 %v486
  %v568 = vunpack.c.h.b16 %v486
  %v569 = vunpack.c.l.b16 %v487
  %v570 = vunpack.c.h.b16 %v487
  %v571 = vunpack.c.l.b16 %v488
  %v572 = vunpack.c.h.b16 %v488
  %v573 = vunpack.c.l.b16 %v489
  %v574 = vunpack.c.h.b16 %v489
  %v575 = vunpack.c.l.b16 %v490
  %v576 = vunpack.c.h.b16 %v490
  %v577 = vunpack.c.l.b16 %v491
  %v578 = vunpack.c.h.b16 %v491
  %v579 = vunpack.c.l.b16 %v492
  %v580 = vunpack.c.h.b16 %v492
  %v581 = vunpack.c.l.b16 %v493
  %v582 = vpack.c.b16 %v555, %v528
  %v583 = vpack.c.b16 %v556, %v529
  %v584 = vpack.c.b16 %v557, %v530
  %v585 = vpack.c.b16 %v558, %v531
  %v586 = vpack.c.b16 %v559, %v532
  %v587 = vpack.c.b16 %v560, %v533
  %v588 = vpack.c.b16 %v561, %v534
  %v589 = vpack.c.b16 %v562, %v535
  %v590 = vpack.c.b16 %v563, %v536
  %v591 = vpack.c.b16 %v564, %v537
  %v592 = vpack.c.b16 %v565, %v538
  %v593 = vpack.c.b16 %v566, %v539
  %v594 = vpack.c.b16 %v567, %v540
  %v595 = vpack.c.b16 %v568, %v541
  %v596 = vpack.c.b16 %v569, %v542
  %v597 = vpack.c.b16 %v570, %v543
  %v598 = vpack.c.b16 %v571, %v544
  %v599 = vpack.c.b16 %v572, %v545
  %v600 = vpack.c.b16 %v573, %v546
  %v601 = vpack.c.b16 %v574, %v547
  %v602 = vpack.c.b16 %v575, %v548
  %v603 = vpack.c.b16 %v576, %v549
  %v604 = vpack.c.b16 %v577, %v550
  %v605 = vpack.c.b16 %v578, %v551
  %v606 = vpack.c.b16 %v579, %v552
  %v607 = vpack.c.b16 %v580, %v553
  %v608 = vpack.c.b16 %v581, %v554
  %v1068 = vunpack.c.l.b16 %v33
  %v1069 = vunpack.c.l.b16 %v34
  %v1070 = vunpack.c.l.b16 %v35
  %v1071 = vunpack.c.l.b16 %v36
  %v1072 = vunpack.c.l.b16 %v37
  %v1073 = vunpack.c.l.b16 %v38
  %v1074 = vunpack.c.l.b16 %v39
  %v1075 = vunpack.c.l.b16 %v40
  %v1076 = vunpack.c.l.b16 %v41
  %v1077 = vunpack.c.l.b16 %v42
  %v1078 = vunpack.c.l.b16 %v43
  %v1079 = vunpack.c.l.b16 %v44
  %v1080 = vunpack.c.l.b16 %v45
  %v1081 = vunpack.c.l.b16 %v46
  %v1082 = vunpack.c.l.b16 %v47
  %v1083 = vunpack.c.l.b16 %v48
  %v1084 = vunpack.c.l.b16 %v49
  %v1085 = vunpack.c.l.b16 %v50
  %v1086 = vunpack.c.l.b16 %v51
  %v1087 = vunpack.c.l.b16 %v52
  %v1088 = vunpack.c.l.b16 %v53
  %v1089 = vunpack.c.l.b16 %v54
  %v1090 = vunpack.c.l.b16 %v55
  %v1091 = vunpack.c.l.b16 %v56
  %v1092 = vunpack.c.l.b16 %v57
  %v1093 = vunpack.c.l.b16 %v58
  %v1094 = vunpack.c.l.b16 %v59
  %v1095 = vunpack.c.l.b16 %v60
  %v1096 = vunpack.c.l.b16 %v61
  %v1097 = vunpack.c.l.b16 %v62
  %v1098 = vunpack.c.l.b16 %v63
  %v1099 = vunpack.c.l.b16 %v64
  %v1100 = vunpack.c.l.b16 %v65
  %v1101 = vunpack.c.l.b16 %v66
  %v1102 = vunpack.c.l.b16 %v67
  %v1103 = vunpack.c.l.b16 %v68
  %v1104 = vunpack.c.l.b16 %v69
  %v1105 = vunpack.c.l.b16 %v70
  %v1106 = vunpack.c.l.b16 %v71
  %v1107 = vunpack.c.l.b16 %v72
  %v1108 = vunpack.c.l.b16 %v73
  %v1109 = vunpack.c.l.b16 %v74
  %v1110 = vunpack.c.l.b16 %v75
  %v1111 = vunpack.c.l.b16 %v76
  %v1112 = vunpack.c.l.b16 %v77
  %v1113 = vunpack.c.l.b16 %v78
  %v1114 = vunpack.c.l.b16 %v79
  %v1115 = vunpack.c.l.b16 %v80
  %v1116 = vunpack.c.l.b16 %v81
  %v1117 = vunpack.c.l.b16 %v82
  %v1118 = vunpack.c.l.b16 %v83
  %v1119 = vunpack.c.l.b16 %v84
  %v1120 = vunpack.c.l.b16 %v85
  %v1121 = vunpack.c.l.b16 %v86
  %v1122 = vunpack.c.l.b16 %v87
  %v1123 = vunpack.c.l.b16 %v88
  %v1124 = vunpack.c.l.b16 %v89
  %v1125 = vunpack.c.l.b16 %v90
  %v1126 = vunpack.c.l.b16 %v91
  %v1127 = vunpack.c.l.b16 %v92
  %v1128 = vunpack.c.l.b16 %v93
  %v1129 = vunpack.c.l.b16 %v94
  %v1130 = vunpack.c.l.b16 %v95
  %v1131 = vunpack.c.l.b16 %v96
  %v1132 = vunpack.c.l.b16 %v97
  %v1133 = vunpack.c.l.b16 %v98
  %v1134 = vunpack.c.l.b16 %v99
  %v1135 = vunpack.c.l.b16 %v100
  %v1136 = vunpack.c.l.b16 %v101
  %v1137 = vunpack.c.l.b16 %v102
  %v1138 = vunpack.c.l.b16 %v103
  %v1139 = vunpack.c.l.b16 %v104
  %v1140 = vunpack.c.l.b16 %v105
  %v1141 = vunpack.c.l.b16 %v106
  %v1142 = vunpack.c.l.b16 %v107
  %v1143 = vunpack.c.l.b16 %v108
  %v1144 = vunpack.c.l.b16 %v109
  %v1145 = vunpack.c.l.b16 %v110
  %v1146 = vunpack.c.l.b16 %v111
  %v1147 = vunpack.c.l.b16 %v112
  %v1148 = vunpack.c.l.b16 %v113
  %v1149 = vunpack.c.l.b16 %v114
  %v1150 = vunpack.c.l.b16 %v115
  %v1151 = vunpack.c.l.b16 %v116
  %v1152 = vunpack.c.l.b16 %v117
  %v1153 = vunpack.c.l.b16 %v118
  %v1154 = vunpack.c.l.b16 %v119
  %v1155 = vunpack.c.l.b16 %v120
  %v1156 = vunpack.c.l.b16 %v121
  %v1157 = vunpack.c.l.b16 %v122
  %v1158 = vunpack.c.l.b16 %v123
  %v1159 = vunpack.c.l.b16 %v124
  %v1160 = vunpack.c.l.b16 %v125
  %v1161 = vunpack.c.l.b16 %v126
  %v1162 = vunpack.c.l.b16 %v127
  %v1163 = vunpack.c.l.b16 %v128
  %v1164 = vunpack.c.l.b16 %v129
  %v1165 = vunpack.c.l.b16 %v130
  %v1166 = vunpack.c.l.b16 %v131
  %v1167 = vunpack.c.l.b16 %v132
  %v1168 = vunpack.c.l.b16 %v133
  %v1169 = vunpack.c.l.b16 %v134
  %v1170 = vunpack.c.l.b16 %v135
  %v1171 = vunpack.c.l.b16 %v136
  %v1172 = vunpack.c.l.b16 %v137
  %v1173 = vunpack.c.l.b16 %v138
  %v1174 = vunpack.c.l.b16 %v139
  %v1175 = vunpack.c.l.b16 %v140
  %v1176 = vunpack.c.l.b16 %v141
  %v1177 = vunpack.c.l.b16 %v142
  %v1178 = vunpack.c.l.b16 %v143
  %v1179 = vunpack.c.l.b16 %v144
  %v1180 = vunpack.c.l.b16 %v145
  %v1181 = vunpack.c.l.b16 %v146
  %v1182 = vunpack.c.l.b16 %v147
  %v1183 = vunpack.c.l.b16 %v148
  %v1184 = vunpack.c.l.b16 %v149
  %v1185 = vunpack.c.l.b16 %v150
  %v1186 = vunpack.c.l.b16 %v151
  %v1187 = vunpack.c.l.b16 %v152
  %v1188 = vunpack.c.l.b16 %v153
  %v1189 = vunpack.c.l.b16 %v154
  %v1190 = vunpack.c.l.b16 %v155
  %v1191 = vunpack.c.l.b16 %v156
  %v1192 = vunpack.c.l.b16 %v157
  %v1193 = vunpack.c.l.b16 %v158
  %v1194 = vunpack.c.l.b16 %v159
  %v1195 = vunpack.c.l.b16 %v160
  %v1196 = vunpack.c.l.b16 %v161
  %v1197 = vunpack.c.l.b16 %v162
  %v1198 = vunpack.c.l.b16 %v163
  %v1199 = vunpack.c.l.b16 %v164
  %v1200 = vunpack.c.l.b16 %v165
  %v1201 = vunpack.c.l.b16 %v166
  %v1202 = vunpack.c.l.b16 %v167
  %v1203 = vunpack.c.l.b16 %v168
  %v1204 = vunpack.c.l.b16 %v169
  %v1205 = vunpack.c.l.b16 %v170
  %v1206 = vunpack.c.l.b16 %v171
  %v1207 = vunpack.c.l.b16 %v172
  %v1208 = vunpack.c.l.b16 %v173
  %v1209 = vunpack.c.l.b16 %v174
  %v1210 = vunpack.c.l.b16 %v175
  %v1211 = vunpack.c.l.b16 %v176
  %v1212 = vunpack.c.l.b16 %v177
  %v1213 = vunpack.c.l.b16 %v178
  %v1214 = vunpack.c.l.b16 %v179
  %v1215 = vunpack.c.l.b16 %v180
  %v1216 = vunpack.c.l.b16 %v181
  %v1217 = vunpack.c.l.b16 %v182
  %v1218 = vunpack.c.l.b16 %v183
  %v1219 = vunpack.c.l.b16 %v184
  %v1220 = vunpack.c.l.b16 %v185
  %v1221 = vunpack.c.l.b16 %v186
  %v1222 = vunpack.c.l.b16 %v187
  %v1223 = vunpack.c.l.b16 %v188
  %v1224 = vunpack.c.l.b16 %v189
  %v1225 = vunpack.c.l.b16 %v190
  %v1226 = vunpack.c.l.b16 %v191
  %v1227 = vunpack.c.l.b16 %v192
  %v1228 = vunpack.c.l.b16 %v193
  %v1229 = vunpack.c.l.b16 %v194
  %v1230 = vunpack.c.l.b16 %v195
  %v1231 = vunpack.c.l.b16 %v196
  %v1232 = vunpack.c.l.b16 %v197
  %v1233 = vunpack.c.l.b16 %v198
  %v1234 = vunpack.c.l.b16 %v199
  %v1235 = vunpack.c.l.b16 %v200
  %v1236 = vunpack.c.l.b16 %v201
  %v1237 = vunpack.c.l.b16 %v202
  %v1238 = vunpack.c.l.b16 %v203
  %v1239 = vunpack.c.l.b16 %v204
  %v1240 = vunpack.c.l.b16 %v205
  %v1241 = vunpack.c.l.b16 %v206
  %v1242 = vunpack.c.l.b16 %v207
  %v1243 = vunpack.c.l.b16 %v208
  %v1244 = vunpack.c.l.b16 %v209
  %v1245 = vunpack.c.l.b16 %v210
  %v1246 = vunpack.c.l.b16 %v211
  %v1247 = vunpack.c.l.b16 %v212
  %v1248 = vunpack.c.l.b16 %v213
  %v1249 = vunpack.c.l.b16 %v214
  %v1250 = vunpack.c.l.b16 %v215
  %v1251 = vunpack.c.l.b16 %v216
  %v1252 = vunpack.c.l.b16 %v217
  %v1253 = vunpack.c.l.b16 %v218
  %v1254 = vunpack.c.l.b16 %v219
  %v1255 = vunpack.c.l.b16 %v220
  %v1256 = vunpack.c.l.b16 %v221
  %v1257 = vunpack.c.l.b16 %v222
  %v1258 = vunpack.c.l.b16 %v223
  %v1259 = vunpack.c.l.b16 %v224
  %v1260 = vunpack.c.l.b16 %v225
  %v1261 = vunpack.c.l.b16 %v226
  %v1262 = vunpack.c.l.b16 %v227
  %v1263 = vunpack.c.l.b16 %v228
  %v1264 = vunpack.c.l.b16 %v229
  %v1265 = vunpack.c.l.b16 %v230
  %v1266 = vunpack.c.l.b16 %v231
  %v1267 = vunpack.c.l.b16 %v232
  %v1268 = vunpack.c.l.b16 %v233
  %v1269 = vunpack.c.l.b16 %v234
  %v1270 = vunpack.c.l.b16 %v235
  %v1271 = vunpack.c.l.b16 %v236
  %v1272 = vunpack.c.l.b16 %v237
  %v1273 = vunpack.c.l.b16 %v238
  %v1274 = vunpack.c.l.b16 %v239
  %v1275 = vunpack.c.l.b16 %v240
  %v1276 = vunpack.c.l.b16 %v241
  %v1277 = vunpack.c.l.b16 %v242
  %v1278 = vunpack.c.l.b16 %v243
  %v1279 = vunpack.c.l.b16 %v244
  %v1280 = vunpack.c.l.b16 %v245
  %v1281 = vunpack.c.l.b16 %v246
  %v1282 = vunpack.c.l.b16 %v247
  %v1283 = vunpack.c.l.b16 %v248
  %v1284 = vunpack.c.l.b16 %v249
  %v1285 = vunpack.c.l.b16 %v250
  %v1286 = vunpack.c.l.b16 %v251
  %v1287 = vunpack.c.l.b16 %v252
  %v1288 = vunpack.c.l.b16 %v253
  %v1289 = vunpack.c.l.b16 %v254
  %v1290 = vunpack.c.l.b16 %v255
  %v1291 = vunpack.c.l.b16 %v256
  %v1292 = vunpack.c.l.b16 %v257
  %v1293 = vunpack.c.l.b16 %v258
  %v1294 = vunpack.c.l.b16 %v259
  %v1295 = vunpack.c.l.b16 %v260
  %v1296 = vunpack.c.l.b16 %v261
  %v1297 = vunpack.c.l.b16 %v262
  %v1298 = vunpack.c.l.b16 %v263
  %v1299 = vunpack.c.l.b16 %v264
  %v1300 = vunpack.c.l.b16 %v265
  %v1301 = vunpack.c.l.b16 %v266
  %v1302 = vunpack.c.l.b16 %v267
  %v1303 = vunpack.c.l.b16 %v268
  %v1304 = vunpack.c.l.b16 %v269
  %v1305 = vunpack.c.l.b16 %v270
  %v1306 = vunpack.c.l.b16 %v271
  %v1307 = vunpack.c.l.b16 %v272
  %v1308 = vunpack.c.l.b16 %v273
  %v1309 = vunpack.c.l.b16 %v274
  %v1310 = vunpack.c.l.b16 %v275
  %v1311 = vunpack.c.l.b16 %v276
  %v1312 = vunpack.c.l.b16 %v277
  %v1313 = vunpack.c.l.b16 %v278
  %v1314 = vunpack.c.l.b16 %v279
  %v1315 = vunpack.c.l.b16 %v280
  %v1316 = vunpack.c.l.b16 %v281
  %v1317 = vunpack.c.l.b16 %v282
  %v1318 = vunpack.c.l.b16 %v283
  %v1319 = vunpack.c.l.b16 %v284
  %v1320 = vunpack.c.l.b16 %v285
  %v1321 = vunpack.c.l.b16 %v286
  %v1322 = vunpack.c.l.b16 %v287
  %v1323 = vunpack.c.l.b16 %v288
  %v1324 = vunpack.c.l.b16 %v289
  %v1325 = vunpack.c.l.b16 %v290
  %v1326 = vunpack.c.l.b16 %v291
  %v1327 = vunpack.c.l.b16 %v292
  %v1328 = vunpack.c.l.b16 %v293
  %v1329 = vunpack.c.l.b16 %v294
  %v1330 = vunpack.c.l.b16 %v295
  %v1331 = vunpack.c.l.b16 %v296
  %v1332 = vunpack.c.l.b16 %v297
  %v1333 = vunpack.c.l.b16 %v298
  %v1334 = vunpack.c.l.b16 %v299
  %v1335 = vunpack.c.l.b16 %v300
  %v1336 = vunpack.c.l.b16 %v301
  %v1337 = vunpack.c.l.b16 %v302
  %v1338 = vunpack.c.l.b16 %v303
  %v1339 = vunpack.c.l.b16 %v304
  %v1340 = vunpack.c.l.b16 %v305
  %v1341 = vunpack.c.l.b16 %v306
  %v1342 = vunpack.c.l.b16 %v307
  %v1343 = vunpack.c.l.b16 %v308
  %v1344 = vunpack.c.l.b16 %v309
  %v1345 = vunpack.c.l.b16 %v310
  %v1346 = vunpack.c.l.b16 %v311
  %v1347 = vunpack.c.l.b16 %v312
  %v1348 = vunpack.c.l.b16 %v313
  %v1349 = vunpack.c.l.b16 %v314
  %v1350 = vunpack.c.l.b16 %v315
  %v1351 = vunpack.c.l.b16 %v316
  %v1352 = vunpack.c.l.b16 %v317
  %v1353 = vunpack.c.l.b16 %v318
  %v1354 = vunpack.c.l.b16 %v319
  %v1355 = vunpack.c.l.b16 %v320
  %v1356 = vunpack.c.l.b16 %v321
  %v1357 = vunpack.c.l.b16 %v322
  %v1358 = vunpack.c.l.b16 %v323
  %v1359 = vunpack.c.l.b16 %v324
  %v1360 = vunpack.c.l.b16 %v325
  %v1361 = vunpack.c.l.b16 %v326
  %v1362 = vunpack.c.l.b16 %v327
  %v1363 = vunpack.c.l.b16 %v328
  %v1364 = vunpack.c.l.b16 %v329
  %v1365 = vunpack.c.l.b16 %v330
  %v1366 = vunpack.c.l.b16 %v331
  %v1367 = vunpack.c.l.b16 %v332
  %v1368 = vunpack.c.l.b16 %v333
  %v1369 = vunpack.c.l.b16 %v334
  %v1370 = vunpack.c.l.b16 %v335
  %v1371 = vunpack.c.l.b16 %v336
  %v1372 = vunpack.c.l.b16 %v337
  %v1373 = vunpack.c.l.b16 %v338
  %v1374 = vunpack.c.l.b16 %v339
  %v1375 = vunpack.c.l.b16 %v340
  %v1376 = vunpack.c.l.b16 %v341
  %v1377 = vunpack.c.l.b16 %v342
  %v1378 = vunpack.c.l.b16 %v343
  %v1379 = vunpack.c.l.b16 %v344
  %v1380 = vunpack.c.l.b16 %v345
  %v1381 = vunpack.c.l.b16 %v346
  %v1382 = vunpack.c.l.b16 %v347
  %v1383 = vunpack.c.l.b16 %v348
  %v1384 = vunpack.c.l.b16 %v349
  %v1385 = vunpack.c.l.b16 %v350
  %v1386 = vunpack.c.l.b16 %v351
  %v1387 = vunpack.c.l.b16 %v352
  %v1388 = vunpack.c.l.b16 %v353
  %v1389 = vunpack.c.l.b16 %v354
  %v1390 = vunpack.c.l.b16 %v355
  %v1391 = vunpack.c.l.b16 %v356
  %v1392 = vunpack.c.l.b16 %v357
  %v1393 = vunpack.c.l.b16 %v358
  %v1394 = vunpack.c.l.b16 %v359
  %v1395 = vunpack.c.l.b16 %v360
  %v1396 = vunpack.c.l.b16 %v361
  %v1397 = vunpack.c.l.b16 %v362
  %v1398 = vunpack.c.l.b16 %v363
  %v1399 = vunpack.c.l.b16 %v364
  %v1400 = vunpack.c.l.b16 %v365
  %v1401 = vunpack.c.l.b16 %v366
  %v1402 = vunpack.c.l.b16 %v367
  %v1403 = vunpack.c.l.b16 %v368
  %v1404 = vunpack.c.l.b16 %v369
  %v1405 = vunpack.c.l.b16 %v370
  %v1406 = vunpack.c.l.b16 %v371
  %v1407 = vunpack.c.l.b16 %v372
  %v1408 = vunpack.c.l.b16 %v373
  %v1409 = vunpack.c.l.b16 %v374
  %v1410 = vunpack.c.l.b16 %v375
  %v1411 = vunpack.c.l.b16 %v376
  %v1412 = vunpack.c.l.b16 %v377
  %v1413 = vunpack.c.l.b16 %v378
  %v1414 = vunpack.c.l.b16 %v379
  %v1415 = vunpack.c.l.b16 %v380
  %v1416 = vunpack.c.l.b16 %v381
  %v1417 = vunpack.c.l.b16 %v382
  %v1418 = vunpack.c.l.b16 %v383
  %v1419 = vunpack.c.l.b16 %v384
  %v1420 = vunpack.c.l.b16 %v385
  %v1421 = vunpack.c.l.b16 %v386
  %v1422 = vunpack.c.l.b16 %v387
  %v1423 = vunpack.c.l.b16 %v388
  %v1424 = vunpack.c.l.b16 %v389
  %v1425 = vunpack.c.l.b16 %v390
  %v1426 = vunpack.c.l.b16 %v391
  %v1427 = vunpack.c.l.b16 %v392
  %v1428 = vunpack.c.l.b16 %v393
  %v1429 = vunpack.c.l.b16 %v394
  %v1430 = vunpack.c.l.b16 %v395
  %v1431 = vunpack.c.l.b16 %v396
  %v1432 = vunpack.c.l.b16 %v397
  %v1433 = vunpack.c.l.b16 %v398
  %v1434 = vunpack.c.l.b16 %v399
  %v1435 = vunpack.c.l.b16 %v400
  %v1436 = vunpack.c.l.b16 %v401
  %v1437 = vunpack.c.l.b16 %v402
  %v1438 = vunpack.c.l.b16 %v403
  %v1439 = vunpack.c.l.b16 %v404
  %v1440 = vunpack.c.l.b16 %v405
  %v1441 = vunpack.c.l.b16 %v406
  %v1442 = vunpack.c.l.b16 %v407
  %v1443 = vunpack.c.l.b16 %v408
  %v1444 = vunpack.c.l.b16 %v409
  %v1445 = vunpack.c.l.b16 %v410
  %v1446 = vunpack.c.l.b16 %v411
  %v1447 = vunpack.c.l.b16 %v412
  %v1448 = vunpack.c.l.b16 %v413
  %v1449 = vunpack.c.l.b16 %v414
  %v1450 = vunpack.c.l.b16 %v415
  %v1451 = vunpack.c.l.b16 %v416
  %v1452 = vunpack.c.l.b16 %v417
  %v1453 = vunpack.c.l.b16 %v418
  %v1454 = vunpack.c.l.b16 %v419
  %v1455 = vunpack.c.l.b16 %v420
  %v1456 = vunpack.c.l.b16 %v421
  %v1457 = vunpack.c.l.b16 %v422
  %v1458 = vunpack.c.l.b16 %v423
  %v1459 = vunpack.c.l.b16 %v424
  %v1460 = vunpack.c.l.b16 %v425
  %v1461 = vunpack.c.l.b16 %v426
  %v1462 = vunpack.c.l.b16 %v427
  %v1463 = vunpack.c.l.b16 %v428
  %v1464 = vunpack.c.l.b16 %v429
  %v1465 = vunpack.c.l.b16 %v430
  %v1466 = vunpack.c.l.b16 %v431
  %v1467 = vunpack.c.l.b16 %v432
  %v1468 = vunpack.c.l.b16 %v433
  %v1469 = vunpack.c.l.b16 %v434
  %v1470 = vunpack.c.l.b16 %v435
  %v1471 = vunpack.c.l.b16 %v436
  %v1472 = vunpack.c.l.b16 %v437
  %v1473 = vunpack.c.l.b16 %v438
  %v1474 = vunpack.c.l.b16 %v439
  %v1475 = vunpack.c.l.b16 %v440
  %v1476 = vunpack.c.l.b16 %v441
  %v1477 = vunpack.c.l.b16 %v442
  %v1478 = vunpack.c.l.b16 %v443
  %v1479 = vunpack.c.l.b16 %v444
  %v1480 = vunpack.c.l.b16 %v445
  %v1481 = vunpack.c.l.b16 %v446
  %v1482 = vunpack.c.l.b16 %v447
  %v1483 = vunpack.c.l.b16 %v448
  %v1484 = vunpack.c.l.b16 %v449
  %v1485 = vunpack.c.l.b16 %v450
  %v1486 = vunpack.c.l.b16 %v451
  %v1487 = vunpack.c.l.b16 %v452
  %v1488 = vunpack.c.l.b16 %v453
  %v1489 = vunpack.c.l.b16 %v454
  %v1490 = vunpack.c.l.b16 %v455
  %v1491 = vunpack.c.l.b16 %v456
  %v1492 = vunpack.c.l.b16 %v457
  %v1493 = vunpack.c.l.b16 %v458
  %v1494 = vunpack.c.l.b16 %v459
  %v1495 = vunpack.c.l.b16 %v460
  %v1496 = vunpack.c.l.b16 %v461
  %v1497 = vunpack.c.l.b16 %v462
  %v1498 = vunpack.c.l.b16 %v463
  %v1499 = vunpack.c.l.b16 %v464
  %v1500 = vpack.c.b16 %v1069, %v1068
  %v1501 = vpack.c.b16 %v1071, %v1070
  %v1502 = vpack.c.b16 %v1073, %v1072
  %v1503 = vpack.c.b16 %v1075, %v1074
  %v1504 = vpack.c.b16 %v1077, %v1076
  %v1505 = vpack.c.b16 %v1079, %v1078
  %v1506 = vpack.c.b16 %v1081, %v1080
  %v1507 = vpack.c.b16 %v1083, %v1082
  %v1508 = vpack.c.b16 %v1085, %v1084
  %v1509 = vpack.c.b16 %v1087, %v1086
  %v1510 = vpack.c.b16 %v1089, %v1088
  %v1511 = vpack.c.b16 %v1091, %v1090
  %v1512 = vpack.c.b16 %v1093, %v1092
  %v1513 = vpack.c.b16 %v1095, %v1094
  %v1514 = vpack.c.b16 %v1097, %v1096
  %v1515 = vpack.c.b16 %v1099, %v1098
  %v1516 = vpack.c.b16 %v1101, %v1100
  %v1517 = vpack.c.b16 %v1103, %v1102
  %v1518 = vpack.c.b16 %v1105, %v1104
  %v1519 = vpack.c.b16 %v1107, %v1106
  %v1520 = vpack.c.b16 %v1109, %v1108
  %v1521 = vpack.c.b16 %v1111, %v1110
  %v1522 = vpack.c.b16 %v1113, %v1112
  %v1523 = vpack.c.b16 %v1115, %v1114
  %v1524 = vpack.c.b16 %v1117, %v1116
  %v1525 = vpack.c.b16 %v1119, %v1118
  %v1526 = vpack.c.b16 %v1121, %v1120
  %v1527 = vpack.c.b16 %v1123, %v1122
  %v1528 = vpack.c.b16 %v1125, %v1124
  %v1529 = vpack.c.b16 %v1127, %v1126
  %v1530 = vpack.c.b16 %v1129, %v1128
  %v1531 = vpack.c.b16 %v1131, %v1130
  %v1532 = vpack.c.b16 %v1133, %v1132
  %v1533 = vpack.c.b16 %v1135, %v1134
  %v1534 = vpack.c.b16 %v1137, %v1136
  %v1535 = vpack.c.b16 %v1139, %v1138
  %v1536 = vpack.c.b16 %v1141, %v1140
  %v1537 = vpack.c.b16 %v1143, %v1142
  %v1538 = vpack.c.b16 %v1145, %v1144
  %v1539 = vpack.c.b16 %v1147, %v1146
  %v1540 = vpack.c.b16 %v1149, %v1148
  %v1541 = vpack.c.b16 %v1151, %v1150
  %v1542 = vpack.c.b16 %v1153, %v1152
  %v1543 = vpack.c.b16 %v1155, %v1154
  %v1544 = vpack.c.b16 %v1157, %v1156
  %v1545 = vpack.c.b16 %v1159, %v1158
  %v1546 = vpack.c.b16 %v1161, %v1160
  %v1547 = vpack.c.b16 %v1163, %v1162
  %v1548 = vpack.c.b16 %v1165, %v1164
  %v1549 = vpack.c.b16 %v1167, %v1166
  %v1550 = vpack.c.b16 %v1169, %v1168
  %v1551 = vpack.c.b16 %v1171, %v1170
  %v1552 = vpack.c.b16 %v1173, %v1172
  %v1553 = vpack.c.b16 %v1175, %v1174
  %v1554 = vpack.c.b16 %v1177, %v1176
  %v1555 = vpack.c.b16 %v1179, %v1178
  %v1556 = vpack.c.b16 %v1181, %v1180
  %v1557 = vpack.c.b16 %v1183, %v1182
  %v1558 = vpack.c.b16 %v1185, %v1184
  %v1559 = vpack.c.b16 %v1187, %v1186
  %v1560 = vpack.c.b16 %v1189, %v1188
  %v1561 = vpack.c.b16 %v1191, %v1190
  %v1562 = vpack.c.b16 %v1193, %v1192
  %v1563 = vpack.c.b16 %v1195, %v1194
  %v1564 = vpack.c.b16 %v1197, %v1196
  %v1565 = vpack.c.b16 %v1199, %v1198
  %v1566 = vpack.c.b16 %v1201, %v1200
  %v1567 = vpack.c.b16 %v1203, %v1202
  %v1568 = vpack.c.b16 %v1205, %v1204
  %v1569 = vpack.c.b16 %v1207, %v1206
  %v1570 = vpack.c.b16 %v1209, %v1208
  %v1571 = vpack.c.b16 %v1211, %v1210
  %v1572 = vpack.c.b16 %v1213, %v1212
  %v1573 = vpack.c.b16 %v1215, %v1214
  %v1574 = vpack.c.b16 %v1217, %v1216
  %v1575 = vpack.c.b16 %v1219, %v1218
  %v1576 = vpack.c.b16 %v1221, %v1220
  %v1577 = vpack.c.b16 %v1223, %v1222
  %v1578 = vpack.c.b16 %v1225, %v1224
  %v1579 = vpack.c.b16 %v1227, %v1226
  %v1580 = vpack.c.b16 %v1229, %v1228
  %v1581 = vpack.c.b16 %v1231, %v1230
  %v1582 = vpack.c.b16 %v1233, %v1232
  %v1583 = vpack.c.b16 %v1235, %v1234
  %v1584 = vpack.c.b16 %v1237, %v1236
  %v1585 = vpack.c.b16 %v1239, %v1238
  %v1586 = vpack.c.b16 %v1241, %v1240
  %v1587 = vpack.c.b16 %v1243, %v1242
  %v1588 = vpack.c.b16 %v1245, %v1244
  %v1589 = vpack.c.b16 %v1247, %v1246
  %v1590 = vpack.c.b16 %v1249, %v1248
  %v1591 = vpack.c.b16 %v1251, %v1250
  %v1592 = vpack.c.b16 %v1253, %v1252
  %v1593 = vpack.c.b16 %v1255, %v1254
  %v1594 = vpack.c.b16 %v1257, %v1256
  %v1595 = vpack.c.b16 %v1259, %v1258
  %v1596 = vpack.c.b16 %v1261, %v1260
  %v1597 = vpack.c.b16 %v1263, %v1262
  %v1598 = vpack.c.b16 %v1265, %v1264
  %v1599 = vpack.c.b16 %v1267, %v1266
  %v1600 = vpack.c.b16 %v1269, %v1268
  %v1601 = vpack.c.b16 %v1271, %v1270
  %v1602 = vpack.c.b16 %v1273, %v1272
  %v1603 = vpack.c.b16 %v1275, %v1274
  %v1604 = vpack.c.b16 %v1277, %v1276
  %v1605 = vpack.c.b16 %v1279, %v1278
  %v1606 = vpack.c.b16 %v1281, %v1280
  %v1607 = vpack.c.b16 %v1283, %v1282
  %v1608 = vpack.c.b16 %v1285, %v1284
  %v1609 = vpack.c.b16 %v1287, %v1286
  %v1610 = vpack.c.b16 %v1289, %v1288
  %v1611 = vpack.c.b16 %v1291, %v1290
  %v1612 = vpack.c.b16 %v1293, %v1292
  %v1613 = vpack.c.b16 %v1295, %v1294
  %v1614 = vpack.c.b16 %v1297, %v1296
  %v1615 = vpack.c.b16 %v1299, %v1298
  %v1616 = vpack.c.b16 %v1301, %v1300
  %v1617 = vpack.c.b16 %v1303, %v1302
  %v1618 = vpack.c.b16 %v1305, %v1304
  %v1619 = vpack.c.b16 %v1307, %v1306
  %v1620 = vpack.c.b16 %v1309, %v1308
  %v1621 = vpack.c.b16 %v1311, %v1310
  %v1622 = vpack.c.b16 %v1313, %v1312
  %v1623 = vpack.c.b16 %v1315, %v1314
  %v1624 = vpack.c.b16 %v1317, %v1316
  %v1625 = vpack.c.b16 %v1319, %v1318
  %v1626 = vpack.c.b16 %v1321, %v1320
  %v1627 = vpack.c.b16 %v1323, %v1322
  %v1628 = vpack.c.b16 %v1325, %v1324
  %v1629 = vpack.c.b16 %v1327, %v1326
  %v1630 = vpack.c.b16 %v1329, %v1328
  %v1631 = vpack.c.b16 %v1331, %v1330
  %v1632 = vpack.c.b16 %v1333, %v1332
  %v1633 = vpack.c.b16 %v1335, %v1334
  %v1634 = vpack.c.b16 %v1337, %v1336
  %v1635 = vpack.c.b16 %v1339, %v1338
  %v1636 = vpack.c.b16 %v1341, %v1340
  %v1637 = vpack.c.b16 %v1343, %v1342
  %v1638 = vpack.c.b16 %v1345, %v1344
  %v1639 = vpack.c.b16 %v1347, %v1346
  %v1640 = vpack.c.b16 %v1349, %v1348
  %v1641 = vpack.c.b16 %v1351, %v1350
  %v1642 = vpack.c.b16 %v1353, %v1352
  %v1643 = vpack.c.b16 %v1355, %v1354
  %v1644 = vpack.c.b16 %v1357, %v1356
  %v1645 = vpack.c.b16 %v1359, %v1358
  %v1646 = vpack.c.b16 %v1361, %v1360
  %v1647 = vpack.c.b16 %v1363, %v1362
  %v1648 = vpack.c.b16 %v1365, %v1364
  %v1649 = vpack.c.b16 %v1367, %v1366
  %v1650 = vpack.c.b16 %v1369, %v1368
  %v1651 = vpack.c.b16 %v1371, %v1370
  %v1652 = vpack.c.b16 %v1373, %v1372
  %v1653 = vpack.c.b16 %v1375, %v1374
  %v1654 = vpack.c.b16 %v1377, %v1376
  %v1655 = vpack.c.b16 %v1379, %v1378
  %v1656 = vpack.c.b16 %v1381, %v1380
  %v1657 = vpack.c.b16 %v1383, %v1382
  %v1658 = vpack.c.b16 %v1385, %v1384
  %v1659 = vpack.c.b16 %v1387, %v1386
  %v1660 = vpack.c.b16 %v1389, %v1388
  %v1661 = vpack.c.b16 %v1391, %v1390
  %v1662 = vpack.c.b16 %v1393, %v1392
  %v1663 = vpack.c.b16 %v1395, %v1394
  %v1664 = vpack.c.b16 %v1397, %v1396
  %v1665 = vpack.c.b16 %v1399, %v1398
  %v1666 = vpack.c.b16 %v1401, %v1400
  %v1667 = vpack.c.b16 %v1403, %v1402
  %v1668 = vpack.c.b16 %v1405, %v1404
  %v1669 = vpack.c.b16 %v1407, %v1406
  %v1670 = vpack.c.b16 %v1409, %v1408
  %v1671 = vpack.c.b16 %v1411, %v1410
  %v1672 = vpack.c.b16 %v1413, %v1412
  %v1673 = vpack.c.b16 %v1415, %v1414
  %v1674 = vpack.c.b16 %v1417, %v1416
  %v1675 = vpack.c.b16 %v1419, %v1418
  %v1676 = vpack.c.b16 %v1421, %v1420
  %v1677 = vpack.c.b16 %v1423, %v1422
  %v1678 = vpack.c.b16 %v1425, %v1424
  %v1679 = vpack.c.b16 %v1427, %v1426
  %v1680 = vpack.c.b16 %v1429, %v1428
  %v1681 = vpack.c.b16 %v1431, %v1430
  %v1682 = vpack.c.b16 %v1433, %v1432
  %v1683 = vpack.c.b16 %v1435, %v1434
  %v1684 = vpack.c.b16 %v1437, %v1436
  %v1685 = vpack.c.b16 %v1439, %v1438
  %v1686 = vpack.c.b16 %v1441, %v1440
  %v1687 = vpack.c.b16 %v1443, %v1442
  %v1688 = vpack.c.b16 %v1445, %v1444
  %v1689 = vpack.c.b16 %v1447, %v1446
  %v1690 = vpack.c.b16 %v1449, %v1448
  %v1691 = vpack.c.b16 %v1451, %v1450
  %v1692 = vpack.c.b16 %v1453, %v1452
  %v1693 = vpack.c.b16 %v1455, %v1454
  %v1694 = vpack.c.b16 %v1457, %v1456
  %v1695 = vpack.c.b16 %v1459, %v1458
  %v1696 = vpack.c.b16 %v1461, %v1460
  %v1697 = vpack.c.b16 %v1463, %v1462
  %v1698 = vpack.c.b16 %v1465, %v1464
  %v1699 = vpack.c.b16 %v1467, %v1466
  %v1700 = vpack.c.b16 %v1469, %v1468
  %v1701 = vpack.c.b16 %v1471, %v1470
  %v1702 = vpack.c.b16 %v1473, %v1472
  %v1703 = vpack.c.b16 %v1475, %v1474
  %v1704 = vpack.c.b16 %v1477, %v1476
  %v1705 = vpack.c.b16 %v1479, %v1478
  %v1706 = vpack.c.b16 %v1481, %v1480
  %v1707 = vpack.c.b16 %v1483, %v1482
  %v1708 = vpack.c.b16 %v1485, %v1484
  %v1709 = vpack.c.b16 %v1487, %v1486
  %v1710 = vpack.c.b16 %v1489, %v1488
  %v1711 = vpack.c.b16 %v1491, %v1490
  %v1712 = vpack.c.b16 %v1493, %v1492
  %v1713 = vpack.c.b16 %v1495, %v1494
  %v1714 = vpack.c.b16 %v1497, %v1496
  %v1715 = vpack.c.b16 %v1499, %v1498
  %1932 = vmatprep.subr.bf16.mxu0 0
  %1933 = vmatpush1.bf16.msra.mxu0 %v1507
  %1934 = vmatprep.subr.bf16.mxu0 0
  %1935 = vmatpush1.bf16.msra.mxu0 %v1506
  %1936 = vmatprep.subr.bf16.mxu0 0
  %1937 = vmatpush1.bf16.msra.mxu0 %v1505
  %1938 = vmatprep.subr.bf16.mxu0 0
  %1939 = vmatpush1.bf16.msra.mxu0 %v1504
  %1940 = vmatprep.subr.bf16.mxu0 0
  %1941 = vmatpush1.bf16.msra.mxu0 %v1503
  %1942 = vmatprep.subr.bf16.mxu0 0
  %1943 = vmatpush1.bf16.msra.mxu0 %v1502
  %1944 = vmatprep.subr.bf16.mxu0 0
  %1945 = vmatpush1.bf16.msra.mxu0 %v1501
  %1946 = vmatprep.subr.bf16.mxu0 0
  %1947 = vmatpush1.bf16.msra.mxu0 %v1500
  %1948 = vmatprep.subr.bf16.mxu0 0
  %1949 = vmatpush2.bf16.msra.mxu0 %v1515
  %1950 = vmatprep.subr.bf16.mxu0 0
  %1951 = vmatpush2.bf16.msra.mxu0 %v1514
  %1952 = vmatprep.subr.bf16.mxu0 0
  %1953 = vmatpush2.bf16.msra.mxu0 %v1513
  %1954 = vmatprep.subr.bf16.mxu0 0
  %1955 = vmatpush2.bf16.msra.mxu0 %v1512
  %1956 = vmatprep.subr.bf16.mxu0 0
  %1957 = vmatpush2.bf16.msra.mxu0 %v1511
  %1958 = vmatprep.subr.bf16.mxu0 0
  %1959 = vmatpush2.bf16.msra.mxu0 %v1510
  %1960 = vmatprep.subr.bf16.mxu0 0
  %1961 = vmatpush2.bf16.msra.mxu0 %v1509
  %1962 = vmatprep.subr.bf16.mxu0 0
  %1963 = vmatpush2.bf16.msra.mxu0 %v1508
  %1964 = vmatprep.mubr.bf16.mxu0 %v583
  %1965 = vmatmul.mubr.bf16.gmra.mxu0 %v582
  %v1966 = vpop.f32.mrf.mxu0
  %v1967 = vadd.f32 %v498, %v1966
  %v1968 = vpop.f32.mrf.mxu0
  %v1969 = vpop.f32.mrf.mxu0
  %v1970 = vadd.f32 %v498, %v1969
  %v1971 = vpop.f32.mrf.mxu0
  %1972 = vdwg.mxu0
  %1973 = vmatprep.subr.bf16.mxu0 0
  %1974 = vmatpush1.bf16.msra.mxu0 %v1523
  %1975 = vmatprep.subr.bf16.mxu0 0
  %1976 = vmatpush1.bf16.msra.mxu0 %v1522
  %1977 = vmatprep.subr.bf16.mxu0 0
  %1978 = vmatpush1.bf16.msra.mxu0 %v1521
  %1979 = vmatprep.subr.bf16.mxu0 0
  %1980 = vmatpush1.bf16.msra.mxu0 %v1520
  %1981 = vmatprep.subr.bf16.mxu0 0
  %1982 = vmatpush1.bf16.msra.mxu0 %v1519
  %1983 = vmatprep.subr.bf16.mxu0 0
  %1984 = vmatpush1.bf16.msra.mxu0 %v1518
  %1985 = vmatprep.subr.bf16.mxu0 0
  %1986 = vmatpush1.bf16.msra.mxu0 %v1517
  %1987 = vmatprep.subr.bf16.mxu0 0
  %1988 = vmatpush1.bf16.msra.mxu0 %v1516
  %1989 = vmatprep.subr.bf16.mxu0 0
  %1990 = vmatpush2.bf16.msra.mxu0 %v1531
  %1991 = vmatprep.subr.bf16.mxu0 0
  %1992 = vmatpush2.bf16.msra.mxu0 %v1530
  %1993 = vmatprep.subr.bf16.mxu0 0
  %1994 = vmatpush2.bf16.msra.mxu0 %v1529
  %1995 = vmatprep.subr.bf16.mxu0 0
  %1996 = vmatpush2.bf16.msra.mxu0 %v1528
  %1997 = vmatprep.subr.bf16.mxu0 0
  %1998 = vmatpush2.bf16.msra.mxu0 %v1527
  %1999 = vmatprep.subr.bf16.mxu0 0
  %2000 = vmatpush2.bf16.msra.mxu0 %v1526
  %2001 = vmatprep.subr.bf16.mxu0 0
  %2002 = vmatpush2.bf16.msra.mxu0 %v1525
  %2003 = vmatprep.subr.bf16.mxu0 0
  %2004 = vmatpush2.bf16.msra.mxu0 %v1524
  %2005 = vmatprep.mubr.bf16.mxu0 %v585
  %2006 = vmatmul.mubr.bf16.gmra.mxu0 %v584
  %v2007 = vpop.f32.mrf.mxu0
  %v2008 = vadd.f32 %v1967, %v2007
  %v2009 = vpop.f32.mrf.mxu0
  %v2010 = vpop.f32.mrf.mxu0
  %v2011 = vadd.f32 %v1970, %v2010
  %v2012 = vpop.f32.mrf.mxu0
  %2013 = vdwg.mxu0
  %2014 = vmatprep.subr.bf16.mxu0 0
  %2015 = vmatpush1.bf16.msra.mxu0 %v1539
  %2016 = vmatprep.subr.bf16.mxu0 0
  %2017 = vmatpush1.bf16.msra.mxu0 %v1538
  %2018 = vmatprep.subr.bf16.mxu0 0
  %2019 = vmatpush1.bf16.msra.mxu0 %v1537
  %2020 = vmatprep.subr.bf16.mxu0 0
  %2021 = vmatpush1.bf16.msra.mxu0 %v1536
  %2022 = vmatprep.subr.bf16.mxu0 0
  %2023 = vmatpush1.bf16.msra.mxu0 %v1535
  %2024 = vmatprep.subr.bf16.mxu0 0
  %2025 = vmatpush1.bf16.msra.mxu0 %v1534
  %2026 = vmatprep.subr.bf16.mxu0 0
  %2027 = vmatpush1.bf16.msra.mxu0 %v1533
  %2028 = vmatprep.subr.bf16.mxu0 0
  %2029 = vmatpush1.bf16.msra.mxu0 %v1532
  %2030 = vmatprep.subr.bf16.mxu0 0
  %2031 = vmatpush2.bf16.msra.mxu0 %v1547
  %2032 = vmatprep.subr.bf16.mxu0 0
  %2033 = vmatpush2.bf16.msra.mxu0 %v1546
  %2034 = vmatprep.subr.bf16.mxu0 0
  %2035 = vmatpush2.bf16.msra.mxu0 %v1545
  %2036 = vmatprep.subr.bf16.mxu0 0
  %2037 = vmatpush2.bf16.msra.mxu0 %v1544
  %2038 = vmatprep.subr.bf16.mxu0 0
  %2039 = vmatpush2.bf16.msra.mxu0 %v1543
  %2040 = vmatprep.subr.bf16.mxu0 0
  %2041 = vmatpush2.bf16.msra.mxu0 %v1542
  %2042 = vmatprep.subr.bf16.mxu0 0
  %2043 = vmatpush2.bf16.msra.mxu0 %v1541
  %2044 = vmatprep.subr.bf16.mxu0 0
  %2045 = vmatpush2.bf16.msra.mxu0 %v1540
  %2046 = vmatprep.mubr.bf16.mxu0 %v587
  %2047 = vmatmul.mubr.bf16.gmra.mxu0 %v586
  %v2048 = vpop.f32.mrf.mxu0
  %v2049 = vadd.f32 %v2008, %v2048
  %v2050 = vpop.f32.mrf.mxu0
  %v2051 = vpop.f32.mrf.mxu0
  %v2052 = vadd.f32 %v2011, %v2051
  %v2053 = vpop.f32.mrf.mxu0
  %2054 = vdwg.mxu0
  %2055 = vmatprep.subr.bf16.mxu0 0
  %2056 = vmatpush1.bf16.msra.mxu0 %v1555
  %2057 = vmatprep.subr.bf16.mxu0 0
  %2058 = vmatpush1.bf16.msra.mxu0 %v1554
  %2059 = vmatprep.subr.bf16.mxu0 0
  %2060 = vmatpush1.bf16.msra.mxu0 %v1553
  %2061 = vmatprep.subr.bf16.mxu0 0
  %2062 = vmatpush1.bf16.msra.mxu0 %v1552
  %2063 = vmatprep.subr.bf16.mxu0 0
  %2064 = vmatpush1.bf16.msra.mxu0 %v1551
  %2065 = vmatprep.subr.bf16.mxu0 0
  %2066 = vmatpush1.bf16.msra.mxu0 %v1550
  %2067 = vmatprep.subr.bf16.mxu0 0
  %2068 = vmatpush1.bf16.msra.mxu0 %v1549
  %2069 = vmatprep.subr.bf16.mxu0 0
  %2070 = vmatpush1.bf16.msra.mxu0 %v1548
  %2071 = vmatprep.subr.bf16.mxu0 0
  %2072 = vmatpush2.bf16.msra.mxu0 %v1563
  %2073 = vmatprep.subr.bf16.mxu0 0
  %2074 = vmatpush2.bf16.msra.mxu0 %v1562
  %2075 = vmatprep.subr.bf16.mxu0 0
  %2076 = vmatpush2.bf16.msra.mxu0 %v1561
  %2077 = vmatprep.subr.bf16.mxu0 0
  %2078 = vmatpush2.bf16.msra.mxu0 %v1560
  %2079 = vmatprep.subr.bf16.mxu0 0
  %2080 = vmatpush2.bf16.msra.mxu0 %v1559
  %2081 = vmatprep.subr.bf16.mxu0 0
  %2082 = vmatpush2.bf16.msra.mxu0 %v1558
  %2083 = vmatprep.subr.bf16.mxu0 0
  %2084 = vmatpush2.bf16.msra.mxu0 %v1557
  %2085 = vmatprep.subr.bf16.mxu0 0
  %2086 = vmatpush2.bf16.msra.mxu0 %v1556
  %2087 = vmatprep.mubr.bf16.mxu0 %v589
  %2088 = vmatmul.mubr.bf16.gmra.mxu0 %v588
  %v2089 = vpop.f32.mrf.mxu0
  %v2090 = vadd.f32 %v2049, %v2089
  %v2091 = vpop.f32.mrf.mxu0
  %v2092 = vpop.f32.mrf.mxu0
  %v2093 = vadd.f32 %v2052, %v2092
  %v2094 = vpop.f32.mrf.mxu0
  %2095 = vdwg.mxu0
  %2096 = vmatprep.subr.bf16.mxu0 0
  %2097 = vmatpush1.bf16.msra.mxu0 %v1571
  %2098 = vmatprep.subr.bf16.mxu0 0
  %2099 = vmatpush1.bf16.msra.mxu0 %v1570
  %2100 = vmatprep.subr.bf16.mxu0 0
  %2101 = vmatpush1.bf16.msra.mxu0 %v1569
  %2102 = vmatprep.subr.bf16.mxu0 0
  %2103 = vmatpush1.bf16.msra.mxu0 %v1568
  %2104 = vmatprep.subr.bf16.mxu0 0
  %2105 = vmatpush1.bf16.msra.mxu0 %v1567
  %2106 = vmatprep.subr.bf16.mxu0 0
  %2107 = vmatpush1.bf16.msra.mxu0 %v1566
  %2108 = vmatprep.subr.bf16.mxu0 0
  %2109 = vmatpush1.bf16.msra.mxu0 %v1565
  %2110 = vmatprep.subr.bf16.mxu0 0
  %2111 = vmatpush1.bf16.msra.mxu0 %v1564
  %2112 = vmatprep.subr.bf16.mxu0 0
  %2113 = vmatpush2.bf16.msra.mxu0 %v1579
  %2114 = vmatprep.subr.bf16.mxu0 0
  %2115 = vmatpush2.bf16.msra.mxu0 %v1578
  %2116 = vmatprep.subr.bf16.mxu0 0
  %2117 = vmatpush2.bf16.msra.mxu0 %v1577
  %2118 = vmatprep.subr.bf16.mxu0 0
  %2119 = vmatpush2.bf16.msra.mxu0 %v1576
  %2120 = vmatprep.subr.bf16.mxu0 0
  %2121 = vmatpush2.bf16.msra.mxu0 %v1575
  %2122 = vmatprep.subr.bf16.mxu0 0
  %2123 = vmatpush2.bf16.msra.mxu0 %v1574
  %2124 = vmatprep.subr.bf16.mxu0 0
  %2125 = vmatpush2.bf16.msra.mxu0 %v1573
  %2126 = vmatprep.subr.bf16.mxu0 0
  %2127 = vmatpush2.bf16.msra.mxu0 %v1572
  %2128 = vmatprep.mubr.bf16.mxu0 %v591
  %2129 = vmatmul.mubr.bf16.gmra.mxu0 %v590
  %v2130 = vpop.f32.mrf.mxu0
  %v2131 = vadd.f32 %v2090, %v2130
  %v2132 = vpop.f32.mrf.mxu0
  %v2133 = vpop.f32.mrf.mxu0
  %v2134 = vadd.f32 %v2093, %v2133
  %v2135 = vpop.f32.mrf.mxu0
  %2136 = vdwg.mxu0
  %2137 = vmatprep.subr.bf16.mxu0 0
  %2138 = vmatpush1.bf16.msra.mxu0 %v1587
  %2139 = vmatprep.subr.bf16.mxu0 0
  %2140 = vmatpush1.bf16.msra.mxu0 %v1586
  %2141 = vmatprep.subr.bf16.mxu0 0
  %2142 = vmatpush1.bf16.msra.mxu0 %v1585
  %2143 = vmatprep.subr.bf16.mxu0 0
  %2144 = vmatpush1.bf16.msra.mxu0 %v1584
  %2145 = vmatprep.subr.bf16.mxu0 0
  %2146 = vmatpush1.bf16.msra.mxu0 %v1583
  %2147 = vmatprep.subr.bf16.mxu0 0
  %2148 = vmatpush1.bf16.msra.mxu0 %v1582
  %2149 = vmatprep.subr.bf16.mxu0 0
  %2150 = vmatpush1.bf16.msra.mxu0 %v1581
  %2151 = vmatprep.subr.bf16.mxu0 0
  %2152 = vmatpush1.bf16.msra.mxu0 %v1580
  %2153 = vmatprep.subr.bf16.mxu0 0
  %2154 = vmatpush2.bf16.msra.mxu0 %v1595
  %2155 = vmatprep.subr.bf16.mxu0 0
  %2156 = vmatpush2.bf16.msra.mxu0 %v1594
  %2157 = vmatprep.subr.bf16.mxu0 0
  %2158 = vmatpush2.bf16.msra.mxu0 %v1593
  %2159 = vmatprep.subr.bf16.mxu0 0
  %2160 = vmatpush2.bf16.msra.mxu0 %v1592
  %2161 = vmatprep.subr.bf16.mxu0 0
  %2162 = vmatpush2.bf16.msra.mxu0 %v1591
  %2163 = vmatprep.subr.bf16.mxu0 0
  %2164 = vmatpush2.bf16.msra.mxu0 %v1590
  %2165 = vmatprep.subr.bf16.mxu0 0
  %2166 = vmatpush2.bf16.msra.mxu0 %v1589
  %2167 = vmatprep.subr.bf16.mxu0 0
  %2168 = vmatpush2.bf16.msra.mxu0 %v1588
  %2169 = vmatprep.mubr.bf16.mxu0 %v593
  %2170 = vmatmul.mubr.bf16.gmra.mxu0 %v592
  %v2171 = vpop.f32.mrf.mxu0
  %v2172 = vadd.f32 %v2131, %v2171
  %v2173 = vpop.f32.mrf.mxu0
  %v2174 = vpop.f32.mrf.mxu0
  %v2175 = vadd.f32 %v2134, %v2174
  %v2176 = vpop.f32.mrf.mxu0
  %2177 = vdwg.mxu0
  %2178 = vmatprep.subr.bf16.mxu0 0
  %2179 = vmatpush1.bf16.msra.mxu0 %v1603
  %2180 = vmatprep.subr.bf16.mxu0 0
  %2181 = vmatpush1.bf16.msra.mxu0 %v1602
  %2182 = vmatprep.subr.bf16.mxu0 0
  %2183 = vmatpush1.bf16.msra.mxu0 %v1601
  %2184 = vmatprep.subr.bf16.mxu0 0
  %2185 = vmatpush1.bf16.msra.mxu0 %v1600
  %2186 = vmatprep.subr.bf16.mxu0 0
  %2187 = vmatpush1.bf16.msra.mxu0 %v1599
  %2188 = vmatprep.subr.bf16.mxu0 0
  %2189 = vmatpush1.bf16.msra.mxu0 %v1598
  %2190 = vmatprep.subr.bf16.mxu0 0
  %2191 = vmatpush1.bf16.msra.mxu0 %v1597
  %2192 = vmatprep.subr.bf16.mxu0 0
  %2193 = vmatpush1.bf16.msra.mxu0 %v1596
  %2194 = vmatprep.subr.bf16.mxu0 0
  %2195 = vmatpush2.bf16.msra.mxu0 %v1611
  %2196 = vmatprep.subr.bf16.mxu0 0
  %2197 = vmatpush2.bf16.msra.mxu0 %v1610
  %2198 = vmatprep.subr.bf16.mxu0 0
  %2199 = vmatpush2.bf16.msra.mxu0 %v1609
  %2200 = vmatprep.subr.bf16.mxu0 0
  %2201 = vmatpush2.bf16.msra.mxu0 %v1608
  %2202 = vmatprep.subr.bf16.mxu0 0
  %2203 = vmatpush2.bf16.msra.mxu0 %v1607
  %2204 = vmatprep.subr.bf16.mxu0 0
  %2205 = vmatpush2.bf16.msra.mxu0 %v1606
  %2206 = vmatprep.subr.bf16.mxu0 0
  %2207 = vmatpush2.bf16.msra.mxu0 %v1605
  %2208 = vmatprep.subr.bf16.mxu0 0
  %2209 = vmatpush2.bf16.msra.mxu0 %v1604
  %2210 = vmatprep.mubr.bf16.mxu0 %v595
  %2211 = vmatmul.mubr.bf16.gmra.mxu0 %v594
  %v2212 = vpop.f32.mrf.mxu0
  %v2213 = vadd.f32 %v2172, %v2212
  %v2214 = vpop.f32.mrf.mxu0
  %v2215 = vpop.f32.mrf.mxu0
  %v2216 = vadd.f32 %v2175, %v2215
  %v2217 = vpop.f32.mrf.mxu0
  %2218 = vdwg.mxu0
  %2219 = vmatprep.subr.bf16.mxu0 0
  %2220 = vmatpush1.bf16.msra.mxu0 %v1619
  %2221 = vmatprep.subr.bf16.mxu0 0
  %2222 = vmatpush1.bf16.msra.mxu0 %v1618
  %2223 = vmatprep.subr.bf16.mxu0 0
  %2224 = vmatpush1.bf16.msra.mxu0 %v1617
  %2225 = vmatprep.subr.bf16.mxu0 0
  %2226 = vmatpush1.bf16.msra.mxu0 %v1616
  %2227 = vmatprep.subr.bf16.mxu0 0
  %2228 = vmatpush1.bf16.msra.mxu0 %v1615
  %2229 = vmatprep.subr.bf16.mxu0 0
  %2230 = vmatpush1.bf16.msra.mxu0 %v1614
  %2231 = vmatprep.subr.bf16.mxu0 0
  %2232 = vmatpush1.bf16.msra.mxu0 %v1613
  %2233 = vmatprep.subr.bf16.mxu0 0
  %2234 = vmatpush1.bf16.msra.mxu0 %v1612
  %2235 = vmatprep.subr.bf16.mxu0 0
  %2236 = vmatpush2.bf16.msra.mxu0 %v1627
  %2237 = vmatprep.subr.bf16.mxu0 0
  %2238 = vmatpush2.bf16.msra.mxu0 %v1626
  %2239 = vmatprep.subr.bf16.mxu0 0
  %2240 = vmatpush2.bf16.msra.mxu0 %v1625
  %2241 = vmatprep.subr.bf16.mxu0 0
  %2242 = vmatpush2.bf16.msra.mxu0 %v1624
  %2243 = vmatprep.subr.bf16.mxu0 0
  %2244 = vmatpush2.bf16.msra.mxu0 %v1623
  %2245 = vmatprep.subr.bf16.mxu0 0
  %2246 = vmatpush2.bf16.msra.mxu0 %v1622
  %2247 = vmatprep.subr.bf16.mxu0 0
  %2248 = vmatpush2.bf16.msra.mxu0 %v1621
  %2249 = vmatprep.subr.bf16.mxu0 0
  %2250 = vmatpush2.bf16.msra.mxu0 %v1620
  %2251 = vmatprep.mubr.bf16.mxu0 %v597
  %2252 = vmatmul.mubr.bf16.gmra.mxu0 %v596
  %v2253 = vpop.f32.mrf.mxu0
  %v2254 = vadd.f32 %v2213, %v2253
  %v2255 = vpop.f32.mrf.mxu0
  %v2256 = vpop.f32.mrf.mxu0
  %v2257 = vadd.f32 %v2216, %v2256
  %v2258 = vpop.f32.mrf.mxu0
  %2259 = vdwg.mxu0
  %2260 = vmatprep.subr.bf16.mxu0 0
  %2261 = vmatpush1.bf16.msra.mxu0 %v1635
  %2262 = vmatprep.subr.bf16.mxu0 0
  %2263 = vmatpush1.bf16.msra.mxu0 %v1634
  %2264 = vmatprep.subr.bf16.mxu0 0
  %2265 = vmatpush1.bf16.msra.mxu0 %v1633
  %2266 = vmatprep.subr.bf16.mxu0 0
  %2267 = vmatpush1.bf16.msra.mxu0 %v1632
  %2268 = vmatprep.subr.bf16.mxu0 0
  %2269 = vmatpush1.bf16.msra.mxu0 %v1631
  %2270 = vmatprep.subr.bf16.mxu0 0
  %2271 = vmatpush1.bf16.msra.mxu0 %v1630
  %2272 = vmatprep.subr.bf16.mxu0 0
  %2273 = vmatpush1.bf16.msra.mxu0 %v1629
  %2274 = vmatprep.subr.bf16.mxu0 0
  %2275 = vmatpush1.bf16.msra.mxu0 %v1628
  %2276 = vmatprep.subr.bf16.mxu0 0
  %2277 = vmatpush2.bf16.msra.mxu0 %v1643
  %2278 = vmatprep.subr.bf16.mxu0 0
  %2279 = vmatpush2.bf16.msra.mxu0 %v1642
  %2280 = vmatprep.subr.bf16.mxu0 0
  %2281 = vmatpush2.bf16.msra.mxu0 %v1641
  %2282 = vmatprep.subr.bf16.mxu0 0
  %2283 = vmatpush2.bf16.msra.mxu0 %v1640
  %2284 = vmatprep.subr.bf16.mxu0 0
  %2285 = vmatpush2.bf16.msra.mxu0 %v1639
  %2286 = vmatprep.subr.bf16.mxu0 0
  %2287 = vmatpush2.bf16.msra.mxu0 %v1638
  %2288 = vmatprep.subr.bf16.mxu0 0
  %2289 = vmatpush2.bf16.msra.mxu0 %v1637
  %2290 = vmatprep.subr.bf16.mxu0 0
  %2291 = vmatpush2.bf16.msra.mxu0 %v1636
  %2292 = vmatprep.mubr.bf16.mxu0 %v599
  %2293 = vmatmul.mubr.bf16.gmra.mxu0 %v598
  %v2294 = vpop.f32.mrf.mxu0
  %v2295 = vadd.f32 %v2254, %v2294
  %v2296 = vpop.f32.mrf.mxu0
  %v2297 = vpop.f32.mrf.mxu0
  %v2298 = vadd.f32 %v2257, %v2297
  %v2299 = vpop.f32.mrf.mxu0
  %2300 = vdwg.mxu0
  %2301 = vmatprep.subr.bf16.mxu0 0
  %2302 = vmatpush1.bf16.msra.mxu0 %v1651
  %2303 = vmatprep.subr.bf16.mxu0 0
  %2304 = vmatpush1.bf16.msra.mxu0 %v1650
  %2305 = vmatprep.subr.bf16.mxu0 0
  %2306 = vmatpush1.bf16.msra.mxu0 %v1649
  %2307 = vmatprep.subr.bf16.mxu0 0
  %2308 = vmatpush1.bf16.msra.mxu0 %v1648
  %2309 = vmatprep.subr.bf16.mxu0 0
  %2310 = vmatpush1.bf16.msra.mxu0 %v1647
  %2311 = vmatprep.subr.bf16.mxu0 0
  %2312 = vmatpush1.bf16.msra.mxu0 %v1646
  %2313 = vmatprep.subr.bf16.mxu0 0
  %2314 = vmatpush1.bf16.msra.mxu0 %v1645
  %2315 = vmatprep.subr.bf16.mxu0 0
  %2316 = vmatpush1.bf16.msra.mxu0 %v1644
  %2317 = vmatprep.subr.bf16.mxu0 0
  %2318 = vmatpush2.bf16.msra.mxu0 %v1659
  %2319 = vmatprep.subr.bf16.mxu0 0
  %2320 = vmatpush2.bf16.msra.mxu0 %v1658
  %2321 = vmatprep.subr.bf16.mxu0 0
  %2322 = vmatpush2.bf16.msra.mxu0 %v1657
  %2323 = vmatprep.subr.bf16.mxu0 0
  %2324 = vmatpush2.bf16.msra.mxu0 %v1656
  %2325 = vmatprep.subr.bf16.mxu0 0
  %2326 = vmatpush2.bf16.msra.mxu0 %v1655
  %2327 = vmatprep.subr.bf16.mxu0 0
  %2328 = vmatpush2.bf16.msra.mxu0 %v1654
  %2329 = vmatprep.subr.bf16.mxu0 0
  %2330 = vmatpush2.bf16.msra.mxu0 %v1653
  %2331 = vmatprep.subr.bf16.mxu0 0
  %2332 = vmatpush2.bf16.msra.mxu0 %v1652
  %2333 = vmatprep.mubr.bf16.mxu0 %v601
  %2334 = vmatmul.mubr.bf16.gmra.mxu0 %v600
  %v2335 = vpop.f32.mrf.mxu0
  %v2336 = vadd.f32 %v2295, %v2335
  %v2337 = vpop.f32.mrf.mxu0
  %v2338 = vpop.f32.mrf.mxu0
  %v2339 = vadd.f32 %v2298, %v2338
  %v2340 = vpop.f32.mrf.mxu0
  %2341 = vdwg.mxu0
  %2342 = vmatprep.subr.bf16.mxu0 0
  %2343 = vmatpush1.bf16.msra.mxu0 %v1667
  %2344 = vmatprep.subr.bf16.mxu0 0
  %2345 = vmatpush1.bf16.msra.mxu0 %v1666
  %2346 = vmatprep.subr.bf16.mxu0 0
  %2347 = vmatpush1.bf16.msra.mxu0 %v1665
  %2348 = vmatprep.subr.bf16.mxu0 0
  %2349 = vmatpush1.bf16.msra.mxu0 %v1664
  %2350 = vmatprep.subr.bf16.mxu0 0
  %2351 = vmatpush1.bf16.msra.mxu0 %v1663
  %2352 = vmatprep.subr.bf16.mxu0 0
  %2353 = vmatpush1.bf16.msra.mxu0 %v1662
  %2354 = vmatprep.subr.bf16.mxu0 0
  %2355 = vmatpush1.bf16.msra.mxu0 %v1661
  %2356 = vmatprep.subr.bf16.mxu0 0
  %2357 = vmatpush1.bf16.msra.mxu0 %v1660
  %2358 = vmatprep.subr.bf16.mxu0 0
  %2359 = vmatpush2.bf16.msra.mxu0 %v1675
  %2360 = vmatprep.subr.bf16.mxu0 0
  %2361 = vmatpush2.bf16.msra.mxu0 %v1674
  %2362 = vmatprep.subr.bf16.mxu0 0
  %2363 = vmatpush2.bf16.msra.mxu0 %v1673
  %2364 = vmatprep.subr.bf16.mxu0 0
  %2365 = vmatpush2.bf16.msra.mxu0 %v1672
  %2366 = vmatprep.subr.bf16.mxu0 0
  %2367 = vmatpush2.bf16.msra.mxu0 %v1671
  %2368 = vmatprep.subr.bf16.mxu0 0
  %2369 = vmatpush2.bf16.msra.mxu0 %v1670
  %2370 = vmatprep.subr.bf16.mxu0 0
  %2371 = vmatpush2.bf16.msra.mxu0 %v1669
  %2372 = vmatprep.subr.bf16.mxu0 0
  %2373 = vmatpush2.bf16.msra.mxu0 %v1668
  %2374 = vmatprep.mubr.bf16.mxu0 %v603
  %2375 = vmatmul.mubr.bf16.gmra.mxu0 %v602
  %v2376 = vpop.f32.mrf.mxu0
  %v2377 = vadd.f32 %v2336, %v2376
  %v2378 = vpop.f32.mrf.mxu0
  %v2379 = vpop.f32.mrf.mxu0
  %v2380 = vadd.f32 %v2339, %v2379
  %v2381 = vpop.f32.mrf.mxu0
  %2382 = vdwg.mxu0
  %2383 = vmatprep.subr.bf16.mxu0 0
  %2384 = vmatpush1.bf16.msra.mxu0 %v1683
  %2385 = vmatprep.subr.bf16.mxu0 0
  %2386 = vmatpush1.bf16.msra.mxu0 %v1682
  %2387 = vmatprep.subr.bf16.mxu0 0
  %2388 = vmatpush1.bf16.msra.mxu0 %v1681
  %2389 = vmatprep.subr.bf16.mxu0 0
  %2390 = vmatpush1.bf16.msra.mxu0 %v1680
  %2391 = vmatprep.subr.bf16.mxu0 0
  %2392 = vmatpush1.bf16.msra.mxu0 %v1679
  %2393 = vmatprep.subr.bf16.mxu0 0
  %2394 = vmatpush1.bf16.msra.mxu0 %v1678
  %2395 = vmatprep.subr.bf16.mxu0 0
  %2396 = vmatpush1.bf16.msra.mxu0 %v1677
  %2397 = vmatprep.subr.bf16.mxu0 0
  %2398 = vmatpush1.bf16.msra.mxu0 %v1676
  %2399 = vmatprep.subr.bf16.mxu0 0
  %2400 = vmatpush2.bf16.msra.mxu0 %v1691
  %2401 = vmatprep.subr.bf16.mxu0 0
  %2402 = vmatpush2.bf16.msra.mxu0 %v1690
  %2403 = vmatprep.subr.bf16.mxu0 0
  %2404 = vmatpush2.bf16.msra.mxu0 %v1689
  %2405 = vmatprep.subr.bf16.mxu0 0
  %2406 = vmatpush2.bf16.msra.mxu0 %v1688
  %2407 = vmatprep.subr.bf16.mxu0 0
  %2408 = vmatpush2.bf16.msra.mxu0 %v1687
  %2409 = vmatprep.subr.bf16.mxu0 0
  %2410 = vmatpush2.bf16.msra.mxu0 %v1686
  %2411 = vmatprep.subr.bf16.mxu0 0
  %2412 = vmatpush2.bf16.msra.mxu0 %v1685
  %2413 = vmatprep.subr.bf16.mxu0 0
  %2414 = vmatpush2.bf16.msra.mxu0 %v1684
  %2415 = vmatprep.mubr.bf16.mxu0 %v605
  %2416 = vmatmul.mubr.bf16.gmra.mxu0 %v604
  %v2417 = vpop.f32.mrf.mxu0
  %v2418 = vadd.f32 %v2377, %v2417
  %v2419 = vpop.f32.mrf.mxu0
  %v2420 = vpop.f32.mrf.mxu0
  %v2421 = vadd.f32 %v2380, %v2420
  %v2422 = vpop.f32.mrf.mxu0
  %2423 = vdwg.mxu0
  %2424 = vmatprep.subr.bf16.mxu0 0
  %2425 = vmatpush1.bf16.msra.mxu0 %v1699
  %2426 = vmatprep.subr.bf16.mxu0 0
  %2427 = vmatpush1.bf16.msra.mxu0 %v1698
  %2428 = vmatprep.subr.bf16.mxu0 0
  %2429 = vmatpush1.bf16.msra.mxu0 %v1697
  %2430 = vmatprep.subr.bf16.mxu0 0
  %2431 = vmatpush1.bf16.msra.mxu0 %v1696
  %2432 = vmatprep.subr.bf16.mxu0 0
  %2433 = vmatpush1.bf16.msra.mxu0 %v1695
  %2434 = vmatprep.subr.bf16.mxu0 0
  %2435 = vmatpush1.bf16.msra.mxu0 %v1694
  %2436 = vmatprep.subr.bf16.mxu0 0
  %2437 = vmatpush1.bf16.msra.mxu0 %v1693
  %2438 = vmatprep.subr.bf16.mxu0 0
  %2439 = vmatpush1.bf16.msra.mxu0 %v1692
  %2440 = vmatprep.subr.bf16.mxu0 0
  %2441 = vmatpush2.bf16.msra.mxu0 %v1707
  %2442 = vmatprep.subr.bf16.mxu0 0
  %2443 = vmatpush2.bf16.msra.mxu0 %v1706
  %2444 = vmatprep.subr.bf16.mxu0 0
  %2445 = vmatpush2.bf16.msra.mxu0 %v1705
  %2446 = vmatprep.subr.bf16.mxu0 0
  %2447 = vmatpush2.bf16.msra.mxu0 %v1704
  %2448 = vmatprep.subr.bf16.mxu0 0
  %2449 = vmatpush2.bf16.msra.mxu0 %v1703
  %2450 = vmatprep.subr.bf16.mxu0 0
  %2451 = vmatpush2.bf16.msra.mxu0 %v1702
  %2452 = vmatprep.subr.bf16.mxu0 0
  %2453 = vmatpush2.bf16.msra.mxu0 %v1701
  %2454 = vmatprep.subr.bf16.mxu0 0
  %2455 = vmatpush2.bf16.msra.mxu0 %v1700
  %2456 = vmatprep.mubr.bf16.mxu0 %v607
  %2457 = vmatmul.mubr.bf16.gmra.mxu0 %v606
  %v2458 = vpop.f32.mrf.mxu0
  %v2459 = vadd.f32 %v2418, %v2458
  %v2460 = vpop.f32.mrf.mxu0
  %v2461 = vpop.f32.mrf.mxu0
  %v2462 = vadd.f32 %v2421, %v2461
  %v2463 = vpop.f32.mrf.mxu0
  %2464 = vdwg.mxu0
  %2465 = vmatprep.subr.bf16.mxu0 0
  %2466 = vmatpush1.bf16.msra.mxu0 %v1715
  %2467 = vmatprep.subr.bf16.mxu0 0
  %2468 = vmatpush1.bf16.msra.mxu0 %v1714
  %2469 = vmatprep.subr.bf16.mxu0 0
  %2470 = vmatpush1.bf16.msra.mxu0 %v1713
  %2471 = vmatprep.subr.bf16.mxu0 0
  %2472 = vmatpush1.bf16.msra.mxu0 %v1712
  %2473 = vmatprep.subr.bf16.mxu0 0
  %2474 = vmatpush1.bf16.msra.mxu0 %v1711
  %2475 = vmatprep.subr.bf16.mxu0 0
  %2476 = vmatpush1.bf16.msra.mxu0 %v1710
  %2477 = vmatprep.subr.bf16.mxu0 0
  %2478 = vmatpush1.bf16.msra.mxu0 %v1709
  %2479 = vmatprep.subr.bf16.mxu0 0
  %2480 = vmatpush1.bf16.msra.mxu0 %v1708
  %2481 = vmatprep.subr.bf16.mxu0 0
  %2482 = vmatpush2.bf16.msra.mxu0 0
  %2483 = vmatprep.subr.bf16.mxu0 0
  %2484 = vmatpush2.bf16.msra.mxu0 0
  %2485 = vmatprep.subr.bf16.mxu0 0
  %2486 = vmatpush2.bf16.msra.mxu0 0
  %2487 = vmatprep.subr.bf16.mxu0 0
  %2488 = vmatpush2.bf16.msra.mxu0 0
  %2489 = vmatprep.subr.bf16.mxu0 0
  %2490 = vmatpush2.bf16.msra.mxu0 0
  %2491 = vmatprep.subr.bf16.mxu0 0
  %2492 = vmatpush2.bf16.msra.mxu0 0
  %2493 = vmatprep.subr.bf16.mxu0 0
  %2494 = vmatpush2.bf16.msra.mxu0 0
  %2495 = vmatprep.subr.bf16.mxu0 0
  %2496 = vmatpush2.bf16.msra.mxu0 0
  %2497 = vmatprep.mubr.bf16.mxu0 0
  %2498 = vmatmul.mubr.bf16.gmra.mxu0 %v608
  %v2499 = vpop.f32.mrf.mxu0
  %v2500 = vadd.f32 %v2459, %v2499
  %v2501 = vpop.f32.mrf.mxu0
  %v2502 = vpop.f32.mrf.mxu0
  %v2503 = vadd.f32 %v2462, %v2502
  %v2504 = vpop.f32.mrf.mxu0
  %2505 = vdwg.mxu0
  %v2506 = vmax.f32 %v2500, 0.0
  %v2507 = vmax.f32 %v2503, 0.0
  %v2508 = vpack.c.bf16 %v2507, %v2506
  %v2509 = vld [vmem:[%s3] sm:$0xff]
  %v2510 = vld [vmem:[%s3 + $0x8] sm:$0xff]
  %v2511 = vld [vmem:[%s3 + $0x10] sm:$0xff]
  %v2512 = vld [vmem:[%s3 + $0x18] sm:$0xff]
  %v2513 = vld [vmem:[%s3 + $0x20] sm:$0xff]
  %v2514 = vld [vmem:[%s3 + $0x28] sm:$0xff]
  %v2515 = vld [vmem:[%s3 + $0x30] sm:$0xff]
  %v2516 = vld [vmem:[%s3 + $0x38] sm:$0xff]
  %v2517 = vld [vmem:[%s3 + $0x40] sm:$0xff]
  %v2518 = vld [vmem:[%s3 + $0x48] sm:$0xff]
  %v2519 = vld [vmem:[%s3 + $0x50] sm:$0xff]
  %v2520 = vld [vmem:[%s3 + $0x58] sm:$0xff]
  %v2521 = vld [vmem:[%s3 + $0x60] sm:$0xff]
  %v2522 = vld [vmem:[%s3 + $0x68] sm:$0xff]
  %v2523 = vld [vmem:[%s3 + $0x70] sm:$0xff]
  %v2524 = vld [vmem:[%s3 + $0x78] sm:$0xff]
  %s2525 = scalar_lea.vmem %s0, 216
  %v2526 = vld [vmem:[%s2525] sm:$0xff]
  %v2527 = vld [vmem:[%s2525 + $0x8] sm:$0xff]
  %v2528 = vld [vmem:[%s2525 + $0x10] sm:$0xff]
  %v2529 = vld [vmem:[%s2525 + $0x18] sm:$0xff]
  %v2530 = vld [vmem:[%s2525 + $0x20] sm:$0xff]
  %v2531 = vld [vmem:[%s2525 + $0x28] sm:$0xff]
  %v2532 = vld [vmem:[%s2525 + $0x30] sm:$0xff]
  %v2533 = vld [vmem:[%s2525 + $0x38] sm:$0xff]
  %v2534 = vld [vmem:[%s2525 + $0x40] sm:$0xff]
  %v2535 = vld [vmem:[%s2525 + $0x48] sm:$0xff]
  %v2536 = vld [vmem:[%s2525 + $0x50] sm:$0xff]
  %v2537 = vld [vmem:[%s2525 + $0x58] sm:$0xff]
  %v2538 = vld [vmem:[%s2525 + $0x60] sm:$0xff]
  %v2539 = vld [vmem:[%s2525 + $0x68] sm:$0xf]
  %v2540 = vld [vmem:[%s2525 + $0x6c] sm:$0xff]
  %v2541 = vld [vmem:[%s2525 + $0x74] sm:$0xff]
  %v2542 = vld [vmem:[%s2525 + $0x7c] sm:$0xff]
  %v2543 = vld [vmem:[%s2525 + $0x84] sm:$0xff]
  %v2544 = vld [vmem:[%s2525 + $0x8c] sm:$0xff]
  %v2545 = vld [vmem:[%s2525 + $0x94] sm:$0xff]
  %v2546 = vld [vmem:[%s2525 + $0x9c] sm:$0xff]
  %v2547 = vld [vmem:[%s2525 + $0xa4] sm:$0xff]
  %v2548 = vld [vmem:[%s2525 + $0xac] sm:$0xff]
  %v2549 = vld [vmem:[%s2525 + $0xb4] sm:$0xff]
  %v2550 = vld [vmem:[%s2525 + $0xbc] sm:$0xff]
  %v2551 = vld [vmem:[%s2525 + $0xc4] sm:$0xff]
  %v2552 = vld [vmem:[%s2525 + $0xcc] sm:$0xff]
  %v2553 = vld [vmem:[%s2525 + $0xd4] sm:$0xf]
  %v2582 = vunpack.c.l.b16 %v2526
  %v2583 = vunpack.c.h.b16 %v2526
  %v2584 = vunpack.c.l.b16 %v2527
  %v2585 = vunpack.c.h.b16 %v2527
  %v2586 = vunpack.c.l.b16 %v2528
  %v2587 = vunpack.c.h.b16 %v2528
  %v2588 = vunpack.c.l.b16 %v2529
  %v2589 = vunpack.c.h.b16 %v2529
  %v2590 = vunpack.c.l.b16 %v2530
  %v2591 = vunpack.c.h.b16 %v2530
  %v2592 = vunpack.c.l.b16 %v2531
  %v2593 = vunpack.c.h.b16 %v2531
  %v2594 = vunpack.c.l.b16 %v2532
  %v2595 = vunpack.c.h.b16 %v2532
  %v2596 = vunpack.c.l.b16 %v2533
  %v2597 = vunpack.c.h.b16 %v2533
  %v2598 = vunpack.c.l.b16 %v2534
  %v2599 = vunpack.c.h.b16 %v2534
  %v2600 = vunpack.c.l.b16 %v2535
  %v2601 = vunpack.c.h.b16 %v2535
  %v2602 = vunpack.c.l.b16 %v2536
  %v2603 = vunpack.c.h.b16 %v2536
  %v2604 = vunpack.c.l.b16 %v2537
  %v2605 = vunpack.c.h.b16 %v2537
  %v2606 = vunpack.c.l.b16 %v2538
  %v2607 = vunpack.c.h.b16 %v2538
  %v2608 = vunpack.c.l.b16 %v2539
  %v2609 = vunpack.c.l.b16 %v2540
  %v2610 = vunpack.c.h.b16 %v2540
  %v2611 = vunpack.c.l.b16 %v2541
  %v2612 = vunpack.c.h.b16 %v2541
  %v2613 = vunpack.c.l.b16 %v2542
  %v2614 = vunpack.c.h.b16 %v2542
  %v2615 = vunpack.c.l.b16 %v2543
  %v2616 = vunpack.c.h.b16 %v2543
  %v2617 = vunpack.c.l.b16 %v2544
  %v2618 = vunpack.c.h.b16 %v2544
  %v2619 = vunpack.c.l.b16 %v2545
  %v2620 = vunpack.c.h.b16 %v2545
  %v2621 = vunpack.c.l.b16 %v2546
  %v2622 = vunpack.c.h.b16 %v2546
  %v2623 = vunpack.c.l.b16 %v2547
  %v2624 = vunpack.c.h.b16 %v2547
  %v2625 = vunpack.c.l.b16 %v2548
  %v2626 = vunpack.c.h.b16 %v2548
  %v2627 = vunpack.c.l.b16 %v2549
  %v2628 = vunpack.c.h.b16 %v2549
  %v2629 = vunpack.c.l.b16 %v2550
  %v2630 = vunpack.c.h.b16 %v2550
  %v2631 = vunpack.c.l.b16 %v2551
  %v2632 = vunpack.c.h.b16 %v2551
  %v2633 = vunpack.c.l.b16 %v2552
  %v2634 = vunpack.c.h.b16 %v2552
  %v2635 = vunpack.c.l.b16 %v2553
  %v2636 = vpack.c.b16 %v2609, %v2582
  %v2637 = vpack.c.b16 %v2610, %v2583
  %v2638 = vpack.c.b16 %v2611, %v2584
  %v2639 = vpack.c.b16 %v2612, %v2585
  %v2640 = vpack.c.b16 %v2613, %v2586
  %v2641 = vpack.c.b16 %v2614, %v2587
  %v2642 = vpack.c.b16 %v2615, %v2588
  %v2643 = vpack.c.b16 %v2616, %v2589
  %v2644 = vpack.c.b16 %v2617, %v2590
  %v2645 = vpack.c.b16 %v2618, %v2591
  %v2646 = vpack.c.b16 %v2619, %v2592
  %v2647 = vpack.c.b16 %v2620, %v2593
  %v2648 = vpack.c.b16 %v2621, %v2594
  %v2649 = vpack.c.b16 %v2622, %v2595
  %v2650 = vpack.c.b16 %v2623, %v2596
  %v2651 = vpack.c.b16 %v2624, %v2597
  %v2652 = vpack.c.b16 %v2625, %v2598
  %v2653 = vpack.c.b16 %v2626, %v2599
  %v2654 = vpack.c.b16 %v2627, %v2600
  %v2655 = vpack.c.b16 %v2628, %v2601
  %v2656 = vpack.c.b16 %v2629, %v2602
  %v2657 = vpack.c.b16 %v2630, %v2603
  %v2658 = vpack.c.b16 %v2631, %v2604
  %v2659 = vpack.c.b16 %v2632, %v2605
  %v2660 = vpack.c.b16 %v2633, %v2606
  %v2661 = vpack.c.b16 %v2634, %v2607
  %v2662 = vpack.c.b16 %v2635, %v2608
  %2690 = vmatprep.subr.bf16.mxu0 0
  %2691 = vmatpush1.bf16.msra.mxu0 %v1507
  %2692 = vmatprep.subr.bf16.mxu0 0
  %2693 = vmatpush1.bf16.msra.mxu0 %v1506
  %2694 = vmatprep.subr.bf16.mxu0 0
  %2695 = vmatpush1.bf16.msra.mxu0 %v1505
  %2696 = vmatprep.subr.bf16.mxu0 0
  %2697 = vmatpush1.bf16.msra.mxu0 %v1504
  %2698 = vmatprep.subr.bf16.mxu0 0
  %2699 = vmatpush1.bf16.msra.mxu0 %v1503
  %2700 = vmatprep.subr.bf16.mxu0 0
  %2701 = vmatpush1.bf16.msra.mxu0 %v1502
  %2702 = vmatprep.subr.bf16.mxu0 0
  %2703 = vmatpush1.bf16.msra.mxu0 %v1501
  %2704 = vmatprep.subr.bf16.mxu0 0
  %2705 = vmatpush1.bf16.msra.mxu0 %v1500
  %2706 = vmatprep.subr.bf16.mxu0 0
  %2707 = vmatpush2.bf16.msra.mxu0 %v1515
  %2708 = vmatprep.subr.bf16.mxu0 0
  %2709 = vmatpush2.bf16.msra.mxu0 %v1514
  %2710 = vmatprep.subr.bf16.mxu0 0
  %2711 = vmatpush2.bf16.msra.mxu0 %v1513
  %2712 = vmatprep.subr.bf16.mxu0 0
  %2713 = vmatpush2.bf16.msra.mxu0 %v1512
  %2714 = vmatprep.subr.bf16.mxu0 0
  %2715 = vmatpush2.bf16.msra.mxu0 %v1511
  %2716 = vmatprep.subr.bf16.mxu0 0
  %2717 = vmatpush2.bf16.msra.mxu0 %v1510
  %2718 = vmatprep.subr.bf16.mxu0 0
  %2719 = vmatpush2.bf16.msra.mxu0 %v1509
  %2720 = vmatprep.subr.bf16.mxu0 0
  %2721 = vmatpush2.bf16.msra.mxu0 %v1508
  %2722 = vmatprep.mubr.bf16.mxu0 %v2637
  %2723 = vmatmul.mubr.bf16.gmra.mxu0 %v2636
  %v2724 = vpop.f32.mrf.mxu0
  %v2725 = vadd.f32 %v498, %v2724
  %v2726 = vpop.f32.mrf.mxu0
  %v2727 = vpop.f32.mrf.mxu0
  %v2728 = vadd.f32 %v498, %v2727
  %v2729 = vpop.f32.mrf.mxu0
  %2730 = vdwg.mxu0
  %2731 = vmatprep.subr.bf16.mxu0 0
  %2732 = vmatpush1.bf16.msra.mxu0 %v1523
  %2733 = vmatprep.subr.bf16.mxu0 0
  %2734 = vmatpush1.bf16.msra.mxu0 %v1522
  %2735 = vmatprep.subr.bf16.mxu0 0
  %2736 = vmatpush1.bf16.msra.mxu0 %v1521
  %2737 = vmatprep.subr.bf16.mxu0 0
  %2738 = vmatpush1.bf16.msra.mxu0 %v1520
  %2739 = vmatprep.subr.bf16.mxu0 0
  %2740 = vmatpush1.bf16.msra.mxu0 %v1519
  %2741 = vmatprep.subr.bf16.mxu0 0
  %2742 = vmatpush1.bf16.msra.mxu0 %v1518
  %2743 = vmatprep.subr.bf16.mxu0 0
  %2744 = vmatpush1.bf16.msra.mxu0 %v1517
  %2745 = vmatprep.subr.bf16.mxu0 0
  %2746 = vmatpush1.bf16.msra.mxu0 %v1516
  %2747 = vmatprep.subr.bf16.mxu0 0
  %2748 = vmatpush2.bf16.msra.mxu0 %v1531
  %2749 = vmatprep.subr.bf16.mxu0 0
  %2750 = vmatpush2.bf16.msra.mxu0 %v1530
  %2751 = vmatprep.subr.bf16.mxu0 0
  %2752 = vmatpush2.bf16.msra.mxu0 %v1529
  %2753 = vmatprep.subr.bf16.mxu0 0
  %2754 = vmatpush2.bf16.msra.mxu0 %v1528
  %2755 = vmatprep.subr.bf16.mxu0 0
  %2756 = vmatpush2.bf16.msra.mxu0 %v1527
  %2757 = vmatprep.subr.bf16.mxu0 0
  %2758 = vmatpush2.bf16.msra.mxu0 %v1526
  %2759 = vmatprep.subr.bf16.mxu0 0
  %2760 = vmatpush2.bf16.msra.mxu0 %v1525
  %2761 = vmatprep.subr.bf16.mxu0 0
  %2762 = vmatpush2.bf16.msra.mxu0 %v1524
  %2763 = vmatprep.mubr.bf16.mxu0 %v2639
  %2764 = vmatmul.mubr.bf16.gmra.mxu0 %v2638
  %v2765 = vpop.f32.mrf.mxu0
  %v2766 = vadd.f32 %v2725, %v2765
  %v2767 = vpop.f32.mrf.mxu0
  %v2768 = vpop.f32.mrf.mxu0
  %v2769 = vadd.f32 %v2728, %v2768
  %v2770 = vpop.f32.mrf.mxu0
  %2771 = vdwg.mxu0
  %2772 = vmatprep.subr.bf16.mxu0 0
  %2773 = vmatpush1.bf16.msra.mxu0 %v1539
  %2774 = vmatprep.subr.bf16.mxu0 0
  %2775 = vmatpush1.bf16.msra.mxu0 %v1538
  %2776 = vmatprep.subr.bf16.mxu0 0
  %2777 = vmatpush1.bf16.msra.mxu0 %v1537
  %2778 = vmatprep.subr.bf16.mxu0 0
  %2779 = vmatpush1.bf16.msra.mxu0 %v1536
  %2780 = vmatprep.subr.bf16.mxu0 0
  %2781 = vmatpush1.bf16.msra.mxu0 %v1535
  %2782 = vmatprep.subr.bf16.mxu0 0
  %2783 = vmatpush1.bf16.msra.mxu0 %v1534
  %2784 = vmatprep.subr.bf16.mxu0 0
  %2785 = vmatpush1.bf16.msra.mxu0 %v1533
  %2786 = vmatprep.subr.bf16.mxu0 0
  %2787 = vmatpush1.bf16.msra.mxu0 %v1532
  %2788 = vmatprep.subr.bf16.mxu0 0
  %2789 = vmatpush2.bf16.msra.mxu0 %v1547
  %2790 = vmatprep.subr.bf16.mxu0 0
  %2791 = vmatpush2.bf16.msra.mxu0 %v1546
  %2792 = vmatprep.subr.bf16.mxu0 0
  %2793 = vmatpush2.bf16.msra.mxu0 %v1545
  %2794 = vmatprep.subr.bf16.mxu0 0
  %2795 = vmatpush2.bf16.msra.mxu0 %v1544
  %2796 = vmatprep.subr.bf16.mxu0 0
  %2797 = vmatpush2.bf16.msra.mxu0 %v1543
  %2798 = vmatprep.subr.bf16.mxu0 0
  %2799 = vmatpush2.bf16.msra.mxu0 %v1542
  %2800 = vmatprep.subr.bf16.mxu0 0
  %2801 = vmatpush2.bf16.msra.mxu0 %v1541
  %2802 = vmatprep.subr.bf16.mxu0 0
  %2803 = vmatpush2.bf16.msra.mxu0 %v1540
  %2804 = vmatprep.mubr.bf16.mxu0 %v2641
  %2805 = vmatmul.mubr.bf16.gmra.mxu0 %v2640
  %v2806 = vpop.f32.mrf.mxu0
  %v2807 = vadd.f32 %v2766, %v2806
  %v2808 = vpop.f32.mrf.mxu0
  %v2809 = vpop.f32.mrf.mxu0
  %v2810 = vadd.f32 %v2769, %v2809
  %v2811 = vpop.f32.mrf.mxu0
  %2812 = vdwg.mxu0
  %2813 = vmatprep.subr.bf16.mxu0 0
  %2814 = vmatpush1.bf16.msra.mxu0 %v1555
  %2815 = vmatprep.subr.bf16.mxu0 0
  %2816 = vmatpush1.bf16.msra.mxu0 %v1554
  %2817 = vmatprep.subr.bf16.mxu0 0
  %2818 = vmatpush1.bf16.msra.mxu0 %v1553
  %2819 = vmatprep.subr.bf16.mxu0 0
  %2820 = vmatpush1.bf16.msra.mxu0 %v1552
  %2821 = vmatprep.subr.bf16.mxu0 0
  %2822 = vmatpush1.bf16.msra.mxu0 %v1551
  %2823 = vmatprep.subr.bf16.mxu0 0
  %2824 = vmatpush1.bf16.msra.mxu0 %v1550
  %2825 = vmatprep.subr.bf16.mxu0 0
  %2826 = vmatpush1.bf16.msra.mxu0 %v1549
  %2827 = vmatprep.subr.bf16.mxu0 0
  %2828 = vmatpush1.bf16.msra.mxu0 %v1548
  %2829 = vmatprep.subr.bf16.mxu0 0
  %2830 = vmatpush2.bf16.msra.mxu0 %v1563
  %2831 = vmatprep.subr.bf16.mxu0 0
  %2832 = vmatpush2.bf16.msra.mxu0 %v1562
  %2833 = vmatprep.subr.bf16.mxu0 0
  %2834 = vmatpush2.bf16.msra.mxu0 %v1561
  %2835 = vmatprep.subr.bf16.mxu0 0
  %2836 = vmatpush2.bf16.msra.mxu0 %v1560
  %2837 = vmatprep.subr.bf16.mxu0 0
  %2838 = vmatpush2.bf16.msra.mxu0 %v1559
  %2839 = vmatprep.subr.bf16.mxu0 0
  %2840 = vmatpush2.bf16.msra.mxu0 %v1558
  %2841 = vmatprep.subr.bf16.mxu0 0
  %2842 = vmatpush2.bf16.msra.mxu0 %v1557
  %2843 = vmatprep.subr.bf16.mxu0 0
  %2844 = vmatpush2.bf16.msra.mxu0 %v1556
  %2845 = vmatprep.mubr.bf16.mxu0 %v2643
  %2846 = vmatmul.mubr.bf16.gmra.mxu0 %v2642
  %v2847 = vpop.f32.mrf.mxu0
  %v2848 = vadd.f32 %v2807, %v2847
  %v2849 = vpop.f32.mrf.mxu0
  %v2850 = vpop.f32.mrf.mxu0
  %v2851 = vadd.f32 %v2810, %v2850
  %v2852 = vpop.f32.mrf.mxu0
  %2853 = vdwg.mxu0
  %2854 = vmatprep.subr.bf16.mxu0 0
  %2855 = vmatpush1.bf16.msra.mxu0 %v1571
  %2856 = vmatprep.subr.bf16.mxu0 0
  %2857 = vmatpush1.bf16.msra.mxu0 %v1570
  %2858 = vmatprep.subr.bf16.mxu0 0
  %2859 = vmatpush1.bf16.msra.mxu0 %v1569
  %2860 = vmatprep.subr.bf16.mxu0 0
  %2861 = vmatpush1.bf16.msra.mxu0 %v1568
  %2862 = vmatprep.subr.bf16.mxu0 0
  %2863 = vmatpush1.bf16.msra.mxu0 %v1567
  %2864 = vmatprep.subr.bf16.mxu0 0
  %2865 = vmatpush1.bf16.msra.mxu0 %v1566
  %2866 = vmatprep.subr.bf16.mxu0 0
  %2867 = vmatpush1.bf16.msra.mxu0 %v1565
  %2868 = vmatprep.subr.bf16.mxu0 0
  %2869 = vmatpush1.bf16.msra.mxu0 %v1564
  %2870 = vmatprep.subr.bf16.mxu0 0
  %2871 = vmatpush2.bf16.msra.mxu0 %v1579
  %2872 = vmatprep.subr.bf16.mxu0 0
  %2873 = vmatpush2.bf16.msra.mxu0 %v1578
  %2874 = vmatprep.subr.bf16.mxu0 0
  %2875 = vmatpush2.bf16.msra.mxu0 %v1577
  %2876 = vmatprep.subr.bf16.mxu0 0
  %2877 = vmatpush2.bf16.msra.mxu0 %v1576
  %2878 = vmatprep.subr.bf16.mxu0 0
  %2879 = vmatpush2.bf16.msra.mxu0 %v1575
  %2880 = vmatprep.subr.bf16.mxu0 0
  %2881 = vmatpush2.bf16.msra.mxu0 %v1574
  %2882 = vmatprep.subr.bf16.mxu0 0
  %2883 = vmatpush2.bf16.msra.mxu0 %v1573
  %2884 = vmatprep.subr.bf16.mxu0 0
  %2885 = vmatpush2.bf16.msra.mxu0 %v1572
  %2886 = vmatprep.mubr.bf16.mxu0 %v2645
  %2887 = vmatmul.mubr.bf16.gmra.mxu0 %v2644
  %v2888 = vpop.f32.mrf.mxu0
  %v2889 = vadd.f32 %v2848, %v2888
  %v2890 = vpop.f32.mrf.mxu0
  %v2891 = vpop.f32.mrf.mxu0
  %v2892 = vadd.f32 %v2851, %v2891
  %v2893 = vpop.f32.mrf.mxu0
  %2894 = vdwg.mxu0
  %2895 = vmatprep.subr.bf16.mxu0 0
  %2896 = vmatpush1.bf16.msra.mxu0 %v1587
  %2897 = vmatprep.subr.bf16.mxu0 0
  %2898 = vmatpush1.bf16.msra.mxu0 %v1586
  %2899 = vmatprep.subr.bf16.mxu0 0
  %2900 = vmatpush1.bf16.msra.mxu0 %v1585
  %2901 = vmatprep.subr.bf16.mxu0 0
  %2902 = vmatpush1.bf16.msra.mxu0 %v1584
  %2903 = vmatprep.subr.bf16.mxu0 0
  %2904 = vmatpush1.bf16.msra.mxu0 %v1583
  %2905 = vmatprep.subr.bf16.mxu0 0
  %2906 = vmatpush1.bf16.msra.mxu0 %v1582
  %2907 = vmatprep.subr.bf16.mxu0 0
  %2908 = vmatpush1.bf16.msra.mxu0 %v1581
  %2909 = vmatprep.subr.bf16.mxu0 0
  %2910 = vmatpush1.bf16.msra.mxu0 %v1580
  %2911 = vmatprep.subr.bf16.mxu0 0
  %2912 = vmatpush2.bf16.msra.mxu0 %v1595
  %2913 = vmatprep.subr.bf16.mxu0 0
  %2914 = vmatpush2.bf16.msra.mxu0 %v1594
  %2915 = vmatprep.subr.bf16.mxu0 0
  %2916 = vmatpush2.bf16.msra.mxu0 %v1593
  %2917 = vmatprep.subr.bf16.mxu0 0
  %2918 = vmatpush2.bf16.msra.mxu0 %v1592
  %2919 = vmatprep.subr.bf16.mxu0 0
  %2920 = vmatpush2.bf16.msra.mxu0 %v1591
  %2921 = vmatprep.subr.bf16.mxu0 0
  %2922 = vmatpush2.bf16.msra.mxu0 %v1590
  %2923 = vmatprep.subr.bf16.mxu0 0
  %2924 = vmatpush2.bf16.msra.mxu0 %v1589
  %2925 = vmatprep.subr.bf16.mxu0 0
  %2926 = vmatpush2.bf16.msra.mxu0 %v1588
  %2927 = vmatprep.mubr.bf16.mxu0 %v2647
  %2928 = vmatmul.mubr.bf16.gmra.mxu0 %v2646
  %v2929 = vpop.f32.mrf.mxu0
  %v2930 = vadd.f32 %v2889, %v2929
  %v2931 = vpop.f32.mrf.mxu0
  %v2932 = vpop.f32.mrf.mxu0
  %v2933 = vadd.f32 %v2892, %v2932
  %v2934 = vpop.f32.mrf.mxu0
  %2935 = vdwg.mxu0
  %2936 = vmatprep.subr.bf16.mxu0 0
  %2937 = vmatpush1.bf16.msra.mxu0 %v1603
  %2938 = vmatprep.subr.bf16.mxu0 0
  %2939 = vmatpush1.bf16.msra.mxu0 %v1602
  %2940 = vmatprep.subr.bf16.mxu0 0
  %2941 = vmatpush1.bf16.msra.mxu0 %v1601
  %2942 = vmatprep.subr.bf16.mxu0 0
  %2943 = vmatpush1.bf16.msra.mxu0 %v1600
  %2944 = vmatprep.subr.bf16.mxu0 0
  %2945 = vmatpush1.bf16.msra.mxu0 %v1599
  %2946 = vmatprep.subr.bf16.mxu0 0
  %2947 = vmatpush1.bf16.msra.mxu0 %v1598
  %2948 = vmatprep.subr.bf16.mxu0 0
  %2949 = vmatpush1.bf16.msra.mxu0 %v1597
  %2950 = vmatprep.subr.bf16.mxu0 0
  %2951 = vmatpush1.bf16.msra.mxu0 %v1596
  %2952 = vmatprep.subr.bf16.mxu0 0
  %2953 = vmatpush2.bf16.msra.mxu0 %v1611
  %2954 = vmatprep.subr.bf16.mxu0 0
  %2955 = vmatpush2.bf16.msra.mxu0 %v1610
  %2956 = vmatprep.subr.bf16.mxu0 0
  %2957 = vmatpush2.bf16.msra.mxu0 %v1609
  %2958 = vmatprep.subr.bf16.mxu0 0
  %2959 = vmatpush2.bf16.msra.mxu0 %v1608
  %2960 = vmatprep.subr.bf16.mxu0 0
  %2961 = vmatpush2.bf16.msra.mxu0 %v1607
  %2962 = vmatprep.subr.bf16.mxu0 0
  %2963 = vmatpush2.bf16.msra.mxu0 %v1606
  %2964 = vmatprep.subr.bf16.mxu0 0
  %2965 = vmatpush2.bf16.msra.mxu0 %v1605
  %2966 = vmatprep.subr.bf16.mxu0 0
  %2967 = vmatpush2.bf16.msra.mxu0 %v1604
  %2968 = vmatprep.mubr.bf16.mxu0 %v2649
  %2969 = vmatmul.mubr.bf16.gmra.mxu0 %v2648
  %v2970 = vpop.f32.mrf.mxu0
  %v2971 = vadd.f32 %v2930, %v2970
  %v2972 = vpop.f32.mrf.mxu0
  %v2973 = vpop.f32.mrf.mxu0
  %v2974 = vadd.f32 %v2933, %v2973
  %v2975 = vpop.f32.mrf.mxu0
  %2976 = vdwg.mxu0
  %2977 = vmatprep.subr.bf16.mxu0 0
  %2978 = vmatpush1.bf16.msra.mxu0 %v1619
  %2979 = vmatprep.subr.bf16.mxu0 0
  %2980 = vmatpush1.bf16.msra.mxu0 %v1618
  %2981 = vmatprep.subr.bf16.mxu0 0
  %2982 = vmatpush1.bf16.msra.mxu0 %v1617
  %2983 = vmatprep.subr.bf16.mxu0 0
  %2984 = vmatpush1.bf16.msra.mxu0 %v1616
  %2985 = vmatprep.subr.bf16.mxu0 0
  %2986 = vmatpush1.bf16.msra.mxu0 %v1615
  %2987 = vmatprep.subr.bf16.mxu0 0
  %2988 = vmatpush1.bf16.msra.mxu0 %v1614
  %2989 = vmatprep.subr.bf16.mxu0 0
  %2990 = vmatpush1.bf16.msra.mxu0 %v1613
  %2991 = vmatprep.subr.bf16.mxu0 0
  %2992 = vmatpush1.bf16.msra.mxu0 %v1612
  %2993 = vmatprep.subr.bf16.mxu0 0
  %2994 = vmatpush2.bf16.msra.mxu0 %v1627
  %2995 = vmatprep.subr.bf16.mxu0 0
  %2996 = vmatpush2.bf16.msra.mxu0 %v1626
  %2997 = vmatprep.subr.bf16.mxu0 0
  %2998 = vmatpush2.bf16.msra.mxu0 %v1625
  %2999 = vmatprep.subr.bf16.mxu0 0
  %3000 = vmatpush2.bf16.msra.mxu0 %v1624
  %3001 = vmatprep.subr.bf16.mxu0 0
  %3002 = vmatpush2.bf16.msra.mxu0 %v1623
  %3003 = vmatprep.subr.bf16.mxu0 0
  %3004 = vmatpush2.bf16.msra.mxu0 %v1622
  %3005 = vmatprep.subr.bf16.mxu0 0
  %3006 = vmatpush2.bf16.msra.mxu0 %v1621
  %3007 = vmatprep.subr.bf16.mxu0 0
  %3008 = vmatpush2.bf16.msra.mxu0 %v1620
  %3009 = vmatprep.mubr.bf16.mxu0 %v2651
  %3010 = vmatmul.mubr.bf16.gmra.mxu0 %v2650
  %v3011 = vpop.f32.mrf.mxu0
  %v3012 = vadd.f32 %v2971, %v3011
  %v3013 = vpop.f32.mrf.mxu0
  %v3014 = vpop.f32.mrf.mxu0
  %v3015 = vadd.f32 %v2974, %v3014
  %v3016 = vpop.f32.mrf.mxu0
  %3017 = vdwg.mxu0
  %3018 = vmatprep.subr.bf16.mxu0 0
  %3019 = vmatpush1.bf16.msra.mxu0 %v1635
  %3020 = vmatprep.subr.bf16.mxu0 0
  %3021 = vmatpush1.bf16.msra.mxu0 %v1634
  %3022 = vmatprep.subr.bf16.mxu0 0
  %3023 = vmatpush1.bf16.msra.mxu0 %v1633
  %3024 = vmatprep.subr.bf16.mxu0 0
  %3025 = vmatpush1.bf16.msra.mxu0 %v1632
  %3026 = vmatprep.subr.bf16.mxu0 0
  %3027 = vmatpush1.bf16.msra.mxu0 %v1631
  %3028 = vmatprep.subr.bf16.mxu0 0
  %3029 = vmatpush1.bf16.msra.mxu0 %v1630
  %3030 = vmatprep.subr.bf16.mxu0 0
  %3031 = vmatpush1.bf16.msra.mxu0 %v1629
  %3032 = vmatprep.subr.bf16.mxu0 0
  %3033 = vmatpush1.bf16.msra.mxu0 %v1628
  %3034 = vmatprep.subr.bf16.mxu0 0
  %3035 = vmatpush2.bf16.msra.mxu0 %v1643
  %3036 = vmatprep.subr.bf16.mxu0 0
  %3037 = vmatpush2.bf16.msra.mxu0 %v1642
  %3038 = vmatprep.subr.bf16.mxu0 0
  %3039 = vmatpush2.bf16.msra.mxu0 %v1641
  %3040 = vmatprep.subr.bf16.mxu0 0
  %3041 = vmatpush2.bf16.msra.mxu0 %v1640
  %3042 = vmatprep.subr.bf16.mxu0 0
  %3043 = vmatpush2.bf16.msra.mxu0 %v1639
  %3044 = vmatprep.subr.bf16.mxu0 0
  %3045 = vmatpush2.bf16.msra.mxu0 %v1638
  %3046 = vmatprep.subr.bf16.mxu0 0
  %3047 = vmatpush2.bf16.msra.mxu0 %v1637
  %3048 = vmatprep.subr.bf16.mxu0 0
  %3049 = vmatpush2.bf16.msra.mxu0 %v1636
  %3050 = vmatprep.mubr.bf16.mxu0 %v2653
  %3051 = vmatmul.mubr.bf16.gmra.mxu0 %v2652
  %v3052 = vpop.f32.mrf.mxu0
  %v3053 = vadd.f32 %v3012, %v3052
  %v3054 = vpop.f32.mrf.mxu0
  %v3055 = vpop.f32.mrf.mxu0
  %v3056 = vadd.f32 %v3015, %v3055
  %v3057 = vpop.f32.mrf.mxu0
  %3058 = vdwg.mxu0
  %3059 = vmatprep.subr.bf16.mxu0 0
  %3060 = vmatpush1.bf16.msra.mxu0 %v1651
  %3061 = vmatprep.subr.bf16.mxu0 0
  %3062 = vmatpush1.bf16.msra.mxu0 %v1650
  %3063 = vmatprep.subr.bf16.mxu0 0
  %3064 = vmatpush1.bf16.msra.mxu0 %v1649
  %3065 = vmatprep.subr.bf16.mxu0 0
  %3066 = vmatpush1.bf16.msra.mxu0 %v1648
  %3067 = vmatprep.subr.bf16.mxu0 0
  %3068 = vmatpush1.bf16.msra.mxu0 %v1647
  %3069 = vmatprep.subr.bf16.mxu0 0
  %3070 = vmatpush1.bf16.msra.mxu0 %v1646
  %3071 = vmatprep.subr.bf16.mxu0 0
  %3072 = vmatpush1.bf16.msra.mxu0 %v1645
  %3073 = vmatprep.subr.bf16.mxu0 0
  %3074 = vmatpush1.bf16.msra.mxu0 %v1644
  %3075 = vmatprep.subr.bf16.mxu0 0
  %3076 = vmatpush2.bf16.msra.mxu0 %v1659
  %3077 = vmatprep.subr.bf16.mxu0 0
  %3078 = vmatpush2.bf16.msra.mxu0 %v1658
  %3079 = vmatprep.subr.bf16.mxu0 0
  %3080 = vmatpush2.bf16.msra.mxu0 %v1657
  %3081 = vmatprep.subr.bf16.mxu0 0
  %3082 = vmatpush2.bf16.msra.mxu0 %v1656
  %3083 = vmatprep.subr.bf16.mxu0 0
  %3084 = vmatpush2.bf16.msra.mxu0 %v1655
  %3085 = vmatprep.subr.bf16.mxu0 0
  %3086 = vmatpush2.bf16.msra.mxu0 %v1654
  %3087 = vmatprep.subr.bf16.mxu0 0
  %3088 = vmatpush2.bf16.msra.mxu0 %v1653
  %3089 = vmatprep.subr.bf16.mxu0 0
  %3090 = vmatpush2.bf16.msra.mxu0 %v1652
  %3091 = vmatprep.mubr.bf16.mxu0 %v2655
  %3092 = vmatmul.mubr.bf16.gmra.mxu0 %v2654
  %v3093 = vpop.f32.mrf.mxu0
  %v3094 = vadd.f32 %v3053, %v3093
  %v3095 = vpop.f32.mrf.mxu0
  %v3096 = vpop.f32.mrf.mxu0
  %v3097 = vadd.f32 %v3056, %v3096
  %v3098 = vpop.f32.mrf.mxu0
  %3099 = vdwg.mxu0
  %3100 = vmatprep.subr.bf16.mxu0 0
  %3101 = vmatpush1.bf16.msra.mxu0 %v1667
  %3102 = vmatprep.subr.bf16.mxu0 0
  %3103 = vmatpush1.bf16.msra.mxu0 %v1666
  %3104 = vmatprep.subr.bf16.mxu0 0
  %3105 = vmatpush1.bf16.msra.mxu0 %v1665
  %3106 = vmatprep.subr.bf16.mxu0 0
  %3107 = vmatpush1.bf16.msra.mxu0 %v1664
  %3108 = vmatprep.subr.bf16.mxu0 0
  %3109 = vmatpush1.bf16.msra.mxu0 %v1663
  %3110 = vmatprep.subr.bf16.mxu0 0
  %3111 = vmatpush1.bf16.msra.mxu0 %v1662
  %3112 = vmatprep.subr.bf16.mxu0 0
  %3113 = vmatpush1.bf16.msra.mxu0 %v1661
  %3114 = vmatprep.subr.bf16.mxu0 0
  %3115 = vmatpush1.bf16.msra.mxu0 %v1660
  %3116 = vmatprep.subr.bf16.mxu0 0
  %3117 = vmatpush2.bf16.msra.mxu0 %v1675
  %3118 = vmatprep.subr.bf16.mxu0 0
  %3119 = vmatpush2.bf16.msra.mxu0 %v1674
  %3120 = vmatprep.subr.bf16.mxu0 0
  %3121 = vmatpush2.bf16.msra.mxu0 %v1673
  %3122 = vmatprep.subr.bf16.mxu0 0
  %3123 = vmatpush2.bf16.msra.mxu0 %v1672
  %3124 = vmatprep.subr.bf16.mxu0 0
  %3125 = vmatpush2.bf16.msra.mxu0 %v1671
  %3126 = vmatprep.subr.bf16.mxu0 0
  %3127 = vmatpush2.bf16.msra.mxu0 %v1670
  %3128 = vmatprep.subr.bf16.mxu0 0
  %3129 = vmatpush2.bf16.msra.mxu0 %v1669
  %3130 = vmatprep.subr.bf16.mxu0 0
  %3131 = vmatpush2.bf16.msra.mxu0 %v1668
  %3132 = vmatprep.mubr.bf16.mxu0 %v2657
  %3133 = vmatmul.mubr.bf16.gmra.mxu0 %v2656
  %v3134 = vpop.f32.mrf.mxu0
  %v3135 = vadd.f32 %v3094, %v3134
  %v3136 = vpop.f32.mrf.mxu0
  %v3137 = vpop.f32.mrf.mxu0
  %v3138 = vadd.f32 %v3097, %v3137
  %v3139 = vpop.f32.mrf.mxu0
  %3140 = vdwg.mxu0
  %3141 = vmatprep.subr.bf16.mxu0 0
  %3142 = vmatpush1.bf16.msra.mxu0 %v1683
  %3143 = vmatprep.subr.bf16.mxu0 0
  %3144 = vmatpush1.bf16.msra.mxu0 %v1682
  %3145 = vmatprep.subr.bf16.mxu0 0
  %3146 = vmatpush1.bf16.msra.mxu0 %v1681
  %3147 = vmatprep.subr.bf16.mxu0 0
  %3148 = vmatpush1.bf16.msra.mxu0 %v1680
  %3149 = vmatprep.subr.bf16.mxu0 0
  %3150 = vmatpush1.bf16.msra.mxu0 %v1679
  %3151 = vmatprep.subr.bf16.mxu0 0
  %3152 = vmatpush1.bf16.msra.mxu0 %v1678
  %3153 = vmatprep.subr.bf16.mxu0 0
  %3154 = vmatpush1.bf16.msra.mxu0 %v1677
  %3155 = vmatprep.subr.bf16.mxu0 0
  %3156 = vmatpush1.bf16.msra.mxu0 %v1676
  %3157 = vmatprep.subr.bf16.mxu0 0
  %3158 = vmatpush2.bf16.msra.mxu0 %v1691
  %3159 = vmatprep.subr.bf16.mxu0 0
  %3160 = vmatpush2.bf16.msra.mxu0 %v1690
  %3161 = vmatprep.subr.bf16.mxu0 0
  %3162 = vmatpush2.bf16.msra.mxu0 %v1689
  %3163 = vmatprep.subr.bf16.mxu0 0
  %3164 = vmatpush2.bf16.msra.mxu0 %v1688
  %3165 = vmatprep.subr.bf16.mxu0 0
  %3166 = vmatpush2.bf16.msra.mxu0 %v1687
  %3167 = vmatprep.subr.bf16.mxu0 0
  %3168 = vmatpush2.bf16.msra.mxu0 %v1686
  %3169 = vmatprep.subr.bf16.mxu0 0
  %3170 = vmatpush2.bf16.msra.mxu0 %v1685
  %3171 = vmatprep.subr.bf16.mxu0 0
  %3172 = vmatpush2.bf16.msra.mxu0 %v1684
  %3173 = vmatprep.mubr.bf16.mxu0 %v2659
  %3174 = vmatmul.mubr.bf16.gmra.mxu0 %v2658
  %v3175 = vpop.f32.mrf.mxu0
  %v3176 = vadd.f32 %v3135, %v3175
  %v3177 = vpop.f32.mrf.mxu0
  %v3178 = vpop.f32.mrf.mxu0
  %v3179 = vadd.f32 %v3138, %v3178
  %v3180 = vpop.f32.mrf.mxu0
  %3181 = vdwg.mxu0
  %3182 = vmatprep.subr.bf16.mxu0 0
  %3183 = vmatpush1.bf16.msra.mxu0 %v1699
  %3184 = vmatprep.subr.bf16.mxu0 0
  %3185 = vmatpush1.bf16.msra.mxu0 %v1698
  %3186 = vmatprep.subr.bf16.mxu0 0
  %3187 = vmatpush1.bf16.msra.mxu0 %v1697
  %3188 = vmatprep.subr.bf16.mxu0 0
  %3189 = vmatpush1.bf16.msra.mxu0 %v1696
  %3190 = vmatprep.subr.bf16.mxu0 0
  %3191 = vmatpush1.bf16.msra.mxu0 %v1695
  %3192 = vmatprep.subr.bf16.mxu0 0
  %3193 = vmatpush1.bf16.msra.mxu0 %v1694
  %3194 = vmatprep.subr.bf16.mxu0 0
  %3195 = vmatpush1.bf16.msra.mxu0 %v1693
  %3196 = vmatprep.subr.bf16.mxu0 0
  %3197 = vmatpush1.bf16.msra.mxu0 %v1692
  %3198 = vmatprep.subr.bf16.mxu0 0
  %3199 = vmatpush2.bf16.msra.mxu0 %v1707
  %3200 = vmatprep.subr.bf16.mxu0 0
  %3201 = vmatpush2.bf16.msra.mxu0 %v1706
  %3202 = vmatprep.subr.bf16.mxu0 0
  %3203 = vmatpush2.bf16.msra.mxu0 %v1705
  %3204 = vmatprep.subr.bf16.mxu0 0
  %3205 = vmatpush2.bf16.msra.mxu0 %v1704
  %3206 = vmatprep.subr.bf16.mxu0 0
  %3207 = vmatpush2.bf16.msra.mxu0 %v1703
  %3208 = vmatprep.subr.bf16.mxu0 0
  %3209 = vmatpush2.bf16.msra.mxu0 %v1702
  %3210 = vmatprep.subr.bf16.mxu0 0
  %3211 = vmatpush2.bf16.msra.mxu0 %v1701
  %3212 = vmatprep.subr.bf16.mxu0 0
  %3213 = vmatpush2.bf16.msra.mxu0 %v1700
  %3214 = vmatprep.mubr.bf16.mxu0 %v2661
  %3215 = vmatmul.mubr.bf16.gmra.mxu0 %v2660
  %v3216 = vpop.f32.mrf.mxu0
  %v3217 = vadd.f32 %v3176, %v3216
  %v3218 = vpop.f32.mrf.mxu0
  %v3219 = vpop.f32.mrf.mxu0
  %v3220 = vadd.f32 %v3179, %v3219
  %v3221 = vpop.f32.mrf.mxu0
  %3222 = vdwg.mxu0
  %3223 = vmatprep.subr.bf16.mxu0 0
  %3224 = vmatpush1.bf16.msra.mxu0 %v1715
  %3225 = vmatprep.subr.bf16.mxu0 0
  %3226 = vmatpush1.bf16.msra.mxu0 %v1714
  %3227 = vmatprep.subr.bf16.mxu0 0
  %3228 = vmatpush1.bf16.msra.mxu0 %v1713
  %3229 = vmatprep.subr.bf16.mxu0 0
  %3230 = vmatpush1.bf16.msra.mxu0 %v1712
  %3231 = vmatprep.subr.bf16.mxu0 0
  %3232 = vmatpush1.bf16.msra.mxu0 %v1711
  %3233 = vmatprep.subr.bf16.mxu0 0
  %3234 = vmatpush1.bf16.msra.mxu0 %v1710
  %3235 = vmatprep.subr.bf16.mxu0 0
  %3236 = vmatpush1.bf16.msra.mxu0 %v1709
  %3237 = vmatprep.subr.bf16.mxu0 0
  %3238 = vmatpush1.bf16.msra.mxu0 %v1708
  %3239 = vmatprep.subr.bf16.mxu0 0
  %3240 = vmatpush2.bf16.msra.mxu0 0
  %3241 = vmatprep.subr.bf16.mxu0 0
  %3242 = vmatpush2.bf16.msra.mxu0 0
  %3243 = vmatprep.subr.bf16.mxu0 0
  %3244 = vmatpush2.bf16.msra.mxu0 0
  %3245 = vmatprep.subr.bf16.mxu0 0
  %3246 = vmatpush2.bf16.msra.mxu0 0
  %3247 = vmatprep.subr.bf16.mxu0 0
  %3248 = vmatpush2.bf16.msra.mxu0 0
  %3249 = vmatprep.subr.bf16.mxu0 0
  %3250 = vmatpush2.bf16.msra.mxu0 0
  %3251 = vmatprep.subr.bf16.mxu0 0
  %3252 = vmatpush2.bf16.msra.mxu0 0
  %3253 = vmatprep.subr.bf16.mxu0 0
  %3254 = vmatpush2.bf16.msra.mxu0 0
  %3255 = vmatprep.mubr.bf16.mxu0 0
  %3256 = vmatmul.mubr.bf16.gmra.mxu0 %v2662
  %v3257 = vpop.f32.mrf.mxu0
  %v3258 = vadd.f32 %v3217, %v3257
  %v3259 = vpop.f32.mrf.mxu0
  %v3260 = vpop.f32.mrf.mxu0
  %v3261 = vadd.f32 %v3220, %v3260
  %v3262 = vpop.f32.mrf.mxu0
  %3263 = vdwg.mxu0
  %v3264 = vmax.f32 %v3258, 0.0
  %v3265 = vmax.f32 %v3261, 0.0
  %v3266 = vpack.c.bf16 %v3265, %v3264
  %s3267 = scalar_lea.vmem %s3, 128
  %v3268 = vld [vmem:[%s3267] sm:$0xff]
  %v3269 = vld [vmem:[%s3267 + $0x8] sm:$0xff]
  %v3270 = vld [vmem:[%s3267 + $0x10] sm:$0xff]
  %v3271 = vld [vmem:[%s3267 + $0x18] sm:$0xff]
  %v3272 = vld [vmem:[%s3267 + $0x20] sm:$0xff]
  %v3273 = vld [vmem:[%s3267 + $0x28] sm:$0xff]
  %v3274 = vld [vmem:[%s3267 + $0x30] sm:$0xff]
  %v3275 = vld [vmem:[%s3267 + $0x38] sm:$0xff]
  %v3276 = vld [vmem:[%s3267 + $0x40] sm:$0xff]
  %v3277 = vld [vmem:[%s3267 + $0x48] sm:$0xff]
  %v3278 = vld [vmem:[%s3267 + $0x50] sm:$0xff]
  %v3279 = vld [vmem:[%s3267 + $0x58] sm:$0xff]
  %v3280 = vld [vmem:[%s3267 + $0x60] sm:$0xff]
  %v3281 = vld [vmem:[%s3267 + $0x68] sm:$0xff]
  %v3282 = vld [vmem:[%s3267 + $0x70] sm:$0xff]
  %v3283 = vld [vmem:[%s3267 + $0x78] sm:$0xff]
  %v3300 = vunpack.c.l.b16 %v3268
  %v3301 = vunpack.c.h.b16 %v3268
  %v3302 = vunpack.c.l.b16 %v3269
  %v3303 = vunpack.c.h.b16 %v3269
  %v3304 = vunpack.c.l.b16 %v3270
  %v3305 = vunpack.c.h.b16 %v3270
  %v3306 = vunpack.c.l.b16 %v3271
  %v3307 = vunpack.c.h.b16 %v3271
  %v3308 = vunpack.c.l.b16 %v3272
  %v3309 = vunpack.c.h.b16 %v3272
  %v3310 = vunpack.c.l.b16 %v3273
  %v3311 = vunpack.c.h.b16 %v3273
  %v3312 = vunpack.c.l.b16 %v3274
  %v3313 = vunpack.c.h.b16 %v3274
  %v3314 = vunpack.c.l.b16 %v3275
  %v3315 = vunpack.c.h.b16 %v3275
  %v3316 = vunpack.c.l.b16 %v3276
  %v3317 = vunpack.c.h.b16 %v3276
  %v3318 = vunpack.c.l.b16 %v3277
  %v3319 = vunpack.c.h.b16 %v3277
  %v3320 = vunpack.c.l.b16 %v3278
  %v3321 = vunpack.c.h.b16 %v3278
  %v3322 = vunpack.c.l.b16 %v3279
  %v3323 = vunpack.c.h.b16 %v3279
  %v3324 = vunpack.c.l.b16 %v3280
  %v3325 = vunpack.c.h.b16 %v3280
  %v3326 = vunpack.c.l.b16 %v3281
  %v3327 = vunpack.c.h.b16 %v3281
  %v3328 = vunpack.c.l.b16 %v3282
  %v3329 = vunpack.c.h.b16 %v3282
  %v3330 = vunpack.c.l.b16 %v3283
  %v3331 = vunpack.c.h.b16 %v3283
  %v3332 = vpack.c.b16 %v3302, %v3300
  %v3333 = vpack.c.b16 %v3303, %v3301
  %v3334 = vpack.c.b16 %v3306, %v3304
  %v3335 = vpack.c.b16 %v3307, %v3305
  %v3336 = vpack.c.b16 %v3310, %v3308
  %v3337 = vpack.c.b16 %v3311, %v3309
  %v3338 = vpack.c.b16 %v3314, %v3312
  %v3339 = vpack.c.b16 %v3315, %v3313
  %v3340 = vpack.c.b16 %v3318, %v3316
  %v3341 = vpack.c.b16 %v3319, %v3317
  %v3342 = vpack.c.b16 %v3322, %v3320
  %v3343 = vpack.c.b16 %v3323, %v3321
  %v3344 = vpack.c.b16 %v3326, %v3324
  %v3345 = vpack.c.b16 %v3327, %v3325
  %v3346 = vpack.c.b16 %v3330, %v3328
  %v3347 = vpack.c.b16 %v3331, %v3329
  %3364 = vmatprep.subr.bf16.mxu0 %v3347
  %3365 = vmatpush1.bf16.msra.mxu0 %v3346
  %3366 = vmatprep.subr.bf16.mxu0 %v3345
  %3367 = vmatpush1.bf16.msra.mxu0 %v3344
  %3368 = vmatprep.subr.bf16.mxu0 %v3343
  %3369 = vmatpush1.bf16.msra.mxu0 %v3342
  %3370 = vmatprep.subr.bf16.mxu0 %v3341
  %3371 = vmatpush1.bf16.msra.mxu0 %v3340
  %3372 = vmatprep.subr.bf16.mxu0 %v3339
  %3373 = vmatpush1.bf16.msra.mxu0 %v3338
  %3374 = vmatprep.subr.bf16.mxu0 %v3337
  %3375 = vmatpush1.bf16.msra.mxu0 %v3336
  %3376 = vmatprep.subr.bf16.mxu0 %v3335
  %3377 = vmatpush1.bf16.msra.mxu0 %v3334
  %3378 = vmatprep.subr.bf16.mxu0 %v3333
  %3379 = vmatpush1.bf16.msra.mxu0 %v3332
  %3380 = vmatprep.subr.bf16.mxu0 0
  %3381 = vmatpush2.bf16.msra.mxu0 0
  %3382 = vmatprep.subr.bf16.mxu0 0
  %3383 = vmatpush2.bf16.msra.mxu0 0
  %3384 = vmatprep.subr.bf16.mxu0 0
  %3385 = vmatpush2.bf16.msra.mxu0 0
  %3386 = vmatprep.subr.bf16.mxu0 0
  %3387 = vmatpush2.bf16.msra.mxu0 0
  %3388 = vmatprep.subr.bf16.mxu0 0
  %3389 = vmatpush2.bf16.msra.mxu0 0
  %3390 = vmatprep.subr.bf16.mxu0 0
  %3391 = vmatpush2.bf16.msra.mxu0 0
  %3392 = vmatprep.subr.bf16.mxu0 0
  %3393 = vmatpush2.bf16.msra.mxu0 0
  %3394 = vmatprep.subr.bf16.mxu0 0
  %3395 = vmatpush2.bf16.msra.mxu0 0
  %3396 = vmatprep.mubr.bf16.mxu0 0
  %3397 = vmatmul.mubr.bf16.gmra.mxu0 %v3266
  %v3398 = vpop.f32.mrf.mxu0
  %v3399 = vadd.f32 0.0, %v3398
  %v3400 = vpop.f32.mrf.mxu0
  %v3401 = vadd.f32 0.0, %v3400
  %v3402 = vpop.f32.mrf.mxu0
  %v3403 = vadd.f32 0.0, %v3402
  %v3404 = vpop.f32.mrf.mxu0
  %v3405 = vadd.f32 0.0, %v3404
  %3406 = vdwg.mxu0
  %v3423 = vunpack.c.l.b16 %v2509
  %v3424 = vunpack.c.h.b16 %v2509
  %v3425 = vunpack.c.l.b16 %v2510
  %v3426 = vunpack.c.h.b16 %v2510
  %v3427 = vunpack.c.l.b16 %v2511
  %v3428 = vunpack.c.h.b16 %v2511
  %v3429 = vunpack.c.l.b16 %v2512
  %v3430 = vunpack.c.h.b16 %v2512
  %v3431 = vunpack.c.l.b16 %v2513
  %v3432 = vunpack.c.h.b16 %v2513
  %v3433 = vunpack.c.l.b16 %v2514
  %v3434 = vunpack.c.h.b16 %v2514
  %v3435 = vunpack.c.l.b16 %v2515
  %v3436 = vunpack.c.h.b16 %v2515
  %v3437 = vunpack.c.l.b16 %v2516
  %v3438 = vunpack.c.h.b16 %v2516
  %v3439 = vunpack.c.l.b16 %v2517
  %v3440 = vunpack.c.h.b16 %v2517
  %v3441 = vunpack.c.l.b16 %v2518
  %v3442 = vunpack.c.h.b16 %v2518
  %v3443 = vunpack.c.l.b16 %v2519
  %v3444 = vunpack.c.h.b16 %v2519
  %v3445 = vunpack.c.l.b16 %v2520
  %v3446 = vunpack.c.h.b16 %v2520
  %v3447 = vunpack.c.l.b16 %v2521
  %v3448 = vunpack.c.h.b16 %v2521
  %v3449 = vunpack.c.l.b16 %v2522
  %v3450 = vunpack.c.h.b16 %v2522
  %v3451 = vunpack.c.l.b16 %v2523
  %v3452 = vunpack.c.h.b16 %v2523
  %v3453 = vunpack.c.l.b16 %v2524
  %v3454 = vunpack.c.h.b16 %v2524
  %v3455 = vpack.c.b16 %v3425, %v3423
  %v3456 = vpack.c.b16 %v3426, %v3424
  %v3457 = vpack.c.b16 %v3429, %v3427
  %v3458 = vpack.c.b16 %v3430, %v3428
  %v3459 = vpack.c.b16 %v3433, %v3431
  %v3460 = vpack.c.b16 %v3434, %v3432
  %v3461 = vpack.c.b16 %v3437, %v3435
  %v3462 = vpack.c.b16 %v3438, %v3436
  %v3463 = vpack.c.b16 %v3441, %v3439
  %v3464 = vpack.c.b16 %v3442, %v3440
  %v3465 = vpack.c.b16 %v3445, %v3443
  %v3466 = vpack.c.b16 %v3446, %v3444
  %v3467 = vpack.c.b16 %v3449, %v3447
  %v3468 = vpack.c.b16 %v3450, %v3448
  %v3469 = vpack.c.b16 %v3453, %v3451
  %v3470 = vpack.c.b16 %v3454, %v3452
  %3487 = vmatprep.subr.bf16.mxu0 %v3470
  %3488 = vmatpush1.bf16.msra.mxu0 %v3469
  %3489 = vmatprep.subr.bf16.mxu0 %v3468
  %3490 = vmatpush1.bf16.msra.mxu0 %v3467
  %3491 = vmatprep.subr.bf16.mxu0 %v3466
  %3492 = vmatpush1.bf16.msra.mxu0 %v3465
  %3493 = vmatprep.subr.bf16.mxu0 %v3464
  %3494 = vmatpush1.bf16.msra.mxu0 %v3463
  %3495 = vmatprep.subr.bf16.mxu0 %v3462
  %3496 = vmatpush1.bf16.msra.mxu0 %v3461
  %3497 = vmatprep.subr.bf16.mxu0 %v3460
  %3498 = vmatpush1.bf16.msra.mxu0 %v3459
  %3499 = vmatprep.subr.bf16.mxu0 %v3458
  %3500 = vmatpush1.bf16.msra.mxu0 %v3457
  %3501 = vmatprep.subr.bf16.mxu0 %v3456
  %3502 = vmatpush1.bf16.msra.mxu0 %v3455
  %3503 = vmatprep.subr.bf16.mxu0 0
  %3504 = vmatpush2.bf16.msra.mxu0 0
  %3505 = vmatprep.subr.bf16.mxu0 0
  %3506 = vmatpush2.bf16.msra.mxu0 0
  %3507 = vmatprep.subr.bf16.mxu0 0
  %3508 = vmatpush2.bf16.msra.mxu0 0
  %3509 = vmatprep.subr.bf16.mxu0 0
  %3510 = vmatpush2.bf16.msra.mxu0 0
  %3511 = vmatprep.subr.bf16.mxu0 0
  %3512 = vmatpush2.bf16.msra.mxu0 0
  %3513 = vmatprep.subr.bf16.mxu0 0
  %3514 = vmatpush2.bf16.msra.mxu0 0
  %3515 = vmatprep.subr.bf16.mxu0 0
  %3516 = vmatpush2.bf16.msra.mxu0 0
  %3517 = vmatprep.subr.bf16.mxu0 0
  %3518 = vmatpush2.bf16.msra.mxu0 0
  %3519 = vmatprep.mubr.bf16.mxu0 0
  %3520 = vmatmul.mubr.bf16.gmra.mxu0 %v2508
  %v3521 = vpop.f32.mrf.mxu0
  %v3522 = vadd.f32 %v3399, %v3521
  %v3523 = vpop.f32.mrf.mxu0
  %v3524 = vadd.f32 %v3401, %v3523
  %v3525 = vpop.f32.mrf.mxu0
  %v3526 = vadd.f32 %v3403, %v3525
  %v3527 = vpop.f32.mrf.mxu0
  %v3528 = vadd.f32 %v3405, %v3527
  %3529 = vdwg.mxu0
  %s3530 = scalar_lea.vmem %s0, 432
  %v3531 = vld [vmem:[%s3530] sm:$0xff]
  %v3532 = vld [vmem:[%s3530 + $0x8] sm:$0xff]
  %v3533 = vld [vmem:[%s3530 + $0x10] sm:$0xff]
  %v3534 = vld [vmem:[%s3530 + $0x18] sm:$0xff]
  %v3535 = vld [vmem:[%s3530 + $0x20] sm:$0xff]
  %v3536 = vld [vmem:[%s3530 + $0x28] sm:$0xff]
  %v3537 = vld [vmem:[%s3530 + $0x30] sm:$0xff]
  %v3538 = vld [vmem:[%s3530 + $0x38] sm:$0xff]
  %v3539 = vld [vmem:[%s3530 + $0x40] sm:$0xff]
  %v3540 = vld [vmem:[%s3530 + $0x48] sm:$0xff]
  %v3541 = vld [vmem:[%s3530 + $0x50] sm:$0xff]
  %v3542 = vld [vmem:[%s3530 + $0x58] sm:$0xff]
  %v3543 = vld [vmem:[%s3530 + $0x60] sm:$0xff]
  %v3544 = vld [vmem:[%s3530 + $0x68] sm:$0xf]
  %v3545 = vld [vmem:[%s3530 + $0x6c] sm:$0xff]
  %v3546 = vld [vmem:[%s3530 + $0x74] sm:$0xff]
  %v3547 = vld [vmem:[%s3530 + $0x7c] sm:$0xff]
  %v3548 = vld [vmem:[%s3530 + $0x84] sm:$0xff]
  %v3549 = vld [vmem:[%s3530 + $0x8c] sm:$0xff]
  %v3550 = vld [vmem:[%s3530 + $0x94] sm:$0xff]
  %v3551 = vld [vmem:[%s3530 + $0x9c] sm:$0xff]
  %v3552 = vld [vmem:[%s3530 + $0xa4] sm:$0xff]
  %v3553 = vld [vmem:[%s3530 + $0xac] sm:$0xff]
  %v3554 = vld [vmem:[%s3530 + $0xb4] sm:$0xff]
  %v3555 = vld [vmem:[%s3530 + $0xbc] sm:$0xff]
  %v3556 = vld [vmem:[%s3530 + $0xc4] sm:$0xff]
  %v3557 = vld [vmem:[%s3530 + $0xcc] sm:$0xff]
  %v3558 = vld [vmem:[%s3530 + $0xd4] sm:$0xf]
  %v3587 = vunpack.c.l.b16 %v3531
  %v3588 = vunpack.c.h.b16 %v3531
  %v3589 = vunpack.c.l.b16 %v3532
  %v3590 = vunpack.c.h.b16 %v3532
  %v3591 = vunpack.c.l.b16 %v3533
  %v3592 = vunpack.c.h.b16 %v3533
  %v3593 = vunpack.c.l.b16 %v3534
  %v3594 = vunpack.c.h.b16 %v3534
  %v3595 = vunpack.c.l.b16 %v3535
  %v3596 = vunpack.c.h.b16 %v3535
  %v3597 = vunpack.c.l.b16 %v3536
  %v3598 = vunpack.c.h.b16 %v3536
  %v3599 = vunpack.c.l.b16 %v3537
  %v3600 = vunpack.c.h.b16 %v3537
  %v3601 = vunpack.c.l.b16 %v3538
  %v3602 = vunpack.c.h.b16 %v3538
  %v3603 = vunpack.c.l.b16 %v3539
  %v3604 = vunpack.c.h.b16 %v3539
  %v3605 = vunpack.c.l.b16 %v3540
  %v3606 = vunpack.c.h.b16 %v3540
  %v3607 = vunpack.c.l.b16 %v3541
  %v3608 = vunpack.c.h.b16 %v3541
  %v3609 = vunpack.c.l.b16 %v3542
  %v3610 = vunpack.c.h.b16 %v3542
  %v3611 = vunpack.c.l.b16 %v3543
  %v3612 = vunpack.c.h.b16 %v3543
  %v3613 = vunpack.c.l.b16 %v3544
  %v3614 = vunpack.c.l.b16 %v3545
  %v3615 = vunpack.c.h.b16 %v3545
  %v3616 = vunpack.c.l.b16 %v3546
  %v3617 = vunpack.c.h.b16 %v3546
  %v3618 = vunpack.c.l.b16 %v3547
  %v3619 = vunpack.c.h.b16 %v3547
  %v3620 = vunpack.c.l.b16 %v3548
  %v3621 = vunpack.c.h.b16 %v3548
  %v3622 = vunpack.c.l.b16 %v3549
  %v3623 = vunpack.c.h.b16 %v3549
  %v3624 = vunpack.c.l.b16 %v3550
  %v3625 = vunpack.c.h.b16 %v3550
  %v3626 = vunpack.c.l.b16 %v3551
  %v3627 = vunpack.c.h.b16 %v3551
  %v3628 = vunpack.c.l.b16 %v3552
  %v3629 = vunpack.c.h.b16 %v3552
  %v3630 = vunpack.c.l.b16 %v3553
  %v3631 = vunpack.c.h.b16 %v3553
  %v3632 = vunpack.c.l.b16 %v3554
  %v3633 = vunpack.c.h.b16 %v3554
  %v3634 = vunpack.c.l.b16 %v3555
  %v3635 = vunpack.c.h.b16 %v3555
  %v3636 = vunpack.c.l.b16 %v3556
  %v3637 = vunpack.c.h.b16 %v3556
  %v3638 = vunpack.c.l.b16 %v3557
  %v3639 = vunpack.c.h.b16 %v3557
  %v3640 = vunpack.c.l.b16 %v3558
  %v3641 = vpack.c.b16 %v3614, %v3587
  %v3642 = vpack.c.b16 %v3615, %v3588
  %v3643 = vpack.c.b16 %v3616, %v3589
  %v3644 = vpack.c.b16 %v3617, %v3590
  %v3645 = vpack.c.b16 %v3618, %v3591
  %v3646 = vpack.c.b16 %v3619, %v3592
  %v3647 = vpack.c.b16 %v3620, %v3593
  %v3648 = vpack.c.b16 %v3621, %v3594
  %v3649 = vpack.c.b16 %v3622, %v3595
  %v3650 = vpack.c.b16 %v3623, %v3596
  %v3651 = vpack.c.b16 %v3624, %v3597
  %v3652 = vpack.c.b16 %v3625, %v3598
  %v3653 = vpack.c.b16 %v3626, %v3599
  %v3654 = vpack.c.b16 %v3627, %v3600
  %v3655 = vpack.c.b16 %v3628, %v3601
  %v3656 = vpack.c.b16 %v3629, %v3602
  %v3657 = vpack.c.b16 %v3630, %v3603
  %v3658 = vpack.c.b16 %v3631, %v3604
  %v3659 = vpack.c.b16 %v3632, %v3605
  %v3660 = vpack.c.b16 %v3633, %v3606
  %v3661 = vpack.c.b16 %v3634, %v3607
  %v3662 = vpack.c.b16 %v3635, %v3608
  %v3663 = vpack.c.b16 %v3636, %v3609
  %v3664 = vpack.c.b16 %v3637, %v3610
  %v3665 = vpack.c.b16 %v3638, %v3611
  %v3666 = vpack.c.b16 %v3639, %v3612
  %v3667 = vpack.c.b16 %v3640, %v3613
  %3695 = vmatprep.subr.bf16.mxu0 0
  %3696 = vmatpush1.bf16.msra.mxu0 %v1507
  %3697 = vmatprep.subr.bf16.mxu0 0
  %3698 = vmatpush1.bf16.msra.mxu0 %v1506
  %3699 = vmatprep.subr.bf16.mxu0 0
  %3700 = vmatpush1.bf16.msra.mxu0 %v1505
  %3701 = vmatprep.subr.bf16.mxu0 0
  %3702 = vmatpush1.bf16.msra.mxu0 %v1504
  %3703 = vmatprep.subr.bf16.mxu0 0
  %3704 = vmatpush1.bf16.msra.mxu0 %v1503
  %3705 = vmatprep.subr.bf16.mxu0 0
  %3706 = vmatpush1.bf16.msra.mxu0 %v1502
  %3707 = vmatprep.subr.bf16.mxu0 0
  %3708 = vmatpush1.bf16.msra.mxu0 %v1501
  %3709 = vmatprep.subr.bf16.mxu0 0
  %3710 = vmatpush1.bf16.msra.mxu0 %v1500
  %3711 = vmatprep.subr.bf16.mxu0 0
  %3712 = vmatpush2.bf16.msra.mxu0 %v1515
  %3713 = vmatprep.subr.bf16.mxu0 0
  %3714 = vmatpush2.bf16.msra.mxu0 %v1514
  %3715 = vmatprep.subr.bf16.mxu0 0
  %3716 = vmatpush2.bf16.msra.mxu0 %v1513
  %3717 = vmatprep.subr.bf16.mxu0 0
  %3718 = vmatpush2.bf16.msra.mxu0 %v1512
  %3719 = vmatprep.subr.bf16.mxu0 0
  %3720 = vmatpush2.bf16.msra.mxu0 %v1511
  %3721 = vmatprep.subr.bf16.mxu0 0
  %3722 = vmatpush2.bf16.msra.mxu0 %v1510
  %3723 = vmatprep.subr.bf16.mxu0 0
  %3724 = vmatpush2.bf16.msra.mxu0 %v1509
  %3725 = vmatprep.subr.bf16.mxu0 0
  %3726 = vmatpush2.bf16.msra.mxu0 %v1508
  %3727 = vmatprep.mubr.bf16.mxu0 %v3642
  %3728 = vmatmul.mubr.bf16.gmra.mxu0 %v3641
  %v3729 = vpop.f32.mrf.mxu0
  %v3730 = vadd.f32 %v498, %v3729
  %v3731 = vpop.f32.mrf.mxu0
  %v3732 = vpop.f32.mrf.mxu0
  %v3733 = vadd.f32 %v498, %v3732
  %v3734 = vpop.f32.mrf.mxu0
  %3735 = vdwg.mxu0
  %3736 = vmatprep.subr.bf16.mxu0 0
  %3737 = vmatpush1.bf16.msra.mxu0 %v1523
  %3738 = vmatprep.subr.bf16.mxu0 0
  %3739 = vmatpush1.bf16.msra.mxu0 %v1522
  %3740 = vmatprep.subr.bf16.mxu0 0
  %3741 = vmatpush1.bf16.msra.mxu0 %v1521
  %3742 = vmatprep.subr.bf16.mxu0 0
  %3743 = vmatpush1.bf16.msra.mxu0 %v1520
  %3744 = vmatprep.subr.bf16.mxu0 0
  %3745 = vmatpush1.bf16.msra.mxu0 %v1519
  %3746 = vmatprep.subr.bf16.mxu0 0
  %3747 = vmatpush1.bf16.msra.mxu0 %v1518
  %3748 = vmatprep.subr.bf16.mxu0 0
  %3749 = vmatpush1.bf16.msra.mxu0 %v1517
  %3750 = vmatprep.subr.bf16.mxu0 0
  %3751 = vmatpush1.bf16.msra.mxu0 %v1516
  %3752 = vmatprep.subr.bf16.mxu0 0
  %3753 = vmatpush2.bf16.msra.mxu0 %v1531
  %3754 = vmatprep.subr.bf16.mxu0 0
  %3755 = vmatpush2.bf16.msra.mxu0 %v1530
  %3756 = vmatprep.subr.bf16.mxu0 0
  %3757 = vmatpush2.bf16.msra.mxu0 %v1529
  %3758 = vmatprep.subr.bf16.mxu0 0
  %3759 = vmatpush2.bf16.msra.mxu0 %v1528
  %3760 = vmatprep.subr.bf16.mxu0 0
  %3761 = vmatpush2.bf16.msra.mxu0 %v1527
  %3762 = vmatprep.subr.bf16.mxu0 0
  %3763 = vmatpush2.bf16.msra.mxu0 %v1526
  %3764 = vmatprep.subr.bf16.mxu0 0
  %3765 = vmatpush2.bf16.msra.mxu0 %v1525
  %3766 = vmatprep.subr.bf16.mxu0 0
  %3767 = vmatpush2.bf16.msra.mxu0 %v1524
  %3768 = vmatprep.mubr.bf16.mxu0 %v3644
  %3769 = vmatmul.mubr.bf16.gmra.mxu0 %v3643
  %v3770 = vpop.f32.mrf.mxu0
  %v3771 = vadd.f32 %v3730, %v3770
  %v3772 = vpop.f32.mrf.mxu0
  %v3773 = vpop.f32.mrf.mxu0
  %v3774 = vadd.f32 %v3733, %v3773
  %v3775 = vpop.f32.mrf.mxu0
  %3776 = vdwg.mxu0
  %3777 = vmatprep.subr.bf16.mxu0 0
  %3778 = vmatpush1.bf16.msra.mxu0 %v1539
  %3779 = vmatprep.subr.bf16.mxu0 0
  %3780 = vmatpush1.bf16.msra.mxu0 %v1538
  %3781 = vmatprep.subr.bf16.mxu0 0
  %3782 = vmatpush1.bf16.msra.mxu0 %v1537
  %3783 = vmatprep.subr.bf16.mxu0 0
  %3784 = vmatpush1.bf16.msra.mxu0 %v1536
  %3785 = vmatprep.subr.bf16.mxu0 0
  %3786 = vmatpush1.bf16.msra.mxu0 %v1535
  %3787 = vmatprep.subr.bf16.mxu0 0
  %3788 = vmatpush1.bf16.msra.mxu0 %v1534
  %3789 = vmatprep.subr.bf16.mxu0 0
  %3790 = vmatpush1.bf16.msra.mxu0 %v1533
  %3791 = vmatprep.subr.bf16.mxu0 0
  %3792 = vmatpush1.bf16.msra.mxu0 %v1532
  %3793 = vmatprep.subr.bf16.mxu0 0
  %3794 = vmatpush2.bf16.msra.mxu0 %v1547
  %3795 = vmatprep.subr.bf16.mxu0 0
  %3796 = vmatpush2.bf16.msra.mxu0 %v1546
  %3797 = vmatprep.subr.bf16.mxu0 0
  %3798 = vmatpush2.bf16.msra.mxu0 %v1545
  %3799 = vmatprep.subr.bf16.mxu0 0
  %3800 = vmatpush2.bf16.msra.mxu0 %v1544
  %3801 = vmatprep.subr.bf16.mxu0 0
  %3802 = vmatpush2.bf16.msra.mxu0 %v1543
  %3803 = vmatprep.subr.bf16.mxu0 0
  %3804 = vmatpush2.bf16.msra.mxu0 %v1542
  %3805 = vmatprep.subr.bf16.mxu0 0
  %3806 = vmatpush2.bf16.msra.mxu0 %v1541
  %3807 = vmatprep.subr.bf16.mxu0 0
  %3808 = vmatpush2.bf16.msra.mxu0 %v1540
  %3809 = vmatprep.mubr.bf16.mxu0 %v3646
  %3810 = vmatmul.mubr.bf16.gmra.mxu0 %v3645
  %v3811 = vpop.f32.mrf.mxu0
  %v3812 = vadd.f32 %v3771, %v3811
  %v3813 = vpop.f32.mrf.mxu0
  %v3814 = vpop.f32.mrf.mxu0
  %v3815 = vadd.f32 %v3774, %v3814
  %v3816 = vpop.f32.mrf.mxu0
  %3817 = vdwg.mxu0
  %3818 = vmatprep.subr.bf16.mxu0 0
  %3819 = vmatpush1.bf16.msra.mxu0 %v1555
  %3820 = vmatprep.subr.bf16.mxu0 0
  %3821 = vmatpush1.bf16.msra.mxu0 %v1554
  %3822 = vmatprep.subr.bf16.mxu0 0
  %3823 = vmatpush1.bf16.msra.mxu0 %v1553
  %3824 = vmatprep.subr.bf16.mxu0 0
  %3825 = vmatpush1.bf16.msra.mxu0 %v1552
  %3826 = vmatprep.subr.bf16.mxu0 0
  %3827 = vmatpush1.bf16.msra.mxu0 %v1551
  %3828 = vmatprep.subr.bf16.mxu0 0
  %3829 = vmatpush1.bf16.msra.mxu0 %v1550
  %3830 = vmatprep.subr.bf16.mxu0 0
  %3831 = vmatpush1.bf16.msra.mxu0 %v1549
  %3832 = vmatprep.subr.bf16.mxu0 0
  %3833 = vmatpush1.bf16.msra.mxu0 %v1548
  %3834 = vmatprep.subr.bf16.mxu0 0
  %3835 = vmatpush2.bf16.msra.mxu0 %v1563
  %3836 = vmatprep.subr.bf16.mxu0 0
  %3837 = vmatpush2.bf16.msra.mxu0 %v1562
  %3838 = vmatprep.subr.bf16.mxu0 0
  %3839 = vmatpush2.bf16.msra.mxu0 %v1561
  %3840 = vmatprep.subr.bf16.mxu0 0
  %3841 = vmatpush2.bf16.msra.mxu0 %v1560
  %3842 = vmatprep.subr.bf16.mxu0 0
  %3843 = vmatpush2.bf16.msra.mxu0 %v1559
  %3844 = vmatprep.subr.bf16.mxu0 0
  %3845 = vmatpush2.bf16.msra.mxu0 %v1558
  %3846 = vmatprep.subr.bf16.mxu0 0
  %3847 = vmatpush2.bf16.msra.mxu0 %v1557
  %3848 = vmatprep.subr.bf16.mxu0 0
  %3849 = vmatpush2.bf16.msra.mxu0 %v1556
  %3850 = vmatprep.mubr.bf16.mxu0 %v3648
  %3851 = vmatmul.mubr.bf16.gmra.mxu0 %v3647
  %v3852 = vpop.f32.mrf.mxu0
  %v3853 = vadd.f32 %v3812, %v3852
  %v3854 = vpop.f32.mrf.mxu0
  %v3855 = vpop.f32.mrf.mxu0
  %v3856 = vadd.f32 %v3815, %v3855
  %v3857 = vpop.f32.mrf.mxu0
  %3858 = vdwg.mxu0
  %3859 = vmatprep.subr.bf16.mxu0 0
  %3860 = vmatpush1.bf16.msra.mxu0 %v1571
  %3861 = vmatprep.subr.bf16.mxu0 0
  %3862 = vmatpush1.bf16.msra.mxu0 %v1570
  %3863 = vmatprep.subr.bf16.mxu0 0
  %3864 = vmatpush1.bf16.msra.mxu0 %v1569
  %3865 = vmatprep.subr.bf16.mxu0 0
  %3866 = vmatpush1.bf16.msra.mxu0 %v1568
  %3867 = vmatprep.subr.bf16.mxu0 0
  %3868 = vmatpush1.bf16.msra.mxu0 %v1567
  %3869 = vmatprep.subr.bf16.mxu0 0
  %3870 = vmatpush1.bf16.msra.mxu0 %v1566
  %3871 = vmatprep.subr.bf16.mxu0 0
  %3872 = vmatpush1.bf16.msra.mxu0 %v1565
  %3873 = vmatprep.subr.bf16.mxu0 0
  %3874 = vmatpush1.bf16.msra.mxu0 %v1564
  %3875 = vmatprep.subr.bf16.mxu0 0
  %3876 = vmatpush2.bf16.msra.mxu0 %v1579
  %3877 = vmatprep.subr.bf16.mxu0 0
  %3878 = vmatpush2.bf16.msra.mxu0 %v1578
  %3879 = vmatprep.subr.bf16.mxu0 0
  %3880 = vmatpush2.bf16.msra.mxu0 %v1577
  %3881 = vmatprep.subr.bf16.mxu0 0
  %3882 = vmatpush2.bf16.msra.mxu0 %v1576
  %3883 = vmatprep.subr.bf16.mxu0 0
  %3884 = vmatpush2.bf16.msra.mxu0 %v1575
  %3885 = vmatprep.subr.bf16.mxu0 0
  %3886 = vmatpush2.bf16.msra.mxu0 %v1574
  %3887 = vmatprep.subr.bf16.mxu0 0
  %3888 = vmatpush2.bf16.msra.mxu0 %v1573
  %3889 = vmatprep.subr.bf16.mxu0 0
  %3890 = vmatpush2.bf16.msra.mxu0 %v1572
  %3891 = vmatprep.mubr.bf16.mxu0 %v3650
  %3892 = vmatmul.mubr.bf16.gmra.mxu0 %v3649
  %v3893 = vpop.f32.mrf.mxu0
  %v3894 = vadd.f32 %v3853, %v3893
  %v3895 = vpop.f32.mrf.mxu0
  %v3896 = vpop.f32.mrf.mxu0
  %v3897 = vadd.f32 %v3856, %v3896
  %v3898 = vpop.f32.mrf.mxu0
  %3899 = vdwg.mxu0
  %3900 = vmatprep.subr.bf16.mxu0 0
  %3901 = vmatpush1.bf16.msra.mxu0 %v1587
  %3902 = vmatprep.subr.bf16.mxu0 0
  %3903 = vmatpush1.bf16.msra.mxu0 %v1586
  %3904 = vmatprep.subr.bf16.mxu0 0
  %3905 = vmatpush1.bf16.msra.mxu0 %v1585
  %3906 = vmatprep.subr.bf16.mxu0 0
  %3907 = vmatpush1.bf16.msra.mxu0 %v1584
  %3908 = vmatprep.subr.bf16.mxu0 0
  %3909 = vmatpush1.bf16.msra.mxu0 %v1583
  %3910 = vmatprep.subr.bf16.mxu0 0
  %3911 = vmatpush1.bf16.msra.mxu0 %v1582
  %3912 = vmatprep.subr.bf16.mxu0 0
  %3913 = vmatpush1.bf16.msra.mxu0 %v1581
  %3914 = vmatprep.subr.bf16.mxu0 0
  %3915 = vmatpush1.bf16.msra.mxu0 %v1580
  %3916 = vmatprep.subr.bf16.mxu0 0
  %3917 = vmatpush2.bf16.msra.mxu0 %v1595
  %3918 = vmatprep.subr.bf16.mxu0 0
  %3919 = vmatpush2.bf16.msra.mxu0 %v1594
  %3920 = vmatprep.subr.bf16.mxu0 0
  %3921 = vmatpush2.bf16.msra.mxu0 %v1593
  %3922 = vmatprep.subr.bf16.mxu0 0
  %3923 = vmatpush2.bf16.msra.mxu0 %v1592
  %3924 = vmatprep.subr.bf16.mxu0 0
  %3925 = vmatpush2.bf16.msra.mxu0 %v1591
  %3926 = vmatprep.subr.bf16.mxu0 0
  %3927 = vmatpush2.bf16.msra.mxu0 %v1590
  %3928 = vmatprep.subr.bf16.mxu0 0
  %3929 = vmatpush2.bf16.msra.mxu0 %v1589
  %3930 = vmatprep.subr.bf16.mxu0 0
  %3931 = vmatpush2.bf16.msra.mxu0 %v1588
  %3932 = vmatprep.mubr.bf16.mxu0 %v3652
  %3933 = vmatmul.mubr.bf16.gmra.mxu0 %v3651
  %v3934 = vpop.f32.mrf.mxu0
  %v3935 = vadd.f32 %v3894, %v3934
  %v3936 = vpop.f32.mrf.mxu0
  %v3937 = vpop.f32.mrf.mxu0
  %v3938 = vadd.f32 %v3897, %v3937
  %v3939 = vpop.f32.mrf.mxu0
  %3940 = vdwg.mxu0
  %3941 = vmatprep.subr.bf16.mxu0 0
  %3942 = vmatpush1.bf16.msra.mxu0 %v1603
  %3943 = vmatprep.subr.bf16.mxu0 0
  %3944 = vmatpush1.bf16.msra.mxu0 %v1602
  %3945 = vmatprep.subr.bf16.mxu0 0
  %3946 = vmatpush1.bf16.msra.mxu0 %v1601
  %3947 = vmatprep.subr.bf16.mxu0 0
  %3948 = vmatpush1.bf16.msra.mxu0 %v1600
  %3949 = vmatprep.subr.bf16.mxu0 0
  %3950 = vmatpush1.bf16.msra.mxu0 %v1599
  %3951 = vmatprep.subr.bf16.mxu0 0
  %3952 = vmatpush1.bf16.msra.mxu0 %v1598
  %3953 = vmatprep.subr.bf16.mxu0 0
  %3954 = vmatpush1.bf16.msra.mxu0 %v1597
  %3955 = vmatprep.subr.bf16.mxu0 0
  %3956 = vmatpush1.bf16.msra.mxu0 %v1596
  %3957 = vmatprep.subr.bf16.mxu0 0
  %3958 = vmatpush2.bf16.msra.mxu0 %v1611
  %3959 = vmatprep.subr.bf16.mxu0 0
  %3960 = vmatpush2.bf16.msra.mxu0 %v1610
  %3961 = vmatprep.subr.bf16.mxu0 0
  %3962 = vmatpush2.bf16.msra.mxu0 %v1609
  %3963 = vmatprep.subr.bf16.mxu0 0
  %3964 = vmatpush2.bf16.msra.mxu0 %v1608
  %3965 = vmatprep.subr.bf16.mxu0 0
  %3966 = vmatpush2.bf16.msra.mxu0 %v1607
  %3967 = vmatprep.subr.bf16.mxu0 0
  %3968 = vmatpush2.bf16.msra.mxu0 %v1606
  %3969 = vmatprep.subr.bf16.mxu0 0
  %3970 = vmatpush2.bf16.msra.mxu0 %v1605
  %3971 = vmatprep.subr.bf16.mxu0 0
  %3972 = vmatpush2.bf16.msra.mxu0 %v1604
  %3973 = vmatprep.mubr.bf16.mxu0 %v3654
  %3974 = vmatmul.mubr.bf16.gmra.mxu0 %v3653
  %v3975 = vpop.f32.mrf.mxu0
  %v3976 = vadd.f32 %v3935, %v3975
  %v3977 = vpop.f32.mrf.mxu0
  %v3978 = vpop.f32.mrf.mxu0
  %v3979 = vadd.f32 %v3938, %v3978
  %v3980 = vpop.f32.mrf.mxu0
  %3981 = vdwg.mxu0
  %3982 = vmatprep.subr.bf16.mxu0 0
  %3983 = vmatpush1.bf16.msra.mxu0 %v1619
  %3984 = vmatprep.subr.bf16.mxu0 0
  %3985 = vmatpush1.bf16.msra.mxu0 %v1618
  %3986 = vmatprep.subr.bf16.mxu0 0
  %3987 = vmatpush1.bf16.msra.mxu0 %v1617
  %3988 = vmatprep.subr.bf16.mxu0 0
  %3989 = vmatpush1.bf16.msra.mxu0 %v1616
  %3990 = vmatprep.subr.bf16.mxu0 0
  %3991 = vmatpush1.bf16.msra.mxu0 %v1615
  %3992 = vmatprep.subr.bf16.mxu0 0
  %3993 = vmatpush1.bf16.msra.mxu0 %v1614
  %3994 = vmatprep.subr.bf16.mxu0 0
  %3995 = vmatpush1.bf16.msra.mxu0 %v1613
  %3996 = vmatprep.subr.bf16.mxu0 0
  %3997 = vmatpush1.bf16.msra.mxu0 %v1612
  %3998 = vmatprep.subr.bf16.mxu0 0
  %3999 = vmatpush2.bf16.msra.mxu0 %v1627
  %4000 = vmatprep.subr.bf16.mxu0 0
  %4001 = vmatpush2.bf16.msra.mxu0 %v1626
  %4002 = vmatprep.subr.bf16.mxu0 0
  %4003 = vmatpush2.bf16.msra.mxu0 %v1625
  %4004 = vmatprep.subr.bf16.mxu0 0
  %4005 = vmatpush2.bf16.msra.mxu0 %v1624
  %4006 = vmatprep.subr.bf16.mxu0 0
  %4007 = vmatpush2.bf16.msra.mxu0 %v1623
  %4008 = vmatprep.subr.bf16.mxu0 0
  %4009 = vmatpush2.bf16.msra.mxu0 %v1622
  %4010 = vmatprep.subr.bf16.mxu0 0
  %4011 = vmatpush2.bf16.msra.mxu0 %v1621
  %4012 = vmatprep.subr.bf16.mxu0 0
  %4013 = vmatpush2.bf16.msra.mxu0 %v1620
  %4014 = vmatprep.mubr.bf16.mxu0 %v3656
  %4015 = vmatmul.mubr.bf16.gmra.mxu0 %v3655
  %v4016 = vpop.f32.mrf.mxu0
  %v4017 = vadd.f32 %v3976, %v4016
  %v4018 = vpop.f32.mrf.mxu0
  %v4019 = vpop.f32.mrf.mxu0
  %v4020 = vadd.f32 %v3979, %v4019
  %v4021 = vpop.f32.mrf.mxu0
  %4022 = vdwg.mxu0
  %4023 = vmatprep.subr.bf16.mxu0 0
  %4024 = vmatpush1.bf16.msra.mxu0 %v1635
  %4025 = vmatprep.subr.bf16.mxu0 0
  %4026 = vmatpush1.bf16.msra.mxu0 %v1634
  %4027 = vmatprep.subr.bf16.mxu0 0
  %4028 = vmatpush1.bf16.msra.mxu0 %v1633
  %4029 = vmatprep.subr.bf16.mxu0 0
  %4030 = vmatpush1.bf16.msra.mxu0 %v1632
  %4031 = vmatprep.subr.bf16.mxu0 0
  %4032 = vmatpush1.bf16.msra.mxu0 %v1631
  %4033 = vmatprep.subr.bf16.mxu0 0
  %4034 = vmatpush1.bf16.msra.mxu0 %v1630
  %4035 = vmatprep.subr.bf16.mxu0 0
  %4036 = vmatpush1.bf16.msra.mxu0 %v1629
  %4037 = vmatprep.subr.bf16.mxu0 0
  %4038 = vmatpush1.bf16.msra.mxu0 %v1628
  %4039 = vmatprep.subr.bf16.mxu0 0
  %4040 = vmatpush2.bf16.msra.mxu0 %v1643
  %4041 = vmatprep.subr.bf16.mxu0 0
  %4042 = vmatpush2.bf16.msra.mxu0 %v1642
  %4043 = vmatprep.subr.bf16.mxu0 0
  %4044 = vmatpush2.bf16.msra.mxu0 %v1641
  %4045 = vmatprep.subr.bf16.mxu0 0
  %4046 = vmatpush2.bf16.msra.mxu0 %v1640
  %4047 = vmatprep.subr.bf16.mxu0 0
  %4048 = vmatpush2.bf16.msra.mxu0 %v1639
  %4049 = vmatprep.subr.bf16.mxu0 0
  %4050 = vmatpush2.bf16.msra.mxu0 %v1638
  %4051 = vmatprep.subr.bf16.mxu0 0
  %4052 = vmatpush2.bf16.msra.mxu0 %v1637
  %4053 = vmatprep.subr.bf16.mxu0 0
  %4054 = vmatpush2.bf16.msra.mxu0 %v1636
  %4055 = vmatprep.mubr.bf16.mxu0 %v3658
  %4056 = vmatmul.mubr.bf16.gmra.mxu0 %v3657
  %v4057 = vpop.f32.mrf.mxu0
  %v4058 = vadd.f32 %v4017, %v4057
  %v4059 = vpop.f32.mrf.mxu0
  %v4060 = vpop.f32.mrf.mxu0
  %v4061 = vadd.f32 %v4020, %v4060
  %v4062 = vpop.f32.mrf.mxu0
  %4063 = vdwg.mxu0
  %4064 = vmatprep.subr.bf16.mxu0 0
  %4065 = vmatpush1.bf16.msra.mxu0 %v1651
  %4066 = vmatprep.subr.bf16.mxu0 0
  %4067 = vmatpush1.bf16.msra.mxu0 %v1650
  %4068 = vmatprep.subr.bf16.mxu0 0
  %4069 = vmatpush1.bf16.msra.mxu0 %v1649
  %4070 = vmatprep.subr.bf16.mxu0 0
  %4071 = vmatpush1.bf16.msra.mxu0 %v1648
  %4072 = vmatprep.subr.bf16.mxu0 0
  %4073 = vmatpush1.bf16.msra.mxu0 %v1647
  %4074 = vmatprep.subr.bf16.mxu0 0
  %4075 = vmatpush1.bf16.msra.mxu0 %v1646
  %4076 = vmatprep.subr.bf16.mxu0 0
  %4077 = vmatpush1.bf16.msra.mxu0 %v1645
  %4078 = vmatprep.subr.bf16.mxu0 0
  %4079 = vmatpush1.bf16.msra.mxu0 %v1644
  %4080 = vmatprep.subr.bf16.mxu0 0
  %4081 = vmatpush2.bf16.msra.mxu0 %v1659
  %4082 = vmatprep.subr.bf16.mxu0 0
  %4083 = vmatpush2.bf16.msra.mxu0 %v1658
  %4084 = vmatprep.subr.bf16.mxu0 0
  %4085 = vmatpush2.bf16.msra.mxu0 %v1657
  %4086 = vmatprep.subr.bf16.mxu0 0
  %4087 = vmatpush2.bf16.msra.mxu0 %v1656
  %4088 = vmatprep.subr.bf16.mxu0 0
  %4089 = vmatpush2.bf16.msra.mxu0 %v1655
  %4090 = vmatprep.subr.bf16.mxu0 0
  %4091 = vmatpush2.bf16.msra.mxu0 %v1654
  %4092 = vmatprep.subr.bf16.mxu0 0
  %4093 = vmatpush2.bf16.msra.mxu0 %v1653
  %4094 = vmatprep.subr.bf16.mxu0 0
  %4095 = vmatpush2.bf16.msra.mxu0 %v1652
  %4096 = vmatprep.mubr.bf16.mxu0 %v3660
  %4097 = vmatmul.mubr.bf16.gmra.mxu0 %v3659
  %v4098 = vpop.f32.mrf.mxu0
  %v4099 = vadd.f32 %v4058, %v4098
  %v4100 = vpop.f32.mrf.mxu0
  %v4101 = vpop.f32.mrf.mxu0
  %v4102 = vadd.f32 %v4061, %v4101
  %v4103 = vpop.f32.mrf.mxu0
  %4104 = vdwg.mxu0
  %4105 = vmatprep.subr.bf16.mxu0 0
  %4106 = vmatpush1.bf16.msra.mxu0 %v1667
  %4107 = vmatprep.subr.bf16.mxu0 0
  %4108 = vmatpush1.bf16.msra.mxu0 %v1666
  %4109 = vmatprep.subr.bf16.mxu0 0
  %4110 = vmatpush1.bf16.msra.mxu0 %v1665
  %4111 = vmatprep.subr.bf16.mxu0 0
  %4112 = vmatpush1.bf16.msra.mxu0 %v1664
  %4113 = vmatprep.subr.bf16.mxu0 0
  %4114 = vmatpush1.bf16.msra.mxu0 %v1663
  %4115 = vmatprep.subr.bf16.mxu0 0
  %4116 = vmatpush1.bf16.msra.mxu0 %v1662
  %4117 = vmatprep.subr.bf16.mxu0 0
  %4118 = vmatpush1.bf16.msra.mxu0 %v1661
  %4119 = vmatprep.subr.bf16.mxu0 0
  %4120 = vmatpush1.bf16.msra.mxu0 %v1660
  %4121 = vmatprep.subr.bf16.mxu0 0
  %4122 = vmatpush2.bf16.msra.mxu0 %v1675
  %4123 = vmatprep.subr.bf16.mxu0 0
  %4124 = vmatpush2.bf16.msra.mxu0 %v1674
  %4125 = vmatprep.subr.bf16.mxu0 0
  %4126 = vmatpush2.bf16.msra.mxu0 %v1673
  %4127 = vmatprep.subr.bf16.mxu0 0
  %4128 = vmatpush2.bf16.msra.mxu0 %v1672
  %4129 = vmatprep.subr.bf16.mxu0 0
  %4130 = vmatpush2.bf16.msra.mxu0 %v1671
  %4131 = vmatprep.subr.bf16.mxu0 0
  %4132 = vmatpush2.bf16.msra.mxu0 %v1670
  %4133 = vmatprep.subr.bf16.mxu0 0
  %4134 = vmatpush2.bf16.msra.mxu0 %v1669
  %4135 = vmatprep.subr.bf16.mxu0 0
  %4136 = vmatpush2.bf16.msra.mxu0 %v1668
  %4137 = vmatprep.mubr.bf16.mxu0 %v3662
  %4138 = vmatmul.mubr.bf16.gmra.mxu0 %v3661
  %v4139 = vpop.f32.mrf.mxu0
  %v4140 = vadd.f32 %v4099, %v4139
  %v4141 = vpop.f32.mrf.mxu0
  %v4142 = vpop.f32.mrf.mxu0
  %v4143 = vadd.f32 %v4102, %v4142
  %v4144 = vpop.f32.mrf.mxu0
  %4145 = vdwg.mxu0
  %4146 = vmatprep.subr.bf16.mxu0 0
  %4147 = vmatpush1.bf16.msra.mxu0 %v1683
  %4148 = vmatprep.subr.bf16.mxu0 0
  %4149 = vmatpush1.bf16.msra.mxu0 %v1682
  %4150 = vmatprep.subr.bf16.mxu0 0
  %4151 = vmatpush1.bf16.msra.mxu0 %v1681
  %4152 = vmatprep.subr.bf16.mxu0 0
  %4153 = vmatpush1.bf16.msra.mxu0 %v1680
  %4154 = vmatprep.subr.bf16.mxu0 0
  %4155 = vmatpush1.bf16.msra.mxu0 %v1679
  %4156 = vmatprep.subr.bf16.mxu0 0
  %4157 = vmatpush1.bf16.msra.mxu0 %v1678
  %4158 = vmatprep.subr.bf16.mxu0 0
  %4159 = vmatpush1.bf16.msra.mxu0 %v1677
  %4160 = vmatprep.subr.bf16.mxu0 0
  %4161 = vmatpush1.bf16.msra.mxu0 %v1676
  %4162 = vmatprep.subr.bf16.mxu0 0
  %4163 = vmatpush2.bf16.msra.mxu0 %v1691
  %4164 = vmatprep.subr.bf16.mxu0 0
  %4165 = vmatpush2.bf16.msra.mxu0 %v1690
  %4166 = vmatprep.subr.bf16.mxu0 0
  %4167 = vmatpush2.bf16.msra.mxu0 %v1689
  %4168 = vmatprep.subr.bf16.mxu0 0
  %4169 = vmatpush2.bf16.msra.mxu0 %v1688
  %4170 = vmatprep.subr.bf16.mxu0 0
  %4171 = vmatpush2.bf16.msra.mxu0 %v1687
  %4172 = vmatprep.subr.bf16.mxu0 0
  %4173 = vmatpush2.bf16.msra.mxu0 %v1686
  %4174 = vmatprep.subr.bf16.mxu0 0
  %4175 = vmatpush2.bf16.msra.mxu0 %v1685
  %4176 = vmatprep.subr.bf16.mxu0 0
  %4177 = vmatpush2.bf16.msra.mxu0 %v1684
  %4178 = vmatprep.mubr.bf16.mxu0 %v3664
  %4179 = vmatmul.mubr.bf16.gmra.mxu0 %v3663
  %v4180 = vpop.f32.mrf.mxu0
  %v4181 = vadd.f32 %v4140, %v4180
  %v4182 = vpop.f32.mrf.mxu0
  %v4183 = vpop.f32.mrf.mxu0
  %v4184 = vadd.f32 %v4143, %v4183
  %v4185 = vpop.f32.mrf.mxu0
  %4186 = vdwg.mxu0
  %4187 = vmatprep.subr.bf16.mxu0 0
  %4188 = vmatpush1.bf16.msra.mxu0 %v1699
  %4189 = vmatprep.subr.bf16.mxu0 0
  %4190 = vmatpush1.bf16.msra.mxu0 %v1698
  %4191 = vmatprep.subr.bf16.mxu0 0
  %4192 = vmatpush1.bf16.msra.mxu0 %v1697
  %4193 = vmatprep.subr.bf16.mxu0 0
  %4194 = vmatpush1.bf16.msra.mxu0 %v1696
  %4195 = vmatprep.subr.bf16.mxu0 0
  %4196 = vmatpush1.bf16.msra.mxu0 %v1695
  %4197 = vmatprep.subr.bf16.mxu0 0
  %4198 = vmatpush1.bf16.msra.mxu0 %v1694
  %4199 = vmatprep.subr.bf16.mxu0 0
  %4200 = vmatpush1.bf16.msra.mxu0 %v1693
  %4201 = vmatprep.subr.bf16.mxu0 0
  %4202 = vmatpush1.bf16.msra.mxu0 %v1692
  %4203 = vmatprep.subr.bf16.mxu0 0
  %4204 = vmatpush2.bf16.msra.mxu0 %v1707
  %4205 = vmatprep.subr.bf16.mxu0 0
  %4206 = vmatpush2.bf16.msra.mxu0 %v1706
  %4207 = vmatprep.subr.bf16.mxu0 0
  %4208 = vmatpush2.bf16.msra.mxu0 %v1705
  %4209 = vmatprep.subr.bf16.mxu0 0
  %4210 = vmatpush2.bf16.msra.mxu0 %v1704
  %4211 = vmatprep.subr.bf16.mxu0 0
  %4212 = vmatpush2.bf16.msra.mxu0 %v1703
  %4213 = vmatprep.subr.bf16.mxu0 0
  %4214 = vmatpush2.bf16.msra.mxu0 %v1702
  %4215 = vmatprep.subr.bf16.mxu0 0
  %4216 = vmatpush2.bf16.msra.mxu0 %v1701
  %4217 = vmatprep.subr.bf16.mxu0 0
  %4218 = vmatpush2.bf16.msra.mxu0 %v1700
  %4219 = vmatprep.mubr.bf16.mxu0 %v3666
  %4220 = vmatmul.mubr.bf16.gmra.mxu0 %v3665
  %v4221 = vpop.f32.mrf.mxu0
  %v4222 = vadd.f32 %v4181, %v4221
  %v4223 = vpop.f32.mrf.mxu0
  %v4224 = vpop.f32.mrf.mxu0
  %v4225 = vadd.f32 %v4184, %v4224
  %v4226 = vpop.f32.mrf.mxu0
  %4227 = vdwg.mxu0
  %4228 = vmatprep.subr.bf16.mxu0 0
  %4229 = vmatpush1.bf16.msra.mxu0 %v1715
  %4230 = vmatprep.subr.bf16.mxu0 0
  %4231 = vmatpush1.bf16.msra.mxu0 %v1714
  %4232 = vmatprep.subr.bf16.mxu0 0
  %4233 = vmatpush1.bf16.msra.mxu0 %v1713
  %4234 = vmatprep.subr.bf16.mxu0 0
  %4235 = vmatpush1.bf16.msra.mxu0 %v1712
  %4236 = vmatprep.subr.bf16.mxu0 0
  %4237 = vmatpush1.bf16.msra.mxu0 %v1711
  %4238 = vmatprep.subr.bf16.mxu0 0
  %4239 = vmatpush1.bf16.msra.mxu0 %v1710
  %4240 = vmatprep.subr.bf16.mxu0 0
  %4241 = vmatpush1.bf16.msra.mxu0 %v1709
  %4242 = vmatprep.subr.bf16.mxu0 0
  %4243 = vmatpush1.bf16.msra.mxu0 %v1708
  %4244 = vmatprep.subr.bf16.mxu0 0
  %4245 = vmatpush2.bf16.msra.mxu0 0
  %4246 = vmatprep.subr.bf16.mxu0 0
  %4247 = vmatpush2.bf16.msra.mxu0 0
  %4248 = vmatprep.subr.bf16.mxu0 0
  %4249 = vmatpush2.bf16.msra.mxu0 0
  %4250 = vmatprep.subr.bf16.mxu0 0
  %4251 = vmatpush2.bf16.msra.mxu0 0
  %4252 = vmatprep.subr.bf16.mxu0 0
  %4253 = vmatpush2.bf16.msra.mxu0 0
  %4254 = vmatprep.subr.bf16.mxu0 0
  %4255 = vmatpush2.bf16.msra.mxu0 0
  %4256 = vmatprep.subr.bf16.mxu0 0
  %4257 = vmatpush2.bf16.msra.mxu0 0
  %4258 = vmatprep.subr.bf16.mxu0 0
  %4259 = vmatpush2.bf16.msra.mxu0 0
  %4260 = vmatprep.mubr.bf16.mxu0 0
  %4261 = vmatmul.mubr.bf16.gmra.mxu0 %v3667
  %v4262 = vpop.f32.mrf.mxu0
  %v4263 = vadd.f32 %v4222, %v4262
  %v4264 = vpop.f32.mrf.mxu0
  %v4265 = vpop.f32.mrf.mxu0
  %v4266 = vadd.f32 %v4225, %v4265
  %v4267 = vpop.f32.mrf.mxu0
  %4268 = vdwg.mxu0
  %v4269 = vmax.f32 %v4263, 0.0
  %v4270 = vmax.f32 %v4266, 0.0
  %v4271 = vpack.c.bf16 %v4270, %v4269
  %s4272 = scalar_lea.vmem %s3, 256
  %v4273 = vld [vmem:[%s4272] sm:$0xff]
  %v4274 = vld [vmem:[%s4272 + $0x8] sm:$0xff]
  %v4275 = vld [vmem:[%s4272 + $0x10] sm:$0xff]
  %v4276 = vld [vmem:[%s4272 + $0x18] sm:$0xff]
  %v4277 = vld [vmem:[%s4272 + $0x20] sm:$0xff]
  %v4278 = vld [vmem:[%s4272 + $0x28] sm:$0xff]
  %v4279 = vld [vmem:[%s4272 + $0x30] sm:$0xff]
  %v4280 = vld [vmem:[%s4272 + $0x38] sm:$0xff]
  %v4281 = vld [vmem:[%s4272 + $0x40] sm:$0xff]
  %v4282 = vld [vmem:[%s4272 + $0x48] sm:$0xff]
  %v4283 = vld [vmem:[%s4272 + $0x50] sm:$0xff]
  %v4284 = vld [vmem:[%s4272 + $0x58] sm:$0xff]
  %v4285 = vld [vmem:[%s4272 + $0x60] sm:$0xff]
  %v4286 = vld [vmem:[%s4272 + $0x68] sm:$0xff]
  %v4287 = vld [vmem:[%s4272 + $0x70] sm:$0xff]
  %v4288 = vld [vmem:[%s4272 + $0x78] sm:$0xff]
  %v4305 = vunpack.c.l.b16 %v4273
  %v4306 = vunpack.c.h.b16 %v4273
  %v4307 = vunpack.c.l.b16 %v4274
  %v4308 = vunpack.c.h.b16 %v4274
  %v4309 = vunpack.c.l.b16 %v4275
  %v4310 = vunpack.c.h.b16 %v4275
  %v4311 = vunpack.c.l.b16 %v4276
  %v4312 = vunpack.c.h.b16 %v4276
  %v4313 = vunpack.c.l.b16 %v4277
  %v4314 = vunpack.c.h.b16 %v4277
  %v4315 = vunpack.c.l.b16 %v4278
  %v4316 = vunpack.c.h.b16 %v4278
  %v4317 = vunpack.c.l.b16 %v4279
  %v4318 = vunpack.c.h.b16 %v4279
  %v4319 = vunpack.c.l.b16 %v4280
  %v4320 = vunpack.c.h.b16 %v4280
  %v4321 = vunpack.c.l.b16 %v4281
  %v4322 = vunpack.c.h.b16 %v4281
  %v4323 = vunpack.c.l.b16 %v4282
  %v4324 = vunpack.c.h.b16 %v4282
  %v4325 = vunpack.c.l.b16 %v4283
  %v4326 = vunpack.c.h.b16 %v4283
  %v4327 = vunpack.c.l.b16 %v4284
  %v4328 = vunpack.c.h.b16 %v4284
  %v4329 = vunpack.c.l.b16 %v4285
  %v4330 = vunpack.c.h.b16 %v4285
  %v4331 = vunpack.c.l.b16 %v4286
  %v4332 = vunpack.c.h.b16 %v4286
  %v4333 = vunpack.c.l.b16 %v4287
  %v4334 = vunpack.c.h.b16 %v4287
  %v4335 = vunpack.c.l.b16 %v4288
  %v4336 = vunpack.c.h.b16 %v4288
  %v4337 = vpack.c.b16 %v4307, %v4305
  %v4338 = vpack.c.b16 %v4308, %v4306
  %v4339 = vpack.c.b16 %v4311, %v4309
  %v4340 = vpack.c.b16 %v4312, %v4310
  %v4341 = vpack.c.b16 %v4315, %v4313
  %v4342 = vpack.c.b16 %v4316, %v4314
  %v4343 = vpack.c.b16 %v4319, %v4317
  %v4344 = vpack.c.b16 %v4320, %v4318
  %v4345 = vpack.c.b16 %v4323, %v4321
  %v4346 = vpack.c.b16 %v4324, %v4322
  %v4347 = vpack.c.b16 %v4327, %v4325
  %v4348 = vpack.c.b16 %v4328, %v4326
  %v4349 = vpack.c.b16 %v4331, %v4329
  %v4350 = vpack.c.b16 %v4332, %v4330
  %v4351 = vpack.c.b16 %v4335, %v4333
  %v4352 = vpack.c.b16 %v4336, %v4334
  %4369 = vmatprep.subr.bf16.mxu0 %v4352
  %4370 = vmatpush1.bf16.msra.mxu0 %v4351
  %4371 = vmatprep.subr.bf16.mxu0 %v4350
  %4372 = vmatpush1.bf16.msra.mxu0 %v4349
  %4373 = vmatprep.subr.bf16.mxu0 %v4348
  %4374 = vmatpush1.bf16.msra.mxu0 %v4347
  %4375 = vmatprep.subr.bf16.mxu0 %v4346
  %4376 = vmatpush1.bf16.msra.mxu0 %v4345
  %4377 = vmatprep.subr.bf16.mxu0 %v4344
  %4378 = vmatpush1.bf16.msra.mxu0 %v4343
  %4379 = vmatprep.subr.bf16.mxu0 %v4342
  %4380 = vmatpush1.bf16.msra.mxu0 %v4341
  %4381 = vmatprep.subr.bf16.mxu0 %v4340
  %4382 = vmatpush1.bf16.msra.mxu0 %v4339
  %4383 = vmatprep.subr.bf16.mxu0 %v4338
  %4384 = vmatpush1.bf16.msra.mxu0 %v4337
  %4385 = vmatprep.subr.bf16.mxu0 0
  %4386 = vmatpush2.bf16.msra.mxu0 0
  %4387 = vmatprep.subr.bf16.mxu0 0
  %4388 = vmatpush2.bf16.msra.mxu0 0
  %4389 = vmatprep.subr.bf16.mxu0 0
  %4390 = vmatpush2.bf16.msra.mxu0 0
  %4391 = vmatprep.subr.bf16.mxu0 0
  %4392 = vmatpush2.bf16.msra.mxu0 0
  %4393 = vmatprep.subr.bf16.mxu0 0
  %4394 = vmatpush2.bf16.msra.mxu0 0
  %4395 = vmatprep.subr.bf16.mxu0 0
  %4396 = vmatpush2.bf16.msra.mxu0 0
  %4397 = vmatprep.subr.bf16.mxu0 0
  %4398 = vmatpush2.bf16.msra.mxu0 0
  %4399 = vmatprep.subr.bf16.mxu0 0
  %4400 = vmatpush2.bf16.msra.mxu0 0
  %4401 = vmatprep.mubr.bf16.mxu0 0
  %4402 = vmatmul.mubr.bf16.gmra.mxu0 %v4271
  %v4403 = vpop.f32.mrf.mxu0
  %v4404 = vadd.f32 0.0, %v4403
  %v4405 = vpop.f32.mrf.mxu0
  %v4406 = vadd.f32 0.0, %v4405
  %v4407 = vpop.f32.mrf.mxu0
  %v4408 = vadd.f32 0.0, %v4407
  %v4409 = vpop.f32.mrf.mxu0
  %v4410 = vadd.f32 0.0, %v4409
  %4411 = vdwg.mxu0
  %v4412 = vadd.f32 %v3522, %v4404
  %v4413 = vadd.f32 %v3524, %v4406
  %v4414 = vadd.f32 %v3526, %v4408
  %v4415 = vadd.f32 %v3528, %v4410
  %s4416 = scalar_lea.vmem %s0, 648
  %v4417 = vld [vmem:[%s4416] sm:$0xff]
  %v4418 = vld [vmem:[%s4416 + $0x8] sm:$0xff]
  %v4419 = vld [vmem:[%s4416 + $0x10] sm:$0xff]
  %v4420 = vld [vmem:[%s4416 + $0x18] sm:$0xff]
  %v4421 = vld [vmem:[%s4416 + $0x20] sm:$0xff]
  %v4422 = vld [vmem:[%s4416 + $0x28] sm:$0xff]
  %v4423 = vld [vmem:[%s4416 + $0x30] sm:$0xff]
  %v4424 = vld [vmem:[%s4416 + $0x38] sm:$0xff]
  %v4425 = vld [vmem:[%s4416 + $0x40] sm:$0xff]
  %v4426 = vld [vmem:[%s4416 + $0x48] sm:$0xff]
  %v4427 = vld [vmem:[%s4416 + $0x50] sm:$0xff]
  %v4428 = vld [vmem:[%s4416 + $0x58] sm:$0xff]
  %v4429 = vld [vmem:[%s4416 + $0x60] sm:$0xff]
  %v4430 = vld [vmem:[%s4416 + $0x68] sm:$0xf]
  %v4431 = vld [vmem:[%s4416 + $0x6c] sm:$0xff]
  %v4432 = vld [vmem:[%s4416 + $0x74] sm:$0xff]
  %v4433 = vld [vmem:[%s4416 + $0x7c] sm:$0xff]
  %v4434 = vld [vmem:[%s4416 + $0x84] sm:$0xff]
  %v4435 = vld [vmem:[%s4416 + $0x8c] sm:$0xff]
  %v4436 = vld [vmem:[%s4416 + $0x94] sm:$0xff]
  %v4437 = vld [vmem:[%s4416 + $0x9c] sm:$0xff]
  %v4438 = vld [vmem:[%s4416 + $0xa4] sm:$0xff]
  %v4439 = vld [vmem:[%s4416 + $0xac] sm:$0xff]
  %v4440 = vld [vmem:[%s4416 + $0xb4] sm:$0xff]
  %v4441 = vld [vmem:[%s4416 + $0xbc] sm:$0xff]
  %v4442 = vld [vmem:[%s4416 + $0xc4] sm:$0xff]
  %v4443 = vld [vmem:[%s4416 + $0xcc] sm:$0xff]
  %v4444 = vld [vmem:[%s4416 + $0xd4] sm:$0xf]
  %v4473 = vunpack.c.l.b16 %v4417
  %v4474 = vunpack.c.h.b16 %v4417
  %v4475 = vunpack.c.l.b16 %v4418
  %v4476 = vunpack.c.h.b16 %v4418
  %v4477 = vunpack.c.l.b16 %v4419
  %v4478 = vunpack.c.h.b16 %v4419
  %v4479 = vunpack.c.l.b16 %v4420
  %v4480 = vunpack.c.h.b16 %v4420
  %v4481 = vunpack.c.l.b16 %v4421
  %v4482 = vunpack.c.h.b16 %v4421
  %v4483 = vunpack.c.l.b16 %v4422
  %v4484 = vunpack.c.h.b16 %v4422
  %v4485 = vunpack.c.l.b16 %v4423
  %v4486 = vunpack.c.h.b16 %v4423
  %v4487 = vunpack.c.l.b16 %v4424
  %v4488 = vunpack.c.h.b16 %v4424
  %v4489 = vunpack.c.l.b16 %v4425
  %v4490 = vunpack.c.h.b16 %v4425
  %v4491 = vunpack.c.l.b16 %v4426
  %v4492 = vunpack.c.h.b16 %v4426
  %v4493 = vunpack.c.l.b16 %v4427
  %v4494 = vunpack.c.h.b16 %v4427
  %v4495 = vunpack.c.l.b16 %v4428
  %v4496 = vunpack.c.h.b16 %v4428
  %v4497 = vunpack.c.l.b16 %v4429
  %v4498 = vunpack.c.h.b16 %v4429
  %v4499 = vunpack.c.l.b16 %v4430
  %v4500 = vunpack.c.l.b16 %v4431
  %v4501 = vunpack.c.h.b16 %v4431
  %v4502 = vunpack.c.l.b16 %v4432
  %v4503 = vunpack.c.h.b16 %v4432
  %v4504 = vunpack.c.l.b16 %v4433
  %v4505 = vunpack.c.h.b16 %v4433
  %v4506 = vunpack.c.l.b16 %v4434
  %v4507 = vunpack.c.h.b16 %v4434
  %v4508 = vunpack.c.l.b16 %v4435
  %v4509 = vunpack.c.h.b16 %v4435
  %v4510 = vunpack.c.l.b16 %v4436
  %v4511 = vunpack.c.h.b16 %v4436
  %v4512 = vunpack.c.l.b16 %v4437
  %v4513 = vunpack.c.h.b16 %v4437
  %v4514 = vunpack.c.l.b16 %v4438
  %v4515 = vunpack.c.h.b16 %v4438
  %v4516 = vunpack.c.l.b16 %v4439
  %v4517 = vunpack.c.h.b16 %v4439
  %v4518 = vunpack.c.l.b16 %v4440
  %v4519 = vunpack.c.h.b16 %v4440
  %v4520 = vunpack.c.l.b16 %v4441
  %v4521 = vunpack.c.h.b16 %v4441
  %v4522 = vunpack.c.l.b16 %v4442
  %v4523 = vunpack.c.h.b16 %v4442
  %v4524 = vunpack.c.l.b16 %v4443
  %v4525 = vunpack.c.h.b16 %v4443
  %v4526 = vunpack.c.l.b16 %v4444
  %v4527 = vpack.c.b16 %v4500, %v4473
  %v4528 = vpack.c.b16 %v4501, %v4474
  %v4529 = vpack.c.b16 %v4502, %v4475
  %v4530 = vpack.c.b16 %v4503, %v4476
  %v4531 = vpack.c.b16 %v4504, %v4477
  %v4532 = vpack.c.b16 %v4505, %v4478
  %v4533 = vpack.c.b16 %v4506, %v4479
  %v4534 = vpack.c.b16 %v4507, %v4480
  %v4535 = vpack.c.b16 %v4508, %v4481
  %v4536 = vpack.c.b16 %v4509, %v4482
  %v4537 = vpack.c.b16 %v4510, %v4483
  %v4538 = vpack.c.b16 %v4511, %v4484
  %v4539 = vpack.c.b16 %v4512, %v4485
  %v4540 = vpack.c.b16 %v4513, %v4486
  %v4541 = vpack.c.b16 %v4514, %v4487
  %v4542 = vpack.c.b16 %v4515, %v4488
  %v4543 = vpack.c.b16 %v4516, %v4489
  %v4544 = vpack.c.b16 %v4517, %v4490
  %v4545 = vpack.c.b16 %v4518, %v4491
  %v4546 = vpack.c.b16 %v4519, %v4492
  %v4547 = vpack.c.b16 %v4520, %v4493
  %v4548 = vpack.c.b16 %v4521, %v4494
  %v4549 = vpack.c.b16 %v4522, %v4495
  %v4550 = vpack.c.b16 %v4523, %v4496
  %v4551 = vpack.c.b16 %v4524, %v4497
  %v4552 = vpack.c.b16 %v4525, %v4498
  %v4553 = vpack.c.b16 %v4526, %v4499
  %4581 = vmatprep.subr.bf16.mxu0 0
  %4582 = vmatpush1.bf16.msra.mxu0 %v1507
  %4583 = vmatprep.subr.bf16.mxu0 0
  %4584 = vmatpush1.bf16.msra.mxu0 %v1506
  %4585 = vmatprep.subr.bf16.mxu0 0
  %4586 = vmatpush1.bf16.msra.mxu0 %v1505
  %4587 = vmatprep.subr.bf16.mxu0 0
  %4588 = vmatpush1.bf16.msra.mxu0 %v1504
  %4589 = vmatprep.subr.bf16.mxu0 0
  %4590 = vmatpush1.bf16.msra.mxu0 %v1503
  %4591 = vmatprep.subr.bf16.mxu0 0
  %4592 = vmatpush1.bf16.msra.mxu0 %v1502
  %4593 = vmatprep.subr.bf16.mxu0 0
  %4594 = vmatpush1.bf16.msra.mxu0 %v1501
  %4595 = vmatprep.subr.bf16.mxu0 0
  %4596 = vmatpush1.bf16.msra.mxu0 %v1500
  %4597 = vmatprep.subr.bf16.mxu0 0
  %4598 = vmatpush2.bf16.msra.mxu0 %v1515
  %4599 = vmatprep.subr.bf16.mxu0 0
  %4600 = vmatpush2.bf16.msra.mxu0 %v1514
  %4601 = vmatprep.subr.bf16.mxu0 0
  %4602 = vmatpush2.bf16.msra.mxu0 %v1513
  %4603 = vmatprep.subr.bf16.mxu0 0
  %4604 = vmatpush2.bf16.msra.mxu0 %v1512
  %4605 = vmatprep.subr.bf16.mxu0 0
  %4606 = vmatpush2.bf16.msra.mxu0 %v1511
  %4607 = vmatprep.subr.bf16.mxu0 0
  %4608 = vmatpush2.bf16.msra.mxu0 %v1510
  %4609 = vmatprep.subr.bf16.mxu0 0
  %4610 = vmatpush2.bf16.msra.mxu0 %v1509
  %4611 = vmatprep.subr.bf16.mxu0 0
  %4612 = vmatpush2.bf16.msra.mxu0 %v1508
  %4613 = vmatprep.mubr.bf16.mxu0 %v4528
  %4614 = vmatmul.mubr.bf16.gmra.mxu0 %v4527
  %v4615 = vpop.f32.mrf.mxu0
  %v4616 = vadd.f32 %v498, %v4615
  %v4617 = vpop.f32.mrf.mxu0
  %v4618 = vpop.f32.mrf.mxu0
  %v4619 = vadd.f32 %v498, %v4618
  %v4620 = vpop.f32.mrf.mxu0
  %4621 = vdwg.mxu0
  %4622 = vmatprep.subr.bf16.mxu0 0
  %4623 = vmatpush1.bf16.msra.mxu0 %v1523
  %4624 = vmatprep.subr.bf16.mxu0 0
  %4625 = vmatpush1.bf16.msra.mxu0 %v1522
  %4626 = vmatprep.subr.bf16.mxu0 0
  %4627 = vmatpush1.bf16.msra.mxu0 %v1521
  %4628 = vmatprep.subr.bf16.mxu0 0
  %4629 = vmatpush1.bf16.msra.mxu0 %v1520
  %4630 = vmatprep.subr.bf16.mxu0 0
  %4631 = vmatpush1.bf16.msra.mxu0 %v1519
  %4632 = vmatprep.subr.bf16.mxu0 0
  %4633 = vmatpush1.bf16.msra.mxu0 %v1518
  %4634 = vmatprep.subr.bf16.mxu0 0
  %4635 = vmatpush1.bf16.msra.mxu0 %v1517
  %4636 = vmatprep.subr.bf16.mxu0 0
  %4637 = vmatpush1.bf16.msra.mxu0 %v1516
  %4638 = vmatprep.subr.bf16.mxu0 0
  %4639 = vmatpush2.bf16.msra.mxu0 %v1531
  %4640 = vmatprep.subr.bf16.mxu0 0
  %4641 = vmatpush2.bf16.msra.mxu0 %v1530
  %4642 = vmatprep.subr.bf16.mxu0 0
  %4643 = vmatpush2.bf16.msra.mxu0 %v1529
  %4644 = vmatprep.subr.bf16.mxu0 0
  %4645 = vmatpush2.bf16.msra.mxu0 %v1528
  %4646 = vmatprep.subr.bf16.mxu0 0
  %4647 = vmatpush2.bf16.msra.mxu0 %v1527
  %4648 = vmatprep.subr.bf16.mxu0 0
  %4649 = vmatpush2.bf16.msra.mxu0 %v1526
  %4650 = vmatprep.subr.bf16.mxu0 0
  %4651 = vmatpush2.bf16.msra.mxu0 %v1525
  %4652 = vmatprep.subr.bf16.mxu0 0
  %4653 = vmatpush2.bf16.msra.mxu0 %v1524
  %4654 = vmatprep.mubr.bf16.mxu0 %v4530
  %4655 = vmatmul.mubr.bf16.gmra.mxu0 %v4529
  %v4656 = vpop.f32.mrf.mxu0
  %v4657 = vadd.f32 %v4616, %v4656
  %v4658 = vpop.f32.mrf.mxu0
  %v4659 = vpop.f32.mrf.mxu0
  %v4660 = vadd.f32 %v4619, %v4659
  %v4661 = vpop.f32.mrf.mxu0
  %4662 = vdwg.mxu0
  %4663 = vmatprep.subr.bf16.mxu0 0
  %4664 = vmatpush1.bf16.msra.mxu0 %v1539
  %4665 = vmatprep.subr.bf16.mxu0 0
  %4666 = vmatpush1.bf16.msra.mxu0 %v1538
  %4667 = vmatprep.subr.bf16.mxu0 0
  %4668 = vmatpush1.bf16.msra.mxu0 %v1537
  %4669 = vmatprep.subr.bf16.mxu0 0
  %4670 = vmatpush1.bf16.msra.mxu0 %v1536
  %4671 = vmatprep.subr.bf16.mxu0 0
  %4672 = vmatpush1.bf16.msra.mxu0 %v1535
  %4673 = vmatprep.subr.bf16.mxu0 0
  %4674 = vmatpush1.bf16.msra.mxu0 %v1534
  %4675 = vmatprep.subr.bf16.mxu0 0
  %4676 = vmatpush1.bf16.msra.mxu0 %v1533
  %4677 = vmatprep.subr.bf16.mxu0 0
  %4678 = vmatpush1.bf16.msra.mxu0 %v1532
  %4679 = vmatprep.subr.bf16.mxu0 0
  %4680 = vmatpush2.bf16.msra.mxu0 %v1547
  %4681 = vmatprep.subr.bf16.mxu0 0
  %4682 = vmatpush2.bf16.msra.mxu0 %v1546
  %4683 = vmatprep.subr.bf16.mxu0 0
  %4684 = vmatpush2.bf16.msra.mxu0 %v1545
  %4685 = vmatprep.subr.bf16.mxu0 0
  %4686 = vmatpush2.bf16.msra.mxu0 %v1544
  %4687 = vmatprep.subr.bf16.mxu0 0
  %4688 = vmatpush2.bf16.msra.mxu0 %v1543
  %4689 = vmatprep.subr.bf16.mxu0 0
  %4690 = vmatpush2.bf16.msra.mxu0 %v1542
  %4691 = vmatprep.subr.bf16.mxu0 0
  %4692 = vmatpush2.bf16.msra.mxu0 %v1541
  %4693 = vmatprep.subr.bf16.mxu0 0
  %4694 = vmatpush2.bf16.msra.mxu0 %v1540
  %4695 = vmatprep.mubr.bf16.mxu0 %v4532
  %4696 = vmatmul.mubr.bf16.gmra.mxu0 %v4531
  %v4697 = vpop.f32.mrf.mxu0
  %v4698 = vadd.f32 %v4657, %v4697
  %v4699 = vpop.f32.mrf.mxu0
  %v4700 = vpop.f32.mrf.mxu0
  %v4701 = vadd.f32 %v4660, %v4700
  %v4702 = vpop.f32.mrf.mxu0
  %4703 = vdwg.mxu0
  %4704 = vmatprep.subr.bf16.mxu0 0
  %4705 = vmatpush1.bf16.msra.mxu0 %v1555
  %4706 = vmatprep.subr.bf16.mxu0 0
  %4707 = vmatpush1.bf16.msra.mxu0 %v1554
  %4708 = vmatprep.subr.bf16.mxu0 0
  %4709 = vmatpush1.bf16.msra.mxu0 %v1553
  %4710 = vmatprep.subr.bf16.mxu0 0
  %4711 = vmatpush1.bf16.msra.mxu0 %v1552
  %4712 = vmatprep.subr.bf16.mxu0 0
  %4713 = vmatpush1.bf16.msra.mxu0 %v1551
  %4714 = vmatprep.subr.bf16.mxu0 0
  %4715 = vmatpush1.bf16.msra.mxu0 %v1550
  %4716 = vmatprep.subr.bf16.mxu0 0
  %4717 = vmatpush1.bf16.msra.mxu0 %v1549
  %4718 = vmatprep.subr.bf16.mxu0 0
  %4719 = vmatpush1.bf16.msra.mxu0 %v1548
  %4720 = vmatprep.subr.bf16.mxu0 0
  %4721 = vmatpush2.bf16.msra.mxu0 %v1563
  %4722 = vmatprep.subr.bf16.mxu0 0
  %4723 = vmatpush2.bf16.msra.mxu0 %v1562
  %4724 = vmatprep.subr.bf16.mxu0 0
  %4725 = vmatpush2.bf16.msra.mxu0 %v1561
  %4726 = vmatprep.subr.bf16.mxu0 0
  %4727 = vmatpush2.bf16.msra.mxu0 %v1560
  %4728 = vmatprep.subr.bf16.mxu0 0
  %4729 = vmatpush2.bf16.msra.mxu0 %v1559
  %4730 = vmatprep.subr.bf16.mxu0 0
  %4731 = vmatpush2.bf16.msra.mxu0 %v1558
  %4732 = vmatprep.subr.bf16.mxu0 0
  %4733 = vmatpush2.bf16.msra.mxu0 %v1557
  %4734 = vmatprep.subr.bf16.mxu0 0
  %4735 = vmatpush2.bf16.msra.mxu0 %v1556
  %4736 = vmatprep.mubr.bf16.mxu0 %v4534
  %4737 = vmatmul.mubr.bf16.gmra.mxu0 %v4533
  %v4738 = vpop.f32.mrf.mxu0
  %v4739 = vadd.f32 %v4698, %v4738
  %v4740 = vpop.f32.mrf.mxu0
  %v4741 = vpop.f32.mrf.mxu0
  %v4742 = vadd.f32 %v4701, %v4741
  %v4743 = vpop.f32.mrf.mxu0
  %4744 = vdwg.mxu0
  %4745 = vmatprep.subr.bf16.mxu0 0
  %4746 = vmatpush1.bf16.msra.mxu0 %v1571
  %4747 = vmatprep.subr.bf16.mxu0 0
  %4748 = vmatpush1.bf16.msra.mxu0 %v1570
  %4749 = vmatprep.subr.bf16.mxu0 0
  %4750 = vmatpush1.bf16.msra.mxu0 %v1569
  %4751 = vmatprep.subr.bf16.mxu0 0
  %4752 = vmatpush1.bf16.msra.mxu0 %v1568
  %4753 = vmatprep.subr.bf16.mxu0 0
  %4754 = vmatpush1.bf16.msra.mxu0 %v1567
  %4755 = vmatprep.subr.bf16.mxu0 0
  %4756 = vmatpush1.bf16.msra.mxu0 %v1566
  %4757 = vmatprep.subr.bf16.mxu0 0
  %4758 = vmatpush1.bf16.msra.mxu0 %v1565
  %4759 = vmatprep.subr.bf16.mxu0 0
  %4760 = vmatpush1.bf16.msra.mxu0 %v1564
  %4761 = vmatprep.subr.bf16.mxu0 0
  %4762 = vmatpush2.bf16.msra.mxu0 %v1579
  %4763 = vmatprep.subr.bf16.mxu0 0
  %4764 = vmatpush2.bf16.msra.mxu0 %v1578
  %4765 = vmatprep.subr.bf16.mxu0 0
  %4766 = vmatpush2.bf16.msra.mxu0 %v1577
  %4767 = vmatprep.subr.bf16.mxu0 0
  %4768 = vmatpush2.bf16.msra.mxu0 %v1576
  %4769 = vmatprep.subr.bf16.mxu0 0
  %4770 = vmatpush2.bf16.msra.mxu0 %v1575
  %4771 = vmatprep.subr.bf16.mxu0 0
  %4772 = vmatpush2.bf16.msra.mxu0 %v1574
  %4773 = vmatprep.subr.bf16.mxu0 0
  %4774 = vmatpush2.bf16.msra.mxu0 %v1573
  %4775 = vmatprep.subr.bf16.mxu0 0
  %4776 = vmatpush2.bf16.msra.mxu0 %v1572
  %4777 = vmatprep.mubr.bf16.mxu0 %v4536
  %4778 = vmatmul.mubr.bf16.gmra.mxu0 %v4535
  %v4779 = vpop.f32.mrf.mxu0
  %v4780 = vadd.f32 %v4739, %v4779
  %v4781 = vpop.f32.mrf.mxu0
  %v4782 = vpop.f32.mrf.mxu0
  %v4783 = vadd.f32 %v4742, %v4782
  %v4784 = vpop.f32.mrf.mxu0
  %4785 = vdwg.mxu0
  %4786 = vmatprep.subr.bf16.mxu0 0
  %4787 = vmatpush1.bf16.msra.mxu0 %v1587
  %4788 = vmatprep.subr.bf16.mxu0 0
  %4789 = vmatpush1.bf16.msra.mxu0 %v1586
  %4790 = vmatprep.subr.bf16.mxu0 0
  %4791 = vmatpush1.bf16.msra.mxu0 %v1585
  %4792 = vmatprep.subr.bf16.mxu0 0
  %4793 = vmatpush1.bf16.msra.mxu0 %v1584
  %4794 = vmatprep.subr.bf16.mxu0 0
  %4795 = vmatpush1.bf16.msra.mxu0 %v1583
  %4796 = vmatprep.subr.bf16.mxu0 0
  %4797 = vmatpush1.bf16.msra.mxu0 %v1582
  %4798 = vmatprep.subr.bf16.mxu0 0
  %4799 = vmatpush1.bf16.msra.mxu0 %v1581
  %4800 = vmatprep.subr.bf16.mxu0 0
  %4801 = vmatpush1.bf16.msra.mxu0 %v1580
  %4802 = vmatprep.subr.bf16.mxu0 0
  %4803 = vmatpush2.bf16.msra.mxu0 %v1595
  %4804 = vmatprep.subr.bf16.mxu0 0
  %4805 = vmatpush2.bf16.msra.mxu0 %v1594
  %4806 = vmatprep.subr.bf16.mxu0 0
  %4807 = vmatpush2.bf16.msra.mxu0 %v1593
  %4808 = vmatprep.subr.bf16.mxu0 0
  %4809 = vmatpush2.bf16.msra.mxu0 %v1592
  %4810 = vmatprep.subr.bf16.mxu0 0
  %4811 = vmatpush2.bf16.msra.mxu0 %v1591
  %4812 = vmatprep.subr.bf16.mxu0 0
  %4813 = vmatpush2.bf16.msra.mxu0 %v1590
  %4814 = vmatprep.subr.bf16.mxu0 0
  %4815 = vmatpush2.bf16.msra.mxu0 %v1589
  %4816 = vmatprep.subr.bf16.mxu0 0
  %4817 = vmatpush2.bf16.msra.mxu0 %v1588
  %4818 = vmatprep.mubr.bf16.mxu0 %v4538
  %4819 = vmatmul.mubr.bf16.gmra.mxu0 %v4537
  %v4820 = vpop.f32.mrf.mxu0
  %v4821 = vadd.f32 %v4780, %v4820
  %v4822 = vpop.f32.mrf.mxu0
  %v4823 = vpop.f32.mrf.mxu0
  %v4824 = vadd.f32 %v4783, %v4823
  %v4825 = vpop.f32.mrf.mxu0
  %4826 = vdwg.mxu0
  %4827 = vmatprep.subr.bf16.mxu0 0
  %4828 = vmatpush1.bf16.msra.mxu0 %v1603
  %4829 = vmatprep.subr.bf16.mxu0 0
  %4830 = vmatpush1.bf16.msra.mxu0 %v1602
  %4831 = vmatprep.subr.bf16.mxu0 0
  %4832 = vmatpush1.bf16.msra.mxu0 %v1601
  %4833 = vmatprep.subr.bf16.mxu0 0
  %4834 = vmatpush1.bf16.msra.mxu0 %v1600
  %4835 = vmatprep.subr.bf16.mxu0 0
  %4836 = vmatpush1.bf16.msra.mxu0 %v1599
  %4837 = vmatprep.subr.bf16.mxu0 0
  %4838 = vmatpush1.bf16.msra.mxu0 %v1598
  %4839 = vmatprep.subr.bf16.mxu0 0
  %4840 = vmatpush1.bf16.msra.mxu0 %v1597
  %4841 = vmatprep.subr.bf16.mxu0 0
  %4842 = vmatpush1.bf16.msra.mxu0 %v1596
  %4843 = vmatprep.subr.bf16.mxu0 0
  %4844 = vmatpush2.bf16.msra.mxu0 %v1611
  %4845 = vmatprep.subr.bf16.mxu0 0
  %4846 = vmatpush2.bf16.msra.mxu0 %v1610
  %4847 = vmatprep.subr.bf16.mxu0 0
  %4848 = vmatpush2.bf16.msra.mxu0 %v1609
  %4849 = vmatprep.subr.bf16.mxu0 0
  %4850 = vmatpush2.bf16.msra.mxu0 %v1608
  %4851 = vmatprep.subr.bf16.mxu0 0
  %4852 = vmatpush2.bf16.msra.mxu0 %v1607
  %4853 = vmatprep.subr.bf16.mxu0 0
  %4854 = vmatpush2.bf16.msra.mxu0 %v1606
  %4855 = vmatprep.subr.bf16.mxu0 0
  %4856 = vmatpush2.bf16.msra.mxu0 %v1605
  %4857 = vmatprep.subr.bf16.mxu0 0
  %4858 = vmatpush2.bf16.msra.mxu0 %v1604
  %4859 = vmatprep.mubr.bf16.mxu0 %v4540
  %4860 = vmatmul.mubr.bf16.gmra.mxu0 %v4539
  %v4861 = vpop.f32.mrf.mxu0
  %v4862 = vadd.f32 %v4821, %v4861
  %v4863 = vpop.f32.mrf.mxu0
  %v4864 = vpop.f32.mrf.mxu0
  %v4865 = vadd.f32 %v4824, %v4864
  %v4866 = vpop.f32.mrf.mxu0
  %4867 = vdwg.mxu0
  %4868 = vmatprep.subr.bf16.mxu0 0
  %4869 = vmatpush1.bf16.msra.mxu0 %v1619
  %4870 = vmatprep.subr.bf16.mxu0 0
  %4871 = vmatpush1.bf16.msra.mxu0 %v1618
  %4872 = vmatprep.subr.bf16.mxu0 0
  %4873 = vmatpush1.bf16.msra.mxu0 %v1617
  %4874 = vmatprep.subr.bf16.mxu0 0
  %4875 = vmatpush1.bf16.msra.mxu0 %v1616
  %4876 = vmatprep.subr.bf16.mxu0 0
  %4877 = vmatpush1.bf16.msra.mxu0 %v1615
  %4878 = vmatprep.subr.bf16.mxu0 0
  %4879 = vmatpush1.bf16.msra.mxu0 %v1614
  %4880 = vmatprep.subr.bf16.mxu0 0
  %4881 = vmatpush1.bf16.msra.mxu0 %v1613
  %4882 = vmatprep.subr.bf16.mxu0 0
  %4883 = vmatpush1.bf16.msra.mxu0 %v1612
  %4884 = vmatprep.subr.bf16.mxu0 0
  %4885 = vmatpush2.bf16.msra.mxu0 %v1627
  %4886 = vmatprep.subr.bf16.mxu0 0
  %4887 = vmatpush2.bf16.msra.mxu0 %v1626
  %4888 = vmatprep.subr.bf16.mxu0 0
  %4889 = vmatpush2.bf16.msra.mxu0 %v1625
  %4890 = vmatprep.subr.bf16.mxu0 0
  %4891 = vmatpush2.bf16.msra.mxu0 %v1624
  %4892 = vmatprep.subr.bf16.mxu0 0
  %4893 = vmatpush2.bf16.msra.mxu0 %v1623
  %4894 = vmatprep.subr.bf16.mxu0 0
  %4895 = vmatpush2.bf16.msra.mxu0 %v1622
  %4896 = vmatprep.subr.bf16.mxu0 0
  %4897 = vmatpush2.bf16.msra.mxu0 %v1621
  %4898 = vmatprep.subr.bf16.mxu0 0
  %4899 = vmatpush2.bf16.msra.mxu0 %v1620
  %4900 = vmatprep.mubr.bf16.mxu0 %v4542
  %4901 = vmatmul.mubr.bf16.gmra.mxu0 %v4541
  %v4902 = vpop.f32.mrf.mxu0
  %v4903 = vadd.f32 %v4862, %v4902
  %v4904 = vpop.f32.mrf.mxu0
  %v4905 = vpop.f32.mrf.mxu0
  %v4906 = vadd.f32 %v4865, %v4905
  %v4907 = vpop.f32.mrf.mxu0
  %4908 = vdwg.mxu0
  %4909 = vmatprep.subr.bf16.mxu0 0
  %4910 = vmatpush1.bf16.msra.mxu0 %v1635
  %4911 = vmatprep.subr.bf16.mxu0 0
  %4912 = vmatpush1.bf16.msra.mxu0 %v1634
  %4913 = vmatprep.subr.bf16.mxu0 0
  %4914 = vmatpush1.bf16.msra.mxu0 %v1633
  %4915 = vmatprep.subr.bf16.mxu0 0
  %4916 = vmatpush1.bf16.msra.mxu0 %v1632
  %4917 = vmatprep.subr.bf16.mxu0 0
  %4918 = vmatpush1.bf16.msra.mxu0 %v1631
  %4919 = vmatprep.subr.bf16.mxu0 0
  %4920 = vmatpush1.bf16.msra.mxu0 %v1630
  %4921 = vmatprep.subr.bf16.mxu0 0
  %4922 = vmatpush1.bf16.msra.mxu0 %v1629
  %4923 = vmatprep.subr.bf16.mxu0 0
  %4924 = vmatpush1.bf16.msra.mxu0 %v1628
  %4925 = vmatprep.subr.bf16.mxu0 0
  %4926 = vmatpush2.bf16.msra.mxu0 %v1643
  %4927 = vmatprep.subr.bf16.mxu0 0
  %4928 = vmatpush2.bf16.msra.mxu0 %v1642
  %4929 = vmatprep.subr.bf16.mxu0 0
  %4930 = vmatpush2.bf16.msra.mxu0 %v1641
  %4931 = vmatprep.subr.bf16.mxu0 0
  %4932 = vmatpush2.bf16.msra.mxu0 %v1640
  %4933 = vmatprep.subr.bf16.mxu0 0
  %4934 = vmatpush2.bf16.msra.mxu0 %v1639
  %4935 = vmatprep.subr.bf16.mxu0 0
  %4936 = vmatpush2.bf16.msra.mxu0 %v1638
  %4937 = vmatprep.subr.bf16.mxu0 0
  %4938 = vmatpush2.bf16.msra.mxu0 %v1637
  %4939 = vmatprep.subr.bf16.mxu0 0
  %4940 = vmatpush2.bf16.msra.mxu0 %v1636
  %4941 = vmatprep.mubr.bf16.mxu0 %v4544
  %4942 = vmatmul.mubr.bf16.gmra.mxu0 %v4543
  %v4943 = vpop.f32.mrf.mxu0
  %v4944 = vadd.f32 %v4903, %v4943
  %v4945 = vpop.f32.mrf.mxu0
  %v4946 = vpop.f32.mrf.mxu0
  %v4947 = vadd.f32 %v4906, %v4946
  %v4948 = vpop.f32.mrf.mxu0
  %4949 = vdwg.mxu0
  %4950 = vmatprep.subr.bf16.mxu0 0
  %4951 = vmatpush1.bf16.msra.mxu0 %v1651
  %4952 = vmatprep.subr.bf16.mxu0 0
  %4953 = vmatpush1.bf16.msra.mxu0 %v1650
  %4954 = vmatprep.subr.bf16.mxu0 0
  %4955 = vmatpush1.bf16.msra.mxu0 %v1649
  %4956 = vmatprep.subr.bf16.mxu0 0
  %4957 = vmatpush1.bf16.msra.mxu0 %v1648
  %4958 = vmatprep.subr.bf16.mxu0 0
  %4959 = vmatpush1.bf16.msra.mxu0 %v1647
  %4960 = vmatprep.subr.bf16.mxu0 0
  %4961 = vmatpush1.bf16.msra.mxu0 %v1646
  %4962 = vmatprep.subr.bf16.mxu0 0
  %4963 = vmatpush1.bf16.msra.mxu0 %v1645
  %4964 = vmatprep.subr.bf16.mxu0 0
  %4965 = vmatpush1.bf16.msra.mxu0 %v1644
  %4966 = vmatprep.subr.bf16.mxu0 0
  %4967 = vmatpush2.bf16.msra.mxu0 %v1659
  %4968 = vmatprep.subr.bf16.mxu0 0
  %4969 = vmatpush2.bf16.msra.mxu0 %v1658
  %4970 = vmatprep.subr.bf16.mxu0 0
  %4971 = vmatpush2.bf16.msra.mxu0 %v1657
  %4972 = vmatprep.subr.bf16.mxu0 0
  %4973 = vmatpush2.bf16.msra.mxu0 %v1656
  %4974 = vmatprep.subr.bf16.mxu0 0
  %4975 = vmatpush2.bf16.msra.mxu0 %v1655
  %4976 = vmatprep.subr.bf16.mxu0 0
  %4977 = vmatpush2.bf16.msra.mxu0 %v1654
  %4978 = vmatprep.subr.bf16.mxu0 0
  %4979 = vmatpush2.bf16.msra.mxu0 %v1653
  %4980 = vmatprep.subr.bf16.mxu0 0
  %4981 = vmatpush2.bf16.msra.mxu0 %v1652
  %4982 = vmatprep.mubr.bf16.mxu0 %v4546
  %4983 = vmatmul.mubr.bf16.gmra.mxu0 %v4545
  %v4984 = vpop.f32.mrf.mxu0
  %v4985 = vadd.f32 %v4944, %v4984
  %v4986 = vpop.f32.mrf.mxu0
  %v4987 = vpop.f32.mrf.mxu0
  %v4988 = vadd.f32 %v4947, %v4987
  %v4989 = vpop.f32.mrf.mxu0
  %4990 = vdwg.mxu0
  %4991 = vmatprep.subr.bf16.mxu0 0
  %4992 = vmatpush1.bf16.msra.mxu0 %v1667
  %4993 = vmatprep.subr.bf16.mxu0 0
  %4994 = vmatpush1.bf16.msra.mxu0 %v1666
  %4995 = vmatprep.subr.bf16.mxu0 0
  %4996 = vmatpush1.bf16.msra.mxu0 %v1665
  %4997 = vmatprep.subr.bf16.mxu0 0
  %4998 = vmatpush1.bf16.msra.mxu0 %v1664
  %4999 = vmatprep.subr.bf16.mxu0 0
  %5000 = vmatpush1.bf16.msra.mxu0 %v1663
  %5001 = vmatprep.subr.bf16.mxu0 0
  %5002 = vmatpush1.bf16.msra.mxu0 %v1662
  %5003 = vmatprep.subr.bf16.mxu0 0
  %5004 = vmatpush1.bf16.msra.mxu0 %v1661
  %5005 = vmatprep.subr.bf16.mxu0 0
  %5006 = vmatpush1.bf16.msra.mxu0 %v1660
  %5007 = vmatprep.subr.bf16.mxu0 0
  %5008 = vmatpush2.bf16.msra.mxu0 %v1675
  %5009 = vmatprep.subr.bf16.mxu0 0
  %5010 = vmatpush2.bf16.msra.mxu0 %v1674
  %5011 = vmatprep.subr.bf16.mxu0 0
  %5012 = vmatpush2.bf16.msra.mxu0 %v1673
  %5013 = vmatprep.subr.bf16.mxu0 0
  %5014 = vmatpush2.bf16.msra.mxu0 %v1672
  %5015 = vmatprep.subr.bf16.mxu0 0
  %5016 = vmatpush2.bf16.msra.mxu0 %v1671
  %5017 = vmatprep.subr.bf16.mxu0 0
  %5018 = vmatpush2.bf16.msra.mxu0 %v1670
  %5019 = vmatprep.subr.bf16.mxu0 0
  %5020 = vmatpush2.bf16.msra.mxu0 %v1669
  %5021 = vmatprep.subr.bf16.mxu0 0
  %5022 = vmatpush2.bf16.msra.mxu0 %v1668
  %5023 = vmatprep.mubr.bf16.mxu0 %v4548
  %5024 = vmatmul.mubr.bf16.gmra.mxu0 %v4547
  %v5025 = vpop.f32.mrf.mxu0
  %v5026 = vadd.f32 %v4985, %v5025
  %v5027 = vpop.f32.mrf.mxu0
  %v5028 = vpop.f32.mrf.mxu0
  %v5029 = vadd.f32 %v4988, %v5028
  %v5030 = vpop.f32.mrf.mxu0
  %5031 = vdwg.mxu0
  %5032 = vmatprep.subr.bf16.mxu0 0
  %5033 = vmatpush1.bf16.msra.mxu0 %v1683
  %5034 = vmatprep.subr.bf16.mxu0 0
  %5035 = vmatpush1.bf16.msra.mxu0 %v1682
  %5036 = vmatprep.subr.bf16.mxu0 0
  %5037 = vmatpush1.bf16.msra.mxu0 %v1681
  %5038 = vmatprep.subr.bf16.mxu0 0
  %5039 = vmatpush1.bf16.msra.mxu0 %v1680
  %5040 = vmatprep.subr.bf16.mxu0 0
  %5041 = vmatpush1.bf16.msra.mxu0 %v1679
  %5042 = vmatprep.subr.bf16.mxu0 0
  %5043 = vmatpush1.bf16.msra.mxu0 %v1678
  %5044 = vmatprep.subr.bf16.mxu0 0
  %5045 = vmatpush1.bf16.msra.mxu0 %v1677
  %5046 = vmatprep.subr.bf16.mxu0 0
  %5047 = vmatpush1.bf16.msra.mxu0 %v1676
  %5048 = vmatprep.subr.bf16.mxu0 0
  %5049 = vmatpush2.bf16.msra.mxu0 %v1691
  %5050 = vmatprep.subr.bf16.mxu0 0
  %5051 = vmatpush2.bf16.msra.mxu0 %v1690
  %5052 = vmatprep.subr.bf16.mxu0 0
  %5053 = vmatpush2.bf16.msra.mxu0 %v1689
  %5054 = vmatprep.subr.bf16.mxu0 0
  %5055 = vmatpush2.bf16.msra.mxu0 %v1688
  %5056 = vmatprep.subr.bf16.mxu0 0
  %5057 = vmatpush2.bf16.msra.mxu0 %v1687
  %5058 = vmatprep.subr.bf16.mxu0 0
  %5059 = vmatpush2.bf16.msra.mxu0 %v1686
  %5060 = vmatprep.subr.bf16.mxu0 0
  %5061 = vmatpush2.bf16.msra.mxu0 %v1685
  %5062 = vmatprep.subr.bf16.mxu0 0
  %5063 = vmatpush2.bf16.msra.mxu0 %v1684
  %5064 = vmatprep.mubr.bf16.mxu0 %v4550
  %5065 = vmatmul.mubr.bf16.gmra.mxu0 %v4549
  %v5066 = vpop.f32.mrf.mxu0
  %v5067 = vadd.f32 %v5026, %v5066
  %v5068 = vpop.f32.mrf.mxu0
  %v5069 = vpop.f32.mrf.mxu0
  %v5070 = vadd.f32 %v5029, %v5069
  %v5071 = vpop.f32.mrf.mxu0
  %5072 = vdwg.mxu0
  %5073 = vmatprep.subr.bf16.mxu0 0
  %5074 = vmatpush1.bf16.msra.mxu0 %v1699
  %5075 = vmatprep.subr.bf16.mxu0 0
  %5076 = vmatpush1.bf16.msra.mxu0 %v1698
  %5077 = vmatprep.subr.bf16.mxu0 0
  %5078 = vmatpush1.bf16.msra.mxu0 %v1697
  %5079 = vmatprep.subr.bf16.mxu0 0
  %5080 = vmatpush1.bf16.msra.mxu0 %v1696
  %5081 = vmatprep.subr.bf16.mxu0 0
  %5082 = vmatpush1.bf16.msra.mxu0 %v1695
  %5083 = vmatprep.subr.bf16.mxu0 0
  %5084 = vmatpush1.bf16.msra.mxu0 %v1694
  %5085 = vmatprep.subr.bf16.mxu0 0
  %5086 = vmatpush1.bf16.msra.mxu0 %v1693
  %5087 = vmatprep.subr.bf16.mxu0 0
  %5088 = vmatpush1.bf16.msra.mxu0 %v1692
  %5089 = vmatprep.subr.bf16.mxu0 0
  %5090 = vmatpush2.bf16.msra.mxu0 %v1707
  %5091 = vmatprep.subr.bf16.mxu0 0
  %5092 = vmatpush2.bf16.msra.mxu0 %v1706
  %5093 = vmatprep.subr.bf16.mxu0 0
  %5094 = vmatpush2.bf16.msra.mxu0 %v1705
  %5095 = vmatprep.subr.bf16.mxu0 0
  %5096 = vmatpush2.bf16.msra.mxu0 %v1704
  %5097 = vmatprep.subr.bf16.mxu0 0
  %5098 = vmatpush2.bf16.msra.mxu0 %v1703
  %5099 = vmatprep.subr.bf16.mxu0 0
  %5100 = vmatpush2.bf16.msra.mxu0 %v1702
  %5101 = vmatprep.subr.bf16.mxu0 0
  %5102 = vmatpush2.bf16.msra.mxu0 %v1701
  %5103 = vmatprep.subr.bf16.mxu0 0
  %5104 = vmatpush2.bf16.msra.mxu0 %v1700
  %5105 = vmatprep.mubr.bf16.mxu0 %v4552
  %5106 = vmatmul.mubr.bf16.gmra.mxu0 %v4551
  %v5107 = vpop.f32.mrf.mxu0
  %v5108 = vadd.f32 %v5067, %v5107
  %v5109 = vpop.f32.mrf.mxu0
  %v5110 = vpop.f32.mrf.mxu0
  %v5111 = vadd.f32 %v5070, %v5110
  %v5112 = vpop.f32.mrf.mxu0
  %5113 = vdwg.mxu0
  %5114 = vmatprep.subr.bf16.mxu0 0
  %5115 = vmatpush1.bf16.msra.mxu0 %v1715
  %5116 = vmatprep.subr.bf16.mxu0 0
  %5117 = vmatpush1.bf16.msra.mxu0 %v1714
  %5118 = vmatprep.subr.bf16.mxu0 0
  %5119 = vmatpush1.bf16.msra.mxu0 %v1713
  %5120 = vmatprep.subr.bf16.mxu0 0
  %5121 = vmatpush1.bf16.msra.mxu0 %v1712
  %5122 = vmatprep.subr.bf16.mxu0 0
  %5123 = vmatpush1.bf16.msra.mxu0 %v1711
  %5124 = vmatprep.subr.bf16.mxu0 0
  %5125 = vmatpush1.bf16.msra.mxu0 %v1710
  %5126 = vmatprep.subr.bf16.mxu0 0
  %5127 = vmatpush1.bf16.msra.mxu0 %v1709
  %5128 = vmatprep.subr.bf16.mxu0 0
  %5129 = vmatpush1.bf16.msra.mxu0 %v1708
  %5130 = vmatprep.subr.bf16.mxu0 0
  %5131 = vmatpush2.bf16.msra.mxu0 0
  %5132 = vmatprep.subr.bf16.mxu0 0
  %5133 = vmatpush2.bf16.msra.mxu0 0
  %5134 = vmatprep.subr.bf16.mxu0 0
  %5135 = vmatpush2.bf16.msra.mxu0 0
  %5136 = vmatprep.subr.bf16.mxu0 0
  %5137 = vmatpush2.bf16.msra.mxu0 0
  %5138 = vmatprep.subr.bf16.mxu0 0
  %5139 = vmatpush2.bf16.msra.mxu0 0
  %5140 = vmatprep.subr.bf16.mxu0 0
  %5141 = vmatpush2.bf16.msra.mxu0 0
  %5142 = vmatprep.subr.bf16.mxu0 0
  %5143 = vmatpush2.bf16.msra.mxu0 0
  %5144 = vmatprep.subr.bf16.mxu0 0
  %5145 = vmatpush2.bf16.msra.mxu0 0
  %5146 = vmatprep.mubr.bf16.mxu0 0
  %5147 = vmatmul.mubr.bf16.gmra.mxu0 %v4553
  %v5148 = vpop.f32.mrf.mxu0
  %v5149 = vadd.f32 %v5108, %v5148
  %v5150 = vpop.f32.mrf.mxu0
  %v5151 = vpop.f32.mrf.mxu0
  %v5152 = vadd.f32 %v5111, %v5151
  %v5153 = vpop.f32.mrf.mxu0
  %5154 = vdwg.mxu0
  %v5155 = vmax.f32 %v5149, 0.0
  %v5156 = vmax.f32 %v5152, 0.0
  %v5157 = vpack.c.bf16 %v5156, %v5155
  %s5158 = scalar_lea.vmem %s3, 384
  %v5159 = vld [vmem:[%s5158] sm:$0xff]
  %v5160 = vld [vmem:[%s5158 + $0x8] sm:$0xff]
  %v5161 = vld [vmem:[%s5158 + $0x10] sm:$0xff]
  %v5162 = vld [vmem:[%s5158 + $0x18] sm:$0xff]
  %v5163 = vld [vmem:[%s5158 + $0x20] sm:$0xff]
  %v5164 = vld [vmem:[%s5158 + $0x28] sm:$0xff]
  %v5165 = vld [vmem:[%s5158 + $0x30] sm:$0xff]
  %v5166 = vld [vmem:[%s5158 + $0x38] sm:$0xff]
  %v5167 = vld [vmem:[%s5158 + $0x40] sm:$0xff]
  %v5168 = vld [vmem:[%s5158 + $0x48] sm:$0xff]
  %v5169 = vld [vmem:[%s5158 + $0x50] sm:$0xff]
  %v5170 = vld [vmem:[%s5158 + $0x58] sm:$0xff]
  %v5171 = vld [vmem:[%s5158 + $0x60] sm:$0xff]
  %v5172 = vld [vmem:[%s5158 + $0x68] sm:$0xff]
  %v5173 = vld [vmem:[%s5158 + $0x70] sm:$0xff]
  %v5174 = vld [vmem:[%s5158 + $0x78] sm:$0xff]
  %v5191 = vunpack.c.l.b16 %v5159
  %v5192 = vunpack.c.h.b16 %v5159
  %v5193 = vunpack.c.l.b16 %v5160
  %v5194 = vunpack.c.h.b16 %v5160
  %v5195 = vunpack.c.l.b16 %v5161
  %v5196 = vunpack.c.h.b16 %v5161
  %v5197 = vunpack.c.l.b16 %v5162
  %v5198 = vunpack.c.h.b16 %v5162
  %v5199 = vunpack.c.l.b16 %v5163
  %v5200 = vunpack.c.h.b16 %v5163
  %v5201 = vunpack.c.l.b16 %v5164
  %v5202 = vunpack.c.h.b16 %v5164
  %v5203 = vunpack.c.l.b16 %v5165
  %v5204 = vunpack.c.h.b16 %v5165
  %v5205 = vunpack.c.l.b16 %v5166
  %v5206 = vunpack.c.h.b16 %v5166
  %v5207 = vunpack.c.l.b16 %v5167
  %v5208 = vunpack.c.h.b16 %v5167
  %v5209 = vunpack.c.l.b16 %v5168
  %v5210 = vunpack.c.h.b16 %v5168
  %v5211 = vunpack.c.l.b16 %v5169
  %v5212 = vunpack.c.h.b16 %v5169
  %v5213 = vunpack.c.l.b16 %v5170
  %v5214 = vunpack.c.h.b16 %v5170
  %v5215 = vunpack.c.l.b16 %v5171
  %v5216 = vunpack.c.h.b16 %v5171
  %v5217 = vunpack.c.l.b16 %v5172
  %v5218 = vunpack.c.h.b16 %v5172
  %v5219 = vunpack.c.l.b16 %v5173
  %v5220 = vunpack.c.h.b16 %v5173
  %v5221 = vunpack.c.l.b16 %v5174
  %v5222 = vunpack.c.h.b16 %v5174
  %v5223 = vpack.c.b16 %v5193, %v5191
  %v5224 = vpack.c.b16 %v5194, %v5192
  %v5225 = vpack.c.b16 %v5197, %v5195
  %v5226 = vpack.c.b16 %v5198, %v5196
  %v5227 = vpack.c.b16 %v5201, %v5199
  %v5228 = vpack.c.b16 %v5202, %v5200
  %v5229 = vpack.c.b16 %v5205, %v5203
  %v5230 = vpack.c.b16 %v5206, %v5204
  %v5231 = vpack.c.b16 %v5209, %v5207
  %v5232 = vpack.c.b16 %v5210, %v5208
  %v5233 = vpack.c.b16 %v5213, %v5211
  %v5234 = vpack.c.b16 %v5214, %v5212
  %v5235 = vpack.c.b16 %v5217, %v5215
  %v5236 = vpack.c.b16 %v5218, %v5216
  %v5237 = vpack.c.b16 %v5221, %v5219
  %v5238 = vpack.c.b16 %v5222, %v5220
  %5255 = vmatprep.subr.bf16.mxu0 %v5238
  %5256 = vmatpush1.bf16.msra.mxu0 %v5237
  %5257 = vmatprep.subr.bf16.mxu0 %v5236
  %5258 = vmatpush1.bf16.msra.mxu0 %v5235
  %5259 = vmatprep.subr.bf16.mxu0 %v5234
  %5260 = vmatpush1.bf16.msra.mxu0 %v5233
  %5261 = vmatprep.subr.bf16.mxu0 %v5232
  %5262 = vmatpush1.bf16.msra.mxu0 %v5231
  %5263 = vmatprep.subr.bf16.mxu0 %v5230
  %5264 = vmatpush1.bf16.msra.mxu0 %v5229
  %5265 = vmatprep.subr.bf16.mxu0 %v5228
  %5266 = vmatpush1.bf16.msra.mxu0 %v5227
  %5267 = vmatprep.subr.bf16.mxu0 %v5226
  %5268 = vmatpush1.bf16.msra.mxu0 %v5225
  %5269 = vmatprep.subr.bf16.mxu0 %v5224
  %5270 = vmatpush1.bf16.msra.mxu0 %v5223
  %5271 = vmatprep.subr.bf16.mxu0 0
  %5272 = vmatpush2.bf16.msra.mxu0 0
  %5273 = vmatprep.subr.bf16.mxu0 0
  %5274 = vmatpush2.bf16.msra.mxu0 0
  %5275 = vmatprep.subr.bf16.mxu0 0
  %5276 = vmatpush2.bf16.msra.mxu0 0
  %5277 = vmatprep.subr.bf16.mxu0 0
  %5278 = vmatpush2.bf16.msra.mxu0 0
  %5279 = vmatprep.subr.bf16.mxu0 0
  %5280 = vmatpush2.bf16.msra.mxu0 0
  %5281 = vmatprep.subr.bf16.mxu0 0
  %5282 = vmatpush2.bf16.msra.mxu0 0
  %5283 = vmatprep.subr.bf16.mxu0 0
  %5284 = vmatpush2.bf16.msra.mxu0 0
  %5285 = vmatprep.subr.bf16.mxu0 0
  %5286 = vmatpush2.bf16.msra.mxu0 0
  %5287 = vmatprep.mubr.bf16.mxu0 0
  %5288 = vmatmul.mubr.bf16.gmra.mxu0 %v5157
  %v5289 = vpop.f32.mrf.mxu0
  %v5290 = vadd.f32 0.0, %v5289
  %v5291 = vpop.f32.mrf.mxu0
  %v5292 = vadd.f32 0.0, %v5291
  %v5293 = vpop.f32.mrf.mxu0
  %v5294 = vadd.f32 0.0, %v5293
  %v5295 = vpop.f32.mrf.mxu0
  %v5296 = vadd.f32 0.0, %v5295
  %5297 = vdwg.mxu0
  %v5298 = vadd.f32 %v4412, %v5290
  %v5299 = vadd.f32 %v4413, %v5292
  %v5300 = vadd.f32 %v4414, %v5294
  %v5301 = vadd.f32 %v4415, %v5296
  %s5302 = scalar_lea.vmem %s0, 864
  %v5303 = vld [vmem:[%s5302] sm:$0xff]
  %v5304 = vld [vmem:[%s5302 + $0x8] sm:$0xff]
  %v5305 = vld [vmem:[%s5302 + $0x10] sm:$0xff]
  %v5306 = vld [vmem:[%s5302 + $0x18] sm:$0xff]
  %v5307 = vld [vmem:[%s5302 + $0x20] sm:$0xff]
  %v5308 = vld [vmem:[%s5302 + $0x28] sm:$0xff]
  %v5309 = vld [vmem:[%s5302 + $0x30] sm:$0xff]
  %v5310 = vld [vmem:[%s5302 + $0x38] sm:$0xff]
  %v5311 = vld [vmem:[%s5302 + $0x40] sm:$0xff]
  %v5312 = vld [vmem:[%s5302 + $0x48] sm:$0xff]
  %v5313 = vld [vmem:[%s5302 + $0x50] sm:$0xff]
  %v5314 = vld [vmem:[%s5302 + $0x58] sm:$0xff]
  %v5315 = vld [vmem:[%s5302 + $0x60] sm:$0xff]
  %v5316 = vld [vmem:[%s5302 + $0x68] sm:$0xf]
  %v5317 = vld [vmem:[%s5302 + $0x6c] sm:$0xff]
  %v5318 = vld [vmem:[%s5302 + $0x74] sm:$0xff]
  %v5319 = vld [vmem:[%s5302 + $0x7c] sm:$0xff]
  %v5320 = vld [vmem:[%s5302 + $0x84] sm:$0xff]
  %v5321 = vld [vmem:[%s5302 + $0x8c] sm:$0xff]
  %v5322 = vld [vmem:[%s5302 + $0x94] sm:$0xff]
  %v5323 = vld [vmem:[%s5302 + $0x9c] sm:$0xff]
  %v5324 = vld [vmem:[%s5302 + $0xa4] sm:$0xff]
  %v5325 = vld [vmem:[%s5302 + $0xac] sm:$0xff]
  %v5326 = vld [vmem:[%s5302 + $0xb4] sm:$0xff]
  %v5327 = vld [vmem:[%s5302 + $0xbc] sm:$0xff]
  %v5328 = vld [vmem:[%s5302 + $0xc4] sm:$0xff]
  %v5329 = vld [vmem:[%s5302 + $0xcc] sm:$0xff]
  %v5330 = vld [vmem:[%s5302 + $0xd4] sm:$0xf]
  %v5359 = vunpack.c.l.b16 %v5303
  %v5360 = vunpack.c.h.b16 %v5303
  %v5361 = vunpack.c.l.b16 %v5304
  %v5362 = vunpack.c.h.b16 %v5304
  %v5363 = vunpack.c.l.b16 %v5305
  %v5364 = vunpack.c.h.b16 %v5305
  %v5365 = vunpack.c.l.b16 %v5306
  %v5366 = vunpack.c.h.b16 %v5306
  %v5367 = vunpack.c.l.b16 %v5307
  %v5368 = vunpack.c.h.b16 %v5307
  %v5369 = vunpack.c.l.b16 %v5308
  %v5370 = vunpack.c.h.b16 %v5308
  %v5371 = vunpack.c.l.b16 %v5309
  %v5372 = vunpack.c.h.b16 %v5309
  %v5373 = vunpack.c.l.b16 %v5310
  %v5374 = vunpack.c.h.b16 %v5310
  %v5375 = vunpack.c.l.b16 %v5311
  %v5376 = vunpack.c.h.b16 %v5311
  %v5377 = vunpack.c.l.b16 %v5312
  %v5378 = vunpack.c.h.b16 %v5312
  %v5379 = vunpack.c.l.b16 %v5313
  %v5380 = vunpack.c.h.b16 %v5313
  %v5381 = vunpack.c.l.b16 %v5314
  %v5382 = vunpack.c.h.b16 %v5314
  %v5383 = vunpack.c.l.b16 %v5315
  %v5384 = vunpack.c.h.b16 %v5315
  %v5385 = vunpack.c.l.b16 %v5316
  %v5386 = vunpack.c.l.b16 %v5317
  %v5387 = vunpack.c.h.b16 %v5317
  %v5388 = vunpack.c.l.b16 %v5318
  %v5389 = vunpack.c.h.b16 %v5318
  %v5390 = vunpack.c.l.b16 %v5319
  %v5391 = vunpack.c.h.b16 %v5319
  %v5392 = vunpack.c.l.b16 %v5320
  %v5393 = vunpack.c.h.b16 %v5320
  %v5394 = vunpack.c.l.b16 %v5321
  %v5395 = vunpack.c.h.b16 %v5321
  %v5396 = vunpack.c.l.b16 %v5322
  %v5397 = vunpack.c.h.b16 %v5322
  %v5398 = vunpack.c.l.b16 %v5323
  %v5399 = vunpack.c.h.b16 %v5323
  %v5400 = vunpack.c.l.b16 %v5324
  %v5401 = vunpack.c.h.b16 %v5324
  %v5402 = vunpack.c.l.b16 %v5325
  %v5403 = vunpack.c.h.b16 %v5325
  %v5404 = vunpack.c.l.b16 %v5326
  %v5405 = vunpack.c.h.b16 %v5326
  %v5406 = vunpack.c.l.b16 %v5327
  %v5407 = vunpack.c.h.b16 %v5327
  %v5408 = vunpack.c.l.b16 %v5328
  %v5409 = vunpack.c.h.b16 %v5328
  %v5410 = vunpack.c.l.b16 %v5329
  %v5411 = vunpack.c.h.b16 %v5329
  %v5412 = vunpack.c.l.b16 %v5330
  %v5413 = vpack.c.b16 %v5386, %v5359
  %v5414 = vpack.c.b16 %v5387, %v5360
  %v5415 = vpack.c.b16 %v5388, %v5361
  %v5416 = vpack.c.b16 %v5389, %v5362
  %v5417 = vpack.c.b16 %v5390, %v5363
  %v5418 = vpack.c.b16 %v5391, %v5364
  %v5419 = vpack.c.b16 %v5392, %v5365
  %v5420 = vpack.c.b16 %v5393, %v5366
  %v5421 = vpack.c.b16 %v5394, %v5367
  %v5422 = vpack.c.b16 %v5395, %v5368
  %v5423 = vpack.c.b16 %v5396, %v5369
  %v5424 = vpack.c.b16 %v5397, %v5370
  %v5425 = vpack.c.b16 %v5398, %v5371
  %v5426 = vpack.c.b16 %v5399, %v5372
  %v5427 = vpack.c.b16 %v5400, %v5373
  %v5428 = vpack.c.b16 %v5401, %v5374
  %v5429 = vpack.c.b16 %v5402, %v5375
  %v5430 = vpack.c.b16 %v5403, %v5376
  %v5431 = vpack.c.b16 %v5404, %v5377
  %v5432 = vpack.c.b16 %v5405, %v5378
  %v5433 = vpack.c.b16 %v5406, %v5379
  %v5434 = vpack.c.b16 %v5407, %v5380
  %v5435 = vpack.c.b16 %v5408, %v5381
  %v5436 = vpack.c.b16 %v5409, %v5382
  %v5437 = vpack.c.b16 %v5410, %v5383
  %v5438 = vpack.c.b16 %v5411, %v5384
  %v5439 = vpack.c.b16 %v5412, %v5385
  %5467 = vmatprep.subr.bf16.mxu0 0
  %5468 = vmatpush1.bf16.msra.mxu0 %v1507
  %5469 = vmatprep.subr.bf16.mxu0 0
  %5470 = vmatpush1.bf16.msra.mxu0 %v1506
  %5471 = vmatprep.subr.bf16.mxu0 0
  %5472 = vmatpush1.bf16.msra.mxu0 %v1505
  %5473 = vmatprep.subr.bf16.mxu0 0
  %5474 = vmatpush1.bf16.msra.mxu0 %v1504
  %5475 = vmatprep.subr.bf16.mxu0 0
  %5476 = vmatpush1.bf16.msra.mxu0 %v1503
  %5477 = vmatprep.subr.bf16.mxu0 0
  %5478 = vmatpush1.bf16.msra.mxu0 %v1502
  %5479 = vmatprep.subr.bf16.mxu0 0
  %5480 = vmatpush1.bf16.msra.mxu0 %v1501
  %5481 = vmatprep.subr.bf16.mxu0 0
  %5482 = vmatpush1.bf16.msra.mxu0 %v1500
  %5483 = vmatprep.subr.bf16.mxu0 0
  %5484 = vmatpush2.bf16.msra.mxu0 %v1515
  %5485 = vmatprep.subr.bf16.mxu0 0
  %5486 = vmatpush2.bf16.msra.mxu0 %v1514
  %5487 = vmatprep.subr.bf16.mxu0 0
  %5488 = vmatpush2.bf16.msra.mxu0 %v1513
  %5489 = vmatprep.subr.bf16.mxu0 0
  %5490 = vmatpush2.bf16.msra.mxu0 %v1512
  %5491 = vmatprep.subr.bf16.mxu0 0
  %5492 = vmatpush2.bf16.msra.mxu0 %v1511
  %5493 = vmatprep.subr.bf16.mxu0 0
  %5494 = vmatpush2.bf16.msra.mxu0 %v1510
  %5495 = vmatprep.subr.bf16.mxu0 0
  %5496 = vmatpush2.bf16.msra.mxu0 %v1509
  %5497 = vmatprep.subr.bf16.mxu0 0
  %5498 = vmatpush2.bf16.msra.mxu0 %v1508
  %5499 = vmatprep.mubr.bf16.mxu0 %v5414
  %5500 = vmatmul.mubr.bf16.gmra.mxu0 %v5413
  %v5501 = vpop.f32.mrf.mxu0
  %v5502 = vadd.f32 %v498, %v5501
  %v5503 = vpop.f32.mrf.mxu0
  %v5504 = vpop.f32.mrf.mxu0
  %v5505 = vadd.f32 %v498, %v5504
  %v5506 = vpop.f32.mrf.mxu0
  %5507 = vdwg.mxu0
  %5508 = vmatprep.subr.bf16.mxu0 0
  %5509 = vmatpush1.bf16.msra.mxu0 %v1523
  %5510 = vmatprep.subr.bf16.mxu0 0
  %5511 = vmatpush1.bf16.msra.mxu0 %v1522
  %5512 = vmatprep.subr.bf16.mxu0 0
  %5513 = vmatpush1.bf16.msra.mxu0 %v1521
  %5514 = vmatprep.subr.bf16.mxu0 0
  %5515 = vmatpush1.bf16.msra.mxu0 %v1520
  %5516 = vmatprep.subr.bf16.mxu0 0
  %5517 = vmatpush1.bf16.msra.mxu0 %v1519
  %5518 = vmatprep.subr.bf16.mxu0 0
  %5519 = vmatpush1.bf16.msra.mxu0 %v1518
  %5520 = vmatprep.subr.bf16.mxu0 0
  %5521 = vmatpush1.bf16.msra.mxu0 %v1517
  %5522 = vmatprep.subr.bf16.mxu0 0
  %5523 = vmatpush1.bf16.msra.mxu0 %v1516
  %5524 = vmatprep.subr.bf16.mxu0 0
  %5525 = vmatpush2.bf16.msra.mxu0 %v1531
  %5526 = vmatprep.subr.bf16.mxu0 0
  %5527 = vmatpush2.bf16.msra.mxu0 %v1530
  %5528 = vmatprep.subr.bf16.mxu0 0
  %5529 = vmatpush2.bf16.msra.mxu0 %v1529
  %5530 = vmatprep.subr.bf16.mxu0 0
  %5531 = vmatpush2.bf16.msra.mxu0 %v1528
  %5532 = vmatprep.subr.bf16.mxu0 0
  %5533 = vmatpush2.bf16.msra.mxu0 %v1527
  %5534 = vmatprep.subr.bf16.mxu0 0
  %5535 = vmatpush2.bf16.msra.mxu0 %v1526
  %5536 = vmatprep.subr.bf16.mxu0 0
  %5537 = vmatpush2.bf16.msra.mxu0 %v1525
  %5538 = vmatprep.subr.bf16.mxu0 0
  %5539 = vmatpush2.bf16.msra.mxu0 %v1524
  %5540 = vmatprep.mubr.bf16.mxu0 %v5416
  %5541 = vmatmul.mubr.bf16.gmra.mxu0 %v5415
  %v5542 = vpop.f32.mrf.mxu0
  %v5543 = vadd.f32 %v5502, %v5542
  %v5544 = vpop.f32.mrf.mxu0
  %v5545 = vpop.f32.mrf.mxu0
  %v5546 = vadd.f32 %v5505, %v5545
  %v5547 = vpop.f32.mrf.mxu0
  %5548 = vdwg.mxu0
  %5549 = vmatprep.subr.bf16.mxu0 0
  %5550 = vmatpush1.bf16.msra.mxu0 %v1539
  %5551 = vmatprep.subr.bf16.mxu0 0
  %5552 = vmatpush1.bf16.msra.mxu0 %v1538
  %5553 = vmatprep.subr.bf16.mxu0 0
  %5554 = vmatpush1.bf16.msra.mxu0 %v1537
  %5555 = vmatprep.subr.bf16.mxu0 0
  %5556 = vmatpush1.bf16.msra.mxu0 %v1536
  %5557 = vmatprep.subr.bf16.mxu0 0
  %5558 = vmatpush1.bf16.msra.mxu0 %v1535
  %5559 = vmatprep.subr.bf16.mxu0 0
  %5560 = vmatpush1.bf16.msra.mxu0 %v1534
  %5561 = vmatprep.subr.bf16.mxu0 0
  %5562 = vmatpush1.bf16.msra.mxu0 %v1533
  %5563 = vmatprep.subr.bf16.mxu0 0
  %5564 = vmatpush1.bf16.msra.mxu0 %v1532
  %5565 = vmatprep.subr.bf16.mxu0 0
  %5566 = vmatpush2.bf16.msra.mxu0 %v1547
  %5567 = vmatprep.subr.bf16.mxu0 0
  %5568 = vmatpush2.bf16.msra.mxu0 %v1546
  %5569 = vmatprep.subr.bf16.mxu0 0
  %5570 = vmatpush2.bf16.msra.mxu0 %v1545
  %5571 = vmatprep.subr.bf16.mxu0 0
  %5572 = vmatpush2.bf16.msra.mxu0 %v1544
  %5573 = vmatprep.subr.bf16.mxu0 0
  %5574 = vmatpush2.bf16.msra.mxu0 %v1543
  %5575 = vmatprep.subr.bf16.mxu0 0
  %5576 = vmatpush2.bf16.msra.mxu0 %v1542
  %5577 = vmatprep.subr.bf16.mxu0 0
  %5578 = vmatpush2.bf16.msra.mxu0 %v1541
  %5579 = vmatprep.subr.bf16.mxu0 0
  %5580 = vmatpush2.bf16.msra.mxu0 %v1540
  %5581 = vmatprep.mubr.bf16.mxu0 %v5418
  %5582 = vmatmul.mubr.bf16.gmra.mxu0 %v5417
  %v5583 = vpop.f32.mrf.mxu0
  %v5584 = vadd.f32 %v5543, %v5583
  %v5585 = vpop.f32.mrf.mxu0
  %v5586 = vpop.f32.mrf.mxu0
  %v5587 = vadd.f32 %v5546, %v5586
  %v5588 = vpop.f32.mrf.mxu0
  %5589 = vdwg.mxu0
  %5590 = vmatprep.subr.bf16.mxu0 0
  %5591 = vmatpush1.bf16.msra.mxu0 %v1555
  %5592 = vmatprep.subr.bf16.mxu0 0
  %5593 = vmatpush1.bf16.msra.mxu0 %v1554
  %5594 = vmatprep.subr.bf16.mxu0 0
  %5595 = vmatpush1.bf16.msra.mxu0 %v1553
  %5596 = vmatprep.subr.bf16.mxu0 0
  %5597 = vmatpush1.bf16.msra.mxu0 %v1552
  %5598 = vmatprep.subr.bf16.mxu0 0
  %5599 = vmatpush1.bf16.msra.mxu0 %v1551
  %5600 = vmatprep.subr.bf16.mxu0 0
  %5601 = vmatpush1.bf16.msra.mxu0 %v1550
  %5602 = vmatprep.subr.bf16.mxu0 0
  %5603 = vmatpush1.bf16.msra.mxu0 %v1549
  %5604 = vmatprep.subr.bf16.mxu0 0
  %5605 = vmatpush1.bf16.msra.mxu0 %v1548
  %5606 = vmatprep.subr.bf16.mxu0 0
  %5607 = vmatpush2.bf16.msra.mxu0 %v1563
  %5608 = vmatprep.subr.bf16.mxu0 0
  %5609 = vmatpush2.bf16.msra.mxu0 %v1562
  %5610 = vmatprep.subr.bf16.mxu0 0
  %5611 = vmatpush2.bf16.msra.mxu0 %v1561
  %5612 = vmatprep.subr.bf16.mxu0 0
  %5613 = vmatpush2.bf16.msra.mxu0 %v1560
  %5614 = vmatprep.subr.bf16.mxu0 0
  %5615 = vmatpush2.bf16.msra.mxu0 %v1559
  %5616 = vmatprep.subr.bf16.mxu0 0
  %5617 = vmatpush2.bf16.msra.mxu0 %v1558
  %5618 = vmatprep.subr.bf16.mxu0 0
  %5619 = vmatpush2.bf16.msra.mxu0 %v1557
  %5620 = vmatprep.subr.bf16.mxu0 0
  %5621 = vmatpush2.bf16.msra.mxu0 %v1556
  %5622 = vmatprep.mubr.bf16.mxu0 %v5420
  %5623 = vmatmul.mubr.bf16.gmra.mxu0 %v5419
  %v5624 = vpop.f32.mrf.mxu0
  %v5625 = vadd.f32 %v5584, %v5624
  %v5626 = vpop.f32.mrf.mxu0
  %v5627 = vpop.f32.mrf.mxu0
  %v5628 = vadd.f32 %v5587, %v5627
  %v5629 = vpop.f32.mrf.mxu0
  %5630 = vdwg.mxu0
  %5631 = vmatprep.subr.bf16.mxu0 0
  %5632 = vmatpush1.bf16.msra.mxu0 %v1571
  %5633 = vmatprep.subr.bf16.mxu0 0
  %5634 = vmatpush1.bf16.msra.mxu0 %v1570
  %5635 = vmatprep.subr.bf16.mxu0 0
  %5636 = vmatpush1.bf16.msra.mxu0 %v1569
  %5637 = vmatprep.subr.bf16.mxu0 0
  %5638 = vmatpush1.bf16.msra.mxu0 %v1568
  %5639 = vmatprep.subr.bf16.mxu0 0
  %5640 = vmatpush1.bf16.msra.mxu0 %v1567
  %5641 = vmatprep.subr.bf16.mxu0 0
  %5642 = vmatpush1.bf16.msra.mxu0 %v1566
  %5643 = vmatprep.subr.bf16.mxu0 0
  %5644 = vmatpush1.bf16.msra.mxu0 %v1565
  %5645 = vmatprep.subr.bf16.mxu0 0
  %5646 = vmatpush1.bf16.msra.mxu0 %v1564
  %5647 = vmatprep.subr.bf16.mxu0 0
  %5648 = vmatpush2.bf16.msra.mxu0 %v1579
  %5649 = vmatprep.subr.bf16.mxu0 0
  %5650 = vmatpush2.bf16.msra.mxu0 %v1578
  %5651 = vmatprep.subr.bf16.mxu0 0
  %5652 = vmatpush2.bf16.msra.mxu0 %v1577
  %5653 = vmatprep.subr.bf16.mxu0 0
  %5654 = vmatpush2.bf16.msra.mxu0 %v1576
  %5655 = vmatprep.subr.bf16.mxu0 0
  %5656 = vmatpush2.bf16.msra.mxu0 %v1575
  %5657 = vmatprep.subr.bf16.mxu0 0
  %5658 = vmatpush2.bf16.msra.mxu0 %v1574
  %5659 = vmatprep.subr.bf16.mxu0 0
  %5660 = vmatpush2.bf16.msra.mxu0 %v1573
  %5661 = vmatprep.subr.bf16.mxu0 0
  %5662 = vmatpush2.bf16.msra.mxu0 %v1572
  %5663 = vmatprep.mubr.bf16.mxu0 %v5422
  %5664 = vmatmul.mubr.bf16.gmra.mxu0 %v5421
  %v5665 = vpop.f32.mrf.mxu0
  %v5666 = vadd.f32 %v5625, %v5665
  %v5667 = vpop.f32.mrf.mxu0
  %v5668 = vpop.f32.mrf.mxu0
  %v5669 = vadd.f32 %v5628, %v5668
  %v5670 = vpop.f32.mrf.mxu0
  %5671 = vdwg.mxu0
  %5672 = vmatprep.subr.bf16.mxu0 0
  %5673 = vmatpush1.bf16.msra.mxu0 %v1587
  %5674 = vmatprep.subr.bf16.mxu0 0
  %5675 = vmatpush1.bf16.msra.mxu0 %v1586
  %5676 = vmatprep.subr.bf16.mxu0 0
  %5677 = vmatpush1.bf16.msra.mxu0 %v1585
  %5678 = vmatprep.subr.bf16.mxu0 0
  %5679 = vmatpush1.bf16.msra.mxu0 %v1584
  %5680 = vmatprep.subr.bf16.mxu0 0
  %5681 = vmatpush1.bf16.msra.mxu0 %v1583
  %5682 = vmatprep.subr.bf16.mxu0 0
  %5683 = vmatpush1.bf16.msra.mxu0 %v1582
  %5684 = vmatprep.subr.bf16.mxu0 0
  %5685 = vmatpush1.bf16.msra.mxu0 %v1581
  %5686 = vmatprep.subr.bf16.mxu0 0
  %5687 = vmatpush1.bf16.msra.mxu0 %v1580
  %5688 = vmatprep.subr.bf16.mxu0 0
  %5689 = vmatpush2.bf16.msra.mxu0 %v1595
  %5690 = vmatprep.subr.bf16.mxu0 0
  %5691 = vmatpush2.bf16.msra.mxu0 %v1594
  %5692 = vmatprep.subr.bf16.mxu0 0
  %5693 = vmatpush2.bf16.msra.mxu0 %v1593
  %5694 = vmatprep.subr.bf16.mxu0 0
  %5695 = vmatpush2.bf16.msra.mxu0 %v1592
  %5696 = vmatprep.subr.bf16.mxu0 0
  %5697 = vmatpush2.bf16.msra.mxu0 %v1591
  %5698 = vmatprep.subr.bf16.mxu0 0
  %5699 = vmatpush2.bf16.msra.mxu0 %v1590
  %5700 = vmatprep.subr.bf16.mxu0 0
  %5701 = vmatpush2.bf16.msra.mxu0 %v1589
  %5702 = vmatprep.subr.bf16.mxu0 0
  %5703 = vmatpush2.bf16.msra.mxu0 %v1588
  %5704 = vmatprep.mubr.bf16.mxu0 %v5424
  %5705 = vmatmul.mubr.bf16.gmra.mxu0 %v5423
  %v5706 = vpop.f32.mrf.mxu0
  %v5707 = vadd.f32 %v5666, %v5706
  %v5708 = vpop.f32.mrf.mxu0
  %v5709 = vpop.f32.mrf.mxu0
  %v5710 = vadd.f32 %v5669, %v5709
  %v5711 = vpop.f32.mrf.mxu0
  %5712 = vdwg.mxu0
  %5713 = vmatprep.subr.bf16.mxu0 0
  %5714 = vmatpush1.bf16.msra.mxu0 %v1603
  %5715 = vmatprep.subr.bf16.mxu0 0
  %5716 = vmatpush1.bf16.msra.mxu0 %v1602
  %5717 = vmatprep.subr.bf16.mxu0 0
  %5718 = vmatpush1.bf16.msra.mxu0 %v1601
  %5719 = vmatprep.subr.bf16.mxu0 0
  %5720 = vmatpush1.bf16.msra.mxu0 %v1600
  %5721 = vmatprep.subr.bf16.mxu0 0
  %5722 = vmatpush1.bf16.msra.mxu0 %v1599
  %5723 = vmatprep.subr.bf16.mxu0 0
  %5724 = vmatpush1.bf16.msra.mxu0 %v1598
  %5725 = vmatprep.subr.bf16.mxu0 0
  %5726 = vmatpush1.bf16.msra.mxu0 %v1597
  %5727 = vmatprep.subr.bf16.mxu0 0
  %5728 = vmatpush1.bf16.msra.mxu0 %v1596
  %5729 = vmatprep.subr.bf16.mxu0 0
  %5730 = vmatpush2.bf16.msra.mxu0 %v1611
  %5731 = vmatprep.subr.bf16.mxu0 0
  %5732 = vmatpush2.bf16.msra.mxu0 %v1610
  %5733 = vmatprep.subr.bf16.mxu0 0
  %5734 = vmatpush2.bf16.msra.mxu0 %v1609
  %5735 = vmatprep.subr.bf16.mxu0 0
  %5736 = vmatpush2.bf16.msra.mxu0 %v1608
  %5737 = vmatprep.subr.bf16.mxu0 0
  %5738 = vmatpush2.bf16.msra.mxu0 %v1607
  %5739 = vmatprep.subr.bf16.mxu0 0
  %5740 = vmatpush2.bf16.msra.mxu0 %v1606
  %5741 = vmatprep.subr.bf16.mxu0 0
  %5742 = vmatpush2.bf16.msra.mxu0 %v1605
  %5743 = vmatprep.subr.bf16.mxu0 0
  %5744 = vmatpush2.bf16.msra.mxu0 %v1604
  %5745 = vmatprep.mubr.bf16.mxu0 %v5426
  %5746 = vmatmul.mubr.bf16.gmra.mxu0 %v5425
  %v5747 = vpop.f32.mrf.mxu0
  %v5748 = vadd.f32 %v5707, %v5747
  %v5749 = vpop.f32.mrf.mxu0
  %v5750 = vpop.f32.mrf.mxu0
  %v5751 = vadd.f32 %v5710, %v5750
  %v5752 = vpop.f32.mrf.mxu0
  %5753 = vdwg.mxu0
  %5754 = vmatprep.subr.bf16.mxu0 0
  %5755 = vmatpush1.bf16.msra.mxu0 %v1619
  %5756 = vmatprep.subr.bf16.mxu0 0
  %5757 = vmatpush1.bf16.msra.mxu0 %v1618
  %5758 = vmatprep.subr.bf16.mxu0 0
  %5759 = vmatpush1.bf16.msra.mxu0 %v1617
  %5760 = vmatprep.subr.bf16.mxu0 0
  %5761 = vmatpush1.bf16.msra.mxu0 %v1616
  %5762 = vmatprep.subr.bf16.mxu0 0
  %5763 = vmatpush1.bf16.msra.mxu0 %v1615
  %5764 = vmatprep.subr.bf16.mxu0 0
  %5765 = vmatpush1.bf16.msra.mxu0 %v1614
  %5766 = vmatprep.subr.bf16.mxu0 0
  %5767 = vmatpush1.bf16.msra.mxu0 %v1613
  %5768 = vmatprep.subr.bf16.mxu0 0
  %5769 = vmatpush1.bf16.msra.mxu0 %v1612
  %5770 = vmatprep.subr.bf16.mxu0 0
  %5771 = vmatpush2.bf16.msra.mxu0 %v1627
  %5772 = vmatprep.subr.bf16.mxu0 0
  %5773 = vmatpush2.bf16.msra.mxu0 %v1626
  %5774 = vmatprep.subr.bf16.mxu0 0
  %5775 = vmatpush2.bf16.msra.mxu0 %v1625
  %5776 = vmatprep.subr.bf16.mxu0 0
  %5777 = vmatpush2.bf16.msra.mxu0 %v1624
  %5778 = vmatprep.subr.bf16.mxu0 0
  %5779 = vmatpush2.bf16.msra.mxu0 %v1623
  %5780 = vmatprep.subr.bf16.mxu0 0
  %5781 = vmatpush2.bf16.msra.mxu0 %v1622
  %5782 = vmatprep.subr.bf16.mxu0 0
  %5783 = vmatpush2.bf16.msra.mxu0 %v1621
  %5784 = vmatprep.subr.bf16.mxu0 0
  %5785 = vmatpush2.bf16.msra.mxu0 %v1620
  %5786 = vmatprep.mubr.bf16.mxu0 %v5428
  %5787 = vmatmul.mubr.bf16.gmra.mxu0 %v5427
  %v5788 = vpop.f32.mrf.mxu0
  %v5789 = vadd.f32 %v5748, %v5788
  %v5790 = vpop.f32.mrf.mxu0
  %v5791 = vpop.f32.mrf.mxu0
  %v5792 = vadd.f32 %v5751, %v5791
  %v5793 = vpop.f32.mrf.mxu0
  %5794 = vdwg.mxu0
  %5795 = vmatprep.subr.bf16.mxu0 0
  %5796 = vmatpush1.bf16.msra.mxu0 %v1635
  %5797 = vmatprep.subr.bf16.mxu0 0
  %5798 = vmatpush1.bf16.msra.mxu0 %v1634
  %5799 = vmatprep.subr.bf16.mxu0 0
  %5800 = vmatpush1.bf16.msra.mxu0 %v1633
  %5801 = vmatprep.subr.bf16.mxu0 0
  %5802 = vmatpush1.bf16.msra.mxu0 %v1632
  %5803 = vmatprep.subr.bf16.mxu0 0
  %5804 = vmatpush1.bf16.msra.mxu0 %v1631
  %5805 = vmatprep.subr.bf16.mxu0 0
  %5806 = vmatpush1.bf16.msra.mxu0 %v1630
  %5807 = vmatprep.subr.bf16.mxu0 0
  %5808 = vmatpush1.bf16.msra.mxu0 %v1629
  %5809 = vmatprep.subr.bf16.mxu0 0
  %5810 = vmatpush1.bf16.msra.mxu0 %v1628
  %5811 = vmatprep.subr.bf16.mxu0 0
  %5812 = vmatpush2.bf16.msra.mxu0 %v1643
  %5813 = vmatprep.subr.bf16.mxu0 0
  %5814 = vmatpush2.bf16.msra.mxu0 %v1642
  %5815 = vmatprep.subr.bf16.mxu0 0
  %5816 = vmatpush2.bf16.msra.mxu0 %v1641
  %5817 = vmatprep.subr.bf16.mxu0 0
  %5818 = vmatpush2.bf16.msra.mxu0 %v1640
  %5819 = vmatprep.subr.bf16.mxu0 0
  %5820 = vmatpush2.bf16.msra.mxu0 %v1639
  %5821 = vmatprep.subr.bf16.mxu0 0
  %5822 = vmatpush2.bf16.msra.mxu0 %v1638
  %5823 = vmatprep.subr.bf16.mxu0 0
  %5824 = vmatpush2.bf16.msra.mxu0 %v1637
  %5825 = vmatprep.subr.bf16.mxu0 0
  %5826 = vmatpush2.bf16.msra.mxu0 %v1636
  %5827 = vmatprep.mubr.bf16.mxu0 %v5430
  %5828 = vmatmul.mubr.bf16.gmra.mxu0 %v5429
  %v5829 = vpop.f32.mrf.mxu0
  %v5830 = vadd.f32 %v5789, %v5829
  %v5831 = vpop.f32.mrf.mxu0
  %v5832 = vpop.f32.mrf.mxu0
  %v5833 = vadd.f32 %v5792, %v5832
  %v5834 = vpop.f32.mrf.mxu0
  %5835 = vdwg.mxu0
  %5836 = vmatprep.subr.bf16.mxu0 0
  %5837 = vmatpush1.bf16.msra.mxu0 %v1651
  %5838 = vmatprep.subr.bf16.mxu0 0
  %5839 = vmatpush1.bf16.msra.mxu0 %v1650
  %5840 = vmatprep.subr.bf16.mxu0 0
  %5841 = vmatpush1.bf16.msra.mxu0 %v1649
  %5842 = vmatprep.subr.bf16.mxu0 0
  %5843 = vmatpush1.bf16.msra.mxu0 %v1648
  %5844 = vmatprep.subr.bf16.mxu0 0
  %5845 = vmatpush1.bf16.msra.mxu0 %v1647
  %5846 = vmatprep.subr.bf16.mxu0 0
  %5847 = vmatpush1.bf16.msra.mxu0 %v1646
  %5848 = vmatprep.subr.bf16.mxu0 0
  %5849 = vmatpush1.bf16.msra.mxu0 %v1645
  %5850 = vmatprep.subr.bf16.mxu0 0
  %5851 = vmatpush1.bf16.msra.mxu0 %v1644
  %5852 = vmatprep.subr.bf16.mxu0 0
  %5853 = vmatpush2.bf16.msra.mxu0 %v1659
  %5854 = vmatprep.subr.bf16.mxu0 0
  %5855 = vmatpush2.bf16.msra.mxu0 %v1658
  %5856 = vmatprep.subr.bf16.mxu0 0
  %5857 = vmatpush2.bf16.msra.mxu0 %v1657
  %5858 = vmatprep.subr.bf16.mxu0 0
  %5859 = vmatpush2.bf16.msra.mxu0 %v1656
  %5860 = vmatprep.subr.bf16.mxu0 0
  %5861 = vmatpush2.bf16.msra.mxu0 %v1655
  %5862 = vmatprep.subr.bf16.mxu0 0
  %5863 = vmatpush2.bf16.msra.mxu0 %v1654
  %5864 = vmatprep.subr.bf16.mxu0 0
  %5865 = vmatpush2.bf16.msra.mxu0 %v1653
  %5866 = vmatprep.subr.bf16.mxu0 0
  %5867 = vmatpush2.bf16.msra.mxu0 %v1652
  %5868 = vmatprep.mubr.bf16.mxu0 %v5432
  %5869 = vmatmul.mubr.bf16.gmra.mxu0 %v5431
  %v5870 = vpop.f32.mrf.mxu0
  %v5871 = vadd.f32 %v5830, %v5870
  %v5872 = vpop.f32.mrf.mxu0
  %v5873 = vpop.f32.mrf.mxu0
  %v5874 = vadd.f32 %v5833, %v5873
  %v5875 = vpop.f32.mrf.mxu0
  %5876 = vdwg.mxu0
  %5877 = vmatprep.subr.bf16.mxu0 0
  %5878 = vmatpush1.bf16.msra.mxu0 %v1667
  %5879 = vmatprep.subr.bf16.mxu0 0
  %5880 = vmatpush1.bf16.msra.mxu0 %v1666
  %5881 = vmatprep.subr.bf16.mxu0 0
  %5882 = vmatpush1.bf16.msra.mxu0 %v1665
  %5883 = vmatprep.subr.bf16.mxu0 0
  %5884 = vmatpush1.bf16.msra.mxu0 %v1664
  %5885 = vmatprep.subr.bf16.mxu0 0
  %5886 = vmatpush1.bf16.msra.mxu0 %v1663
  %5887 = vmatprep.subr.bf16.mxu0 0
  %5888 = vmatpush1.bf16.msra.mxu0 %v1662
  %5889 = vmatprep.subr.bf16.mxu0 0
  %5890 = vmatpush1.bf16.msra.mxu0 %v1661
  %5891 = vmatprep.subr.bf16.mxu0 0
  %5892 = vmatpush1.bf16.msra.mxu0 %v1660
  %5893 = vmatprep.subr.bf16.mxu0 0
  %5894 = vmatpush2.bf16.msra.mxu0 %v1675
  %5895 = vmatprep.subr.bf16.mxu0 0
  %5896 = vmatpush2.bf16.msra.mxu0 %v1674
  %5897 = vmatprep.subr.bf16.mxu0 0
  %5898 = vmatpush2.bf16.msra.mxu0 %v1673
  %5899 = vmatprep.subr.bf16.mxu0 0
  %5900 = vmatpush2.bf16.msra.mxu0 %v1672
  %5901 = vmatprep.subr.bf16.mxu0 0
  %5902 = vmatpush2.bf16.msra.mxu0 %v1671
  %5903 = vmatprep.subr.bf16.mxu0 0
  %5904 = vmatpush2.bf16.msra.mxu0 %v1670
  %5905 = vmatprep.subr.bf16.mxu0 0
  %5906 = vmatpush2.bf16.msra.mxu0 %v1669
  %5907 = vmatprep.subr.bf16.mxu0 0
  %5908 = vmatpush2.bf16.msra.mxu0 %v1668
  %5909 = vmatprep.mubr.bf16.mxu0 %v5434
  %5910 = vmatmul.mubr.bf16.gmra.mxu0 %v5433
  %v5911 = vpop.f32.mrf.mxu0
  %v5912 = vadd.f32 %v5871, %v5911
  %v5913 = vpop.f32.mrf.mxu0
  %v5914 = vpop.f32.mrf.mxu0
  %v5915 = vadd.f32 %v5874, %v5914
  %v5916 = vpop.f32.mrf.mxu0
  %5917 = vdwg.mxu0
  %5918 = vmatprep.subr.bf16.mxu0 0
  %5919 = vmatpush1.bf16.msra.mxu0 %v1683
  %5920 = vmatprep.subr.bf16.mxu0 0
  %5921 = vmatpush1.bf16.msra.mxu0 %v1682
  %5922 = vmatprep.subr.bf16.mxu0 0
  %5923 = vmatpush1.bf16.msra.mxu0 %v1681
  %5924 = vmatprep.subr.bf16.mxu0 0
  %5925 = vmatpush1.bf16.msra.mxu0 %v1680
  %5926 = vmatprep.subr.bf16.mxu0 0
  %5927 = vmatpush1.bf16.msra.mxu0 %v1679
  %5928 = vmatprep.subr.bf16.mxu0 0
  %5929 = vmatpush1.bf16.msra.mxu0 %v1678
  %5930 = vmatprep.subr.bf16.mxu0 0
  %5931 = vmatpush1.bf16.msra.mxu0 %v1677
  %5932 = vmatprep.subr.bf16.mxu0 0
  %5933 = vmatpush1.bf16.msra.mxu0 %v1676
  %5934 = vmatprep.subr.bf16.mxu0 0
  %5935 = vmatpush2.bf16.msra.mxu0 %v1691
  %5936 = vmatprep.subr.bf16.mxu0 0
  %5937 = vmatpush2.bf16.msra.mxu0 %v1690
  %5938 = vmatprep.subr.bf16.mxu0 0
  %5939 = vmatpush2.bf16.msra.mxu0 %v1689
  %5940 = vmatprep.subr.bf16.mxu0 0
  %5941 = vmatpush2.bf16.msra.mxu0 %v1688
  %5942 = vmatprep.subr.bf16.mxu0 0
  %5943 = vmatpush2.bf16.msra.mxu0 %v1687
  %5944 = vmatprep.subr.bf16.mxu0 0
  %5945 = vmatpush2.bf16.msra.mxu0 %v1686
  %5946 = vmatprep.subr.bf16.mxu0 0
  %5947 = vmatpush2.bf16.msra.mxu0 %v1685
  %5948 = vmatprep.subr.bf16.mxu0 0
  %5949 = vmatpush2.bf16.msra.mxu0 %v1684
  %5950 = vmatprep.mubr.bf16.mxu0 %v5436
  %5951 = vmatmul.mubr.bf16.gmra.mxu0 %v5435
  %v5952 = vpop.f32.mrf.mxu0
  %v5953 = vadd.f32 %v5912, %v5952
  %v5954 = vpop.f32.mrf.mxu0
  %v5955 = vpop.f32.mrf.mxu0
  %v5956 = vadd.f32 %v5915, %v5955
  %v5957 = vpop.f32.mrf.mxu0
  %5958 = vdwg.mxu0
  %5959 = vmatprep.subr.bf16.mxu0 0
  %5960 = vmatpush1.bf16.msra.mxu0 %v1699
  %5961 = vmatprep.subr.bf16.mxu0 0
  %5962 = vmatpush1.bf16.msra.mxu0 %v1698
  %5963 = vmatprep.subr.bf16.mxu0 0
  %5964 = vmatpush1.bf16.msra.mxu0 %v1697
  %5965 = vmatprep.subr.bf16.mxu0 0
  %5966 = vmatpush1.bf16.msra.mxu0 %v1696
  %5967 = vmatprep.subr.bf16.mxu0 0
  %5968 = vmatpush1.bf16.msra.mxu0 %v1695
  %5969 = vmatprep.subr.bf16.mxu0 0
  %5970 = vmatpush1.bf16.msra.mxu0 %v1694
  %5971 = vmatprep.subr.bf16.mxu0 0
  %5972 = vmatpush1.bf16.msra.mxu0 %v1693
  %5973 = vmatprep.subr.bf16.mxu0 0
  %5974 = vmatpush1.bf16.msra.mxu0 %v1692
  %5975 = vmatprep.subr.bf16.mxu0 0
  %5976 = vmatpush2.bf16.msra.mxu0 %v1707
  %5977 = vmatprep.subr.bf16.mxu0 0
  %5978 = vmatpush2.bf16.msra.mxu0 %v1706
  %5979 = vmatprep.subr.bf16.mxu0 0
  %5980 = vmatpush2.bf16.msra.mxu0 %v1705
  %5981 = vmatprep.subr.bf16.mxu0 0
  %5982 = vmatpush2.bf16.msra.mxu0 %v1704
  %5983 = vmatprep.subr.bf16.mxu0 0
  %5984 = vmatpush2.bf16.msra.mxu0 %v1703
  %5985 = vmatprep.subr.bf16.mxu0 0
  %5986 = vmatpush2.bf16.msra.mxu0 %v1702
  %5987 = vmatprep.subr.bf16.mxu0 0
  %5988 = vmatpush2.bf16.msra.mxu0 %v1701
  %5989 = vmatprep.subr.bf16.mxu0 0
  %5990 = vmatpush2.bf16.msra.mxu0 %v1700
  %5991 = vmatprep.mubr.bf16.mxu0 %v5438
  %5992 = vmatmul.mubr.bf16.gmra.mxu0 %v5437
  %v5993 = vpop.f32.mrf.mxu0
  %v5994 = vadd.f32 %v5953, %v5993
  %v5995 = vpop.f32.mrf.mxu0
  %v5996 = vpop.f32.mrf.mxu0
  %v5997 = vadd.f32 %v5956, %v5996
  %v5998 = vpop.f32.mrf.mxu0
  %5999 = vdwg.mxu0
  %6000 = vmatprep.subr.bf16.mxu0 0
  %6001 = vmatpush1.bf16.msra.mxu0 %v1715
  %6002 = vmatprep.subr.bf16.mxu0 0
  %6003 = vmatpush1.bf16.msra.mxu0 %v1714
  %6004 = vmatprep.subr.bf16.mxu0 0
  %6005 = vmatpush1.bf16.msra.mxu0 %v1713
  %6006 = vmatprep.subr.bf16.mxu0 0
  %6007 = vmatpush1.bf16.msra.mxu0 %v1712
  %6008 = vmatprep.subr.bf16.mxu0 0
  %6009 = vmatpush1.bf16.msra.mxu0 %v1711
  %6010 = vmatprep.subr.bf16.mxu0 0
  %6011 = vmatpush1.bf16.msra.mxu0 %v1710
  %6012 = vmatprep.subr.bf16.mxu0 0
  %6013 = vmatpush1.bf16.msra.mxu0 %v1709
  %6014 = vmatprep.subr.bf16.mxu0 0
  %6015 = vmatpush1.bf16.msra.mxu0 %v1708
  %6016 = vmatprep.subr.bf16.mxu0 0
  %6017 = vmatpush2.bf16.msra.mxu0 0
  %6018 = vmatprep.subr.bf16.mxu0 0
  %6019 = vmatpush2.bf16.msra.mxu0 0
  %6020 = vmatprep.subr.bf16.mxu0 0
  %6021 = vmatpush2.bf16.msra.mxu0 0
  %6022 = vmatprep.subr.bf16.mxu0 0
  %6023 = vmatpush2.bf16.msra.mxu0 0
  %6024 = vmatprep.subr.bf16.mxu0 0
  %6025 = vmatpush2.bf16.msra.mxu0 0
  %6026 = vmatprep.subr.bf16.mxu0 0
  %6027 = vmatpush2.bf16.msra.mxu0 0
  %6028 = vmatprep.subr.bf16.mxu0 0
  %6029 = vmatpush2.bf16.msra.mxu0 0
  %6030 = vmatprep.subr.bf16.mxu0 0
  %6031 = vmatpush2.bf16.msra.mxu0 0
  %6032 = vmatprep.mubr.bf16.mxu0 0
  %6033 = vmatmul.mubr.bf16.gmra.mxu0 %v5439
  %v6034 = vpop.f32.mrf.mxu0
  %v6035 = vadd.f32 %v5994, %v6034
  %v6036 = vpop.f32.mrf.mxu0
  %v6037 = vpop.f32.mrf.mxu0
  %v6038 = vadd.f32 %v5997, %v6037
  %v6039 = vpop.f32.mrf.mxu0
  %6040 = vdwg.mxu0
  %v6041 = vmax.f32 %v6035, 0.0
  %v6042 = vmax.f32 %v6038, 0.0
  %v6043 = vpack.c.bf16 %v6042, %v6041
  %s6044 = scalar_lea.vmem %s3, 512
  %v6045 = vld [vmem:[%s6044] sm:$0xff]
  %v6046 = vld [vmem:[%s6044 + $0x8] sm:$0xff]
  %v6047 = vld [vmem:[%s6044 + $0x10] sm:$0xff]
  %v6048 = vld [vmem:[%s6044 + $0x18] sm:$0xff]
  %v6049 = vld [vmem:[%s6044 + $0x20] sm:$0xff]
  %v6050 = vld [vmem:[%s6044 + $0x28] sm:$0xff]
  %v6051 = vld [vmem:[%s6044 + $0x30] sm:$0xff]
  %v6052 = vld [vmem:[%s6044 + $0x38] sm:$0xff]
  %v6053 = vld [vmem:[%s6044 + $0x40] sm:$0xff]
  %v6054 = vld [vmem:[%s6044 + $0x48] sm:$0xff]
  %v6055 = vld [vmem:[%s6044 + $0x50] sm:$0xff]
  %v6056 = vld [vmem:[%s6044 + $0x58] sm:$0xff]
  %v6057 = vld [vmem:[%s6044 + $0x60] sm:$0xff]
  %v6058 = vld [vmem:[%s6044 + $0x68] sm:$0xff]
  %v6059 = vld [vmem:[%s6044 + $0x70] sm:$0xff]
  %v6060 = vld [vmem:[%s6044 + $0x78] sm:$0xff]
  %v6077 = vunpack.c.l.b16 %v6045
  %v6078 = vunpack.c.h.b16 %v6045
  %v6079 = vunpack.c.l.b16 %v6046
  %v6080 = vunpack.c.h.b16 %v6046
  %v6081 = vunpack.c.l.b16 %v6047
  %v6082 = vunpack.c.h.b16 %v6047
  %v6083 = vunpack.c.l.b16 %v6048
  %v6084 = vunpack.c.h.b16 %v6048
  %v6085 = vunpack.c.l.b16 %v6049
  %v6086 = vunpack.c.h.b16 %v6049
  %v6087 = vunpack.c.l.b16 %v6050
  %v6088 = vunpack.c.h.b16 %v6050
  %v6089 = vunpack.c.l.b16 %v6051
  %v6090 = vunpack.c.h.b16 %v6051
  %v6091 = vunpack.c.l.b16 %v6052
  %v6092 = vunpack.c.h.b16 %v6052
  %v6093 = vunpack.c.l.b16 %v6053
  %v6094 = vunpack.c.h.b16 %v6053
  %v6095 = vunpack.c.l.b16 %v6054
  %v6096 = vunpack.c.h.b16 %v6054
  %v6097 = vunpack.c.l.b16 %v6055
  %v6098 = vunpack.c.h.b16 %v6055
  %v6099 = vunpack.c.l.b16 %v6056
  %v6100 = vunpack.c.h.b16 %v6056
  %v6101 = vunpack.c.l.b16 %v6057
  %v6102 = vunpack.c.h.b16 %v6057
  %v6103 = vunpack.c.l.b16 %v6058
  %v6104 = vunpack.c.h.b16 %v6058
  %v6105 = vunpack.c.l.b16 %v6059
  %v6106 = vunpack.c.h.b16 %v6059
  %v6107 = vunpack.c.l.b16 %v6060
  %v6108 = vunpack.c.h.b16 %v6060
  %v6109 = vpack.c.b16 %v6079, %v6077
  %v6110 = vpack.c.b16 %v6080, %v6078
  %v6111 = vpack.c.b16 %v6083, %v6081
  %v6112 = vpack.c.b16 %v6084, %v6082
  %v6113 = vpack.c.b16 %v6087, %v6085
  %v6114 = vpack.c.b16 %v6088, %v6086
  %v6115 = vpack.c.b16 %v6091, %v6089
  %v6116 = vpack.c.b16 %v6092, %v6090
  %v6117 = vpack.c.b16 %v6095, %v6093
  %v6118 = vpack.c.b16 %v6096, %v6094
  %v6119 = vpack.c.b16 %v6099, %v6097
  %v6120 = vpack.c.b16 %v6100, %v6098
  %v6121 = vpack.c.b16 %v6103, %v6101
  %v6122 = vpack.c.b16 %v6104, %v6102
  %v6123 = vpack.c.b16 %v6107, %v6105
  %v6124 = vpack.c.b16 %v6108, %v6106
  %6141 = vmatprep.subr.bf16.mxu0 %v6124
  %6142 = vmatpush1.bf16.msra.mxu0 %v6123
  %6143 = vmatprep.subr.bf16.mxu0 %v6122
  %6144 = vmatpush1.bf16.msra.mxu0 %v6121
  %6145 = vmatprep.subr.bf16.mxu0 %v6120
  %6146 = vmatpush1.bf16.msra.mxu0 %v6119
  %6147 = vmatprep.subr.bf16.mxu0 %v6118
  %6148 = vmatpush1.bf16.msra.mxu0 %v6117
  %6149 = vmatprep.subr.bf16.mxu0 %v6116
  %6150 = vmatpush1.bf16.msra.mxu0 %v6115
  %6151 = vmatprep.subr.bf16.mxu0 %v6114
  %6152 = vmatpush1.bf16.msra.mxu0 %v6113
  %6153 = vmatprep.subr.bf16.mxu0 %v6112
  %6154 = vmatpush1.bf16.msra.mxu0 %v6111
  %6155 = vmatprep.subr.bf16.mxu0 %v6110
  %6156 = vmatpush1.bf16.msra.mxu0 %v6109
  %6157 = vmatprep.subr.bf16.mxu0 0
  %6158 = vmatpush2.bf16.msra.mxu0 0
  %6159 = vmatprep.subr.bf16.mxu0 0
  %6160 = vmatpush2.bf16.msra.mxu0 0
  %6161 = vmatprep.subr.bf16.mxu0 0
  %6162 = vmatpush2.bf16.msra.mxu0 0
  %6163 = vmatprep.subr.bf16.mxu0 0
  %6164 = vmatpush2.bf16.msra.mxu0 0
  %6165 = vmatprep.subr.bf16.mxu0 0
  %6166 = vmatpush2.bf16.msra.mxu0 0
  %6167 = vmatprep.subr.bf16.mxu0 0
  %6168 = vmatpush2.bf16.msra.mxu0 0
  %6169 = vmatprep.subr.bf16.mxu0 0
  %6170 = vmatpush2.bf16.msra.mxu0 0
  %6171 = vmatprep.subr.bf16.mxu0 0
  %6172 = vmatpush2.bf16.msra.mxu0 0
  %6173 = vmatprep.mubr.bf16.mxu0 0
  %6174 = vmatmul.mubr.bf16.gmra.mxu0 %v6043
  %v6175 = vpop.f32.mrf.mxu0
  %v6176 = vadd.f32 0.0, %v6175
  %v6177 = vpop.f32.mrf.mxu0
  %v6178 = vadd.f32 0.0, %v6177
  %v6179 = vpop.f32.mrf.mxu0
  %v6180 = vadd.f32 0.0, %v6179
  %v6181 = vpop.f32.mrf.mxu0
  %v6182 = vadd.f32 0.0, %v6181
  %6183 = vdwg.mxu0
  %v6184 = vadd.f32 %v5298, %v6176
  %v6185 = vadd.f32 %v5299, %v6178
  %v6186 = vadd.f32 %v5300, %v6180
  %v6187 = vadd.f32 %v5301, %v6182
  %s6188 = scalar_lea.vmem %s0, 1080
  %v6189 = vld [vmem:[%s6188] sm:$0xff]
  %v6190 = vld [vmem:[%s6188 + $0x8] sm:$0xff]
  %v6191 = vld [vmem:[%s6188 + $0x10] sm:$0xff]
  %v6192 = vld [vmem:[%s6188 + $0x18] sm:$0xff]
  %v6193 = vld [vmem:[%s6188 + $0x20] sm:$0xff]
  %v6194 = vld [vmem:[%s6188 + $0x28] sm:$0xff]
  %v6195 = vld [vmem:[%s6188 + $0x30] sm:$0xff]
  %v6196 = vld [vmem:[%s6188 + $0x38] sm:$0xff]
  %v6197 = vld [vmem:[%s6188 + $0x40] sm:$0xff]
  %v6198 = vld [vmem:[%s6188 + $0x48] sm:$0xff]
  %v6199 = vld [vmem:[%s6188 + $0x50] sm:$0xff]
  %v6200 = vld [vmem:[%s6188 + $0x58] sm:$0xff]
  %v6201 = vld [vmem:[%s6188 + $0x60] sm:$0xff]
  %v6202 = vld [vmem:[%s6188 + $0x68] sm:$0xf]
  %v6203 = vld [vmem:[%s6188 + $0x6c] sm:$0xff]
  %v6204 = vld [vmem:[%s6188 + $0x74] sm:$0xff]
  %v6205 = vld [vmem:[%s6188 + $0x7c] sm:$0xff]
  %v6206 = vld [vmem:[%s6188 + $0x84] sm:$0xff]
  %v6207 = vld [vmem:[%s6188 + $0x8c] sm:$0xff]
  %v6208 = vld [vmem:[%s6188 + $0x94] sm:$0xff]
  %v6209 = vld [vmem:[%s6188 + $0x9c] sm:$0xff]
  %v6210 = vld [vmem:[%s6188 + $0xa4] sm:$0xff]
  %v6211 = vld [vmem:[%s6188 + $0xac] sm:$0xff]
  %v6212 = vld [vmem:[%s6188 + $0xb4] sm:$0xff]
  %v6213 = vld [vmem:[%s6188 + $0xbc] sm:$0xff]
  %v6214 = vld [vmem:[%s6188 + $0xc4] sm:$0xff]
  %v6215 = vld [vmem:[%s6188 + $0xcc] sm:$0xff]
  %v6216 = vld [vmem:[%s6188 + $0xd4] sm:$0xf]
  %v6245 = vunpack.c.l.b16 %v6189
  %v6246 = vunpack.c.h.b16 %v6189
  %v6247 = vunpack.c.l.b16 %v6190
  %v6248 = vunpack.c.h.b16 %v6190
  %v6249 = vunpack.c.l.b16 %v6191
  %v6250 = vunpack.c.h.b16 %v6191
  %v6251 = vunpack.c.l.b16 %v6192
  %v6252 = vunpack.c.h.b16 %v6192
  %v6253 = vunpack.c.l.b16 %v6193
  %v6254 = vunpack.c.h.b16 %v6193
  %v6255 = vunpack.c.l.b16 %v6194
  %v6256 = vunpack.c.h.b16 %v6194
  %v6257 = vunpack.c.l.b16 %v6195
  %v6258 = vunpack.c.h.b16 %v6195
  %v6259 = vunpack.c.l.b16 %v6196
  %v6260 = vunpack.c.h.b16 %v6196
  %v6261 = vunpack.c.l.b16 %v6197
  %v6262 = vunpack.c.h.b16 %v6197
  %v6263 = vunpack.c.l.b16 %v6198
  %v6264 = vunpack.c.h.b16 %v6198
  %v6265 = vunpack.c.l.b16 %v6199
  %v6266 = vunpack.c.h.b16 %v6199
  %v6267 = vunpack.c.l.b16 %v6200
  %v6268 = vunpack.c.h.b16 %v6200
  %v6269 = vunpack.c.l.b16 %v6201
  %v6270 = vunpack.c.h.b16 %v6201
  %v6271 = vunpack.c.l.b16 %v6202
  %v6272 = vunpack.c.l.b16 %v6203
  %v6273 = vunpack.c.h.b16 %v6203
  %v6274 = vunpack.c.l.b16 %v6204
  %v6275 = vunpack.c.h.b16 %v6204
  %v6276 = vunpack.c.l.b16 %v6205
  %v6277 = vunpack.c.h.b16 %v6205
  %v6278 = vunpack.c.l.b16 %v6206
  %v6279 = vunpack.c.h.b16 %v6206
  %v6280 = vunpack.c.l.b16 %v6207
  %v6281 = vunpack.c.h.b16 %v6207
  %v6282 = vunpack.c.l.b16 %v6208
  %v6283 = vunpack.c.h.b16 %v6208
  %v6284 = vunpack.c.l.b16 %v6209
  %v6285 = vunpack.c.h.b16 %v6209
  %v6286 = vunpack.c.l.b16 %v6210
  %v6287 = vunpack.c.h.b16 %v6210
  %v6288 = vunpack.c.l.b16 %v6211
  %v6289 = vunpack.c.h.b16 %v6211
  %v6290 = vunpack.c.l.b16 %v6212
  %v6291 = vunpack.c.h.b16 %v6212
  %v6292 = vunpack.c.l.b16 %v6213
  %v6293 = vunpack.c.h.b16 %v6213
  %v6294 = vunpack.c.l.b16 %v6214
  %v6295 = vunpack.c.h.b16 %v6214
  %v6296 = vunpack.c.l.b16 %v6215
  %v6297 = vunpack.c.h.b16 %v6215
  %v6298 = vunpack.c.l.b16 %v6216
  %v6299 = vpack.c.b16 %v6272, %v6245
  %v6300 = vpack.c.b16 %v6273, %v6246
  %v6301 = vpack.c.b16 %v6274, %v6247
  %v6302 = vpack.c.b16 %v6275, %v6248
  %v6303 = vpack.c.b16 %v6276, %v6249
  %v6304 = vpack.c.b16 %v6277, %v6250
  %v6305 = vpack.c.b16 %v6278, %v6251
  %v6306 = vpack.c.b16 %v6279, %v6252
  %v6307 = vpack.c.b16 %v6280, %v6253
  %v6308 = vpack.c.b16 %v6281, %v6254
  %v6309 = vpack.c.b16 %v6282, %v6255
  %v6310 = vpack.c.b16 %v6283, %v6256
  %v6311 = vpack.c.b16 %v6284, %v6257
  %v6312 = vpack.c.b16 %v6285, %v6258
  %v6313 = vpack.c.b16 %v6286, %v6259
  %v6314 = vpack.c.b16 %v6287, %v6260
  %v6315 = vpack.c.b16 %v6288, %v6261
  %v6316 = vpack.c.b16 %v6289, %v6262
  %v6317 = vpack.c.b16 %v6290, %v6263
  %v6318 = vpack.c.b16 %v6291, %v6264
  %v6319 = vpack.c.b16 %v6292, %v6265
  %v6320 = vpack.c.b16 %v6293, %v6266
  %v6321 = vpack.c.b16 %v6294, %v6267
  %v6322 = vpack.c.b16 %v6295, %v6268
  %v6323 = vpack.c.b16 %v6296, %v6269
  %v6324 = vpack.c.b16 %v6297, %v6270
  %v6325 = vpack.c.b16 %v6298, %v6271
  %6353 = vmatprep.subr.bf16.mxu0 0
  %6354 = vmatpush1.bf16.msra.mxu0 %v1507
  %6355 = vmatprep.subr.bf16.mxu0 0
  %6356 = vmatpush1.bf16.msra.mxu0 %v1506
  %6357 = vmatprep.subr.bf16.mxu0 0
  %6358 = vmatpush1.bf16.msra.mxu0 %v1505
  %6359 = vmatprep.subr.bf16.mxu0 0
  %6360 = vmatpush1.bf16.msra.mxu0 %v1504
  %6361 = vmatprep.subr.bf16.mxu0 0
  %6362 = vmatpush1.bf16.msra.mxu0 %v1503
  %6363 = vmatprep.subr.bf16.mxu0 0
  %6364 = vmatpush1.bf16.msra.mxu0 %v1502
  %6365 = vmatprep.subr.bf16.mxu0 0
  %6366 = vmatpush1.bf16.msra.mxu0 %v1501
  %6367 = vmatprep.subr.bf16.mxu0 0
  %6368 = vmatpush1.bf16.msra.mxu0 %v1500
  %6369 = vmatprep.subr.bf16.mxu0 0
  %6370 = vmatpush2.bf16.msra.mxu0 %v1515
  %6371 = vmatprep.subr.bf16.mxu0 0
  %6372 = vmatpush2.bf16.msra.mxu0 %v1514
  %6373 = vmatprep.subr.bf16.mxu0 0
  %6374 = vmatpush2.bf16.msra.mxu0 %v1513
  %6375 = vmatprep.subr.bf16.mxu0 0
  %6376 = vmatpush2.bf16.msra.mxu0 %v1512
  %6377 = vmatprep.subr.bf16.mxu0 0
  %6378 = vmatpush2.bf16.msra.mxu0 %v1511
  %6379 = vmatprep.subr.bf16.mxu0 0
  %6380 = vmatpush2.bf16.msra.mxu0 %v1510
  %6381 = vmatprep.subr.bf16.mxu0 0
  %6382 = vmatpush2.bf16.msra.mxu0 %v1509
  %6383 = vmatprep.subr.bf16.mxu0 0
  %6384 = vmatpush2.bf16.msra.mxu0 %v1508
  %6385 = vmatprep.mubr.bf16.mxu0 %v6300
  %6386 = vmatmul.mubr.bf16.gmra.mxu0 %v6299
  %v6387 = vpop.f32.mrf.mxu0
  %v6388 = vadd.f32 %v498, %v6387
  %v6389 = vpop.f32.mrf.mxu0
  %v6390 = vpop.f32.mrf.mxu0
  %v6391 = vadd.f32 %v498, %v6390
  %v6392 = vpop.f32.mrf.mxu0
  %6393 = vdwg.mxu0
  %6394 = vmatprep.subr.bf16.mxu0 0
  %6395 = vmatpush1.bf16.msra.mxu0 %v1523
  %6396 = vmatprep.subr.bf16.mxu0 0
  %6397 = vmatpush1.bf16.msra.mxu0 %v1522
  %6398 = vmatprep.subr.bf16.mxu0 0
  %6399 = vmatpush1.bf16.msra.mxu0 %v1521
  %6400 = vmatprep.subr.bf16.mxu0 0
  %6401 = vmatpush1.bf16.msra.mxu0 %v1520
  %6402 = vmatprep.subr.bf16.mxu0 0
  %6403 = vmatpush1.bf16.msra.mxu0 %v1519
  %6404 = vmatprep.subr.bf16.mxu0 0
  %6405 = vmatpush1.bf16.msra.mxu0 %v1518
  %6406 = vmatprep.subr.bf16.mxu0 0
  %6407 = vmatpush1.bf16.msra.mxu0 %v1517
  %6408 = vmatprep.subr.bf16.mxu0 0
  %6409 = vmatpush1.bf16.msra.mxu0 %v1516
  %6410 = vmatprep.subr.bf16.mxu0 0
  %6411 = vmatpush2.bf16.msra.mxu0 %v1531
  %6412 = vmatprep.subr.bf16.mxu0 0
  %6413 = vmatpush2.bf16.msra.mxu0 %v1530
  %6414 = vmatprep.subr.bf16.mxu0 0
  %6415 = vmatpush2.bf16.msra.mxu0 %v1529
  %6416 = vmatprep.subr.bf16.mxu0 0
  %6417 = vmatpush2.bf16.msra.mxu0 %v1528
  %6418 = vmatprep.subr.bf16.mxu0 0
  %6419 = vmatpush2.bf16.msra.mxu0 %v1527
  %6420 = vmatprep.subr.bf16.mxu0 0
  %6421 = vmatpush2.bf16.msra.mxu0 %v1526
  %6422 = vmatprep.subr.bf16.mxu0 0
  %6423 = vmatpush2.bf16.msra.mxu0 %v1525
  %6424 = vmatprep.subr.bf16.mxu0 0
  %6425 = vmatpush2.bf16.msra.mxu0 %v1524
  %6426 = vmatprep.mubr.bf16.mxu0 %v6302
  %6427 = vmatmul.mubr.bf16.gmra.mxu0 %v6301
  %v6428 = vpop.f32.mrf.mxu0
  %v6429 = vadd.f32 %v6388, %v6428
  %v6430 = vpop.f32.mrf.mxu0
  %v6431 = vpop.f32.mrf.mxu0
  %v6432 = vadd.f32 %v6391, %v6431
  %v6433 = vpop.f32.mrf.mxu0
  %6434 = vdwg.mxu0
  %6435 = vmatprep.subr.bf16.mxu0 0
  %6436 = vmatpush1.bf16.msra.mxu0 %v1539
  %6437 = vmatprep.subr.bf16.mxu0 0
  %6438 = vmatpush1.bf16.msra.mxu0 %v1538
  %6439 = vmatprep.subr.bf16.mxu0 0
  %6440 = vmatpush1.bf16.msra.mxu0 %v1537
  %6441 = vmatprep.subr.bf16.mxu0 0
  %6442 = vmatpush1.bf16.msra.mxu0 %v1536
  %6443 = vmatprep.subr.bf16.mxu0 0
  %6444 = vmatpush1.bf16.msra.mxu0 %v1535
  %6445 = vmatprep.subr.bf16.mxu0 0
  %6446 = vmatpush1.bf16.msra.mxu0 %v1534
  %6447 = vmatprep.subr.bf16.mxu0 0
  %6448 = vmatpush1.bf16.msra.mxu0 %v1533
  %6449 = vmatprep.subr.bf16.mxu0 0
  %6450 = vmatpush1.bf16.msra.mxu0 %v1532
  %6451 = vmatprep.subr.bf16.mxu0 0
  %6452 = vmatpush2.bf16.msra.mxu0 %v1547
  %6453 = vmatprep.subr.bf16.mxu0 0
  %6454 = vmatpush2.bf16.msra.mxu0 %v1546
  %6455 = vmatprep.subr.bf16.mxu0 0
  %6456 = vmatpush2.bf16.msra.mxu0 %v1545
  %6457 = vmatprep.subr.bf16.mxu0 0
  %6458 = vmatpush2.bf16.msra.mxu0 %v1544
  %6459 = vmatprep.subr.bf16.mxu0 0
  %6460 = vmatpush2.bf16.msra.mxu0 %v1543
  %6461 = vmatprep.subr.bf16.mxu0 0
  %6462 = vmatpush2.bf16.msra.mxu0 %v1542
  %6463 = vmatprep.subr.bf16.mxu0 0
  %6464 = vmatpush2.bf16.msra.mxu0 %v1541
  %6465 = vmatprep.subr.bf16.mxu0 0
  %6466 = vmatpush2.bf16.msra.mxu0 %v1540
  %6467 = vmatprep.mubr.bf16.mxu0 %v6304
  %6468 = vmatmul.mubr.bf16.gmra.mxu0 %v6303
  %v6469 = vpop.f32.mrf.mxu0
  %v6470 = vadd.f32 %v6429, %v6469
  %v6471 = vpop.f32.mrf.mxu0
  %v6472 = vpop.f32.mrf.mxu0
  %v6473 = vadd.f32 %v6432, %v6472
  %v6474 = vpop.f32.mrf.mxu0
  %6475 = vdwg.mxu0
  %6476 = vmatprep.subr.bf16.mxu0 0
  %6477 = vmatpush1.bf16.msra.mxu0 %v1555
  %6478 = vmatprep.subr.bf16.mxu0 0
  %6479 = vmatpush1.bf16.msra.mxu0 %v1554
  %6480 = vmatprep.subr.bf16.mxu0 0
  %6481 = vmatpush1.bf16.msra.mxu0 %v1553
  %6482 = vmatprep.subr.bf16.mxu0 0
  %6483 = vmatpush1.bf16.msra.mxu0 %v1552
  %6484 = vmatprep.subr.bf16.mxu0 0
  %6485 = vmatpush1.bf16.msra.mxu0 %v1551
  %6486 = vmatprep.subr.bf16.mxu0 0
  %6487 = vmatpush1.bf16.msra.mxu0 %v1550
  %6488 = vmatprep.subr.bf16.mxu0 0
  %6489 = vmatpush1.bf16.msra.mxu0 %v1549
  %6490 = vmatprep.subr.bf16.mxu0 0
  %6491 = vmatpush1.bf16.msra.mxu0 %v1548
  %6492 = vmatprep.subr.bf16.mxu0 0
  %6493 = vmatpush2.bf16.msra.mxu0 %v1563
  %6494 = vmatprep.subr.bf16.mxu0 0
  %6495 = vmatpush2.bf16.msra.mxu0 %v1562
  %6496 = vmatprep.subr.bf16.mxu0 0
  %6497 = vmatpush2.bf16.msra.mxu0 %v1561
  %6498 = vmatprep.subr.bf16.mxu0 0
  %6499 = vmatpush2.bf16.msra.mxu0 %v1560
  %6500 = vmatprep.subr.bf16.mxu0 0
  %6501 = vmatpush2.bf16.msra.mxu0 %v1559
  %6502 = vmatprep.subr.bf16.mxu0 0
  %6503 = vmatpush2.bf16.msra.mxu0 %v1558
  %6504 = vmatprep.subr.bf16.mxu0 0
  %6505 = vmatpush2.bf16.msra.mxu0 %v1557
  %6506 = vmatprep.subr.bf16.mxu0 0
  %6507 = vmatpush2.bf16.msra.mxu0 %v1556
  %6508 = vmatprep.mubr.bf16.mxu0 %v6306
  %6509 = vmatmul.mubr.bf16.gmra.mxu0 %v6305
  %v6510 = vpop.f32.mrf.mxu0
  %v6511 = vadd.f32 %v6470, %v6510
  %v6512 = vpop.f32.mrf.mxu0
  %v6513 = vpop.f32.mrf.mxu0
  %v6514 = vadd.f32 %v6473, %v6513
  %v6515 = vpop.f32.mrf.mxu0
  %6516 = vdwg.mxu0
  %6517 = vmatprep.subr.bf16.mxu0 0
  %6518 = vmatpush1.bf16.msra.mxu0 %v1571
  %6519 = vmatprep.subr.bf16.mxu0 0
  %6520 = vmatpush1.bf16.msra.mxu0 %v1570
  %6521 = vmatprep.subr.bf16.mxu0 0
  %6522 = vmatpush1.bf16.msra.mxu0 %v1569
  %6523 = vmatprep.subr.bf16.mxu0 0
  %6524 = vmatpush1.bf16.msra.mxu0 %v1568
  %6525 = vmatprep.subr.bf16.mxu0 0
  %6526 = vmatpush1.bf16.msra.mxu0 %v1567
  %6527 = vmatprep.subr.bf16.mxu0 0
  %6528 = vmatpush1.bf16.msra.mxu0 %v1566
  %6529 = vmatprep.subr.bf16.mxu0 0
  %6530 = vmatpush1.bf16.msra.mxu0 %v1565
  %6531 = vmatprep.subr.bf16.mxu0 0
  %6532 = vmatpush1.bf16.msra.mxu0 %v1564
  %6533 = vmatprep.subr.bf16.mxu0 0
  %6534 = vmatpush2.bf16.msra.mxu0 %v1579
  %6535 = vmatprep.subr.bf16.mxu0 0
  %6536 = vmatpush2.bf16.msra.mxu0 %v1578
  %6537 = vmatprep.subr.bf16.mxu0 0
  %6538 = vmatpush2.bf16.msra.mxu0 %v1577
  %6539 = vmatprep.subr.bf16.mxu0 0
  %6540 = vmatpush2.bf16.msra.mxu0 %v1576
  %6541 = vmatprep.subr.bf16.mxu0 0
  %6542 = vmatpush2.bf16.msra.mxu0 %v1575
  %6543 = vmatprep.subr.bf16.mxu0 0
  %6544 = vmatpush2.bf16.msra.mxu0 %v1574
  %6545 = vmatprep.subr.bf16.mxu0 0
  %6546 = vmatpush2.bf16.msra.mxu0 %v1573
  %6547 = vmatprep.subr.bf16.mxu0 0
  %6548 = vmatpush2.bf16.msra.mxu0 %v1572
  %6549 = vmatprep.mubr.bf16.mxu0 %v6308
  %6550 = vmatmul.mubr.bf16.gmra.mxu0 %v6307
  %v6551 = vpop.f32.mrf.mxu0
  %v6552 = vadd.f32 %v6511, %v6551
  %v6553 = vpop.f32.mrf.mxu0
  %v6554 = vpop.f32.mrf.mxu0
  %v6555 = vadd.f32 %v6514, %v6554
  %v6556 = vpop.f32.mrf.mxu0
  %6557 = vdwg.mxu0
  %6558 = vmatprep.subr.bf16.mxu0 0
  %6559 = vmatpush1.bf16.msra.mxu0 %v1587
  %6560 = vmatprep.subr.bf16.mxu0 0
  %6561 = vmatpush1.bf16.msra.mxu0 %v1586
  %6562 = vmatprep.subr.bf16.mxu0 0
  %6563 = vmatpush1.bf16.msra.mxu0 %v1585
  %6564 = vmatprep.subr.bf16.mxu0 0
  %6565 = vmatpush1.bf16.msra.mxu0 %v1584
  %6566 = vmatprep.subr.bf16.mxu0 0
  %6567 = vmatpush1.bf16.msra.mxu0 %v1583
  %6568 = vmatprep.subr.bf16.mxu0 0
  %6569 = vmatpush1.bf16.msra.mxu0 %v1582
  %6570 = vmatprep.subr.bf16.mxu0 0
  %6571 = vmatpush1.bf16.msra.mxu0 %v1581
  %6572 = vmatprep.subr.bf16.mxu0 0
  %6573 = vmatpush1.bf16.msra.mxu0 %v1580
  %6574 = vmatprep.subr.bf16.mxu0 0
  %6575 = vmatpush2.bf16.msra.mxu0 %v1595
  %6576 = vmatprep.subr.bf16.mxu0 0
  %6577 = vmatpush2.bf16.msra.mxu0 %v1594
  %6578 = vmatprep.subr.bf16.mxu0 0
  %6579 = vmatpush2.bf16.msra.mxu0 %v1593
  %6580 = vmatprep.subr.bf16.mxu0 0
  %6581 = vmatpush2.bf16.msra.mxu0 %v1592
  %6582 = vmatprep.subr.bf16.mxu0 0
  %6583 = vmatpush2.bf16.msra.mxu0 %v1591
  %6584 = vmatprep.subr.bf16.mxu0 0
  %6585 = vmatpush2.bf16.msra.mxu0 %v1590
  %6586 = vmatprep.subr.bf16.mxu0 0
  %6587 = vmatpush2.bf16.msra.mxu0 %v1589
  %6588 = vmatprep.subr.bf16.mxu0 0
  %6589 = vmatpush2.bf16.msra.mxu0 %v1588
  %6590 = vmatprep.mubr.bf16.mxu0 %v6310
  %6591 = vmatmul.mubr.bf16.gmra.mxu0 %v6309
  %v6592 = vpop.f32.mrf.mxu0
  %v6593 = vadd.f32 %v6552, %v6592
  %v6594 = vpop.f32.mrf.mxu0
  %v6595 = vpop.f32.mrf.mxu0
  %v6596 = vadd.f32 %v6555, %v6595
  %v6597 = vpop.f32.mrf.mxu0
  %6598 = vdwg.mxu0
  %6599 = vmatprep.subr.bf16.mxu0 0
  %6600 = vmatpush1.bf16.msra.mxu0 %v1603
  %6601 = vmatprep.subr.bf16.mxu0 0
  %6602 = vmatpush1.bf16.msra.mxu0 %v1602
  %6603 = vmatprep.subr.bf16.mxu0 0
  %6604 = vmatpush1.bf16.msra.mxu0 %v1601
  %6605 = vmatprep.subr.bf16.mxu0 0
  %6606 = vmatpush1.bf16.msra.mxu0 %v1600
  %6607 = vmatprep.subr.bf16.mxu0 0
  %6608 = vmatpush1.bf16.msra.mxu0 %v1599
  %6609 = vmatprep.subr.bf16.mxu0 0
  %6610 = vmatpush1.bf16.msra.mxu0 %v1598
  %6611 = vmatprep.subr.bf16.mxu0 0
  %6612 = vmatpush1.bf16.msra.mxu0 %v1597
  %6613 = vmatprep.subr.bf16.mxu0 0
  %6614 = vmatpush1.bf16.msra.mxu0 %v1596
  %6615 = vmatprep.subr.bf16.mxu0 0
  %6616 = vmatpush2.bf16.msra.mxu0 %v1611
  %6617 = vmatprep.subr.bf16.mxu0 0
  %6618 = vmatpush2.bf16.msra.mxu0 %v1610
  %6619 = vmatprep.subr.bf16.mxu0 0
  %6620 = vmatpush2.bf16.msra.mxu0 %v1609
  %6621 = vmatprep.subr.bf16.mxu0 0
  %6622 = vmatpush2.bf16.msra.mxu0 %v1608
  %6623 = vmatprep.subr.bf16.mxu0 0
  %6624 = vmatpush2.bf16.msra.mxu0 %v1607
  %6625 = vmatprep.subr.bf16.mxu0 0
  %6626 = vmatpush2.bf16.msra.mxu0 %v1606
  %6627 = vmatprep.subr.bf16.mxu0 0
  %6628 = vmatpush2.bf16.msra.mxu0 %v1605
  %6629 = vmatprep.subr.bf16.mxu0 0
  %6630 = vmatpush2.bf16.msra.mxu0 %v1604
  %6631 = vmatprep.mubr.bf16.mxu0 %v6312
  %6632 = vmatmul.mubr.bf16.gmra.mxu0 %v6311
  %v6633 = vpop.f32.mrf.mxu0
  %v6634 = vadd.f32 %v6593, %v6633
  %v6635 = vpop.f32.mrf.mxu0
  %v6636 = vpop.f32.mrf.mxu0
  %v6637 = vadd.f32 %v6596, %v6636
  %v6638 = vpop.f32.mrf.mxu0
  %6639 = vdwg.mxu0
  %6640 = vmatprep.subr.bf16.mxu0 0
  %6641 = vmatpush1.bf16.msra.mxu0 %v1619
  %6642 = vmatprep.subr.bf16.mxu0 0
  %6643 = vmatpush1.bf16.msra.mxu0 %v1618
  %6644 = vmatprep.subr.bf16.mxu0 0
  %6645 = vmatpush1.bf16.msra.mxu0 %v1617
  %6646 = vmatprep.subr.bf16.mxu0 0
  %6647 = vmatpush1.bf16.msra.mxu0 %v1616
  %6648 = vmatprep.subr.bf16.mxu0 0
  %6649 = vmatpush1.bf16.msra.mxu0 %v1615
  %6650 = vmatprep.subr.bf16.mxu0 0
  %6651 = vmatpush1.bf16.msra.mxu0 %v1614
  %6652 = vmatprep.subr.bf16.mxu0 0
  %6653 = vmatpush1.bf16.msra.mxu0 %v1613
  %6654 = vmatprep.subr.bf16.mxu0 0
  %6655 = vmatpush1.bf16.msra.mxu0 %v1612
  %6656 = vmatprep.subr.bf16.mxu0 0
  %6657 = vmatpush2.bf16.msra.mxu0 %v1627
  %6658 = vmatprep.subr.bf16.mxu0 0
  %6659 = vmatpush2.bf16.msra.mxu0 %v1626
  %6660 = vmatprep.subr.bf16.mxu0 0
  %6661 = vmatpush2.bf16.msra.mxu0 %v1625
  %6662 = vmatprep.subr.bf16.mxu0 0
  %6663 = vmatpush2.bf16.msra.mxu0 %v1624
  %6664 = vmatprep.subr.bf16.mxu0 0
  %6665 = vmatpush2.bf16.msra.mxu0 %v1623
  %6666 = vmatprep.subr.bf16.mxu0 0
  %6667 = vmatpush2.bf16.msra.mxu0 %v1622
  %6668 = vmatprep.subr.bf16.mxu0 0
  %6669 = vmatpush2.bf16.msra.mxu0 %v1621
  %6670 = vmatprep.subr.bf16.mxu0 0
  %6671 = vmatpush2.bf16.msra.mxu0 %v1620
  %6672 = vmatprep.mubr.bf16.mxu0 %v6314
  %6673 = vmatmul.mubr.bf16.gmra.mxu0 %v6313
  %v6674 = vpop.f32.mrf.mxu0
  %v6675 = vadd.f32 %v6634, %v6674
  %v6676 = vpop.f32.mrf.mxu0
  %v6677 = vpop.f32.mrf.mxu0
  %v6678 = vadd.f32 %v6637, %v6677
  %v6679 = vpop.f32.mrf.mxu0
  %6680 = vdwg.mxu0
  %6681 = vmatprep.subr.bf16.mxu0 0
  %6682 = vmatpush1.bf16.msra.mxu0 %v1635
  %6683 = vmatprep.subr.bf16.mxu0 0
  %6684 = vmatpush1.bf16.msra.mxu0 %v1634
  %6685 = vmatprep.subr.bf16.mxu0 0
  %6686 = vmatpush1.bf16.msra.mxu0 %v1633
  %6687 = vmatprep.subr.bf16.mxu0 0
  %6688 = vmatpush1.bf16.msra.mxu0 %v1632
  %6689 = vmatprep.subr.bf16.mxu0 0
  %6690 = vmatpush1.bf16.msra.mxu0 %v1631
  %6691 = vmatprep.subr.bf16.mxu0 0
  %6692 = vmatpush1.bf16.msra.mxu0 %v1630
  %6693 = vmatprep.subr.bf16.mxu0 0
  %6694 = vmatpush1.bf16.msra.mxu0 %v1629
  %6695 = vmatprep.subr.bf16.mxu0 0
  %6696 = vmatpush1.bf16.msra.mxu0 %v1628
  %6697 = vmatprep.subr.bf16.mxu0 0
  %6698 = vmatpush2.bf16.msra.mxu0 %v1643
  %6699 = vmatprep.subr.bf16.mxu0 0
  %6700 = vmatpush2.bf16.msra.mxu0 %v1642
  %6701 = vmatprep.subr.bf16.mxu0 0
  %6702 = vmatpush2.bf16.msra.mxu0 %v1641
  %6703 = vmatprep.subr.bf16.mxu0 0
  %6704 = vmatpush2.bf16.msra.mxu0 %v1640
  %6705 = vmatprep.subr.bf16.mxu0 0
  %6706 = vmatpush2.bf16.msra.mxu0 %v1639
  %6707 = vmatprep.subr.bf16.mxu0 0
  %6708 = vmatpush2.bf16.msra.mxu0 %v1638
  %6709 = vmatprep.subr.bf16.mxu0 0
  %6710 = vmatpush2.bf16.msra.mxu0 %v1637
  %6711 = vmatprep.subr.bf16.mxu0 0
  %6712 = vmatpush2.bf16.msra.mxu0 %v1636
  %6713 = vmatprep.mubr.bf16.mxu0 %v6316
  %6714 = vmatmul.mubr.bf16.gmra.mxu0 %v6315
  %v6715 = vpop.f32.mrf.mxu0
  %v6716 = vadd.f32 %v6675, %v6715
  %v6717 = vpop.f32.mrf.mxu0
  %v6718 = vpop.f32.mrf.mxu0
  %v6719 = vadd.f32 %v6678, %v6718
  %v6720 = vpop.f32.mrf.mxu0
  %6721 = vdwg.mxu0
  %6722 = vmatprep.subr.bf16.mxu0 0
  %6723 = vmatpush1.bf16.msra.mxu0 %v1651
  %6724 = vmatprep.subr.bf16.mxu0 0
  %6725 = vmatpush1.bf16.msra.mxu0 %v1650
  %6726 = vmatprep.subr.bf16.mxu0 0
  %6727 = vmatpush1.bf16.msra.mxu0 %v1649
  %6728 = vmatprep.subr.bf16.mxu0 0
  %6729 = vmatpush1.bf16.msra.mxu0 %v1648
  %6730 = vmatprep.subr.bf16.mxu0 0
  %6731 = vmatpush1.bf16.msra.mxu0 %v1647
  %6732 = vmatprep.subr.bf16.mxu0 0
  %6733 = vmatpush1.bf16.msra.mxu0 %v1646
  %6734 = vmatprep.subr.bf16.mxu0 0
  %6735 = vmatpush1.bf16.msra.mxu0 %v1645
  %6736 = vmatprep.subr.bf16.mxu0 0
  %6737 = vmatpush1.bf16.msra.mxu0 %v1644
  %6738 = vmatprep.subr.bf16.mxu0 0
  %6739 = vmatpush2.bf16.msra.mxu0 %v1659
  %6740 = vmatprep.subr.bf16.mxu0 0
  %6741 = vmatpush2.bf16.msra.mxu0 %v1658
  %6742 = vmatprep.subr.bf16.mxu0 0
  %6743 = vmatpush2.bf16.msra.mxu0 %v1657
  %6744 = vmatprep.subr.bf16.mxu0 0
  %6745 = vmatpush2.bf16.msra.mxu0 %v1656
  %6746 = vmatprep.subr.bf16.mxu0 0
  %6747 = vmatpush2.bf16.msra.mxu0 %v1655
  %6748 = vmatprep.subr.bf16.mxu0 0
  %6749 = vmatpush2.bf16.msra.mxu0 %v1654
  %6750 = vmatprep.subr.bf16.mxu0 0
  %6751 = vmatpush2.bf16.msra.mxu0 %v1653
  %6752 = vmatprep.subr.bf16.mxu0 0
  %6753 = vmatpush2.bf16.msra.mxu0 %v1652
  %6754 = vmatprep.mubr.bf16.mxu0 %v6318
  %6755 = vmatmul.mubr.bf16.gmra.mxu0 %v6317
  %v6756 = vpop.f32.mrf.mxu0
  %v6757 = vadd.f32 %v6716, %v6756
  %v6758 = vpop.f32.mrf.mxu0
  %v6759 = vpop.f32.mrf.mxu0
  %v6760 = vadd.f32 %v6719, %v6759
  %v6761 = vpop.f32.mrf.mxu0
  %6762 = vdwg.mxu0
  %6763 = vmatprep.subr.bf16.mxu0 0
  %6764 = vmatpush1.bf16.msra.mxu0 %v1667
  %6765 = vmatprep.subr.bf16.mxu0 0
  %6766 = vmatpush1.bf16.msra.mxu0 %v1666
  %6767 = vmatprep.subr.bf16.mxu0 0
  %6768 = vmatpush1.bf16.msra.mxu0 %v1665
  %6769 = vmatprep.subr.bf16.mxu0 0
  %6770 = vmatpush1.bf16.msra.mxu0 %v1664
  %6771 = vmatprep.subr.bf16.mxu0 0
  %6772 = vmatpush1.bf16.msra.mxu0 %v1663
  %6773 = vmatprep.subr.bf16.mxu0 0
  %6774 = vmatpush1.bf16.msra.mxu0 %v1662
  %6775 = vmatprep.subr.bf16.mxu0 0
  %6776 = vmatpush1.bf16.msra.mxu0 %v1661
  %6777 = vmatprep.subr.bf16.mxu0 0
  %6778 = vmatpush1.bf16.msra.mxu0 %v1660
  %6779 = vmatprep.subr.bf16.mxu0 0
  %6780 = vmatpush2.bf16.msra.mxu0 %v1675
  %6781 = vmatprep.subr.bf16.mxu0 0
  %6782 = vmatpush2.bf16.msra.mxu0 %v1674
  %6783 = vmatprep.subr.bf16.mxu0 0
  %6784 = vmatpush2.bf16.msra.mxu0 %v1673
  %6785 = vmatprep.subr.bf16.mxu0 0
  %6786 = vmatpush2.bf16.msra.mxu0 %v1672
  %6787 = vmatprep.subr.bf16.mxu0 0
  %6788 = vmatpush2.bf16.msra.mxu0 %v1671
  %6789 = vmatprep.subr.bf16.mxu0 0
  %6790 = vmatpush2.bf16.msra.mxu0 %v1670
  %6791 = vmatprep.subr.bf16.mxu0 0
  %6792 = vmatpush2.bf16.msra.mxu0 %v1669
  %6793 = vmatprep.subr.bf16.mxu0 0
  %6794 = vmatpush2.bf16.msra.mxu0 %v1668
  %6795 = vmatprep.mubr.bf16.mxu0 %v6320
  %6796 = vmatmul.mubr.bf16.gmra.mxu0 %v6319
  %v6797 = vpop.f32.mrf.mxu0
  %v6798 = vadd.f32 %v6757, %v6797
  %v6799 = vpop.f32.mrf.mxu0
  %v6800 = vpop.f32.mrf.mxu0
  %v6801 = vadd.f32 %v6760, %v6800
  %v6802 = vpop.f32.mrf.mxu0
  %6803 = vdwg.mxu0
  %6804 = vmatprep.subr.bf16.mxu0 0
  %6805 = vmatpush1.bf16.msra.mxu0 %v1683
  %6806 = vmatprep.subr.bf16.mxu0 0
  %6807 = vmatpush1.bf16.msra.mxu0 %v1682
  %6808 = vmatprep.subr.bf16.mxu0 0
  %6809 = vmatpush1.bf16.msra.mxu0 %v1681
  %6810 = vmatprep.subr.bf16.mxu0 0
  %6811 = vmatpush1.bf16.msra.mxu0 %v1680
  %6812 = vmatprep.subr.bf16.mxu0 0
  %6813 = vmatpush1.bf16.msra.mxu0 %v1679
  %6814 = vmatprep.subr.bf16.mxu0 0
  %6815 = vmatpush1.bf16.msra.mxu0 %v1678
  %6816 = vmatprep.subr.bf16.mxu0 0
  %6817 = vmatpush1.bf16.msra.mxu0 %v1677
  %6818 = vmatprep.subr.bf16.mxu0 0
  %6819 = vmatpush1.bf16.msra.mxu0 %v1676
  %6820 = vmatprep.subr.bf16.mxu0 0
  %6821 = vmatpush2.bf16.msra.mxu0 %v1691
  %6822 = vmatprep.subr.bf16.mxu0 0
  %6823 = vmatpush2.bf16.msra.mxu0 %v1690
  %6824 = vmatprep.subr.bf16.mxu0 0
  %6825 = vmatpush2.bf16.msra.mxu0 %v1689
  %6826 = vmatprep.subr.bf16.mxu0 0
  %6827 = vmatpush2.bf16.msra.mxu0 %v1688
  %6828 = vmatprep.subr.bf16.mxu0 0
  %6829 = vmatpush2.bf16.msra.mxu0 %v1687
  %6830 = vmatprep.subr.bf16.mxu0 0
  %6831 = vmatpush2.bf16.msra.mxu0 %v1686
  %6832 = vmatprep.subr.bf16.mxu0 0
  %6833 = vmatpush2.bf16.msra.mxu0 %v1685
  %6834 = vmatprep.subr.bf16.mxu0 0
  %6835 = vmatpush2.bf16.msra.mxu0 %v1684
  %6836 = vmatprep.mubr.bf16.mxu0 %v6322
  %6837 = vmatmul.mubr.bf16.gmra.mxu0 %v6321
  %v6838 = vpop.f32.mrf.mxu0
  %v6839 = vadd.f32 %v6798, %v6838
  %v6840 = vpop.f32.mrf.mxu0
  %v6841 = vpop.f32.mrf.mxu0
  %v6842 = vadd.f32 %v6801, %v6841
  %v6843 = vpop.f32.mrf.mxu0
  %6844 = vdwg.mxu0
  %6845 = vmatprep.subr.bf16.mxu0 0
  %6846 = vmatpush1.bf16.msra.mxu0 %v1699
  %6847 = vmatprep.subr.bf16.mxu0 0
  %6848 = vmatpush1.bf16.msra.mxu0 %v1698
  %6849 = vmatprep.subr.bf16.mxu0 0
  %6850 = vmatpush1.bf16.msra.mxu0 %v1697
  %6851 = vmatprep.subr.bf16.mxu0 0
  %6852 = vmatpush1.bf16.msra.mxu0 %v1696
  %6853 = vmatprep.subr.bf16.mxu0 0
  %6854 = vmatpush1.bf16.msra.mxu0 %v1695
  %6855 = vmatprep.subr.bf16.mxu0 0
  %6856 = vmatpush1.bf16.msra.mxu0 %v1694
  %6857 = vmatprep.subr.bf16.mxu0 0
  %6858 = vmatpush1.bf16.msra.mxu0 %v1693
  %6859 = vmatprep.subr.bf16.mxu0 0
  %6860 = vmatpush1.bf16.msra.mxu0 %v1692
  %6861 = vmatprep.subr.bf16.mxu0 0
  %6862 = vmatpush2.bf16.msra.mxu0 %v1707
  %6863 = vmatprep.subr.bf16.mxu0 0
  %6864 = vmatpush2.bf16.msra.mxu0 %v1706
  %6865 = vmatprep.subr.bf16.mxu0 0
  %6866 = vmatpush2.bf16.msra.mxu0 %v1705
  %6867 = vmatprep.subr.bf16.mxu0 0
  %6868 = vmatpush2.bf16.msra.mxu0 %v1704
  %6869 = vmatprep.subr.bf16.mxu0 0
  %6870 = vmatpush2.bf16.msra.mxu0 %v1703
  %6871 = vmatprep.subr.bf16.mxu0 0
  %6872 = vmatpush2.bf16.msra.mxu0 %v1702
  %6873 = vmatprep.subr.bf16.mxu0 0
  %6874 = vmatpush2.bf16.msra.mxu0 %v1701
  %6875 = vmatprep.subr.bf16.mxu0 0
  %6876 = vmatpush2.bf16.msra.mxu0 %v1700
  %6877 = vmatprep.mubr.bf16.mxu0 %v6324
  %6878 = vmatmul.mubr.bf16.gmra.mxu0 %v6323
  %v6879 = vpop.f32.mrf.mxu0
  %v6880 = vadd.f32 %v6839, %v6879
  %v6881 = vpop.f32.mrf.mxu0
  %v6882 = vpop.f32.mrf.mxu0
  %v6883 = vadd.f32 %v6842, %v6882
  %v6884 = vpop.f32.mrf.mxu0
  %6885 = vdwg.mxu0
  %6886 = vmatprep.subr.bf16.mxu0 0
  %6887 = vmatpush1.bf16.msra.mxu0 %v1715
  %6888 = vmatprep.subr.bf16.mxu0 0
  %6889 = vmatpush1.bf16.msra.mxu0 %v1714
  %6890 = vmatprep.subr.bf16.mxu0 0
  %6891 = vmatpush1.bf16.msra.mxu0 %v1713
  %6892 = vmatprep.subr.bf16.mxu0 0
  %6893 = vmatpush1.bf16.msra.mxu0 %v1712
  %6894 = vmatprep.subr.bf16.mxu0 0
  %6895 = vmatpush1.bf16.msra.mxu0 %v1711
  %6896 = vmatprep.subr.bf16.mxu0 0
  %6897 = vmatpush1.bf16.msra.mxu0 %v1710
  %6898 = vmatprep.subr.bf16.mxu0 0
  %6899 = vmatpush1.bf16.msra.mxu0 %v1709
  %6900 = vmatprep.subr.bf16.mxu0 0
  %6901 = vmatpush1.bf16.msra.mxu0 %v1708
  %6902 = vmatprep.subr.bf16.mxu0 0
  %6903 = vmatpush2.bf16.msra.mxu0 0
  %6904 = vmatprep.subr.bf16.mxu0 0
  %6905 = vmatpush2.bf16.msra.mxu0 0
  %6906 = vmatprep.subr.bf16.mxu0 0
  %6907 = vmatpush2.bf16.msra.mxu0 0
  %6908 = vmatprep.subr.bf16.mxu0 0
  %6909 = vmatpush2.bf16.msra.mxu0 0
  %6910 = vmatprep.subr.bf16.mxu0 0
  %6911 = vmatpush2.bf16.msra.mxu0 0
  %6912 = vmatprep.subr.bf16.mxu0 0
  %6913 = vmatpush2.bf16.msra.mxu0 0
  %6914 = vmatprep.subr.bf16.mxu0 0
  %6915 = vmatpush2.bf16.msra.mxu0 0
  %6916 = vmatprep.subr.bf16.mxu0 0
  %6917 = vmatpush2.bf16.msra.mxu0 0
  %6918 = vmatprep.mubr.bf16.mxu0 0
  %6919 = vmatmul.mubr.bf16.gmra.mxu0 %v6325
  %v6920 = vpop.f32.mrf.mxu0
  %v6921 = vadd.f32 %v6880, %v6920
  %v6922 = vpop.f32.mrf.mxu0
  %v6923 = vpop.f32.mrf.mxu0
  %v6924 = vadd.f32 %v6883, %v6923
  %v6925 = vpop.f32.mrf.mxu0
  %6926 = vdwg.mxu0
  %v6927 = vmax.f32 %v6921, 0.0
  %v6928 = vmax.f32 %v6924, 0.0
  %v6929 = vpack.c.bf16 %v6928, %v6927
  %s6930 = scalar_lea.vmem %s3, 640
  %v6931 = vld [vmem:[%s6930] sm:$0xff]
  %v6932 = vld [vmem:[%s6930 + $0x8] sm:$0xff]
  %v6933 = vld [vmem:[%s6930 + $0x10] sm:$0xff]
  %v6934 = vld [vmem:[%s6930 + $0x18] sm:$0xff]
  %v6935 = vld [vmem:[%s6930 + $0x20] sm:$0xff]
  %v6936 = vld [vmem:[%s6930 + $0x28] sm:$0xff]
  %v6937 = vld [vmem:[%s6930 + $0x30] sm:$0xff]
  %v6938 = vld [vmem:[%s6930 + $0x38] sm:$0xff]
  %v6939 = vld [vmem:[%s6930 + $0x40] sm:$0xff]
  %v6940 = vld [vmem:[%s6930 + $0x48] sm:$0xff]
  %v6941 = vld [vmem:[%s6930 + $0x50] sm:$0xff]
  %v6942 = vld [vmem:[%s6930 + $0x58] sm:$0xff]
  %v6943 = vld [vmem:[%s6930 + $0x60] sm:$0xff]
  %v6944 = vld [vmem:[%s6930 + $0x68] sm:$0xff]
  %v6945 = vld [vmem:[%s6930 + $0x70] sm:$0xff]
  %v6946 = vld [vmem:[%s6930 + $0x78] sm:$0xff]
  %v6963 = vunpack.c.l.b16 %v6931
  %v6964 = vunpack.c.h.b16 %v6931
  %v6965 = vunpack.c.l.b16 %v6932
  %v6966 = vunpack.c.h.b16 %v6932
  %v6967 = vunpack.c.l.b16 %v6933
  %v6968 = vunpack.c.h.b16 %v6933
  %v6969 = vunpack.c.l.b16 %v6934
  %v6970 = vunpack.c.h.b16 %v6934
  %v6971 = vunpack.c.l.b16 %v6935
  %v6972 = vunpack.c.h.b16 %v6935
  %v6973 = vunpack.c.l.b16 %v6936
  %v6974 = vunpack.c.h.b16 %v6936
  %v6975 = vunpack.c.l.b16 %v6937
  %v6976 = vunpack.c.h.b16 %v6937
  %v6977 = vunpack.c.l.b16 %v6938
  %v6978 = vunpack.c.h.b16 %v6938
  %v6979 = vunpack.c.l.b16 %v6939
  %v6980 = vunpack.c.h.b16 %v6939
  %v6981 = vunpack.c.l.b16 %v6940
  %v6982 = vunpack.c.h.b16 %v6940
  %v6983 = vunpack.c.l.b16 %v6941
  %v6984 = vunpack.c.h.b16 %v6941
  %v6985 = vunpack.c.l.b16 %v6942
  %v6986 = vunpack.c.h.b16 %v6942
  %v6987 = vunpack.c.l.b16 %v6943
  %v6988 = vunpack.c.h.b16 %v6943
  %v6989 = vunpack.c.l.b16 %v6944
  %v6990 = vunpack.c.h.b16 %v6944
  %v6991 = vunpack.c.l.b16 %v6945
  %v6992 = vunpack.c.h.b16 %v6945
  %v6993 = vunpack.c.l.b16 %v6946
  %v6994 = vunpack.c.h.b16 %v6946
  %v6995 = vpack.c.b16 %v6965, %v6963
  %v6996 = vpack.c.b16 %v6966, %v6964
  %v6997 = vpack.c.b16 %v6969, %v6967
  %v6998 = vpack.c.b16 %v6970, %v6968
  %v6999 = vpack.c.b16 %v6973, %v6971
  %v7000 = vpack.c.b16 %v6974, %v6972
  %v7001 = vpack.c.b16 %v6977, %v6975
  %v7002 = vpack.c.b16 %v6978, %v6976
  %v7003 = vpack.c.b16 %v6981, %v6979
  %v7004 = vpack.c.b16 %v6982, %v6980
  %v7005 = vpack.c.b16 %v6985, %v6983
  %v7006 = vpack.c.b16 %v6986, %v6984
  %v7007 = vpack.c.b16 %v6989, %v6987
  %v7008 = vpack.c.b16 %v6990, %v6988
  %v7009 = vpack.c.b16 %v6993, %v6991
  %v7010 = vpack.c.b16 %v6994, %v6992
  %7027 = vmatprep.subr.bf16.mxu0 %v7010
  %7028 = vmatpush1.bf16.msra.mxu0 %v7009
  %7029 = vmatprep.subr.bf16.mxu0 %v7008
  %7030 = vmatpush1.bf16.msra.mxu0 %v7007
  %7031 = vmatprep.subr.bf16.mxu0 %v7006
  %7032 = vmatpush1.bf16.msra.mxu0 %v7005
  %7033 = vmatprep.subr.bf16.mxu0 %v7004
  %7034 = vmatpush1.bf16.msra.mxu0 %v7003
  %7035 = vmatprep.subr.bf16.mxu0 %v7002
  %7036 = vmatpush1.bf16.msra.mxu0 %v7001
  %7037 = vmatprep.subr.bf16.mxu0 %v7000
  %7038 = vmatpush1.bf16.msra.mxu0 %v6999
  %7039 = vmatprep.subr.bf16.mxu0 %v6998
  %7040 = vmatpush1.bf16.msra.mxu0 %v6997
  %7041 = vmatprep.subr.bf16.mxu0 %v6996
  %7042 = vmatpush1.bf16.msra.mxu0 %v6995
  %7043 = vmatprep.subr.bf16.mxu0 0
  %7044 = vmatpush2.bf16.msra.mxu0 0
  %7045 = vmatprep.subr.bf16.mxu0 0
  %7046 = vmatpush2.bf16.msra.mxu0 0
  %7047 = vmatprep.subr.bf16.mxu0 0
  %7048 = vmatpush2.bf16.msra.mxu0 0
  %7049 = vmatprep.subr.bf16.mxu0 0
  %7050 = vmatpush2.bf16.msra.mxu0 0
  %7051 = vmatprep.subr.bf16.mxu0 0
  %7052 = vmatpush2.bf16.msra.mxu0 0
  %7053 = vmatprep.subr.bf16.mxu0 0
  %7054 = vmatpush2.bf16.msra.mxu0 0
  %7055 = vmatprep.subr.bf16.mxu0 0
  %7056 = vmatpush2.bf16.msra.mxu0 0
  %7057 = vmatprep.subr.bf16.mxu0 0
  %7058 = vmatpush2.bf16.msra.mxu0 0
  %7059 = vmatprep.mubr.bf16.mxu0 0
  %7060 = vmatmul.mubr.bf16.gmra.mxu0 %v6929
  %v7061 = vpop.f32.mrf.mxu0
  %v7062 = vadd.f32 0.0, %v7061
  %v7063 = vpop.f32.mrf.mxu0
  %v7064 = vadd.f32 0.0, %v7063
  %v7065 = vpop.f32.mrf.mxu0
  %v7066 = vadd.f32 0.0, %v7065
  %v7067 = vpop.f32.mrf.mxu0
  %v7068 = vadd.f32 0.0, %v7067
  %7069 = vdwg.mxu0
  %v7070 = vadd.f32 %v6184, %v7062
  %v7071 = vadd.f32 %v6185, %v7064
  %v7072 = vadd.f32 %v6186, %v7066
  %v7073 = vadd.f32 %v6187, %v7068
  %s7074 = scalar_lea.vmem %s0, 1296
  %v7075 = vld [vmem:[%s7074] sm:$0xff]
  %v7076 = vld [vmem:[%s7074 + $0x8] sm:$0xff]
  %v7077 = vld [vmem:[%s7074 + $0x10] sm:$0xff]
  %v7078 = vld [vmem:[%s7074 + $0x18] sm:$0xff]
  %v7079 = vld [vmem:[%s7074 + $0x20] sm:$0xff]
  %v7080 = vld [vmem:[%s7074 + $0x28] sm:$0xff]
  %v7081 = vld [vmem:[%s7074 + $0x30] sm:$0xff]
  %v7082 = vld [vmem:[%s7074 + $0x38] sm:$0xff]
  %v7083 = vld [vmem:[%s7074 + $0x40] sm:$0xff]
  %v7084 = vld [vmem:[%s7074 + $0x48] sm:$0xff]
  %v7085 = vld [vmem:[%s7074 + $0x50] sm:$0xff]
  %v7086 = vld [vmem:[%s7074 + $0x58] sm:$0xff]
  %v7087 = vld [vmem:[%s7074 + $0x60] sm:$0xff]
  %v7088 = vld [vmem:[%s7074 + $0x68] sm:$0xf]
  %v7089 = vld [vmem:[%s7074 + $0x6c] sm:$0xff]
  %v7090 = vld [vmem:[%s7074 + $0x74] sm:$0xff]
  %v7091 = vld [vmem:[%s7074 + $0x7c] sm:$0xff]
  %v7092 = vld [vmem:[%s7074 + $0x84] sm:$0xff]
  %v7093 = vld [vmem:[%s7074 + $0x8c] sm:$0xff]
  %v7094 = vld [vmem:[%s7074 + $0x94] sm:$0xff]
  %v7095 = vld [vmem:[%s7074 + $0x9c] sm:$0xff]
  %v7096 = vld [vmem:[%s7074 + $0xa4] sm:$0xff]
  %v7097 = vld [vmem:[%s7074 + $0xac] sm:$0xff]
  %v7098 = vld [vmem:[%s7074 + $0xb4] sm:$0xff]
  %v7099 = vld [vmem:[%s7074 + $0xbc] sm:$0xff]
  %v7100 = vld [vmem:[%s7074 + $0xc4] sm:$0xff]
  %v7101 = vld [vmem:[%s7074 + $0xcc] sm:$0xff]
  %v7102 = vld [vmem:[%s7074 + $0xd4] sm:$0xf]
  %v7131 = vunpack.c.l.b16 %v7075
  %v7132 = vunpack.c.h.b16 %v7075
  %v7133 = vunpack.c.l.b16 %v7076
  %v7134 = vunpack.c.h.b16 %v7076
  %v7135 = vunpack.c.l.b16 %v7077
  %v7136 = vunpack.c.h.b16 %v7077
  %v7137 = vunpack.c.l.b16 %v7078
  %v7138 = vunpack.c.h.b16 %v7078
  %v7139 = vunpack.c.l.b16 %v7079
  %v7140 = vunpack.c.h.b16 %v7079
  %v7141 = vunpack.c.l.b16 %v7080
  %v7142 = vunpack.c.h.b16 %v7080
  %v7143 = vunpack.c.l.b16 %v7081
  %v7144 = vunpack.c.h.b16 %v7081
  %v7145 = vunpack.c.l.b16 %v7082
  %v7146 = vunpack.c.h.b16 %v7082
  %v7147 = vunpack.c.l.b16 %v7083
  %v7148 = vunpack.c.h.b16 %v7083
  %v7149 = vunpack.c.l.b16 %v7084
  %v7150 = vunpack.c.h.b16 %v7084
  %v7151 = vunpack.c.l.b16 %v7085
  %v7152 = vunpack.c.h.b16 %v7085
  %v7153 = vunpack.c.l.b16 %v7086
  %v7154 = vunpack.c.h.b16 %v7086
  %v7155 = vunpack.c.l.b16 %v7087
  %v7156 = vunpack.c.h.b16 %v7087
  %v7157 = vunpack.c.l.b16 %v7088
  %v7158 = vunpack.c.l.b16 %v7089
  %v7159 = vunpack.c.h.b16 %v7089
  %v7160 = vunpack.c.l.b16 %v7090
  %v7161 = vunpack.c.h.b16 %v7090
  %v7162 = vunpack.c.l.b16 %v7091
  %v7163 = vunpack.c.h.b16 %v7091
  %v7164 = vunpack.c.l.b16 %v7092
  %v7165 = vunpack.c.h.b16 %v7092
  %v7166 = vunpack.c.l.b16 %v7093
  %v7167 = vunpack.c.h.b16 %v7093
  %v7168 = vunpack.c.l.b16 %v7094
  %v7169 = vunpack.c.h.b16 %v7094
  %v7170 = vunpack.c.l.b16 %v7095
  %v7171 = vunpack.c.h.b16 %v7095
  %v7172 = vunpack.c.l.b16 %v7096
  %v7173 = vunpack.c.h.b16 %v7096
  %v7174 = vunpack.c.l.b16 %v7097
  %v7175 = vunpack.c.h.b16 %v7097
  %v7176 = vunpack.c.l.b16 %v7098
  %v7177 = vunpack.c.h.b16 %v7098
  %v7178 = vunpack.c.l.b16 %v7099
  %v7179 = vunpack.c.h.b16 %v7099
  %v7180 = vunpack.c.l.b16 %v7100
  %v7181 = vunpack.c.h.b16 %v7100
  %v7182 = vunpack.c.l.b16 %v7101
  %v7183 = vunpack.c.h.b16 %v7101
  %v7184 = vunpack.c.l.b16 %v7102
  %v7185 = vpack.c.b16 %v7158, %v7131
  %v7186 = vpack.c.b16 %v7159, %v7132
  %v7187 = vpack.c.b16 %v7160, %v7133
  %v7188 = vpack.c.b16 %v7161, %v7134
  %v7189 = vpack.c.b16 %v7162, %v7135
  %v7190 = vpack.c.b16 %v7163, %v7136
  %v7191 = vpack.c.b16 %v7164, %v7137
  %v7192 = vpack.c.b16 %v7165, %v7138
  %v7193 = vpack.c.b16 %v7166, %v7139
  %v7194 = vpack.c.b16 %v7167, %v7140
  %v7195 = vpack.c.b16 %v7168, %v7141
  %v7196 = vpack.c.b16 %v7169, %v7142
  %v7197 = vpack.c.b16 %v7170, %v7143
  %v7198 = vpack.c.b16 %v7171, %v7144
  %v7199 = vpack.c.b16 %v7172, %v7145
  %v7200 = vpack.c.b16 %v7173, %v7146
  %v7201 = vpack.c.b16 %v7174, %v7147
  %v7202 = vpack.c.b16 %v7175, %v7148
  %v7203 = vpack.c.b16 %v7176, %v7149
  %v7204 = vpack.c.b16 %v7177, %v7150
  %v7205 = vpack.c.b16 %v7178, %v7151
  %v7206 = vpack.c.b16 %v7179, %v7152
  %v7207 = vpack.c.b16 %v7180, %v7153
  %v7208 = vpack.c.b16 %v7181, %v7154
  %v7209 = vpack.c.b16 %v7182, %v7155
  %v7210 = vpack.c.b16 %v7183, %v7156
  %v7211 = vpack.c.b16 %v7184, %v7157
  %7239 = vmatprep.subr.bf16.mxu0 0
  %7240 = vmatpush1.bf16.msra.mxu0 %v1507
  %7241 = vmatprep.subr.bf16.mxu0 0
  %7242 = vmatpush1.bf16.msra.mxu0 %v1506
  %7243 = vmatprep.subr.bf16.mxu0 0
  %7244 = vmatpush1.bf16.msra.mxu0 %v1505
  %7245 = vmatprep.subr.bf16.mxu0 0
  %7246 = vmatpush1.bf16.msra.mxu0 %v1504
  %7247 = vmatprep.subr.bf16.mxu0 0
  %7248 = vmatpush1.bf16.msra.mxu0 %v1503
  %7249 = vmatprep.subr.bf16.mxu0 0
  %7250 = vmatpush1.bf16.msra.mxu0 %v1502
  %7251 = vmatprep.subr.bf16.mxu0 0
  %7252 = vmatpush1.bf16.msra.mxu0 %v1501
  %7253 = vmatprep.subr.bf16.mxu0 0
  %7254 = vmatpush1.bf16.msra.mxu0 %v1500
  %7255 = vmatprep.subr.bf16.mxu0 0
  %7256 = vmatpush2.bf16.msra.mxu0 %v1515
  %7257 = vmatprep.subr.bf16.mxu0 0
  %7258 = vmatpush2.bf16.msra.mxu0 %v1514
  %7259 = vmatprep.subr.bf16.mxu0 0
  %7260 = vmatpush2.bf16.msra.mxu0 %v1513
  %7261 = vmatprep.subr.bf16.mxu0 0
  %7262 = vmatpush2.bf16.msra.mxu0 %v1512
  %7263 = vmatprep.subr.bf16.mxu0 0
  %7264 = vmatpush2.bf16.msra.mxu0 %v1511
  %7265 = vmatprep.subr.bf16.mxu0 0
  %7266 = vmatpush2.bf16.msra.mxu0 %v1510
  %7267 = vmatprep.subr.bf16.mxu0 0
  %7268 = vmatpush2.bf16.msra.mxu0 %v1509
  %7269 = vmatprep.subr.bf16.mxu0 0
  %7270 = vmatpush2.bf16.msra.mxu0 %v1508
  %7271 = vmatprep.mubr.bf16.mxu0 %v7186
  %7272 = vmatmul.mubr.bf16.gmra.mxu0 %v7185
  %v7273 = vpop.f32.mrf.mxu0
  %v7274 = vadd.f32 %v498, %v7273
  %v7275 = vpop.f32.mrf.mxu0
  %v7276 = vpop.f32.mrf.mxu0
  %v7277 = vadd.f32 %v498, %v7276
  %v7278 = vpop.f32.mrf.mxu0
  %7279 = vdwg.mxu0
  %7280 = vmatprep.subr.bf16.mxu0 0
  %7281 = vmatpush1.bf16.msra.mxu0 %v1523
  %7282 = vmatprep.subr.bf16.mxu0 0
  %7283 = vmatpush1.bf16.msra.mxu0 %v1522
  %7284 = vmatprep.subr.bf16.mxu0 0
  %7285 = vmatpush1.bf16.msra.mxu0 %v1521
  %7286 = vmatprep.subr.bf16.mxu0 0
  %7287 = vmatpush1.bf16.msra.mxu0 %v1520
  %7288 = vmatprep.subr.bf16.mxu0 0
  %7289 = vmatpush1.bf16.msra.mxu0 %v1519
  %7290 = vmatprep.subr.bf16.mxu0 0
  %7291 = vmatpush1.bf16.msra.mxu0 %v1518
  %7292 = vmatprep.subr.bf16.mxu0 0
  %7293 = vmatpush1.bf16.msra.mxu0 %v1517
  %7294 = vmatprep.subr.bf16.mxu0 0
  %7295 = vmatpush1.bf16.msra.mxu0 %v1516
  %7296 = vmatprep.subr.bf16.mxu0 0
  %7297 = vmatpush2.bf16.msra.mxu0 %v1531
  %7298 = vmatprep.subr.bf16.mxu0 0
  %7299 = vmatpush2.bf16.msra.mxu0 %v1530
  %7300 = vmatprep.subr.bf16.mxu0 0
  %7301 = vmatpush2.bf16.msra.mxu0 %v1529
  %7302 = vmatprep.subr.bf16.mxu0 0
  %7303 = vmatpush2.bf16.msra.mxu0 %v1528
  %7304 = vmatprep.subr.bf16.mxu0 0
  %7305 = vmatpush2.bf16.msra.mxu0 %v1527
  %7306 = vmatprep.subr.bf16.mxu0 0
  %7307 = vmatpush2.bf16.msra.mxu0 %v1526
  %7308 = vmatprep.subr.bf16.mxu0 0
  %7309 = vmatpush2.bf16.msra.mxu0 %v1525
  %7310 = vmatprep.subr.bf16.mxu0 0
  %7311 = vmatpush2.bf16.msra.mxu0 %v1524
  %7312 = vmatprep.mubr.bf16.mxu0 %v7188
  %7313 = vmatmul.mubr.bf16.gmra.mxu0 %v7187
  %v7314 = vpop.f32.mrf.mxu0
  %v7315 = vadd.f32 %v7274, %v7314
  %v7316 = vpop.f32.mrf.mxu0
  %v7317 = vpop.f32.mrf.mxu0
  %v7318 = vadd.f32 %v7277, %v7317
  %v7319 = vpop.f32.mrf.mxu0
  %7320 = vdwg.mxu0
  %7321 = vmatprep.subr.bf16.mxu0 0
  %7322 = vmatpush1.bf16.msra.mxu0 %v1539
  %7323 = vmatprep.subr.bf16.mxu0 0
  %7324 = vmatpush1.bf16.msra.mxu0 %v1538
  %7325 = vmatprep.subr.bf16.mxu0 0
  %7326 = vmatpush1.bf16.msra.mxu0 %v1537
  %7327 = vmatprep.subr.bf16.mxu0 0
  %7328 = vmatpush1.bf16.msra.mxu0 %v1536
  %7329 = vmatprep.subr.bf16.mxu0 0
  %7330 = vmatpush1.bf16.msra.mxu0 %v1535
  %7331 = vmatprep.subr.bf16.mxu0 0
  %7332 = vmatpush1.bf16.msra.mxu0 %v1534
  %7333 = vmatprep.subr.bf16.mxu0 0
  %7334 = vmatpush1.bf16.msra.mxu0 %v1533
  %7335 = vmatprep.subr.bf16.mxu0 0
  %7336 = vmatpush1.bf16.msra.mxu0 %v1532
  %7337 = vmatprep.subr.bf16.mxu0 0
  %7338 = vmatpush2.bf16.msra.mxu0 %v1547
  %7339 = vmatprep.subr.bf16.mxu0 0
  %7340 = vmatpush2.bf16.msra.mxu0 %v1546
  %7341 = vmatprep.subr.bf16.mxu0 0
  %7342 = vmatpush2.bf16.msra.mxu0 %v1545
  %7343 = vmatprep.subr.bf16.mxu0 0
  %7344 = vmatpush2.bf16.msra.mxu0 %v1544
  %7345 = vmatprep.subr.bf16.mxu0 0
  %7346 = vmatpush2.bf16.msra.mxu0 %v1543
  %7347 = vmatprep.subr.bf16.mxu0 0
  %7348 = vmatpush2.bf16.msra.mxu0 %v1542
  %7349 = vmatprep.subr.bf16.mxu0 0
  %7350 = vmatpush2.bf16.msra.mxu0 %v1541
  %7351 = vmatprep.subr.bf16.mxu0 0
  %7352 = vmatpush2.bf16.msra.mxu0 %v1540
  %7353 = vmatprep.mubr.bf16.mxu0 %v7190
  %7354 = vmatmul.mubr.bf16.gmra.mxu0 %v7189
  %v7355 = vpop.f32.mrf.mxu0
  %v7356 = vadd.f32 %v7315, %v7355
  %v7357 = vpop.f32.mrf.mxu0
  %v7358 = vpop.f32.mrf.mxu0
  %v7359 = vadd.f32 %v7318, %v7358
  %v7360 = vpop.f32.mrf.mxu0
  %7361 = vdwg.mxu0
  %7362 = vmatprep.subr.bf16.mxu0 0
  %7363 = vmatpush1.bf16.msra.mxu0 %v1555
  %7364 = vmatprep.subr.bf16.mxu0 0
  %7365 = vmatpush1.bf16.msra.mxu0 %v1554
  %7366 = vmatprep.subr.bf16.mxu0 0
  %7367 = vmatpush1.bf16.msra.mxu0 %v1553
  %7368 = vmatprep.subr.bf16.mxu0 0
  %7369 = vmatpush1.bf16.msra.mxu0 %v1552
  %7370 = vmatprep.subr.bf16.mxu0 0
  %7371 = vmatpush1.bf16.msra.mxu0 %v1551
  %7372 = vmatprep.subr.bf16.mxu0 0
  %7373 = vmatpush1.bf16.msra.mxu0 %v1550
  %7374 = vmatprep.subr.bf16.mxu0 0
  %7375 = vmatpush1.bf16.msra.mxu0 %v1549
  %7376 = vmatprep.subr.bf16.mxu0 0
  %7377 = vmatpush1.bf16.msra.mxu0 %v1548
  %7378 = vmatprep.subr.bf16.mxu0 0
  %7379 = vmatpush2.bf16.msra.mxu0 %v1563
  %7380 = vmatprep.subr.bf16.mxu0 0
  %7381 = vmatpush2.bf16.msra.mxu0 %v1562
  %7382 = vmatprep.subr.bf16.mxu0 0
  %7383 = vmatpush2.bf16.msra.mxu0 %v1561
  %7384 = vmatprep.subr.bf16.mxu0 0
  %7385 = vmatpush2.bf16.msra.mxu0 %v1560
  %7386 = vmatprep.subr.bf16.mxu0 0
  %7387 = vmatpush2.bf16.msra.mxu0 %v1559
  %7388 = vmatprep.subr.bf16.mxu0 0
  %7389 = vmatpush2.bf16.msra.mxu0 %v1558
  %7390 = vmatprep.subr.bf16.mxu0 0
  %7391 = vmatpush2.bf16.msra.mxu0 %v1557
  %7392 = vmatprep.subr.bf16.mxu0 0
  %7393 = vmatpush2.bf16.msra.mxu0 %v1556
  %7394 = vmatprep.mubr.bf16.mxu0 %v7192
  %7395 = vmatmul.mubr.bf16.gmra.mxu0 %v7191
  %v7396 = vpop.f32.mrf.mxu0
  %v7397 = vadd.f32 %v7356, %v7396
  %v7398 = vpop.f32.mrf.mxu0
  %v7399 = vpop.f32.mrf.mxu0
  %v7400 = vadd.f32 %v7359, %v7399
  %v7401 = vpop.f32.mrf.mxu0
  %7402 = vdwg.mxu0
  %7403 = vmatprep.subr.bf16.mxu0 0
  %7404 = vmatpush1.bf16.msra.mxu0 %v1571
  %7405 = vmatprep.subr.bf16.mxu0 0
  %7406 = vmatpush1.bf16.msra.mxu0 %v1570
  %7407 = vmatprep.subr.bf16.mxu0 0
  %7408 = vmatpush1.bf16.msra.mxu0 %v1569
  %7409 = vmatprep.subr.bf16.mxu0 0
  %7410 = vmatpush1.bf16.msra.mxu0 %v1568
  %7411 = vmatprep.subr.bf16.mxu0 0
  %7412 = vmatpush1.bf16.msra.mxu0 %v1567
  %7413 = vmatprep.subr.bf16.mxu0 0
  %7414 = vmatpush1.bf16.msra.mxu0 %v1566
  %7415 = vmatprep.subr.bf16.mxu0 0
  %7416 = vmatpush1.bf16.msra.mxu0 %v1565
  %7417 = vmatprep.subr.bf16.mxu0 0
  %7418 = vmatpush1.bf16.msra.mxu0 %v1564
  %7419 = vmatprep.subr.bf16.mxu0 0
  %7420 = vmatpush2.bf16.msra.mxu0 %v1579
  %7421 = vmatprep.subr.bf16.mxu0 0
  %7422 = vmatpush2.bf16.msra.mxu0 %v1578
  %7423 = vmatprep.subr.bf16.mxu0 0
  %7424 = vmatpush2.bf16.msra.mxu0 %v1577
  %7425 = vmatprep.subr.bf16.mxu0 0
  %7426 = vmatpush2.bf16.msra.mxu0 %v1576
  %7427 = vmatprep.subr.bf16.mxu0 0
  %7428 = vmatpush2.bf16.msra.mxu0 %v1575
  %7429 = vmatprep.subr.bf16.mxu0 0
  %7430 = vmatpush2.bf16.msra.mxu0 %v1574
  %7431 = vmatprep.subr.bf16.mxu0 0
  %7432 = vmatpush2.bf16.msra.mxu0 %v1573
  %7433 = vmatprep.subr.bf16.mxu0 0
  %7434 = vmatpush2.bf16.msra.mxu0 %v1572
  %7435 = vmatprep.mubr.bf16.mxu0 %v7194
  %7436 = vmatmul.mubr.bf16.gmra.mxu0 %v7193
  %v7437 = vpop.f32.mrf.mxu0
  %v7438 = vadd.f32 %v7397, %v7437
  %v7439 = vpop.f32.mrf.mxu0
  %v7440 = vpop.f32.mrf.mxu0
  %v7441 = vadd.f32 %v7400, %v7440
  %v7442 = vpop.f32.mrf.mxu0
  %7443 = vdwg.mxu0
  %7444 = vmatprep.subr.bf16.mxu0 0
  %7445 = vmatpush1.bf16.msra.mxu0 %v1587
  %7446 = vmatprep.subr.bf16.mxu0 0
  %7447 = vmatpush1.bf16.msra.mxu0 %v1586
  %7448 = vmatprep.subr.bf16.mxu0 0
  %7449 = vmatpush1.bf16.msra.mxu0 %v1585
  %7450 = vmatprep.subr.bf16.mxu0 0
  %7451 = vmatpush1.bf16.msra.mxu0 %v1584
  %7452 = vmatprep.subr.bf16.mxu0 0
  %7453 = vmatpush1.bf16.msra.mxu0 %v1583
  %7454 = vmatprep.subr.bf16.mxu0 0
  %7455 = vmatpush1.bf16.msra.mxu0 %v1582
  %7456 = vmatprep.subr.bf16.mxu0 0
  %7457 = vmatpush1.bf16.msra.mxu0 %v1581
  %7458 = vmatprep.subr.bf16.mxu0 0
  %7459 = vmatpush1.bf16.msra.mxu0 %v1580
  %7460 = vmatprep.subr.bf16.mxu0 0
  %7461 = vmatpush2.bf16.msra.mxu0 %v1595
  %7462 = vmatprep.subr.bf16.mxu0 0
  %7463 = vmatpush2.bf16.msra.mxu0 %v1594
  %7464 = vmatprep.subr.bf16.mxu0 0
  %7465 = vmatpush2.bf16.msra.mxu0 %v1593
  %7466 = vmatprep.subr.bf16.mxu0 0
  %7467 = vmatpush2.bf16.msra.mxu0 %v1592
  %7468 = vmatprep.subr.bf16.mxu0 0
  %7469 = vmatpush2.bf16.msra.mxu0 %v1591
  %7470 = vmatprep.subr.bf16.mxu0 0
  %7471 = vmatpush2.bf16.msra.mxu0 %v1590
  %7472 = vmatprep.subr.bf16.mxu0 0
  %7473 = vmatpush2.bf16.msra.mxu0 %v1589
  %7474 = vmatprep.subr.bf16.mxu0 0
  %7475 = vmatpush2.bf16.msra.mxu0 %v1588
  %7476 = vmatprep.mubr.bf16.mxu0 %v7196
  %7477 = vmatmul.mubr.bf16.gmra.mxu0 %v7195
  %v7478 = vpop.f32.mrf.mxu0
  %v7479 = vadd.f32 %v7438, %v7478
  %v7480 = vpop.f32.mrf.mxu0
  %v7481 = vpop.f32.mrf.mxu0
  %v7482 = vadd.f32 %v7441, %v7481
  %v7483 = vpop.f32.mrf.mxu0
  %7484 = vdwg.mxu0
  %7485 = vmatprep.subr.bf16.mxu0 0
  %7486 = vmatpush1.bf16.msra.mxu0 %v1603
  %7487 = vmatprep.subr.bf16.mxu0 0
  %7488 = vmatpush1.bf16.msra.mxu0 %v1602
  %7489 = vmatprep.subr.bf16.mxu0 0
  %7490 = vmatpush1.bf16.msra.mxu0 %v1601
  %7491 = vmatprep.subr.bf16.mxu0 0
  %7492 = vmatpush1.bf16.msra.mxu0 %v1600
  %7493 = vmatprep.subr.bf16.mxu0 0
  %7494 = vmatpush1.bf16.msra.mxu0 %v1599
  %7495 = vmatprep.subr.bf16.mxu0 0
  %7496 = vmatpush1.bf16.msra.mxu0 %v1598
  %7497 = vmatprep.subr.bf16.mxu0 0
  %7498 = vmatpush1.bf16.msra.mxu0 %v1597
  %7499 = vmatprep.subr.bf16.mxu0 0
  %7500 = vmatpush1.bf16.msra.mxu0 %v1596
  %7501 = vmatprep.subr.bf16.mxu0 0
  %7502 = vmatpush2.bf16.msra.mxu0 %v1611
  %7503 = vmatprep.subr.bf16.mxu0 0
  %7504 = vmatpush2.bf16.msra.mxu0 %v1610
  %7505 = vmatprep.subr.bf16.mxu0 0
  %7506 = vmatpush2.bf16.msra.mxu0 %v1609
  %7507 = vmatprep.subr.bf16.mxu0 0
  %7508 = vmatpush2.bf16.msra.mxu0 %v1608
  %7509 = vmatprep.subr.bf16.mxu0 0
  %7510 = vmatpush2.bf16.msra.mxu0 %v1607
  %7511 = vmatprep.subr.bf16.mxu0 0
  %7512 = vmatpush2.bf16.msra.mxu0 %v1606
  %7513 = vmatprep.subr.bf16.mxu0 0
  %7514 = vmatpush2.bf16.msra.mxu0 %v1605
  %7515 = vmatprep.subr.bf16.mxu0 0
  %7516 = vmatpush2.bf16.msra.mxu0 %v1604
  %7517 = vmatprep.mubr.bf16.mxu0 %v7198
  %7518 = vmatmul.mubr.bf16.gmra.mxu0 %v7197
  %v7519 = vpop.f32.mrf.mxu0
  %v7520 = vadd.f32 %v7479, %v7519
  %v7521 = vpop.f32.mrf.mxu0
  %v7522 = vpop.f32.mrf.mxu0
  %v7523 = vadd.f32 %v7482, %v7522
  %v7524 = vpop.f32.mrf.mxu0
  %7525 = vdwg.mxu0
  %7526 = vmatprep.subr.bf16.mxu0 0
  %7527 = vmatpush1.bf16.msra.mxu0 %v1619
  %7528 = vmatprep.subr.bf16.mxu0 0
  %7529 = vmatpush1.bf16.msra.mxu0 %v1618
  %7530 = vmatprep.subr.bf16.mxu0 0
  %7531 = vmatpush1.bf16.msra.mxu0 %v1617
  %7532 = vmatprep.subr.bf16.mxu0 0
  %7533 = vmatpush1.bf16.msra.mxu0 %v1616
  %7534 = vmatprep.subr.bf16.mxu0 0
  %7535 = vmatpush1.bf16.msra.mxu0 %v1615
  %7536 = vmatprep.subr.bf16.mxu0 0
  %7537 = vmatpush1.bf16.msra.mxu0 %v1614
  %7538 = vmatprep.subr.bf16.mxu0 0
  %7539 = vmatpush1.bf16.msra.mxu0 %v1613
  %7540 = vmatprep.subr.bf16.mxu0 0
  %7541 = vmatpush1.bf16.msra.mxu0 %v1612
  %7542 = vmatprep.subr.bf16.mxu0 0
  %7543 = vmatpush2.bf16.msra.mxu0 %v1627
  %7544 = vmatprep.subr.bf16.mxu0 0
  %7545 = vmatpush2.bf16.msra.mxu0 %v1626
  %7546 = vmatprep.subr.bf16.mxu0 0
  %7547 = vmatpush2.bf16.msra.mxu0 %v1625
  %7548 = vmatprep.subr.bf16.mxu0 0
  %7549 = vmatpush2.bf16.msra.mxu0 %v1624
  %7550 = vmatprep.subr.bf16.mxu0 0
  %7551 = vmatpush2.bf16.msra.mxu0 %v1623
  %7552 = vmatprep.subr.bf16.mxu0 0
  %7553 = vmatpush2.bf16.msra.mxu0 %v1622
  %7554 = vmatprep.subr.bf16.mxu0 0
  %7555 = vmatpush2.bf16.msra.mxu0 %v1621
  %7556 = vmatprep.subr.bf16.mxu0 0
  %7557 = vmatpush2.bf16.msra.mxu0 %v1620
  %7558 = vmatprep.mubr.bf16.mxu0 %v7200
  %7559 = vmatmul.mubr.bf16.gmra.mxu0 %v7199
  %v7560 = vpop.f32.mrf.mxu0
  %v7561 = vadd.f32 %v7520, %v7560
  %v7562 = vpop.f32.mrf.mxu0
  %v7563 = vpop.f32.mrf.mxu0
  %v7564 = vadd.f32 %v7523, %v7563
  %v7565 = vpop.f32.mrf.mxu0
  %7566 = vdwg.mxu0
  %7567 = vmatprep.subr.bf16.mxu0 0
  %7568 = vmatpush1.bf16.msra.mxu0 %v1635
  %7569 = vmatprep.subr.bf16.mxu0 0
  %7570 = vmatpush1.bf16.msra.mxu0 %v1634
  %7571 = vmatprep.subr.bf16.mxu0 0
  %7572 = vmatpush1.bf16.msra.mxu0 %v1633
  %7573 = vmatprep.subr.bf16.mxu0 0
  %7574 = vmatpush1.bf16.msra.mxu0 %v1632
  %7575 = vmatprep.subr.bf16.mxu0 0
  %7576 = vmatpush1.bf16.msra.mxu0 %v1631
  %7577 = vmatprep.subr.bf16.mxu0 0
  %7578 = vmatpush1.bf16.msra.mxu0 %v1630
  %7579 = vmatprep.subr.bf16.mxu0 0
  %7580 = vmatpush1.bf16.msra.mxu0 %v1629
  %7581 = vmatprep.subr.bf16.mxu0 0
  %7582 = vmatpush1.bf16.msra.mxu0 %v1628
  %7583 = vmatprep.subr.bf16.mxu0 0
  %7584 = vmatpush2.bf16.msra.mxu0 %v1643
  %7585 = vmatprep.subr.bf16.mxu0 0
  %7586 = vmatpush2.bf16.msra.mxu0 %v1642
  %7587 = vmatprep.subr.bf16.mxu0 0
  %7588 = vmatpush2.bf16.msra.mxu0 %v1641
  %7589 = vmatprep.subr.bf16.mxu0 0
  %7590 = vmatpush2.bf16.msra.mxu0 %v1640
  %7591 = vmatprep.subr.bf16.mxu0 0
  %7592 = vmatpush2.bf16.msra.mxu0 %v1639
  %7593 = vmatprep.subr.bf16.mxu0 0
  %7594 = vmatpush2.bf16.msra.mxu0 %v1638
  %7595 = vmatprep.subr.bf16.mxu0 0
  %7596 = vmatpush2.bf16.msra.mxu0 %v1637
  %7597 = vmatprep.subr.bf16.mxu0 0
  %7598 = vmatpush2.bf16.msra.mxu0 %v1636
  %7599 = vmatprep.mubr.bf16.mxu0 %v7202
  %7600 = vmatmul.mubr.bf16.gmra.mxu0 %v7201
  %v7601 = vpop.f32.mrf.mxu0
  %v7602 = vadd.f32 %v7561, %v7601
  %v7603 = vpop.f32.mrf.mxu0
  %v7604 = vpop.f32.mrf.mxu0
  %v7605 = vadd.f32 %v7564, %v7604
  %v7606 = vpop.f32.mrf.mxu0
  %7607 = vdwg.mxu0
  %7608 = vmatprep.subr.bf16.mxu0 0
  %7609 = vmatpush1.bf16.msra.mxu0 %v1651
  %7610 = vmatprep.subr.bf16.mxu0 0
  %7611 = vmatpush1.bf16.msra.mxu0 %v1650
  %7612 = vmatprep.subr.bf16.mxu0 0
  %7613 = vmatpush1.bf16.msra.mxu0 %v1649
  %7614 = vmatprep.subr.bf16.mxu0 0
  %7615 = vmatpush1.bf16.msra.mxu0 %v1648
  %7616 = vmatprep.subr.bf16.mxu0 0
  %7617 = vmatpush1.bf16.msra.mxu0 %v1647
  %7618 = vmatprep.subr.bf16.mxu0 0
  %7619 = vmatpush1.bf16.msra.mxu0 %v1646
  %7620 = vmatprep.subr.bf16.mxu0 0
  %7621 = vmatpush1.bf16.msra.mxu0 %v1645
  %7622 = vmatprep.subr.bf16.mxu0 0
  %7623 = vmatpush1.bf16.msra.mxu0 %v1644
  %7624 = vmatprep.subr.bf16.mxu0 0
  %7625 = vmatpush2.bf16.msra.mxu0 %v1659
  %7626 = vmatprep.subr.bf16.mxu0 0
  %7627 = vmatpush2.bf16.msra.mxu0 %v1658
  %7628 = vmatprep.subr.bf16.mxu0 0
  %7629 = vmatpush2.bf16.msra.mxu0 %v1657
  %7630 = vmatprep.subr.bf16.mxu0 0
  %7631 = vmatpush2.bf16.msra.mxu0 %v1656
  %7632 = vmatprep.subr.bf16.mxu0 0
  %7633 = vmatpush2.bf16.msra.mxu0 %v1655
  %7634 = vmatprep.subr.bf16.mxu0 0
  %7635 = vmatpush2.bf16.msra.mxu0 %v1654
  %7636 = vmatprep.subr.bf16.mxu0 0
  %7637 = vmatpush2.bf16.msra.mxu0 %v1653
  %7638 = vmatprep.subr.bf16.mxu0 0
  %7639 = vmatpush2.bf16.msra.mxu0 %v1652
  %7640 = vmatprep.mubr.bf16.mxu0 %v7204
  %7641 = vmatmul.mubr.bf16.gmra.mxu0 %v7203
  %v7642 = vpop.f32.mrf.mxu0
  %v7643 = vadd.f32 %v7602, %v7642
  %v7644 = vpop.f32.mrf.mxu0
  %v7645 = vpop.f32.mrf.mxu0
  %v7646 = vadd.f32 %v7605, %v7645
  %v7647 = vpop.f32.mrf.mxu0
  %7648 = vdwg.mxu0
  %7649 = vmatprep.subr.bf16.mxu0 0
  %7650 = vmatpush1.bf16.msra.mxu0 %v1667
  %7651 = vmatprep.subr.bf16.mxu0 0
  %7652 = vmatpush1.bf16.msra.mxu0 %v1666
  %7653 = vmatprep.subr.bf16.mxu0 0
  %7654 = vmatpush1.bf16.msra.mxu0 %v1665
  %7655 = vmatprep.subr.bf16.mxu0 0
  %7656 = vmatpush1.bf16.msra.mxu0 %v1664
  %7657 = vmatprep.subr.bf16.mxu0 0
  %7658 = vmatpush1.bf16.msra.mxu0 %v1663
  %7659 = vmatprep.subr.bf16.mxu0 0
  %7660 = vmatpush1.bf16.msra.mxu0 %v1662
  %7661 = vmatprep.subr.bf16.mxu0 0
  %7662 = vmatpush1.bf16.msra.mxu0 %v1661
  %7663 = vmatprep.subr.bf16.mxu0 0
  %7664 = vmatpush1.bf16.msra.mxu0 %v1660
  %7665 = vmatprep.subr.bf16.mxu0 0
  %7666 = vmatpush2.bf16.msra.mxu0 %v1675
  %7667 = vmatprep.subr.bf16.mxu0 0
  %7668 = vmatpush2.bf16.msra.mxu0 %v1674
  %7669 = vmatprep.subr.bf16.mxu0 0
  %7670 = vmatpush2.bf16.msra.mxu0 %v1673
  %7671 = vmatprep.subr.bf16.mxu0 0
  %7672 = vmatpush2.bf16.msra.mxu0 %v1672
  %7673 = vmatprep.subr.bf16.mxu0 0
  %7674 = vmatpush2.bf16.msra.mxu0 %v1671
  %7675 = vmatprep.subr.bf16.mxu0 0
  %7676 = vmatpush2.bf16.msra.mxu0 %v1670
  %7677 = vmatprep.subr.bf16.mxu0 0
  %7678 = vmatpush2.bf16.msra.mxu0 %v1669
  %7679 = vmatprep.subr.bf16.mxu0 0
  %7680 = vmatpush2.bf16.msra.mxu0 %v1668
  %7681 = vmatprep.mubr.bf16.mxu0 %v7206
  %7682 = vmatmul.mubr.bf16.gmra.mxu0 %v7205
  %v7683 = vpop.f32.mrf.mxu0
  %v7684 = vadd.f32 %v7643, %v7683
  %v7685 = vpop.f32.mrf.mxu0
  %v7686 = vpop.f32.mrf.mxu0
  %v7687 = vadd.f32 %v7646, %v7686
  %v7688 = vpop.f32.mrf.mxu0
  %7689 = vdwg.mxu0
  %7690 = vmatprep.subr.bf16.mxu0 0
  %7691 = vmatpush1.bf16.msra.mxu0 %v1683
  %7692 = vmatprep.subr.bf16.mxu0 0
  %7693 = vmatpush1.bf16.msra.mxu0 %v1682
  %7694 = vmatprep.subr.bf16.mxu0 0
  %7695 = vmatpush1.bf16.msra.mxu0 %v1681
  %7696 = vmatprep.subr.bf16.mxu0 0
  %7697 = vmatpush1.bf16.msra.mxu0 %v1680
  %7698 = vmatprep.subr.bf16.mxu0 0
  %7699 = vmatpush1.bf16.msra.mxu0 %v1679
  %7700 = vmatprep.subr.bf16.mxu0 0
  %7701 = vmatpush1.bf16.msra.mxu0 %v1678
  %7702 = vmatprep.subr.bf16.mxu0 0
  %7703 = vmatpush1.bf16.msra.mxu0 %v1677
  %7704 = vmatprep.subr.bf16.mxu0 0
  %7705 = vmatpush1.bf16.msra.mxu0 %v1676
  %7706 = vmatprep.subr.bf16.mxu0 0
  %7707 = vmatpush2.bf16.msra.mxu0 %v1691
  %7708 = vmatprep.subr.bf16.mxu0 0
  %7709 = vmatpush2.bf16.msra.mxu0 %v1690
  %7710 = vmatprep.subr.bf16.mxu0 0
  %7711 = vmatpush2.bf16.msra.mxu0 %v1689
  %7712 = vmatprep.subr.bf16.mxu0 0
  %7713 = vmatpush2.bf16.msra.mxu0 %v1688
  %7714 = vmatprep.subr.bf16.mxu0 0
  %7715 = vmatpush2.bf16.msra.mxu0 %v1687
  %7716 = vmatprep.subr.bf16.mxu0 0
  %7717 = vmatpush2.bf16.msra.mxu0 %v1686
  %7718 = vmatprep.subr.bf16.mxu0 0
  %7719 = vmatpush2.bf16.msra.mxu0 %v1685
  %7720 = vmatprep.subr.bf16.mxu0 0
  %7721 = vmatpush2.bf16.msra.mxu0 %v1684
  %7722 = vmatprep.mubr.bf16.mxu0 %v7208
  %7723 = vmatmul.mubr.bf16.gmra.mxu0 %v7207
  %v7724 = vpop.f32.mrf.mxu0
  %v7725 = vadd.f32 %v7684, %v7724
  %v7726 = vpop.f32.mrf.mxu0
  %v7727 = vpop.f32.mrf.mxu0
  %v7728 = vadd.f32 %v7687, %v7727
  %v7729 = vpop.f32.mrf.mxu0
  %7730 = vdwg.mxu0
  %7731 = vmatprep.subr.bf16.mxu0 0
  %7732 = vmatpush1.bf16.msra.mxu0 %v1699
  %7733 = vmatprep.subr.bf16.mxu0 0
  %7734 = vmatpush1.bf16.msra.mxu0 %v1698
  %7735 = vmatprep.subr.bf16.mxu0 0
  %7736 = vmatpush1.bf16.msra.mxu0 %v1697
  %7737 = vmatprep.subr.bf16.mxu0 0
  %7738 = vmatpush1.bf16.msra.mxu0 %v1696
  %7739 = vmatprep.subr.bf16.mxu0 0
  %7740 = vmatpush1.bf16.msra.mxu0 %v1695
  %7741 = vmatprep.subr.bf16.mxu0 0
  %7742 = vmatpush1.bf16.msra.mxu0 %v1694
  %7743 = vmatprep.subr.bf16.mxu0 0
  %7744 = vmatpush1.bf16.msra.mxu0 %v1693
  %7745 = vmatprep.subr.bf16.mxu0 0
  %7746 = vmatpush1.bf16.msra.mxu0 %v1692
  %7747 = vmatprep.subr.bf16.mxu0 0
  %7748 = vmatpush2.bf16.msra.mxu0 %v1707
  %7749 = vmatprep.subr.bf16.mxu0 0
  %7750 = vmatpush2.bf16.msra.mxu0 %v1706
  %7751 = vmatprep.subr.bf16.mxu0 0
  %7752 = vmatpush2.bf16.msra.mxu0 %v1705
  %7753 = vmatprep.subr.bf16.mxu0 0
  %7754 = vmatpush2.bf16.msra.mxu0 %v1704
  %7755 = vmatprep.subr.bf16.mxu0 0
  %7756 = vmatpush2.bf16.msra.mxu0 %v1703
  %7757 = vmatprep.subr.bf16.mxu0 0
  %7758 = vmatpush2.bf16.msra.mxu0 %v1702
  %7759 = vmatprep.subr.bf16.mxu0 0
  %7760 = vmatpush2.bf16.msra.mxu0 %v1701
  %7761 = vmatprep.subr.bf16.mxu0 0
  %7762 = vmatpush2.bf16.msra.mxu0 %v1700
  %7763 = vmatprep.mubr.bf16.mxu0 %v7210
  %7764 = vmatmul.mubr.bf16.gmra.mxu0 %v7209
  %v7765 = vpop.f32.mrf.mxu0
  %v7766 = vadd.f32 %v7725, %v7765
  %v7767 = vpop.f32.mrf.mxu0
  %v7768 = vpop.f32.mrf.mxu0
  %v7769 = vadd.f32 %v7728, %v7768
  %v7770 = vpop.f32.mrf.mxu0
  %7771 = vdwg.mxu0
  %7772 = vmatprep.subr.bf16.mxu0 0
  %7773 = vmatpush1.bf16.msra.mxu0 %v1715
  %7774 = vmatprep.subr.bf16.mxu0 0
  %7775 = vmatpush1.bf16.msra.mxu0 %v1714
  %7776 = vmatprep.subr.bf16.mxu0 0
  %7777 = vmatpush1.bf16.msra.mxu0 %v1713
  %7778 = vmatprep.subr.bf16.mxu0 0
  %7779 = vmatpush1.bf16.msra.mxu0 %v1712
  %7780 = vmatprep.subr.bf16.mxu0 0
  %7781 = vmatpush1.bf16.msra.mxu0 %v1711
  %7782 = vmatprep.subr.bf16.mxu0 0
  %7783 = vmatpush1.bf16.msra.mxu0 %v1710
  %7784 = vmatprep.subr.bf16.mxu0 0
  %7785 = vmatpush1.bf16.msra.mxu0 %v1709
  %7786 = vmatprep.subr.bf16.mxu0 0
  %7787 = vmatpush1.bf16.msra.mxu0 %v1708
  %7788 = vmatprep.subr.bf16.mxu0 0
  %7789 = vmatpush2.bf16.msra.mxu0 0
  %7790 = vmatprep.subr.bf16.mxu0 0
  %7791 = vmatpush2.bf16.msra.mxu0 0
  %7792 = vmatprep.subr.bf16.mxu0 0
  %7793 = vmatpush2.bf16.msra.mxu0 0
  %7794 = vmatprep.subr.bf16.mxu0 0
  %7795 = vmatpush2.bf16.msra.mxu0 0
  %7796 = vmatprep.subr.bf16.mxu0 0
  %7797 = vmatpush2.bf16.msra.mxu0 0
  %7798 = vmatprep.subr.bf16.mxu0 0
  %7799 = vmatpush2.bf16.msra.mxu0 0
  %7800 = vmatprep.subr.bf16.mxu0 0
  %7801 = vmatpush2.bf16.msra.mxu0 0
  %7802 = vmatprep.subr.bf16.mxu0 0
  %7803 = vmatpush2.bf16.msra.mxu0 0
  %7804 = vmatprep.mubr.bf16.mxu0 0
  %7805 = vmatmul.mubr.bf16.gmra.mxu0 %v7211
  %v7806 = vpop.f32.mrf.mxu0
  %v7807 = vadd.f32 %v7766, %v7806
  %v7808 = vpop.f32.mrf.mxu0
  %v7809 = vpop.f32.mrf.mxu0
  %v7810 = vadd.f32 %v7769, %v7809
  %v7811 = vpop.f32.mrf.mxu0
  %7812 = vdwg.mxu0
  %v7813 = vmax.f32 %v7807, 0.0
  %v7814 = vmax.f32 %v7810, 0.0
  %v7815 = vpack.c.bf16 %v7814, %v7813
  %s7816 = scalar_lea.vmem %s3, 768
  %v7817 = vld [vmem:[%s7816] sm:$0xff]
  %v7818 = vld [vmem:[%s7816 + $0x8] sm:$0xff]
  %v7819 = vld [vmem:[%s7816 + $0x10] sm:$0xff]
  %v7820 = vld [vmem:[%s7816 + $0x18] sm:$0xff]
  %v7821 = vld [vmem:[%s7816 + $0x20] sm:$0xff]
  %v7822 = vld [vmem:[%s7816 + $0x28] sm:$0xff]
  %v7823 = vld [vmem:[%s7816 + $0x30] sm:$0xff]
  %v7824 = vld [vmem:[%s7816 + $0x38] sm:$0xff]
  %v7825 = vld [vmem:[%s7816 + $0x40] sm:$0xff]
  %v7826 = vld [vmem:[%s7816 + $0x48] sm:$0xff]
  %v7827 = vld [vmem:[%s7816 + $0x50] sm:$0xff]
  %v7828 = vld [vmem:[%s7816 + $0x58] sm:$0xff]
  %v7829 = vld [vmem:[%s7816 + $0x60] sm:$0xff]
  %v7830 = vld [vmem:[%s7816 + $0x68] sm:$0xff]
  %v7831 = vld [vmem:[%s7816 + $0x70] sm:$0xff]
  %v7832 = vld [vmem:[%s7816 + $0x78] sm:$0xff]
  %v7849 = vunpack.c.l.b16 %v7817
  %v7850 = vunpack.c.h.b16 %v7817
  %v7851 = vunpack.c.l.b16 %v7818
  %v7852 = vunpack.c.h.b16 %v7818
  %v7853 = vunpack.c.l.b16 %v7819
  %v7854 = vunpack.c.h.b16 %v7819
  %v7855 = vunpack.c.l.b16 %v7820
  %v7856 = vunpack.c.h.b16 %v7820
  %v7857 = vunpack.c.l.b16 %v7821
  %v7858 = vunpack.c.h.b16 %v7821
  %v7859 = vunpack.c.l.b16 %v7822
  %v7860 = vunpack.c.h.b16 %v7822
  %v7861 = vunpack.c.l.b16 %v7823
  %v7862 = vunpack.c.h.b16 %v7823
  %v7863 = vunpack.c.l.b16 %v7824
  %v7864 = vunpack.c.h.b16 %v7824
  %v7865 = vunpack.c.l.b16 %v7825
  %v7866 = vunpack.c.h.b16 %v7825
  %v7867 = vunpack.c.l.b16 %v7826
  %v7868 = vunpack.c.h.b16 %v7826
  %v7869 = vunpack.c.l.b16 %v7827
  %v7870 = vunpack.c.h.b16 %v7827
  %v7871 = vunpack.c.l.b16 %v7828
  %v7872 = vunpack.c.h.b16 %v7828
  %v7873 = vunpack.c.l.b16 %v7829
  %v7874 = vunpack.c.h.b16 %v7829
  %v7875 = vunpack.c.l.b16 %v7830
  %v7876 = vunpack.c.h.b16 %v7830
  %v7877 = vunpack.c.l.b16 %v7831
  %v7878 = vunpack.c.h.b16 %v7831
  %v7879 = vunpack.c.l.b16 %v7832
  %v7880 = vunpack.c.h.b16 %v7832
  %v7881 = vpack.c.b16 %v7851, %v7849
  %v7882 = vpack.c.b16 %v7852, %v7850
  %v7883 = vpack.c.b16 %v7855, %v7853
  %v7884 = vpack.c.b16 %v7856, %v7854
  %v7885 = vpack.c.b16 %v7859, %v7857
  %v7886 = vpack.c.b16 %v7860, %v7858
  %v7887 = vpack.c.b16 %v7863, %v7861
  %v7888 = vpack.c.b16 %v7864, %v7862
  %v7889 = vpack.c.b16 %v7867, %v7865
  %v7890 = vpack.c.b16 %v7868, %v7866
  %v7891 = vpack.c.b16 %v7871, %v7869
  %v7892 = vpack.c.b16 %v7872, %v7870
  %v7893 = vpack.c.b16 %v7875, %v7873
  %v7894 = vpack.c.b16 %v7876, %v7874
  %v7895 = vpack.c.b16 %v7879, %v7877
  %v7896 = vpack.c.b16 %v7880, %v7878
  %7913 = vmatprep.subr.bf16.mxu0 %v7896
  %7914 = vmatpush1.bf16.msra.mxu0 %v7895
  %7915 = vmatprep.subr.bf16.mxu0 %v7894
  %7916 = vmatpush1.bf16.msra.mxu0 %v7893
  %7917 = vmatprep.subr.bf16.mxu0 %v7892
  %7918 = vmatpush1.bf16.msra.mxu0 %v7891
  %7919 = vmatprep.subr.bf16.mxu0 %v7890
  %7920 = vmatpush1.bf16.msra.mxu0 %v7889
  %7921 = vmatprep.subr.bf16.mxu0 %v7888
  %7922 = vmatpush1.bf16.msra.mxu0 %v7887
  %7923 = vmatprep.subr.bf16.mxu0 %v7886
  %7924 = vmatpush1.bf16.msra.mxu0 %v7885
  %7925 = vmatprep.subr.bf16.mxu0 %v7884
  %7926 = vmatpush1.bf16.msra.mxu0 %v7883
  %7927 = vmatprep.subr.bf16.mxu0 %v7882
  %7928 = vmatpush1.bf16.msra.mxu0 %v7881
  %7929 = vmatprep.subr.bf16.mxu0 0
  %7930 = vmatpush2.bf16.msra.mxu0 0
  %7931 = vmatprep.subr.bf16.mxu0 0
  %7932 = vmatpush2.bf16.msra.mxu0 0
  %7933 = vmatprep.subr.bf16.mxu0 0
  %7934 = vmatpush2.bf16.msra.mxu0 0
  %7935 = vmatprep.subr.bf16.mxu0 0
  %7936 = vmatpush2.bf16.msra.mxu0 0
  %7937 = vmatprep.subr.bf16.mxu0 0
  %7938 = vmatpush2.bf16.msra.mxu0 0
  %7939 = vmatprep.subr.bf16.mxu0 0
  %7940 = vmatpush2.bf16.msra.mxu0 0
  %7941 = vmatprep.subr.bf16.mxu0 0
  %7942 = vmatpush2.bf16.msra.mxu0 0
  %7943 = vmatprep.subr.bf16.mxu0 0
  %7944 = vmatpush2.bf16.msra.mxu0 0
  %7945 = vmatprep.mubr.bf16.mxu0 0
  %7946 = vmatmul.mubr.bf16.gmra.mxu0 %v7815
  %v7947 = vpop.f32.mrf.mxu0
  %v7948 = vadd.f32 0.0, %v7947
  %v7949 = vpop.f32.mrf.mxu0
  %v7950 = vadd.f32 0.0, %v7949
  %v7951 = vpop.f32.mrf.mxu0
  %v7952 = vadd.f32 0.0, %v7951
  %v7953 = vpop.f32.mrf.mxu0
  %v7954 = vadd.f32 0.0, %v7953
  %7955 = vdwg.mxu0
  %v7956 = vadd.f32 %v7070, %v7948
  %v7957 = vadd.f32 %v7071, %v7950
  %v7958 = vadd.f32 %v7072, %v7952
  %v7959 = vadd.f32 %v7073, %v7954
  %s7960 = scalar_lea.vmem %s0, 1512
  %v7961 = vld [vmem:[%s7960] sm:$0xff]
  %v7962 = vld [vmem:[%s7960 + $0x8] sm:$0xff]
  %v7963 = vld [vmem:[%s7960 + $0x10] sm:$0xff]
  %v7964 = vld [vmem:[%s7960 + $0x18] sm:$0xff]
  %v7965 = vld [vmem:[%s7960 + $0x20] sm:$0xff]
  %v7966 = vld [vmem:[%s7960 + $0x28] sm:$0xff]
  %v7967 = vld [vmem:[%s7960 + $0x30] sm:$0xff]
  %v7968 = vld [vmem:[%s7960 + $0x38] sm:$0xff]
  %v7969 = vld [vmem:[%s7960 + $0x40] sm:$0xff]
  %v7970 = vld [vmem:[%s7960 + $0x48] sm:$0xff]
  %v7971 = vld [vmem:[%s7960 + $0x50] sm:$0xff]
  %v7972 = vld [vmem:[%s7960 + $0x58] sm:$0xff]
  %v7973 = vld [vmem:[%s7960 + $0x60] sm:$0xff]
  %v7974 = vld [vmem:[%s7960 + $0x68] sm:$0xf]
  %v7975 = vld [vmem:[%s7960 + $0x6c] sm:$0xff]
  %v7976 = vld [vmem:[%s7960 + $0x74] sm:$0xff]
  %v7977 = vld [vmem:[%s7960 + $0x7c] sm:$0xff]
  %v7978 = vld [vmem:[%s7960 + $0x84] sm:$0xff]
  %v7979 = vld [vmem:[%s7960 + $0x8c] sm:$0xff]
  %v7980 = vld [vmem:[%s7960 + $0x94] sm:$0xff]
  %v7981 = vld [vmem:[%s7960 + $0x9c] sm:$0xff]
  %v7982 = vld [vmem:[%s7960 + $0xa4] sm:$0xff]
  %v7983 = vld [vmem:[%s7960 + $0xac] sm:$0xff]
  %v7984 = vld [vmem:[%s7960 + $0xb4] sm:$0xff]
  %v7985 = vld [vmem:[%s7960 + $0xbc] sm:$0xff]
  %v7986 = vld [vmem:[%s7960 + $0xc4] sm:$0xff]
  %v7987 = vld [vmem:[%s7960 + $0xcc] sm:$0xff]
  %v7988 = vld [vmem:[%s7960 + $0xd4] sm:$0xf]
  %v8017 = vunpack.c.l.b16 %v7961
  %v8018 = vunpack.c.h.b16 %v7961
  %v8019 = vunpack.c.l.b16 %v7962
  %v8020 = vunpack.c.h.b16 %v7962
  %v8021 = vunpack.c.l.b16 %v7963
  %v8022 = vunpack.c.h.b16 %v7963
  %v8023 = vunpack.c.l.b16 %v7964
  %v8024 = vunpack.c.h.b16 %v7964
  %v8025 = vunpack.c.l.b16 %v7965
  %v8026 = vunpack.c.h.b16 %v7965
  %v8027 = vunpack.c.l.b16 %v7966
  %v8028 = vunpack.c.h.b16 %v7966
  %v8029 = vunpack.c.l.b16 %v7967
  %v8030 = vunpack.c.h.b16 %v7967
  %v8031 = vunpack.c.l.b16 %v7968
  %v8032 = vunpack.c.h.b16 %v7968
  %v8033 = vunpack.c.l.b16 %v7969
  %v8034 = vunpack.c.h.b16 %v7969
  %v8035 = vunpack.c.l.b16 %v7970
  %v8036 = vunpack.c.h.b16 %v7970
  %v8037 = vunpack.c.l.b16 %v7971
  %v8038 = vunpack.c.h.b16 %v7971
  %v8039 = vunpack.c.l.b16 %v7972
  %v8040 = vunpack.c.h.b16 %v7972
  %v8041 = vunpack.c.l.b16 %v7973
  %v8042 = vunpack.c.h.b16 %v7973
  %v8043 = vunpack.c.l.b16 %v7974
  %v8044 = vunpack.c.l.b16 %v7975
  %v8045 = vunpack.c.h.b16 %v7975
  %v8046 = vunpack.c.l.b16 %v7976
  %v8047 = vunpack.c.h.b16 %v7976
  %v8048 = vunpack.c.l.b16 %v7977
  %v8049 = vunpack.c.h.b16 %v7977
  %v8050 = vunpack.c.l.b16 %v7978
  %v8051 = vunpack.c.h.b16 %v7978
  %v8052 = vunpack.c.l.b16 %v7979
  %v8053 = vunpack.c.h.b16 %v7979
  %v8054 = vunpack.c.l.b16 %v7980
  %v8055 = vunpack.c.h.b16 %v7980
  %v8056 = vunpack.c.l.b16 %v7981
  %v8057 = vunpack.c.h.b16 %v7981
  %v8058 = vunpack.c.l.b16 %v7982
  %v8059 = vunpack.c.h.b16 %v7982
  %v8060 = vunpack.c.l.b16 %v7983
  %v8061 = vunpack.c.h.b16 %v7983
  %v8062 = vunpack.c.l.b16 %v7984
  %v8063 = vunpack.c.h.b16 %v7984
  %v8064 = vunpack.c.l.b16 %v7985
  %v8065 = vunpack.c.h.b16 %v7985
  %v8066 = vunpack.c.l.b16 %v7986
  %v8067 = vunpack.c.h.b16 %v7986
  %v8068 = vunpack.c.l.b16 %v7987
  %v8069 = vunpack.c.h.b16 %v7987
  %v8070 = vunpack.c.l.b16 %v7988
  %v8071 = vpack.c.b16 %v8044, %v8017
  %v8072 = vpack.c.b16 %v8045, %v8018
  %v8073 = vpack.c.b16 %v8046, %v8019
  %v8074 = vpack.c.b16 %v8047, %v8020
  %v8075 = vpack.c.b16 %v8048, %v8021
  %v8076 = vpack.c.b16 %v8049, %v8022
  %v8077 = vpack.c.b16 %v8050, %v8023
  %v8078 = vpack.c.b16 %v8051, %v8024
  %v8079 = vpack.c.b16 %v8052, %v8025
  %v8080 = vpack.c.b16 %v8053, %v8026
  %v8081 = vpack.c.b16 %v8054, %v8027
  %v8082 = vpack.c.b16 %v8055, %v8028
  %v8083 = vpack.c.b16 %v8056, %v8029
  %v8084 = vpack.c.b16 %v8057, %v8030
  %v8085 = vpack.c.b16 %v8058, %v8031
  %v8086 = vpack.c.b16 %v8059, %v8032
  %v8087 = vpack.c.b16 %v8060, %v8033
  %v8088 = vpack.c.b16 %v8061, %v8034
  %v8089 = vpack.c.b16 %v8062, %v8035
  %v8090 = vpack.c.b16 %v8063, %v8036
  %v8091 = vpack.c.b16 %v8064, %v8037
  %v8092 = vpack.c.b16 %v8065, %v8038
  %v8093 = vpack.c.b16 %v8066, %v8039
  %v8094 = vpack.c.b16 %v8067, %v8040
  %v8095 = vpack.c.b16 %v8068, %v8041
  %v8096 = vpack.c.b16 %v8069, %v8042
  %v8097 = vpack.c.b16 %v8070, %v8043
  %8125 = vmatprep.subr.bf16.mxu0 0
  %8126 = vmatpush1.bf16.msra.mxu0 %v1507
  %8127 = vmatprep.subr.bf16.mxu0 0
  %8128 = vmatpush1.bf16.msra.mxu0 %v1506
  %8129 = vmatprep.subr.bf16.mxu0 0
  %8130 = vmatpush1.bf16.msra.mxu0 %v1505
  %8131 = vmatprep.subr.bf16.mxu0 0
  %8132 = vmatpush1.bf16.msra.mxu0 %v1504
  %8133 = vmatprep.subr.bf16.mxu0 0
  %8134 = vmatpush1.bf16.msra.mxu0 %v1503
  %8135 = vmatprep.subr.bf16.mxu0 0
  %8136 = vmatpush1.bf16.msra.mxu0 %v1502
  %8137 = vmatprep.subr.bf16.mxu0 0
  %8138 = vmatpush1.bf16.msra.mxu0 %v1501
  %8139 = vmatprep.subr.bf16.mxu0 0
  %8140 = vmatpush1.bf16.msra.mxu0 %v1500
  %8141 = vmatprep.subr.bf16.mxu0 0
  %8142 = vmatpush2.bf16.msra.mxu0 %v1515
  %8143 = vmatprep.subr.bf16.mxu0 0
  %8144 = vmatpush2.bf16.msra.mxu0 %v1514
  %8145 = vmatprep.subr.bf16.mxu0 0
  %8146 = vmatpush2.bf16.msra.mxu0 %v1513
  %8147 = vmatprep.subr.bf16.mxu0 0
  %8148 = vmatpush2.bf16.msra.mxu0 %v1512
  %8149 = vmatprep.subr.bf16.mxu0 0
  %8150 = vmatpush2.bf16.msra.mxu0 %v1511
  %8151 = vmatprep.subr.bf16.mxu0 0
  %8152 = vmatpush2.bf16.msra.mxu0 %v1510
  %8153 = vmatprep.subr.bf16.mxu0 0
  %8154 = vmatpush2.bf16.msra.mxu0 %v1509
  %8155 = vmatprep.subr.bf16.mxu0 0
  %8156 = vmatpush2.bf16.msra.mxu0 %v1508
  %8157 = vmatprep.mubr.bf16.mxu0 %v8072
  %8158 = vmatmul.mubr.bf16.gmra.mxu0 %v8071
  %v8159 = vpop.f32.mrf.mxu0
  %v8160 = vadd.f32 %v498, %v8159
  %v8161 = vpop.f32.mrf.mxu0
  %v8162 = vpop.f32.mrf.mxu0
  %v8163 = vadd.f32 %v498, %v8162
  %v8164 = vpop.f32.mrf.mxu0
  %8165 = vdwg.mxu0
  %8166 = vmatprep.subr.bf16.mxu0 0
  %8167 = vmatpush1.bf16.msra.mxu0 %v1523
  %8168 = vmatprep.subr.bf16.mxu0 0
  %8169 = vmatpush1.bf16.msra.mxu0 %v1522
  %8170 = vmatprep.subr.bf16.mxu0 0
  %8171 = vmatpush1.bf16.msra.mxu0 %v1521
  %8172 = vmatprep.subr.bf16.mxu0 0
  %8173 = vmatpush1.bf16.msra.mxu0 %v1520
  %8174 = vmatprep.subr.bf16.mxu0 0
  %8175 = vmatpush1.bf16.msra.mxu0 %v1519
  %8176 = vmatprep.subr.bf16.mxu0 0
  %8177 = vmatpush1.bf16.msra.mxu0 %v1518
  %8178 = vmatprep.subr.bf16.mxu0 0
  %8179 = vmatpush1.bf16.msra.mxu0 %v1517
  %8180 = vmatprep.subr.bf16.mxu0 0
  %8181 = vmatpush1.bf16.msra.mxu0 %v1516
  %8182 = vmatprep.subr.bf16.mxu0 0
  %8183 = vmatpush2.bf16.msra.mxu0 %v1531
  %8184 = vmatprep.subr.bf16.mxu0 0
  %8185 = vmatpush2.bf16.msra.mxu0 %v1530
  %8186 = vmatprep.subr.bf16.mxu0 0
  %8187 = vmatpush2.bf16.msra.mxu0 %v1529
  %8188 = vmatprep.subr.bf16.mxu0 0
  %8189 = vmatpush2.bf16.msra.mxu0 %v1528
  %8190 = vmatprep.subr.bf16.mxu0 0
  %8191 = vmatpush2.bf16.msra.mxu0 %v1527
  %8192 = vmatprep.subr.bf16.mxu0 0
  %8193 = vmatpush2.bf16.msra.mxu0 %v1526
  %8194 = vmatprep.subr.bf16.mxu0 0
  %8195 = vmatpush2.bf16.msra.mxu0 %v1525
  %8196 = vmatprep.subr.bf16.mxu0 0
  %8197 = vmatpush2.bf16.msra.mxu0 %v1524
  %8198 = vmatprep.mubr.bf16.mxu0 %v8074
  %8199 = vmatmul.mubr.bf16.gmra.mxu0 %v8073
  %v8200 = vpop.f32.mrf.mxu0
  %v8201 = vadd.f32 %v8160, %v8200
  %v8202 = vpop.f32.mrf.mxu0
  %v8203 = vpop.f32.mrf.mxu0
  %v8204 = vadd.f32 %v8163, %v8203
  %v8205 = vpop.f32.mrf.mxu0
  %8206 = vdwg.mxu0
  %8207 = vmatprep.subr.bf16.mxu0 0
  %8208 = vmatpush1.bf16.msra.mxu0 %v1539
  %8209 = vmatprep.subr.bf16.mxu0 0
  %8210 = vmatpush1.bf16.msra.mxu0 %v1538
  %8211 = vmatprep.subr.bf16.mxu0 0
  %8212 = vmatpush1.bf16.msra.mxu0 %v1537
  %8213 = vmatprep.subr.bf16.mxu0 0
  %8214 = vmatpush1.bf16.msra.mxu0 %v1536
  %8215 = vmatprep.subr.bf16.mxu0 0
  %8216 = vmatpush1.bf16.msra.mxu0 %v1535
  %8217 = vmatprep.subr.bf16.mxu0 0
  %8218 = vmatpush1.bf16.msra.mxu0 %v1534
  %8219 = vmatprep.subr.bf16.mxu0 0
  %8220 = vmatpush1.bf16.msra.mxu0 %v1533
  %8221 = vmatprep.subr.bf16.mxu0 0
  %8222 = vmatpush1.bf16.msra.mxu0 %v1532
  %8223 = vmatprep.subr.bf16.mxu0 0
  %8224 = vmatpush2.bf16.msra.mxu0 %v1547
  %8225 = vmatprep.subr.bf16.mxu0 0
  %8226 = vmatpush2.bf16.msra.mxu0 %v1546
  %8227 = vmatprep.subr.bf16.mxu0 0
  %8228 = vmatpush2.bf16.msra.mxu0 %v1545
  %8229 = vmatprep.subr.bf16.mxu0 0
  %8230 = vmatpush2.bf16.msra.mxu0 %v1544
  %8231 = vmatprep.subr.bf16.mxu0 0
  %8232 = vmatpush2.bf16.msra.mxu0 %v1543
  %8233 = vmatprep.subr.bf16.mxu0 0
  %8234 = vmatpush2.bf16.msra.mxu0 %v1542
  %8235 = vmatprep.subr.bf16.mxu0 0
  %8236 = vmatpush2.bf16.msra.mxu0 %v1541
  %8237 = vmatprep.subr.bf16.mxu0 0
  %8238 = vmatpush2.bf16.msra.mxu0 %v1540
  %8239 = vmatprep.mubr.bf16.mxu0 %v8076
  %8240 = vmatmul.mubr.bf16.gmra.mxu0 %v8075
  %v8241 = vpop.f32.mrf.mxu0
  %v8242 = vadd.f32 %v8201, %v8241
  %v8243 = vpop.f32.mrf.mxu0
  %v8244 = vpop.f32.mrf.mxu0
  %v8245 = vadd.f32 %v8204, %v8244
  %v8246 = vpop.f32.mrf.mxu0
  %8247 = vdwg.mxu0
  %8248 = vmatprep.subr.bf16.mxu0 0
  %8249 = vmatpush1.bf16.msra.mxu0 %v1555
  %8250 = vmatprep.subr.bf16.mxu0 0
  %8251 = vmatpush1.bf16.msra.mxu0 %v1554
  %8252 = vmatprep.subr.bf16.mxu0 0
  %8253 = vmatpush1.bf16.msra.mxu0 %v1553
  %8254 = vmatprep.subr.bf16.mxu0 0
  %8255 = vmatpush1.bf16.msra.mxu0 %v1552
  %8256 = vmatprep.subr.bf16.mxu0 0
  %8257 = vmatpush1.bf16.msra.mxu0 %v1551
  %8258 = vmatprep.subr.bf16.mxu0 0
  %8259 = vmatpush1.bf16.msra.mxu0 %v1550
  %8260 = vmatprep.subr.bf16.mxu0 0
  %8261 = vmatpush1.bf16.msra.mxu0 %v1549
  %8262 = vmatprep.subr.bf16.mxu0 0
  %8263 = vmatpush1.bf16.msra.mxu0 %v1548
  %8264 = vmatprep.subr.bf16.mxu0 0
  %8265 = vmatpush2.bf16.msra.mxu0 %v1563
  %8266 = vmatprep.subr.bf16.mxu0 0
  %8267 = vmatpush2.bf16.msra.mxu0 %v1562
  %8268 = vmatprep.subr.bf16.mxu0 0
  %8269 = vmatpush2.bf16.msra.mxu0 %v1561
  %8270 = vmatprep.subr.bf16.mxu0 0
  %8271 = vmatpush2.bf16.msra.mxu0 %v1560
  %8272 = vmatprep.subr.bf16.mxu0 0
  %8273 = vmatpush2.bf16.msra.mxu0 %v1559
  %8274 = vmatprep.subr.bf16.mxu0 0
  %8275 = vmatpush2.bf16.msra.mxu0 %v1558
  %8276 = vmatprep.subr.bf16.mxu0 0
  %8277 = vmatpush2.bf16.msra.mxu0 %v1557
  %8278 = vmatprep.subr.bf16.mxu0 0
  %8279 = vmatpush2.bf16.msra.mxu0 %v1556
  %8280 = vmatprep.mubr.bf16.mxu0 %v8078
  %8281 = vmatmul.mubr.bf16.gmra.mxu0 %v8077
  %v8282 = vpop.f32.mrf.mxu0
  %v8283 = vadd.f32 %v8242, %v8282
  %v8284 = vpop.f32.mrf.mxu0
  %v8285 = vpop.f32.mrf.mxu0
  %v8286 = vadd.f32 %v8245, %v8285
  %v8287 = vpop.f32.mrf.mxu0
  %8288 = vdwg.mxu0
  %8289 = vmatprep.subr.bf16.mxu0 0
  %8290 = vmatpush1.bf16.msra.mxu0 %v1571
  %8291 = vmatprep.subr.bf16.mxu0 0
  %8292 = vmatpush1.bf16.msra.mxu0 %v1570
  %8293 = vmatprep.subr.bf16.mxu0 0
  %8294 = vmatpush1.bf16.msra.mxu0 %v1569
  %8295 = vmatprep.subr.bf16.mxu0 0
  %8296 = vmatpush1.bf16.msra.mxu0 %v1568
  %8297 = vmatprep.subr.bf16.mxu0 0
  %8298 = vmatpush1.bf16.msra.mxu0 %v1567
  %8299 = vmatprep.subr.bf16.mxu0 0
  %8300 = vmatpush1.bf16.msra.mxu0 %v1566
  %8301 = vmatprep.subr.bf16.mxu0 0
  %8302 = vmatpush1.bf16.msra.mxu0 %v1565
  %8303 = vmatprep.subr.bf16.mxu0 0
  %8304 = vmatpush1.bf16.msra.mxu0 %v1564
  %8305 = vmatprep.subr.bf16.mxu0 0
  %8306 = vmatpush2.bf16.msra.mxu0 %v1579
  %8307 = vmatprep.subr.bf16.mxu0 0
  %8308 = vmatpush2.bf16.msra.mxu0 %v1578
  %8309 = vmatprep.subr.bf16.mxu0 0
  %8310 = vmatpush2.bf16.msra.mxu0 %v1577
  %8311 = vmatprep.subr.bf16.mxu0 0
  %8312 = vmatpush2.bf16.msra.mxu0 %v1576
  %8313 = vmatprep.subr.bf16.mxu0 0
  %8314 = vmatpush2.bf16.msra.mxu0 %v1575
  %8315 = vmatprep.subr.bf16.mxu0 0
  %8316 = vmatpush2.bf16.msra.mxu0 %v1574
  %8317 = vmatprep.subr.bf16.mxu0 0
  %8318 = vmatpush2.bf16.msra.mxu0 %v1573
  %8319 = vmatprep.subr.bf16.mxu0 0
  %8320 = vmatpush2.bf16.msra.mxu0 %v1572
  %8321 = vmatprep.mubr.bf16.mxu0 %v8080
  %8322 = vmatmul.mubr.bf16.gmra.mxu0 %v8079
  %v8323 = vpop.f32.mrf.mxu0
  %v8324 = vadd.f32 %v8283, %v8323
  %v8325 = vpop.f32.mrf.mxu0
  %v8326 = vpop.f32.mrf.mxu0
  %v8327 = vadd.f32 %v8286, %v8326
  %v8328 = vpop.f32.mrf.mxu0
  %8329 = vdwg.mxu0
  %8330 = vmatprep.subr.bf16.mxu0 0
  %8331 = vmatpush1.bf16.msra.mxu0 %v1587
  %8332 = vmatprep.subr.bf16.mxu0 0
  %8333 = vmatpush1.bf16.msra.mxu0 %v1586
  %8334 = vmatprep.subr.bf16.mxu0 0
  %8335 = vmatpush1.bf16.msra.mxu0 %v1585
  %8336 = vmatprep.subr.bf16.mxu0 0
  %8337 = vmatpush1.bf16.msra.mxu0 %v1584
  %8338 = vmatprep.subr.bf16.mxu0 0
  %8339 = vmatpush1.bf16.msra.mxu0 %v1583
  %8340 = vmatprep.subr.bf16.mxu0 0
  %8341 = vmatpush1.bf16.msra.mxu0 %v1582
  %8342 = vmatprep.subr.bf16.mxu0 0
  %8343 = vmatpush1.bf16.msra.mxu0 %v1581
  %8344 = vmatprep.subr.bf16.mxu0 0
  %8345 = vmatpush1.bf16.msra.mxu0 %v1580
  %8346 = vmatprep.subr.bf16.mxu0 0
  %8347 = vmatpush2.bf16.msra.mxu0 %v1595
  %8348 = vmatprep.subr.bf16.mxu0 0
  %8349 = vmatpush2.bf16.msra.mxu0 %v1594
  %8350 = vmatprep.subr.bf16.mxu0 0
  %8351 = vmatpush2.bf16.msra.mxu0 %v1593
  %8352 = vmatprep.subr.bf16.mxu0 0
  %8353 = vmatpush2.bf16.msra.mxu0 %v1592
  %8354 = vmatprep.subr.bf16.mxu0 0
  %8355 = vmatpush2.bf16.msra.mxu0 %v1591
  %8356 = vmatprep.subr.bf16.mxu0 0
  %8357 = vmatpush2.bf16.msra.mxu0 %v1590
  %8358 = vmatprep.subr.bf16.mxu0 0
  %8359 = vmatpush2.bf16.msra.mxu0 %v1589
  %8360 = vmatprep.subr.bf16.mxu0 0
  %8361 = vmatpush2.bf16.msra.mxu0 %v1588
  %8362 = vmatprep.mubr.bf16.mxu0 %v8082
  %8363 = vmatmul.mubr.bf16.gmra.mxu0 %v8081
  %v8364 = vpop.f32.mrf.mxu0
  %v8365 = vadd.f32 %v8324, %v8364
  %v8366 = vpop.f32.mrf.mxu0
  %v8367 = vpop.f32.mrf.mxu0
  %v8368 = vadd.f32 %v8327, %v8367
  %v8369 = vpop.f32.mrf.mxu0
  %8370 = vdwg.mxu0
  %8371 = vmatprep.subr.bf16.mxu0 0
  %8372 = vmatpush1.bf16.msra.mxu0 %v1603
  %8373 = vmatprep.subr.bf16.mxu0 0
  %8374 = vmatpush1.bf16.msra.mxu0 %v1602
  %8375 = vmatprep.subr.bf16.mxu0 0
  %8376 = vmatpush1.bf16.msra.mxu0 %v1601
  %8377 = vmatprep.subr.bf16.mxu0 0
  %8378 = vmatpush1.bf16.msra.mxu0 %v1600
  %8379 = vmatprep.subr.bf16.mxu0 0
  %8380 = vmatpush1.bf16.msra.mxu0 %v1599
  %8381 = vmatprep.subr.bf16.mxu0 0
  %8382 = vmatpush1.bf16.msra.mxu0 %v1598
  %8383 = vmatprep.subr.bf16.mxu0 0
  %8384 = vmatpush1.bf16.msra.mxu0 %v1597
  %8385 = vmatprep.subr.bf16.mxu0 0
  %8386 = vmatpush1.bf16.msra.mxu0 %v1596
  %8387 = vmatprep.subr.bf16.mxu0 0
  %8388 = vmatpush2.bf16.msra.mxu0 %v1611
  %8389 = vmatprep.subr.bf16.mxu0 0
  %8390 = vmatpush2.bf16.msra.mxu0 %v1610
  %8391 = vmatprep.subr.bf16.mxu0 0
  %8392 = vmatpush2.bf16.msra.mxu0 %v1609
  %8393 = vmatprep.subr.bf16.mxu0 0
  %8394 = vmatpush2.bf16.msra.mxu0 %v1608
  %8395 = vmatprep.subr.bf16.mxu0 0
  %8396 = vmatpush2.bf16.msra.mxu0 %v1607
  %8397 = vmatprep.subr.bf16.mxu0 0
  %8398 = vmatpush2.bf16.msra.mxu0 %v1606
  %8399 = vmatprep.subr.bf16.mxu0 0
  %8400 = vmatpush2.bf16.msra.mxu0 %v1605
  %8401 = vmatprep.subr.bf16.mxu0 0
  %8402 = vmatpush2.bf16.msra.mxu0 %v1604
  %8403 = vmatprep.mubr.bf16.mxu0 %v8084
  %8404 = vmatmul.mubr.bf16.gmra.mxu0 %v8083
  %v8405 = vpop.f32.mrf.mxu0
  %v8406 = vadd.f32 %v8365, %v8405
  %v8407 = vpop.f32.mrf.mxu0
  %v8408 = vpop.f32.mrf.mxu0
  %v8409 = vadd.f32 %v8368, %v8408
  %v8410 = vpop.f32.mrf.mxu0
  %8411 = vdwg.mxu0
  %8412 = vmatprep.subr.bf16.mxu0 0
  %8413 = vmatpush1.bf16.msra.mxu0 %v1619
  %8414 = vmatprep.subr.bf16.mxu0 0
  %8415 = vmatpush1.bf16.msra.mxu0 %v1618
  %8416 = vmatprep.subr.bf16.mxu0 0
  %8417 = vmatpush1.bf16.msra.mxu0 %v1617
  %8418 = vmatprep.subr.bf16.mxu0 0
  %8419 = vmatpush1.bf16.msra.mxu0 %v1616
  %8420 = vmatprep.subr.bf16.mxu0 0
  %8421 = vmatpush1.bf16.msra.mxu0 %v1615
  %8422 = vmatprep.subr.bf16.mxu0 0
  %8423 = vmatpush1.bf16.msra.mxu0 %v1614
  %8424 = vmatprep.subr.bf16.mxu0 0
  %8425 = vmatpush1.bf16.msra.mxu0 %v1613
  %8426 = vmatprep.subr.bf16.mxu0 0
  %8427 = vmatpush1.bf16.msra.mxu0 %v1612
  %8428 = vmatprep.subr.bf16.mxu0 0
  %8429 = vmatpush2.bf16.msra.mxu0 %v1627
  %8430 = vmatprep.subr.bf16.mxu0 0
  %8431 = vmatpush2.bf16.msra.mxu0 %v1626
  %8432 = vmatprep.subr.bf16.mxu0 0
  %8433 = vmatpush2.bf16.msra.mxu0 %v1625
  %8434 = vmatprep.subr.bf16.mxu0 0
  %8435 = vmatpush2.bf16.msra.mxu0 %v1624
  %8436 = vmatprep.subr.bf16.mxu0 0
  %8437 = vmatpush2.bf16.msra.mxu0 %v1623
  %8438 = vmatprep.subr.bf16.mxu0 0
  %8439 = vmatpush2.bf16.msra.mxu0 %v1622
  %8440 = vmatprep.subr.bf16.mxu0 0
  %8441 = vmatpush2.bf16.msra.mxu0 %v1621
  %8442 = vmatprep.subr.bf16.mxu0 0
  %8443 = vmatpush2.bf16.msra.mxu0 %v1620
  %8444 = vmatprep.mubr.bf16.mxu0 %v8086
  %8445 = vmatmul.mubr.bf16.gmra.mxu0 %v8085
  %v8446 = vpop.f32.mrf.mxu0
  %v8447 = vadd.f32 %v8406, %v8446
  %v8448 = vpop.f32.mrf.mxu0
  %v8449 = vpop.f32.mrf.mxu0
  %v8450 = vadd.f32 %v8409, %v8449
  %v8451 = vpop.f32.mrf.mxu0
  %8452 = vdwg.mxu0
  %8453 = vmatprep.subr.bf16.mxu0 0
  %8454 = vmatpush1.bf16.msra.mxu0 %v1635
  %8455 = vmatprep.subr.bf16.mxu0 0
  %8456 = vmatpush1.bf16.msra.mxu0 %v1634
  %8457 = vmatprep.subr.bf16.mxu0 0
  %8458 = vmatpush1.bf16.msra.mxu0 %v1633
  %8459 = vmatprep.subr.bf16.mxu0 0
  %8460 = vmatpush1.bf16.msra.mxu0 %v1632
  %8461 = vmatprep.subr.bf16.mxu0 0
  %8462 = vmatpush1.bf16.msra.mxu0 %v1631
  %8463 = vmatprep.subr.bf16.mxu0 0
  %8464 = vmatpush1.bf16.msra.mxu0 %v1630
  %8465 = vmatprep.subr.bf16.mxu0 0
  %8466 = vmatpush1.bf16.msra.mxu0 %v1629
  %8467 = vmatprep.subr.bf16.mxu0 0
  %8468 = vmatpush1.bf16.msra.mxu0 %v1628
  %8469 = vmatprep.subr.bf16.mxu0 0
  %8470 = vmatpush2.bf16.msra.mxu0 %v1643
  %8471 = vmatprep.subr.bf16.mxu0 0
  %8472 = vmatpush2.bf16.msra.mxu0 %v1642
  %8473 = vmatprep.subr.bf16.mxu0 0
  %8474 = vmatpush2.bf16.msra.mxu0 %v1641
  %8475 = vmatprep.subr.bf16.mxu0 0
  %8476 = vmatpush2.bf16.msra.mxu0 %v1640
  %8477 = vmatprep.subr.bf16.mxu0 0
  %8478 = vmatpush2.bf16.msra.mxu0 %v1639
  %8479 = vmatprep.subr.bf16.mxu0 0
  %8480 = vmatpush2.bf16.msra.mxu0 %v1638
  %8481 = vmatprep.subr.bf16.mxu0 0
  %8482 = vmatpush2.bf16.msra.mxu0 %v1637
  %8483 = vmatprep.subr.bf16.mxu0 0
  %8484 = vmatpush2.bf16.msra.mxu0 %v1636
  %8485 = vmatprep.mubr.bf16.mxu0 %v8088
  %8486 = vmatmul.mubr.bf16.gmra.mxu0 %v8087
  %v8487 = vpop.f32.mrf.mxu0
  %v8488 = vadd.f32 %v8447, %v8487
  %v8489 = vpop.f32.mrf.mxu0
  %v8490 = vpop.f32.mrf.mxu0
  %v8491 = vadd.f32 %v8450, %v8490
  %v8492 = vpop.f32.mrf.mxu0
  %8493 = vdwg.mxu0
  %8494 = vmatprep.subr.bf16.mxu0 0
  %8495 = vmatpush1.bf16.msra.mxu0 %v1651
  %8496 = vmatprep.subr.bf16.mxu0 0
  %8497 = vmatpush1.bf16.msra.mxu0 %v1650
  %8498 = vmatprep.subr.bf16.mxu0 0
  %8499 = vmatpush1.bf16.msra.mxu0 %v1649
  %8500 = vmatprep.subr.bf16.mxu0 0
  %8501 = vmatpush1.bf16.msra.mxu0 %v1648
  %8502 = vmatprep.subr.bf16.mxu0 0
  %8503 = vmatpush1.bf16.msra.mxu0 %v1647
  %8504 = vmatprep.subr.bf16.mxu0 0
  %8505 = vmatpush1.bf16.msra.mxu0 %v1646
  %8506 = vmatprep.subr.bf16.mxu0 0
  %8507 = vmatpush1.bf16.msra.mxu0 %v1645
  %8508 = vmatprep.subr.bf16.mxu0 0
  %8509 = vmatpush1.bf16.msra.mxu0 %v1644
  %8510 = vmatprep.subr.bf16.mxu0 0
  %8511 = vmatpush2.bf16.msra.mxu0 %v1659
  %8512 = vmatprep.subr.bf16.mxu0 0
  %8513 = vmatpush2.bf16.msra.mxu0 %v1658
  %8514 = vmatprep.subr.bf16.mxu0 0
  %8515 = vmatpush2.bf16.msra.mxu0 %v1657
  %8516 = vmatprep.subr.bf16.mxu0 0
  %8517 = vmatpush2.bf16.msra.mxu0 %v1656
  %8518 = vmatprep.subr.bf16.mxu0 0
  %8519 = vmatpush2.bf16.msra.mxu0 %v1655
  %8520 = vmatprep.subr.bf16.mxu0 0
  %8521 = vmatpush2.bf16.msra.mxu0 %v1654
  %8522 = vmatprep.subr.bf16.mxu0 0
  %8523 = vmatpush2.bf16.msra.mxu0 %v1653
  %8524 = vmatprep.subr.bf16.mxu0 0
  %8525 = vmatpush2.bf16.msra.mxu0 %v1652
  %8526 = vmatprep.mubr.bf16.mxu0 %v8090
  %8527 = vmatmul.mubr.bf16.gmra.mxu0 %v8089
  %v8528 = vpop.f32.mrf.mxu0
  %v8529 = vadd.f32 %v8488, %v8528
  %v8530 = vpop.f32.mrf.mxu0
  %v8531 = vpop.f32.mrf.mxu0
  %v8532 = vadd.f32 %v8491, %v8531
  %v8533 = vpop.f32.mrf.mxu0
  %8534 = vdwg.mxu0
  %8535 = vmatprep.subr.bf16.mxu0 0
  %8536 = vmatpush1.bf16.msra.mxu0 %v1667
  %8537 = vmatprep.subr.bf16.mxu0 0
  %8538 = vmatpush1.bf16.msra.mxu0 %v1666
  %8539 = vmatprep.subr.bf16.mxu0 0
  %8540 = vmatpush1.bf16.msra.mxu0 %v1665
  %8541 = vmatprep.subr.bf16.mxu0 0
  %8542 = vmatpush1.bf16.msra.mxu0 %v1664
  %8543 = vmatprep.subr.bf16.mxu0 0
  %8544 = vmatpush1.bf16.msra.mxu0 %v1663
  %8545 = vmatprep.subr.bf16.mxu0 0
  %8546 = vmatpush1.bf16.msra.mxu0 %v1662
  %8547 = vmatprep.subr.bf16.mxu0 0
  %8548 = vmatpush1.bf16.msra.mxu0 %v1661
  %8549 = vmatprep.subr.bf16.mxu0 0
  %8550 = vmatpush1.bf16.msra.mxu0 %v1660
  %8551 = vmatprep.subr.bf16.mxu0 0
  %8552 = vmatpush2.bf16.msra.mxu0 %v1675
  %8553 = vmatprep.subr.bf16.mxu0 0
  %8554 = vmatpush2.bf16.msra.mxu0 %v1674
  %8555 = vmatprep.subr.bf16.mxu0 0
  %8556 = vmatpush2.bf16.msra.mxu0 %v1673
  %8557 = vmatprep.subr.bf16.mxu0 0
  %8558 = vmatpush2.bf16.msra.mxu0 %v1672
  %8559 = vmatprep.subr.bf16.mxu0 0
  %8560 = vmatpush2.bf16.msra.mxu0 %v1671
  %8561 = vmatprep.subr.bf16.mxu0 0
  %8562 = vmatpush2.bf16.msra.mxu0 %v1670
  %8563 = vmatprep.subr.bf16.mxu0 0
  %8564 = vmatpush2.bf16.msra.mxu0 %v1669
  %8565 = vmatprep.subr.bf16.mxu0 0
  %8566 = vmatpush2.bf16.msra.mxu0 %v1668
  %8567 = vmatprep.mubr.bf16.mxu0 %v8092
  %8568 = vmatmul.mubr.bf16.gmra.mxu0 %v8091
  %v8569 = vpop.f32.mrf.mxu0
  %v8570 = vadd.f32 %v8529, %v8569
  %v8571 = vpop.f32.mrf.mxu0
  %v8572 = vpop.f32.mrf.mxu0
  %v8573 = vadd.f32 %v8532, %v8572
  %v8574 = vpop.f32.mrf.mxu0
  %8575 = vdwg.mxu0
  %8576 = vmatprep.subr.bf16.mxu0 0
  %8577 = vmatpush1.bf16.msra.mxu0 %v1683
  %8578 = vmatprep.subr.bf16.mxu0 0
  %8579 = vmatpush1.bf16.msra.mxu0 %v1682
  %8580 = vmatprep.subr.bf16.mxu0 0
  %8581 = vmatpush1.bf16.msra.mxu0 %v1681
  %8582 = vmatprep.subr.bf16.mxu0 0
  %8583 = vmatpush1.bf16.msra.mxu0 %v1680
  %8584 = vmatprep.subr.bf16.mxu0 0
  %8585 = vmatpush1.bf16.msra.mxu0 %v1679
  %8586 = vmatprep.subr.bf16.mxu0 0
  %8587 = vmatpush1.bf16.msra.mxu0 %v1678
  %8588 = vmatprep.subr.bf16.mxu0 0
  %8589 = vmatpush1.bf16.msra.mxu0 %v1677
  %8590 = vmatprep.subr.bf16.mxu0 0
  %8591 = vmatpush1.bf16.msra.mxu0 %v1676
  %8592 = vmatprep.subr.bf16.mxu0 0
  %8593 = vmatpush2.bf16.msra.mxu0 %v1691
  %8594 = vmatprep.subr.bf16.mxu0 0
  %8595 = vmatpush2.bf16.msra.mxu0 %v1690
  %8596 = vmatprep.subr.bf16.mxu0 0
  %8597 = vmatpush2.bf16.msra.mxu0 %v1689
  %8598 = vmatprep.subr.bf16.mxu0 0
  %8599 = vmatpush2.bf16.msra.mxu0 %v1688
  %8600 = vmatprep.subr.bf16.mxu0 0
  %8601 = vmatpush2.bf16.msra.mxu0 %v1687
  %8602 = vmatprep.subr.bf16.mxu0 0
  %8603 = vmatpush2.bf16.msra.mxu0 %v1686
  %8604 = vmatprep.subr.bf16.mxu0 0
  %8605 = vmatpush2.bf16.msra.mxu0 %v1685
  %8606 = vmatprep.subr.bf16.mxu0 0
  %8607 = vmatpush2.bf16.msra.mxu0 %v1684
  %8608 = vmatprep.mubr.bf16.mxu0 %v8094
  %8609 = vmatmul.mubr.bf16.gmra.mxu0 %v8093
  %v8610 = vpop.f32.mrf.mxu0
  %v8611 = vadd.f32 %v8570, %v8610
  %v8612 = vpop.f32.mrf.mxu0
  %v8613 = vpop.f32.mrf.mxu0
  %v8614 = vadd.f32 %v8573, %v8613
  %v8615 = vpop.f32.mrf.mxu0
  %8616 = vdwg.mxu0
  %8617 = vmatprep.subr.bf16.mxu0 0
  %8618 = vmatpush1.bf16.msra.mxu0 %v1699
  %8619 = vmatprep.subr.bf16.mxu0 0
  %8620 = vmatpush1.bf16.msra.mxu0 %v1698
  %8621 = vmatprep.subr.bf16.mxu0 0
  %8622 = vmatpush1.bf16.msra.mxu0 %v1697
  %8623 = vmatprep.subr.bf16.mxu0 0
  %8624 = vmatpush1.bf16.msra.mxu0 %v1696
  %8625 = vmatprep.subr.bf16.mxu0 0
  %8626 = vmatpush1.bf16.msra.mxu0 %v1695
  %8627 = vmatprep.subr.bf16.mxu0 0
  %8628 = vmatpush1.bf16.msra.mxu0 %v1694
  %8629 = vmatprep.subr.bf16.mxu0 0
  %8630 = vmatpush1.bf16.msra.mxu0 %v1693
  %8631 = vmatprep.subr.bf16.mxu0 0
  %8632 = vmatpush1.bf16.msra.mxu0 %v1692
  %8633 = vmatprep.subr.bf16.mxu0 0
  %8634 = vmatpush2.bf16.msra.mxu0 %v1707
  %8635 = vmatprep.subr.bf16.mxu0 0
  %8636 = vmatpush2.bf16.msra.mxu0 %v1706
  %8637 = vmatprep.subr.bf16.mxu0 0
  %8638 = vmatpush2.bf16.msra.mxu0 %v1705
  %8639 = vmatprep.subr.bf16.mxu0 0
  %8640 = vmatpush2.bf16.msra.mxu0 %v1704
  %8641 = vmatprep.subr.bf16.mxu0 0
  %8642 = vmatpush2.bf16.msra.mxu0 %v1703
  %8643 = vmatprep.subr.bf16.mxu0 0
  %8644 = vmatpush2.bf16.msra.mxu0 %v1702
  %8645 = vmatprep.subr.bf16.mxu0 0
  %8646 = vmatpush2.bf16.msra.mxu0 %v1701
  %8647 = vmatprep.subr.bf16.mxu0 0
  %8648 = vmatpush2.bf16.msra.mxu0 %v1700
  %8649 = vmatprep.mubr.bf16.mxu0 %v8096
  %8650 = vmatmul.mubr.bf16.gmra.mxu0 %v8095
  %v8651 = vpop.f32.mrf.mxu0
  %v8652 = vadd.f32 %v8611, %v8651
  %v8653 = vpop.f32.mrf.mxu0
  %v8654 = vpop.f32.mrf.mxu0
  %v8655 = vadd.f32 %v8614, %v8654
  %v8656 = vpop.f32.mrf.mxu0
  %8657 = vdwg.mxu0
  %8658 = vmatprep.subr.bf16.mxu0 0
  %8659 = vmatpush1.bf16.msra.mxu0 %v1715
  %8660 = vmatprep.subr.bf16.mxu0 0
  %8661 = vmatpush1.bf16.msra.mxu0 %v1714
  %8662 = vmatprep.subr.bf16.mxu0 0
  %8663 = vmatpush1.bf16.msra.mxu0 %v1713
  %8664 = vmatprep.subr.bf16.mxu0 0
  %8665 = vmatpush1.bf16.msra.mxu0 %v1712
  %8666 = vmatprep.subr.bf16.mxu0 0
  %8667 = vmatpush1.bf16.msra.mxu0 %v1711
  %8668 = vmatprep.subr.bf16.mxu0 0
  %8669 = vmatpush1.bf16.msra.mxu0 %v1710
  %8670 = vmatprep.subr.bf16.mxu0 0
  %8671 = vmatpush1.bf16.msra.mxu0 %v1709
  %8672 = vmatprep.subr.bf16.mxu0 0
  %8673 = vmatpush1.bf16.msra.mxu0 %v1708
  %8674 = vmatprep.subr.bf16.mxu0 0
  %8675 = vmatpush2.bf16.msra.mxu0 0
  %8676 = vmatprep.subr.bf16.mxu0 0
  %8677 = vmatpush2.bf16.msra.mxu0 0
  %8678 = vmatprep.subr.bf16.mxu0 0
  %8679 = vmatpush2.bf16.msra.mxu0 0
  %8680 = vmatprep.subr.bf16.mxu0 0
  %8681 = vmatpush2.bf16.msra.mxu0 0
  %8682 = vmatprep.subr.bf16.mxu0 0
  %8683 = vmatpush2.bf16.msra.mxu0 0
  %8684 = vmatprep.subr.bf16.mxu0 0
  %8685 = vmatpush2.bf16.msra.mxu0 0
  %8686 = vmatprep.subr.bf16.mxu0 0
  %8687 = vmatpush2.bf16.msra.mxu0 0
  %8688 = vmatprep.subr.bf16.mxu0 0
  %8689 = vmatpush2.bf16.msra.mxu0 0
  %8690 = vmatprep.mubr.bf16.mxu0 0
  %8691 = vmatmul.mubr.bf16.gmra.mxu0 %v8097
  %v8692 = vpop.f32.mrf.mxu0
  %v8693 = vadd.f32 %v8652, %v8692
  %v8694 = vpop.f32.mrf.mxu0
  %v8695 = vpop.f32.mrf.mxu0
  %v8696 = vadd.f32 %v8655, %v8695
  %v8697 = vpop.f32.mrf.mxu0
  %8698 = vdwg.mxu0
  %v8699 = vmax.f32 %v8693, 0.0
  %v8700 = vmax.f32 %v8696, 0.0
  %v8701 = vpack.c.bf16 %v8700, %v8699
  %s8702 = scalar_lea.vmem %s3, 896
  %v8703 = vld [vmem:[%s8702] sm:$0xff]
  %v8704 = vld [vmem:[%s8702 + $0x8] sm:$0xff]
  %v8705 = vld [vmem:[%s8702 + $0x10] sm:$0xff]
  %v8706 = vld [vmem:[%s8702 + $0x18] sm:$0xff]
  %v8707 = vld [vmem:[%s8702 + $0x20] sm:$0xff]
  %v8708 = vld [vmem:[%s8702 + $0x28] sm:$0xff]
  %v8709 = vld [vmem:[%s8702 + $0x30] sm:$0xff]
  %v8710 = vld [vmem:[%s8702 + $0x38] sm:$0xff]
  %v8711 = vld [vmem:[%s8702 + $0x40] sm:$0xff]
  %v8712 = vld [vmem:[%s8702 + $0x48] sm:$0xff]
  %v8713 = vld [vmem:[%s8702 + $0x50] sm:$0xff]
  %v8714 = vld [vmem:[%s8702 + $0x58] sm:$0xff]
  %v8715 = vld [vmem:[%s8702 + $0x60] sm:$0xff]
  %v8716 = vld [vmem:[%s8702 + $0x68] sm:$0xff]
  %v8717 = vld [vmem:[%s8702 + $0x70] sm:$0xff]
  %v8718 = vld [vmem:[%s8702 + $0x78] sm:$0xff]
  %v8735 = vunpack.c.l.b16 %v8703
  %v8736 = vunpack.c.h.b16 %v8703
  %v8737 = vunpack.c.l.b16 %v8704
  %v8738 = vunpack.c.h.b16 %v8704
  %v8739 = vunpack.c.l.b16 %v8705
  %v8740 = vunpack.c.h.b16 %v8705
  %v8741 = vunpack.c.l.b16 %v8706
  %v8742 = vunpack.c.h.b16 %v8706
  %v8743 = vunpack.c.l.b16 %v8707
  %v8744 = vunpack.c.h.b16 %v8707
  %v8745 = vunpack.c.l.b16 %v8708
  %v8746 = vunpack.c.h.b16 %v8708
  %v8747 = vunpack.c.l.b16 %v8709
  %v8748 = vunpack.c.h.b16 %v8709
  %v8749 = vunpack.c.l.b16 %v8710
  %v8750 = vunpack.c.h.b16 %v8710
  %v8751 = vunpack.c.l.b16 %v8711
  %v8752 = vunpack.c.h.b16 %v8711
  %v8753 = vunpack.c.l.b16 %v8712
  %v8754 = vunpack.c.h.b16 %v8712
  %v8755 = vunpack.c.l.b16 %v8713
  %v8756 = vunpack.c.h.b16 %v8713
  %v8757 = vunpack.c.l.b16 %v8714
  %v8758 = vunpack.c.h.b16 %v8714
  %v8759 = vunpack.c.l.b16 %v8715
  %v8760 = vunpack.c.h.b16 %v8715
  %v8761 = vunpack.c.l.b16 %v8716
  %v8762 = vunpack.c.h.b16 %v8716
  %v8763 = vunpack.c.l.b16 %v8717
  %v8764 = vunpack.c.h.b16 %v8717
  %v8765 = vunpack.c.l.b16 %v8718
  %v8766 = vunpack.c.h.b16 %v8718
  %v8767 = vpack.c.b16 %v8737, %v8735
  %v8768 = vpack.c.b16 %v8738, %v8736
  %v8769 = vpack.c.b16 %v8741, %v8739
  %v8770 = vpack.c.b16 %v8742, %v8740
  %v8771 = vpack.c.b16 %v8745, %v8743
  %v8772 = vpack.c.b16 %v8746, %v8744
  %v8773 = vpack.c.b16 %v8749, %v8747
  %v8774 = vpack.c.b16 %v8750, %v8748
  %v8775 = vpack.c.b16 %v8753, %v8751
  %v8776 = vpack.c.b16 %v8754, %v8752
  %v8777 = vpack.c.b16 %v8757, %v8755
  %v8778 = vpack.c.b16 %v8758, %v8756
  %v8779 = vpack.c.b16 %v8761, %v8759
  %v8780 = vpack.c.b16 %v8762, %v8760
  %v8781 = vpack.c.b16 %v8765, %v8763
  %v8782 = vpack.c.b16 %v8766, %v8764
  %8799 = vmatprep.subr.bf16.mxu0 %v8782
  %8800 = vmatpush1.bf16.msra.mxu0 %v8781
  %8801 = vmatprep.subr.bf16.mxu0 %v8780
  %8802 = vmatpush1.bf16.msra.mxu0 %v8779
  %8803 = vmatprep.subr.bf16.mxu0 %v8778
  %8804 = vmatpush1.bf16.msra.mxu0 %v8777
  %8805 = vmatprep.subr.bf16.mxu0 %v8776
  %8806 = vmatpush1.bf16.msra.mxu0 %v8775
  %8807 = vmatprep.subr.bf16.mxu0 %v8774
  %8808 = vmatpush1.bf16.msra.mxu0 %v8773
  %8809 = vmatprep.subr.bf16.mxu0 %v8772
  %8810 = vmatpush1.bf16.msra.mxu0 %v8771
  %8811 = vmatprep.subr.bf16.mxu0 %v8770
  %8812 = vmatpush1.bf16.msra.mxu0 %v8769
  %8813 = vmatprep.subr.bf16.mxu0 %v8768
  %8814 = vmatpush1.bf16.msra.mxu0 %v8767
  %8815 = vmatprep.subr.bf16.mxu0 0
  %8816 = vmatpush2.bf16.msra.mxu0 0
  %8817 = vmatprep.subr.bf16.mxu0 0
  %8818 = vmatpush2.bf16.msra.mxu0 0
  %8819 = vmatprep.subr.bf16.mxu0 0
  %8820 = vmatpush2.bf16.msra.mxu0 0
  %8821 = vmatprep.subr.bf16.mxu0 0
  %8822 = vmatpush2.bf16.msra.mxu0 0
  %8823 = vmatprep.subr.bf16.mxu0 0
  %8824 = vmatpush2.bf16.msra.mxu0 0
  %8825 = vmatprep.subr.bf16.mxu0 0
  %8826 = vmatpush2.bf16.msra.mxu0 0
  %8827 = vmatprep.subr.bf16.mxu0 0
  %8828 = vmatpush2.bf16.msra.mxu0 0
  %8829 = vmatprep.subr.bf16.mxu0 0
  %8830 = vmatpush2.bf16.msra.mxu0 0
  %8831 = vmatprep.mubr.bf16.mxu0 0
  %8832 = vmatmul.mubr.bf16.gmra.mxu0 %v8701
  %v8833 = vpop.f32.mrf.mxu0
  %v8834 = vadd.f32 0.0, %v8833
  %v8835 = vpop.f32.mrf.mxu0
  %v8836 = vadd.f32 0.0, %v8835
  %v8837 = vpop.f32.mrf.mxu0
  %v8838 = vadd.f32 0.0, %v8837
  %v8839 = vpop.f32.mrf.mxu0
  %v8840 = vadd.f32 0.0, %v8839
  %8841 = vdwg.mxu0
  %v8842 = vadd.f32 %v7956, %v8834
  %v8843 = vadd.f32 %v7957, %v8836
  %v8844 = vadd.f32 %v7958, %v8838
  %v8845 = vadd.f32 %v7959, %v8840
  %v8846 = vld [vmem:[%s4] sm:$0x3]
  %v8848 = vlaneseq
  %v8849 = vshrl.u32 %v8848, 7
  %v8850 = vsub.s32 0, %v8849
  %v8851 = vrot.slane %v8846, %v8850
  %v8852 = vlaneseq
  %v8853 = vshrl.u32 %v8852, 7
  %v8854 = vsub.s32 1, %v8853
  %v8855 = vrot.slane %v8846, %v8854
  %v8858 = vadd.f32 %v8842, %v8851
  %v8859 = vadd.f32 %v8843, %v8855
  %v8860 = vadd.f32 %v8844, %v8851
  %v8861 = vadd.f32 %v8845, %v8855
  %v8862 = vmax.f32 %v8858, 0.0
  %v8863 = vmax.f32 %v8859, 0.0
  %v8864 = vmax.f32 %v8860, 0.0
  %v8865 = vmax.f32 %v8861, 0.0
  %v8866 = vpack.c.bf16 %v8864, %v8862
  %v8867 = vpack.c.bf16 %v8865, %v8863
  %v8868 = vld [vmem:[%s5] sm:$0xf]
  %v8869 = vld [vmem:[%s5 + $0x4] sm:$0xf]
  %v8870 = vld [vmem:[%s5 + $0x8] sm:$0xf]
  %v8871 = vld [vmem:[%s5 + $0xc] sm:$0xf]
  %v8872 = vld [vmem:[%s5 + $0x10] sm:$0xf]
  %v8873 = vld [vmem:[%s5 + $0x14] sm:$0xf]
  %v8874 = vld [vmem:[%s5 + $0x18] sm:$0xf]
  %v8875 = vld [vmem:[%s5 + $0x1c] sm:$0xf]
  %v8876 = vld [vmem:[%s5 + $0x20] sm:$0xf]
  %v8877 = vld [vmem:[%s5 + $0x24] sm:$0xf]
  %v8878 = vld [vmem:[%s5 + $0x28] sm:$0xf]
  %v8879 = vld [vmem:[%s5 + $0x2c] sm:$0xf]
  %v8880 = vld [vmem:[%s5 + $0x30] sm:$0xf]
  %v8881 = vld [vmem:[%s5 + $0x34] sm:$0xf]
  %v8882 = vld [vmem:[%s5 + $0x38] sm:$0xf]
  %v8883 = vld [vmem:[%s5 + $0x3c] sm:$0xf]
  %v8884 = vld [vmem:[%s5 + $0x40] sm:$0xf]
  %v8885 = vld [vmem:[%s5 + $0x44] sm:$0xf]
  %v8886 = vld [vmem:[%s5 + $0x48] sm:$0xf]
  %v8887 = vld [vmem:[%s5 + $0x4c] sm:$0xf]
  %v8888 = vld [vmem:[%s5 + $0x50] sm:$0xf]
  %v8889 = vld [vmem:[%s5 + $0x54] sm:$0xf]
  %v8890 = vld [vmem:[%s5 + $0x58] sm:$0xf]
  %v8891 = vld [vmem:[%s5 + $0x5c] sm:$0xf]
  %v8892 = vld [vmem:[%s5 + $0x60] sm:$0xf]
  %v8893 = vld [vmem:[%s5 + $0x64] sm:$0xf]
  %v8894 = vld [vmem:[%s5 + $0x68] sm:$0xf]
  %v8895 = vld [vmem:[%s5 + $0x6c] sm:$0xf]
  %v8896 = vld [vmem:[%s5 + $0x70] sm:$0xf]
  %v8897 = vld [vmem:[%s5 + $0x74] sm:$0xf]
  %v8898 = vld [vmem:[%s5 + $0x78] sm:$0xf]
  %v8899 = vld [vmem:[%s5 + $0x7c] sm:$0xf]
  %v8900 = vld [vmem:[%s6] sm:$0x1]
  %v8902 = vlaneseq
  %v8903 = vshrl.u32 %v8902, 7
  %v8904 = vsub.s32 0, %v8903
  %v8905 = vrot.slane %v8900, %v8904
  %v8939 = vunpack.c.l.b16 %v8868
  %v8940 = vunpack.c.l.b16 %v8869
  %v8941 = vunpack.c.l.b16 %v8870
  %v8942 = vunpack.c.l.b16 %v8871
  %v8943 = vunpack.c.l.b16 %v8872
  %v8944 = vunpack.c.l.b16 %v8873
  %v8945 = vunpack.c.l.b16 %v8874
  %v8946 = vunpack.c.l.b16 %v8875
  %v8947 = vunpack.c.l.b16 %v8876
  %v8948 = vunpack.c.l.b16 %v8877
  %v8949 = vunpack.c.l.b16 %v8878
  %v8950 = vunpack.c.l.b16 %v8879
  %v8951 = vunpack.c.l.b16 %v8880
  %v8952 = vunpack.c.l.b16 %v8881
  %v8953 = vunpack.c.l.b16 %v8882
  %v8954 = vunpack.c.l.b16 %v8883
  %v8955 = vunpack.c.l.b16 %v8884
  %v8956 = vunpack.c.l.b16 %v8885
  %v8957 = vunpack.c.l.b16 %v8886
  %v8958 = vunpack.c.l.b16 %v8887
  %v8959 = vunpack.c.l.b16 %v8888
  %v8960 = vunpack.c.l.b16 %v8889
  %v8961 = vunpack.c.l.b16 %v8890
  %v8962 = vunpack.c.l.b16 %v8891
  %v8963 = vunpack.c.l.b16 %v8892
  %v8964 = vunpack.c.l.b16 %v8893
  %v8965 = vunpack.c.l.b16 %v8894
  %v8966 = vunpack.c.l.b16 %v8895
  %v8967 = vunpack.c.l.b16 %v8896
  %v8968 = vunpack.c.l.b16 %v8897
  %v8969 = vunpack.c.l.b16 %v8898
  %v8970 = vunpack.c.l.b16 %v8899
  %v8971 = vpack.c.b16 %v8940, %v8939
  %v8972 = vpack.c.b16 %v8942, %v8941
  %v8973 = vpack.c.b16 %v8944, %v8943
  %v8974 = vpack.c.b16 %v8946, %v8945
  %v8975 = vpack.c.b16 %v8948, %v8947
  %v8976 = vpack.c.b16 %v8950, %v8949
  %v8977 = vpack.c.b16 %v8952, %v8951
  %v8978 = vpack.c.b16 %v8954, %v8953
  %v8979 = vpack.c.b16 %v8956, %v8955
  %v8980 = vpack.c.b16 %v8958, %v8957
  %v8981 = vpack.c.b16 %v8960, %v8959
  %v8982 = vpack.c.b16 %v8962, %v8961
  %v8983 = vpack.c.b16 %v8964, %v8963
  %v8984 = vpack.c.b16 %v8966, %v8965
  %v8985 = vpack.c.b16 %v8968, %v8967
  %v8986 = vpack.c.b16 %v8970, %v8969
  %9003 = vmatprep.subr.bf16.mxu0 0
  %9004 = vmatpush1.bf16.msra.mxu0 %v8978
  %9005 = vmatprep.subr.bf16.mxu0 0
  %9006 = vmatpush1.bf16.msra.mxu0 %v8977
  %9007 = vmatprep.subr.bf16.mxu0 0
  %9008 = vmatpush1.bf16.msra.mxu0 %v8976
  %9009 = vmatprep.subr.bf16.mxu0 0
  %9010 = vmatpush1.bf16.msra.mxu0 %v8975
  %9011 = vmatprep.subr.bf16.mxu0 0
  %9012 = vmatpush1.bf16.msra.mxu0 %v8974
  %9013 = vmatprep.subr.bf16.mxu0 0
  %9014 = vmatpush1.bf16.msra.mxu0 %v8973
  %9015 = vmatprep.subr.bf16.mxu0 0
  %9016 = vmatpush1.bf16.msra.mxu0 %v8972
  %9017 = vmatprep.subr.bf16.mxu0 0
  %9018 = vmatpush1.bf16.msra.mxu0 %v8971
  %9019 = vmatprep.subr.bf16.mxu0 0
  %9020 = vmatpush2.bf16.msra.mxu0 %v8986
  %9021 = vmatprep.subr.bf16.mxu0 0
  %9022 = vmatpush2.bf16.msra.mxu0 %v8985
  %9023 = vmatprep.subr.bf16.mxu0 0
  %9024 = vmatpush2.bf16.msra.mxu0 %v8984
  %9025 = vmatprep.subr.bf16.mxu0 0
  %9026 = vmatpush2.bf16.msra.mxu0 %v8983
  %9027 = vmatprep.subr.bf16.mxu0 0
  %9028 = vmatpush2.bf16.msra.mxu0 %v8982
  %9029 = vmatprep.subr.bf16.mxu0 0
  %9030 = vmatpush2.bf16.msra.mxu0 %v8981
  %9031 = vmatprep.subr.bf16.mxu0 0
  %9032 = vmatpush2.bf16.msra.mxu0 %v8980
  %9033 = vmatprep.subr.bf16.mxu0 0
  %9034 = vmatpush2.bf16.msra.mxu0 %v8979
  %9035 = vmatprep.mubr.bf16.mxu0 %v8867
  %9036 = vmatmul.mubr.bf16.gmra.mxu0 %v8866
  %v9037 = vpop.f32.mrf.mxu0
  %v9038 = vadd.f32 %v8905, %v9037
  %v9039 = vpop.f32.mrf.mxu0
  %v9040 = vpop.f32.mrf.mxu0
  %v9041 = vadd.f32 %v8905, %v9040
  %v9042 = vpop.f32.mrf.mxu0
  %9043 = vdwg.mxu0
  %v9044 = vmax.f32 %v9038, 0.0
  %v9045 = vmax.f32 %v9041, 0.0
  %v9046 = vpack.c.bf16 %v9045, %v9044
  %v9047 = vld [vmem:[%s7] sm:$0xf]
  %v9048 = vld [vmem:[%s7 + $0x4] sm:$0xf]
  %v9049 = vld [vmem:[%s7 + $0x8] sm:$0xf]
  %v9050 = vld [vmem:[%s7 + $0xc] sm:$0xf]
  %v9051 = vld [vmem:[%s7 + $0x10] sm:$0xf]
  %v9052 = vld [vmem:[%s7 + $0x14] sm:$0xf]
  %v9053 = vld [vmem:[%s7 + $0x18] sm:$0xf]
  %v9054 = vld [vmem:[%s7 + $0x1c] sm:$0xf]
  %v9055 = vld [vmem:[%s7 + $0x20] sm:$0xf]
  %v9056 = vld [vmem:[%s7 + $0x24] sm:$0xf]
  %v9057 = vld [vmem:[%s7 + $0x28] sm:$0xf]
  %v9058 = vld [vmem:[%s7 + $0x2c] sm:$0xf]
  %v9059 = vld [vmem:[%s7 + $0x30] sm:$0xf]
  %v9060 = vld [vmem:[%s7 + $0x34] sm:$0xf]
  %v9061 = vld [vmem:[%s7 + $0x38] sm:$0xf]
  %v9062 = vld [vmem:[%s7 + $0x3c] sm:$0xf]
  %v9063 = vld [vmem:[%s8] sm:$0x1]
  %v9065 = vlaneseq
  %v9066 = vshrl.u32 %v9065, 7
  %v9067 = vsub.s32 0, %v9066
  %v9068 = vrot.slane %v9063, %v9067
  %v9086 = vunpack.c.l.b16 %v9047
  %v9087 = vunpack.c.l.b16 %v9048
  %v9088 = vunpack.c.l.b16 %v9049
  %v9089 = vunpack.c.l.b16 %v9050
  %v9090 = vunpack.c.l.b16 %v9051
  %v9091 = vunpack.c.l.b16 %v9052
  %v9092 = vunpack.c.l.b16 %v9053
  %v9093 = vunpack.c.l.b16 %v9054
  %v9094 = vunpack.c.l.b16 %v9055
  %v9095 = vunpack.c.l.b16 %v9056
  %v9096 = vunpack.c.l.b16 %v9057
  %v9097 = vunpack.c.l.b16 %v9058
  %v9098 = vunpack.c.l.b16 %v9059
  %v9099 = vunpack.c.l.b16 %v9060
  %v9100 = vunpack.c.l.b16 %v9061
  %v9101 = vunpack.c.l.b16 %v9062
  %v9102 = vpack.c.b16 %v9087, %v9086
  %v9103 = vpack.c.b16 %v9089, %v9088
  %v9104 = vpack.c.b16 %v9091, %v9090
  %v9105 = vpack.c.b16 %v9093, %v9092
  %v9106 = vpack.c.b16 %v9095, %v9094
  %v9107 = vpack.c.b16 %v9097, %v9096
  %v9108 = vpack.c.b16 %v9099, %v9098
  %v9109 = vpack.c.b16 %v9101, %v9100
  %9118 = vmatprep.subr.bf16.mxu0 0
  %9119 = vmatpush1.bf16.msra.mxu0 %v9109
  %9120 = vmatprep.subr.bf16.mxu0 0
  %9121 = vmatpush1.bf16.msra.mxu0 %v9108
  %9122 = vmatprep.subr.bf16.mxu0 0
  %9123 = vmatpush1.bf16.msra.mxu0 %v9107
  %9124 = vmatprep.subr.bf16.mxu0 0
  %9125 = vmatpush1.bf16.msra.mxu0 %v9106
  %9126 = vmatprep.subr.bf16.mxu0 0
  %9127 = vmatpush1.bf16.msra.mxu0 %v9105
  %9128 = vmatprep.subr.bf16.mxu0 0
  %9129 = vmatpush1.bf16.msra.mxu0 %v9104
  %9130 = vmatprep.subr.bf16.mxu0 0
  %9131 = vmatpush1.bf16.msra.mxu0 %v9103
  %9132 = vmatprep.subr.bf16.mxu0 0
  %9133 = vmatpush1.bf16.msra.mxu0 %v9102
  %9134 = vmatprep.subr.bf16.mxu0 0
  %9135 = vmatpush2.bf16.msra.mxu0 0
  %9136 = vmatprep.subr.bf16.mxu0 0
  %9137 = vmatpush2.bf16.msra.mxu0 0
  %9138 = vmatprep.subr.bf16.mxu0 0
  %9139 = vmatpush2.bf16.msra.mxu0 0
  %9140 = vmatprep.subr.bf16.mxu0 0
  %9141 = vmatpush2.bf16.msra.mxu0 0
  %9142 = vmatprep.subr.bf16.mxu0 0
  %9143 = vmatpush2.bf16.msra.mxu0 0
  %9144 = vmatprep.subr.bf16.mxu0 0
  %9145 = vmatpush2.bf16.msra.mxu0 0
  %9146 = vmatprep.subr.bf16.mxu0 0
  %9147 = vmatpush2.bf16.msra.mxu0 0
  %9148 = vmatprep.subr.bf16.mxu0 0
  %9149 = vmatpush2.bf16.msra.mxu0 0
  %9150 = vmatprep.mubr.bf16.mxu0 0
  %9151 = vmatmul.mubr.bf16.gmra.mxu0 %v9046
  %v9152 = vpop.f32.mrf.mxu0
  %v9153 = vadd.f32 %v9068, %v9152
  %v9154 = vpop.f32.mrf.mxu0
  %v9155 = vpop.f32.mrf.mxu0
  %v9156 = vadd.f32 %v9068, %v9155
  %v9157 = vpop.f32.mrf.mxu0
  %9158 = vdwg.mxu0
  %9159 = vst [vmem:[%s9] sm:$0xff] %v9153
  %9160 = vst [vmem:[%s9 + $0x8] sm:$0xff] %v9156
  // Predicated region
  $region38: #{a_call__.3} parent=0 // pred_check
    _
  $region39: #{a_call__.3} parent=0 // pred_check_branch
    %9162 = sbr.rel (0) target = $region41
  $region40: #{a_call__.3} parent=0 // pred_region
    _
  $region41: #{a_call__.3} parent=0 // pred_fallthru
    _
  // Predicated region
  $region42: #{a_call__.3} parent=0 // pred_check
    _
  $region43: #{a_call__.3} parent=0 // pred_check_branch
    %9164 = sbr.rel (0) target = $region45
  $region44: #{a_call__.3} parent=0 // pred_region
    _
  $region45: #{a_call__.3} parent=0 // pred_fallthru
    _

</llo_original>
